<compile_context>
chip_gen: v6e
topology: v6e:2x2x1
jax: 0.10.0
libtpu: 0.0.40
codegen_flags: <defaults>
</compile_context>

<pallas_src>
import functools

import jax
import jax.numpy as jnp
from jax.experimental import pallas as pl
from jax.experimental.pallas import tpu as pltpu


def _round_up(n, m):
    return (n + m - 1) // m * m


# ------------------------------ fused kernel --------------------------------

def _kan_fused_kernel(x_ref, *refs, num_layers, spline_order, knots, inv_kh,
                      compute_dtype):
    """Fused multi-layer KANLinear forward.

    x_ref      : (rows, InPad0)  f32, zero-padded input activations
    refs[:L]   : packed weight per layer, ((S+1)*InPad_l, OutPad_l) in
                 `compute_dtype`:
                   rows [0, InPad)               -> base_weight.T   (SiLU path)
                   rows [InPad*(1+s), InPad*(2+s)) -> scaled_spline_weight[:, :, s].T
    refs[L]    : (rows, OutPad_last) f32 output
    knots      : tuple of Python floats (uniform grid, shared by all features)
    inv_kh     : tuple, inv_kh[k-1] = 1/(k*h)  (uniform grid => exact denom)
    """
    w_refs = refs[:num_layers]
    out_ref = refs[num_layers]

    x = x_ref[...]                                        # (rows, InPad) f32
    for l in range(num_layers):
        # ---- B-spline bases: knot axis unrolled, features stay on lanes ----
        bases = [
            jnp.logical_and(x >= knots[j], x < knots[j + 1]).astype(x.dtype)
            for j in range(len(knots) - 1)
        ]
        for k in range(1, spline_order + 1):
            inv = inv_kh[k - 1]                           # scalar constant
            bases = [
                (x - knots[j]) * inv * bases[j]
                + (knots[j + k + 1] - x) * inv * bases[j + 1]
                for j in range(len(bases) - 1)
            ]
        # len(bases) == grid_size + spline_order == S, each (rows, InPad)

        # ---- base (SiLU) + spline paths as ONE lane-dense matmul -----------
        silu = x * jax.nn.sigmoid(x)
        feats = jnp.concatenate([silu] + bases, axis=-1)  # (rows, (S+1)*InPad)
        x = jnp.dot(feats.astype(compute_dtype), w_refs[l][...],
                    preferred_element_type=jnp.float32)   # (rows, OutPad) f32

    out_ref[...] = x.astype(out_ref.dtype)


# ------------------------- one-time parameter prep --------------------------

def prepare_kan_params(layer_params, *, grid_size, spline_order,
                       grid_range=(-1.0, 1.0), compute_dtype=jnp.bfloat16):
    """Pack KAN weights for the fused kernel (hoisted out of the hot path):
    apply spline_scaler, transpose, zero-pad every feature dim to a multiple
    of 128, and stack [base | knot 0 | ... | knot S-1] along the contraction
    axis so each layer is a single lane-dense matmul."""
    in_features = layer_params[0]["base_weight"].shape[1]
    in_pad0 = _round_up(in_features, 128)

    weights = []
    ip = in_pad0
    out_f = in_features
    for p in layer_params:
        out_f, in_f, S = p["spline_weight"].shape
        assert _round_up(in_f, 128) == ip
        op = _round_up(out_f, 128)

        scaled = p["spline_weight"] * p["spline_scaler"][:, :, None]  # (O,I,S)

        w = jnp.zeros(((S + 1) * ip, op), jnp.float32)
        w = w.at[:in_f, :out_f].set(p["base_weight"].T)               # base
        sw = jnp.zeros((S, ip, op), jnp.float32)
        sw = sw.at[:, :in_f, :out_f].set(jnp.transpose(scaled, (2, 1, 0)))
        w = w.at[ip:, :].set(sw.reshape(S * ip, op))                  # spline
        weights.append(w.astype(compute_dtype))
        ip = op

    h = (grid_range[1] - grid_range[0]) / grid_size
    # Compute knots exactly as the reference grid does (f32), then bake them
    # into the kernel as scalar constants.
    knots_arr = (jnp.arange(-spline_order, grid_size + spline_order + 1,
                            dtype=jnp.float32) * jnp.float32(h)
                 + jnp.float32(grid_range[0]))
    cfg = dict(
        in_features=in_features,
        out_features=out_f,
        in_pad=in_pad0,
        out_pad=ip,
        spline_order=spline_order,
        knots=tuple(float(v) for v in knots_arr),
        inv_kh=tuple(1.0 / (k * h) for k in range(1, spline_order + 1)),
        compute_dtype=compute_dtype,
    )
    return tuple(weights), cfg


# --------------------------------- forward ----------------------------------

def kan_forward(x, weights, *, cfg, block_rows=512):
    """Full KAN forward: x (..., in_features) -> (..., out_features).
    One pallas_call; batch rows tiled on a parallel grid."""
    orig_shape = x.shape
    in_f = cfg["in_features"]
    assert orig_shape[-1] == in_f, orig_shape
    x2 = x.reshape(-1, in_f).astype(jnp.float32)
    rows = x2.shape[0]

    block_b = min(block_rows, _round_up(rows, 8))
    rows_pad = _round_up(rows, block_b)
    in_pad, out_pad = cfg["in_pad"], cfg["out_pad"]

    # Zero-pad rows and the feature/lane dim (padded features have zero
    # weight rows, so they contribute nothing).
    x_pad = jnp.zeros((rows_pad, in_pad), jnp.float32).at[:rows, :in_f].set(x2)

    num_layers = len(weights)
    kernel = functools.partial(
        _kan_fused_kernel,
        num_layers=num_layers,
        spline_order=cfg["spline_order"],
        knots=cfg["knots"],
        inv_kh=cfg["inv_kh"],
        compute_dtype=cfg["compute_dtype"],
    )

    in_specs = [pl.BlockSpec((block_b, in_pad), lambda i: (i, 0))]
    for w in weights:
        # Constant block index -> weights stay resident across grid steps.
        in_specs.append(pl.BlockSpec(w.shape, lambda i: (0, 0)))
    out_specs = pl.BlockSpec((block_b, out_pad), lambda i: (i, 0))

    out_padded = pl.pallas_call(
        kernel,
        out_shape=jax.ShapeDtypeStruct((rows_pad, out_pad), jnp.float32),
        grid_spec=pltpu.PrefetchScalarGridSpec(
            num_scalar_prefetch=0,
            grid=(rows_pad // block_b,),
            in_specs=in_specs,
            out_specs=out_specs,
        ),
        compiler_params=pltpu.CompilerParams(
            dimension_semantics=("parallel",)),   # shard rows across TCs (v7x)
    )(x_pad, *weights)

    out = out_padded[:rows, :cfg["out_features"]]
    return out.reshape(*orig_shape[:-1], cfg["out_features"])


# ----------------------------- parameter setup ------------------------------

def make_grid(in_features, grid_size, spline_order, grid_range=(-1.0, 1.0)):
    h = (grid_range[1] - grid_range[0]) / grid_size
    g = (jnp.arange(-spline_order, grid_size + spline_order + 1,
                    dtype=jnp.float32) * h + grid_range[0])
    return jnp.tile(g[None, :], (in_features, 1))            # (In, G+2K+1)


def init_kan_layer(key, in_features, out_features, grid_size, spline_order):
    """Deterministic synthetic init (shapes match the PyTorch module)."""
    k1, k2, k3 = jax.random.split(key, 3)
    S = grid_size + spline_order
    bound = 1.0 / jnp.sqrt(jnp.float32(in_features))
    base_weight = jax.random.uniform(k1, (out_features, in_features),
                                     jnp.float32, -bound, bound)
    spline_weight = jax.random.uniform(k2, (out_features, in_features, S),
                                       jnp.float32, -0.1, 0.1)
    spline_scaler = jax.random.uniform(k3, (out_features, in_features),
                                       jnp.float32, -bound, bound)
    grid = make_grid(in_features, grid_size, spline_order)
    return dict(base_weight=base_weight, spline_weight=spline_weight,
                spline_scaler=spline_scaler, grid=grid)


# ----------------------------- pure-JAX reference ---------------------------

def _ref_b_splines(x, grid, spline_order):
    xe = x[:, :, None]
    bases = jnp.logical_and(xe >= grid[None, :, :-1],
                            xe < grid[None, :, 1:]).astype(x.dtype)
    for k in range(1, spline_order + 1):
        bases = ((xe - grid[None, :, :-(k + 1)])
                 / (grid[None, :, k:-1] - grid[None, :, :-(k + 1)])
                 * bases[:, :, :-1]
                 + (grid[None, :, k + 1:] - xe)
                 / (grid[None, :, k + 1:] - grid[None, :, 1:-k])
                 * bases[:, :, 1:])
    return bases


def ref_kan_forward(x, layer_params, *, spline_order):
    orig_shape = x.shape
    x2 = x.reshape(-1, orig_shape[-1])
    for p in layer_params:
        base_out = (x2 * jax.nn.sigmoid(x2)) @ p["base_weight"].T
        bases = _ref_b_splines(x2, p["grid"], spline_order)
        scaled = p["spline_weight"] * p["spline_scaler"][:, :, None]
        out_f = scaled.shape[0]
        spline_out = bases.reshape(x2.shape[0], -1) @ scaled.reshape(out_f, -1).T
        x2 = base_out + spline_out
    return x2.reshape(*orig_shape[:-1], x2.shape[-1])


# ---------------------------------- main -------------------------------------

if __name__ == "__main__":
    grid_size = 5
    spline_order = 3
    layers_hidden = [8, 32, 16]           # KAN([8, 32, 16])

    key = jax.random.PRNGKey(0)
    k_x, *k_layers = jax.random.split(key, 1 + len(layers_hidden) - 1)

    # More rows per call than the bare minimum so launch/DMA cost amortizes:
    # (batch=16, seq=8, in_features=8) -> 128 rows through the kernel.
    x = jax.random.normal(k_x, (16, 8, layers_hidden[0]), jnp.float32) * 0.5

    layer_params = [
        init_kan_layer(k, i, o, grid_size, spline_order)
        for k, i, o in zip(k_layers, layers_hidden[:-1], layers_hidden[1:])
    ]

    ref = ref_kan_forward(x, layer_params, spline_order=spline_order)

    # --- f32 MXU path: exact structural check vs the pure-JAX reference -----
    w32, cfg32 = prepare_kan_params(layer_params, grid_size=grid_size,
                                    spline_order=spline_order,
                                    compute_dtype=jnp.float32)
    fwd32 = jax.jit(functools.partial(kan_forward, cfg=cfg32))
    out32 = jax.block_until_ready(fwd32(x, w32))
    assert out32.shape == (16, 8, layers_hidden[-1]), out32.shape
    assert jnp.allclose(out32, ref, atol=1e-4, rtol=1e-4), "f32 mismatch"

    # --- bf16-operand MXU path (v6e/v7x): f32 accumulation, looser tol ------
    wbf, cfgbf = prepare_kan_params(layer_params, grid_size=grid_size,
                                    spline_order=spline_order,
                                    compute_dtype=jnp.bfloat16)
    fwdbf = jax.jit(functools.partial(kan_forward, cfg=cfgbf))
    outbf = jax.block_until_ready(fwdbf(x, wbf))
    assert outbf.shape == (16, 8, layers_hidden[-1]), outbf.shape
    assert jnp.allclose(outbf, ref, atol=5e-2, rtol=5e-2), "bf16 mismatch"

    print("KERNEL_OK")
</pallas_src>

<mosaic_0001>
module attributes {stable_mosaic.version = 11 : i64} {
  func.func @_kan_fused_kernel(%arg0: i32, %arg1: memref<128x128xf32, #tpu.memory_space<vmem>>, %arg2: memref<1152x128xf32, #tpu.memory_space<vmem>>, %arg3: memref<1152x128xf32, #tpu.memory_space<vmem>>, %arg4: memref<128x128xf32, #tpu.memory_space<vmem>>) attributes {dimension_semantics = [#tpu.dimension_semantics<parallel>], iteration_bounds = array<i64: 1>, scalar_prefetch = 0 : i64, scratch_operands = 0 : i64, tpu.core_type = #tpu.core_type<tc>, window_params = [{transform_indices = @transform_0, window_bounds = array<i64: 128, 128>}, {pipeline_mode = #tpu.pipeline_mode<synchronous>, transform_indices = @transform_1, window_bounds = array<i64: 1152, 128>}, {pipeline_mode = #tpu.pipeline_mode<synchronous>, transform_indices = @transform_2, window_bounds = array<i64: 1152, 128>}, {transform_indices = @transform_3, window_bounds = array<i64: 128, 128>}]} {
    %c0 = arith.constant 0 : index
    %c0_0 = arith.constant 0 : index
    %0 = vector.load %arg1[%c0, %c0_0] : memref<128x128xf32, #tpu.memory_space<vmem>>, vector<128x128xf32>
    %cst = arith.constant -2.200000e+00 : f32
    %1 = vector.broadcast %cst : f32 to vector<128x128xf32>
    %2 = arith.cmpf oge, %0, %1 : vector<128x128xf32>
    %cst_1 = arith.constant -1.800000e+00 : f32
    %3 = vector.broadcast %cst_1 : f32 to vector<128x128xf32>
    %4 = arith.cmpf olt, %0, %3 : vector<128x128xf32>
    %5 = arith.andi %2, %4 : vector<128x128xi1>
    %6 = arith.extui %5 : vector<128x128xi1> to vector<128x128xi32>
    %7 = arith.sitofp %6 : vector<128x128xi32> to vector<128x128xf32>
    %cst_2 = arith.constant -1.800000e+00 : f32
    %8 = vector.broadcast %cst_2 : f32 to vector<128x128xf32>
    %9 = arith.cmpf oge, %0, %8 : vector<128x128xf32>
    %cst_3 = arith.constant -1.400000e+00 : f32
    %10 = vector.broadcast %cst_3 : f32 to vector<128x128xf32>
    %11 = arith.cmpf olt, %0, %10 : vector<128x128xf32>
    %12 = arith.andi %9, %11 : vector<128x128xi1>
    %13 = arith.extui %12 : vector<128x128xi1> to vector<128x128xi32>
    %14 = arith.sitofp %13 : vector<128x128xi32> to vector<128x128xf32>
    %cst_4 = arith.constant -1.400000e+00 : f32
    %15 = vector.broadcast %cst_4 : f32 to vector<128x128xf32>
    %16 = arith.cmpf oge, %0, %15 : vector<128x128xf32>
    %cst_5 = arith.constant -1.000000e+00 : f32
    %17 = vector.broadcast %cst_5 : f32 to vector<128x128xf32>
    %18 = arith.cmpf olt, %0, %17 : vector<128x128xf32>
    %19 = arith.andi %16, %18 : vector<128x128xi1>
    %20 = arith.extui %19 : vector<128x128xi1> to vector<128x128xi32>
    %21 = arith.sitofp %20 : vector<128x128xi32> to vector<128x128xf32>
    %cst_6 = arith.constant -1.000000e+00 : f32
    %22 = vector.broadcast %cst_6 : f32 to vector<128x128xf32>
    %23 = arith.cmpf oge, %0, %22 : vector<128x128xf32>
    %cst_7 = arith.constant -6.000000e-01 : f32
    %24 = vector.broadcast %cst_7 : f32 to vector<128x128xf32>
    %25 = arith.cmpf olt, %0, %24 : vector<128x128xf32>
    %26 = arith.andi %23, %25 : vector<128x128xi1>
    %27 = arith.extui %26 : vector<128x128xi1> to vector<128x128xi32>
    %28 = arith.sitofp %27 : vector<128x128xi32> to vector<128x128xf32>
    %cst_8 = arith.constant -6.000000e-01 : f32
    %29 = vector.broadcast %cst_8 : f32 to vector<128x128xf32>
    %30 = arith.cmpf oge, %0, %29 : vector<128x128xf32>
    %cst_9 = arith.constant -0.199999988 : f32
    %31 = vector.broadcast %cst_9 : f32 to vector<128x128xf32>
    %32 = arith.cmpf olt, %0, %31 : vector<128x128xf32>
    %33 = arith.andi %30, %32 : vector<128x128xi1>
    %34 = arith.extui %33 : vector<128x128xi1> to vector<128x128xi32>
    %35 = arith.sitofp %34 : vector<128x128xi32> to vector<128x128xf32>
    %cst_10 = arith.constant -0.199999988 : f32
    %36 = vector.broadcast %cst_10 : f32 to vector<128x128xf32>
    %37 = arith.cmpf oge, %0, %36 : vector<128x128xf32>
    %cst_11 = arith.constant 0.200000048 : f32
    %38 = vector.broadcast %cst_11 : f32 to vector<128x128xf32>
    %39 = arith.cmpf olt, %0, %38 : vector<128x128xf32>
    %40 = arith.andi %37, %39 : vector<128x128xi1>
    %41 = arith.extui %40 : vector<128x128xi1> to vector<128x128xi32>
    %42 = arith.sitofp %41 : vector<128x128xi32> to vector<128x128xf32>
    %cst_12 = arith.constant 0.200000048 : f32
    %43 = vector.broadcast %cst_12 : f32 to vector<128x128xf32>
    %44 = arith.cmpf oge, %0, %43 : vector<128x128xf32>
    %cst_13 = arith.constant 6.000000e-01 : f32
    %45 = vector.broadcast %cst_13 : f32 to vector<128x128xf32>
    %46 = arith.cmpf olt, %0, %45 : vector<128x128xf32>
    %47 = arith.andi %44, %46 : vector<128x128xi1>
    %48 = arith.extui %47 : vector<128x128xi1> to vector<128x128xi32>
    %49 = arith.sitofp %48 : vector<128x128xi32> to vector<128x128xf32>
    %cst_14 = arith.constant 6.000000e-01 : f32
    %50 = vector.broadcast %cst_14 : f32 to vector<128x128xf32>
    %51 = arith.cmpf oge, %0, %50 : vector<128x128xf32>
    %cst_15 = arith.constant 1.000000e+00 : f32
    %52 = vector.broadcast %cst_15 : f32 to vector<128x128xf32>
    %53 = arith.cmpf olt, %0, %52 : vector<128x128xf32>
    %54 = arith.andi %51, %53 : vector<128x128xi1>
    %55 = arith.extui %54 : vector<128x128xi1> to vector<128x128xi32>
    %56 = arith.sitofp %55 : vector<128x128xi32> to vector<128x128xf32>
    %cst_16 = arith.constant 1.000000e+00 : f32
    %57 = vector.broadcast %cst_16 : f32 to vector<128x128xf32>
    %58 = arith.cmpf oge, %0, %57 : vector<128x128xf32>
    %cst_17 = arith.constant 1.4000001 : f32
    %59 = vector.broadcast %cst_17 : f32 to vector<128x128xf32>
    %60 = arith.cmpf olt, %0, %59 : vector<128x128xf32>
    %61 = arith.andi %58, %60 : vector<128x128xi1>
    %62 = arith.extui %61 : vector<128x128xi1> to vector<128x128xi32>
    %63 = arith.sitofp %62 : vector<128x128xi32> to vector<128x128xf32>
    %cst_18 = arith.constant 1.4000001 : f32
    %64 = vector.broadcast %cst_18 : f32 to vector<128x128xf32>
    %65 = arith.cmpf oge, %0, %64 : vector<128x128xf32>
    %cst_19 = arith.constant 1.800000e+00 : f32
    %66 = vector.broadcast %cst_19 : f32 to vector<128x128xf32>
    %67 = arith.cmpf olt, %0, %66 : vector<128x128xf32>
    %68 = arith.andi %65, %67 : vector<128x128xi1>
    %69 = arith.extui %68 : vector<128x128xi1> to vector<128x128xi32>
    %70 = arith.sitofp %69 : vector<128x128xi32> to vector<128x128xf32>
    %cst_20 = arith.constant 1.800000e+00 : f32
    %71 = vector.broadcast %cst_20 : f32 to vector<128x128xf32>
    %72 = arith.cmpf oge, %0, %71 : vector<128x128xf32>
    %cst_21 = arith.constant 2.200000e+00 : f32
    %73 = vector.broadcast %cst_21 : f32 to vector<128x128xf32>
    %74 = arith.cmpf olt, %0, %73 : vector<128x128xf32>
    %75 = arith.andi %72, %74 : vector<128x128xi1>
    %76 = arith.extui %75 : vector<128x128xi1> to vector<128x128xi32>
    %77 = arith.sitofp %76 : vector<128x128xi32> to vector<128x128xf32>
    %cst_22 = arith.constant -2.200000e+00 : f32
    %78 = vector.broadcast %cst_22 : f32 to vector<128x128xf32>
    %79 = arith.subf %0, %78 : vector<128x128xf32>
    %cst_23 = arith.constant 2.500000e+00 : f32
    %80 = vector.broadcast %cst_23 : f32 to vector<128x128xf32>
    %81 = arith.mulf %79, %80 : vector<128x128xf32>
    %82 = arith.mulf %81, %7 : vector<128x128xf32>
    %cst_24 = arith.constant -1.400000e+00 : f32
    %83 = vector.broadcast %cst_24 : f32 to vector<128x128xf32>
    %84 = arith.subf %83, %0 : vector<128x128xf32>
    %cst_25 = arith.constant 2.500000e+00 : f32
    %85 = vector.broadcast %cst_25 : f32 to vector<128x128xf32>
    %86 = arith.mulf %84, %85 : vector<128x128xf32>
    %87 = arith.mulf %86, %14 : vector<128x128xf32>
    %88 = arith.addf %82, %87 : vector<128x128xf32>
    %cst_26 = arith.constant -1.800000e+00 : f32
    %89 = vector.broadcast %cst_26 : f32 to vector<128x128xf32>
    %90 = arith.subf %0, %89 : vector<128x128xf32>
    %cst_27 = arith.constant 2.500000e+00 : f32
    %91 = vector.broadcast %cst_27 : f32 to vector<128x128xf32>
    %92 = arith.mulf %90, %91 : vector<128x128xf32>
    %93 = arith.mulf %92, %14 : vector<128x128xf32>
    %cst_28 = arith.constant -1.000000e+00 : f32
    %94 = vector.broadcast %cst_28 : f32 to vector<128x128xf32>
    %95 = arith.subf %94, %0 : vector<128x128xf32>
    %cst_29 = arith.constant 2.500000e+00 : f32
    %96 = vector.broadcast %cst_29 : f32 to vector<128x128xf32>
    %97 = arith.mulf %95, %96 : vector<128x128xf32>
    %98 = arith.mulf %97, %21 : vector<128x128xf32>
    %99 = arith.addf %93, %98 : vector<128x128xf32>
    %cst_30 = arith.constant -1.400000e+00 : f32
    %100 = vector.broadcast %cst_30 : f32 to vector<128x128xf32>
    %101 = arith.subf %0, %100 : vector<128x128xf32>
    %cst_31 = arith.constant 2.500000e+00 : f32
    %102 = vector.broadcast %cst_31 : f32 to vector<128x128xf32>
    %103 = arith.mulf %101, %102 : vector<128x128xf32>
    %104 = arith.mulf %103, %21 : vector<128x128xf32>
    %cst_32 = arith.constant -6.000000e-01 : f32
    %105 = vector.broadcast %cst_32 : f32 to vector<128x128xf32>
    %106 = arith.subf %105, %0 : vector<128x128xf32>
    %cst_33 = arith.constant 2.500000e+00 : f32
    %107 = vector.broadcast %cst_33 : f32 to vector<128x128xf32>
    %108 = arith.mulf %106, %107 : vector<128x128xf32>
    %109 = arith.mulf %108, %28 : vector<128x128xf32>
    %110 = arith.addf %104, %109 : vector<128x128xf32>
    %cst_34 = arith.constant -1.000000e+00 : f32
    %111 = vector.broadcast %cst_34 : f32 to vector<128x128xf32>
    %112 = arith.subf %0, %111 : vector<128x128xf32>
    %cst_35 = arith.constant 2.500000e+00 : f32
    %113 = vector.broadcast %cst_35 : f32 to vector<128x128xf32>
    %114 = arith.mulf %112, %113 : vector<128x128xf32>
    %115 = arith.mulf %114, %28 : vector<128x128xf32>
    %cst_36 = arith.constant -0.199999988 : f32
    %116 = vector.broadcast %cst_36 : f32 to vector<128x128xf32>
    %117 = arith.subf %116, %0 : vector<128x128xf32>
    %cst_37 = arith.constant 2.500000e+00 : f32
    %118 = vector.broadcast %cst_37 : f32 to vector<128x128xf32>
    %119 = arith.mulf %117, %118 : vector<128x128xf32>
    %120 = arith.mulf %119, %35 : vector<128x128xf32>
    %121 = arith.addf %115, %120 : vector<128x128xf32>
    %cst_38 = arith.constant -6.000000e-01 : f32
    %122 = vector.broadcast %cst_38 : f32 to vector<128x128xf32>
    %123 = arith.subf %0, %122 : vector<128x128xf32>
    %cst_39 = arith.constant 2.500000e+00 : f32
    %124 = vector.broadcast %cst_39 : f32 to vector<128x128xf32>
    %125 = arith.mulf %123, %124 : vector<128x128xf32>
    %126 = arith.mulf %125, %35 : vector<128x128xf32>
    %cst_40 = arith.constant 0.200000048 : f32
    %127 = vector.broadcast %cst_40 : f32 to vector<128x128xf32>
    %128 = arith.subf %127, %0 : vector<128x128xf32>
    %cst_41 = arith.constant 2.500000e+00 : f32
    %129 = vector.broadcast %cst_41 : f32 to vector<128x128xf32>
    %130 = arith.mulf %128, %129 : vector<128x128xf32>
    %131 = arith.mulf %130, %42 : vector<128x128xf32>
    %132 = arith.addf %126, %131 : vector<128x128xf32>
    %cst_42 = arith.constant -0.199999988 : f32
    %133 = vector.broadcast %cst_42 : f32 to vector<128x128xf32>
    %134 = arith.subf %0, %133 : vector<128x128xf32>
    %cst_43 = arith.constant 2.500000e+00 : f32
    %135 = vector.broadcast %cst_43 : f32 to vector<128x128xf32>
    %136 = arith.mulf %134, %135 : vector<128x128xf32>
    %137 = arith.mulf %136, %42 : vector<128x128xf32>
    %cst_44 = arith.constant 6.000000e-01 : f32
    %138 = vector.broadcast %cst_44 : f32 to vector<128x128xf32>
    %139 = arith.subf %138, %0 : vector<128x128xf32>
    %cst_45 = arith.constant 2.500000e+00 : f32
    %140 = vector.broadcast %cst_45 : f32 to vector<128x128xf32>
    %141 = arith.mulf %139, %140 : vector<128x128xf32>
    %142 = arith.mulf %141, %49 : vector<128x128xf32>
    %143 = arith.addf %137, %142 : vector<128x128xf32>
    %cst_46 = arith.constant 0.200000048 : f32
    %144 = vector.broadcast %cst_46 : f32 to vector<128x128xf32>
    %145 = arith.subf %0, %144 : vector<128x128xf32>
    %cst_47 = arith.constant 2.500000e+00 : f32
    %146 = vector.broadcast %cst_47 : f32 to vector<128x128xf32>
    %147 = arith.mulf %145, %146 : vector<128x128xf32>
    %148 = arith.mulf %147, %49 : vector<128x128xf32>
    %cst_48 = arith.constant 1.000000e+00 : f32
    %149 = vector.broadcast %cst_48 : f32 to vector<128x128xf32>
    %150 = arith.subf %149, %0 : vector<128x128xf32>
    %cst_49 = arith.constant 2.500000e+00 : f32
    %151 = vector.broadcast %cst_49 : f32 to vector<128x128xf32>
    %152 = arith.mulf %150, %151 : vector<128x128xf32>
    %153 = arith.mulf %152, %56 : vector<128x128xf32>
    %154 = arith.addf %148, %153 : vector<128x128xf32>
    %cst_50 = arith.constant 6.000000e-01 : f32
    %155 = vector.broadcast %cst_50 : f32 to vector<128x128xf32>
    %156 = arith.subf %0, %155 : vector<128x128xf32>
    %cst_51 = arith.constant 2.500000e+00 : f32
    %157 = vector.broadcast %cst_51 : f32 to vector<128x128xf32>
    %158 = arith.mulf %156, %157 : vector<128x128xf32>
    %159 = arith.mulf %158, %56 : vector<128x128xf32>
    %cst_52 = arith.constant 1.4000001 : f32
    %160 = vector.broadcast %cst_52 : f32 to vector<128x128xf32>
    %161 = arith.subf %160, %0 : vector<128x128xf32>
    %cst_53 = arith.constant 2.500000e+00 : f32
    %162 = vector.broadcast %cst_53 : f32 to vector<128x128xf32>
    %163 = arith.mulf %161, %162 : vector<128x128xf32>
    %164 = arith.mulf %163, %63 : vector<128x128xf32>
    %165 = arith.addf %159, %164 : vector<128x128xf32>
    %cst_54 = arith.constant 1.000000e+00 : f32
    %166 = vector.broadcast %cst_54 : f32 to vector<128x128xf32>
    %167 = arith.subf %0, %166 : vector<128x128xf32>
    %cst_55 = arith.constant 2.500000e+00 : f32
    %168 = vector.broadcast %cst_55 : f32 to vector<128x128xf32>
    %169 = arith.mulf %167, %168 : vector<128x128xf32>
    %170 = arith.mulf %169, %63 : vector<128x128xf32>
    %cst_56 = arith.constant 1.800000e+00 : f32
    %171 = vector.broadcast %cst_56 : f32 to vector<128x128xf32>
    %172 = arith.subf %171, %0 : vector<128x128xf32>
    %cst_57 = arith.constant 2.500000e+00 : f32
    %173 = vector.broadcast %cst_57 : f32 to vector<128x128xf32>
    %174 = arith.mulf %172, %173 : vector<128x128xf32>
    %175 = arith.mulf %174, %70 : vector<128x128xf32>
    %176 = arith.addf %170, %175 : vector<128x128xf32>
    %cst_58 = arith.constant 1.4000001 : f32
    %177 = vector.broadcast %cst_58 : f32 to vector<128x128xf32>
    %178 = arith.subf %0, %177 : vector<128x128xf32>
    %cst_59 = arith.constant 2.500000e+00 : f32
    %179 = vector.broadcast %cst_59 : f32 to vector<128x128xf32>
    %180 = arith.mulf %178, %179 : vector<128x128xf32>
    %181 = arith.mulf %180, %70 : vector<128x128xf32>
    %cst_60 = arith.constant 2.200000e+00 : f32
    %182 = vector.broadcast %cst_60 : f32 to vector<128x128xf32>
    %183 = arith.subf %182, %0 : vector<128x128xf32>
    %cst_61 = arith.constant 2.500000e+00 : f32
    %184 = vector.broadcast %cst_61 : f32 to vector<128x128xf32>
    %185 = arith.mulf %183, %184 : vector<128x128xf32>
    %186 = arith.mulf %185, %77 : vector<128x128xf32>
    %187 = arith.addf %181, %186 : vector<128x128xf32>
    %cst_62 = arith.constant -2.200000e+00 : f32
    %188 = vector.broadcast %cst_62 : f32 to vector<128x128xf32>
    %189 = arith.subf %0, %188 : vector<128x128xf32>
    %cst_63 = arith.constant 1.250000e+00 : f32
    %190 = vector.broadcast %cst_63 : f32 to vector<128x128xf32>
    %191 = arith.mulf %189, %190 : vector<128x128xf32>
    %192 = arith.mulf %191, %88 : vector<128x128xf32>
    %cst_64 = arith.constant -1.000000e+00 : f32
    %193 = vector.broadcast %cst_64 : f32 to vector<128x128xf32>
    %194 = arith.subf %193, %0 : vector<128x128xf32>
    %cst_65 = arith.constant 1.250000e+00 : f32
    %195 = vector.broadcast %cst_65 : f32 to vector<128x128xf32>
    %196 = arith.mulf %194, %195 : vector<128x128xf32>
    %197 = arith.mulf %196, %99 : vector<128x128xf32>
    %198 = arith.addf %192, %197 : vector<128x128xf32>
    %cst_66 = arith.constant -1.800000e+00 : f32
    %199 = vector.broadcast %cst_66 : f32 to vector<128x128xf32>
    %200 = arith.subf %0, %199 : vector<128x128xf32>
    %cst_67 = arith.constant 1.250000e+00 : f32
    %201 = vector.broadcast %cst_67 : f32 to vector<128x128xf32>
    %202 = arith.mulf %200, %201 : vector<128x128xf32>
    %203 = arith.mulf %202, %99 : vector<128x128xf32>
    %cst_68 = arith.constant -6.000000e-01 : f32
    %204 = vector.broadcast %cst_68 : f32 to vector<128x128xf32>
    %205 = arith.subf %204, %0 : vector<128x128xf32>
    %cst_69 = arith.constant 1.250000e+00 : f32
    %206 = vector.broadcast %cst_69 : f32 to vector<128x128xf32>
    %207 = arith.mulf %205, %206 : vector<128x128xf32>
    %208 = arith.mulf %207, %110 : vector<128x128xf32>
    %209 = arith.addf %203, %208 : vector<128x128xf32>
    %cst_70 = arith.constant -1.400000e+00 : f32
    %210 = vector.broadcast %cst_70 : f32 to vector<128x128xf32>
    %211 = arith.subf %0, %210 : vector<128x128xf32>
    %cst_71 = arith.constant 1.250000e+00 : f32
    %212 = vector.broadcast %cst_71 : f32 to vector<128x128xf32>
    %213 = arith.mulf %211, %212 : vector<128x128xf32>
    %214 = arith.mulf %213, %110 : vector<128x128xf32>
    %cst_72 = arith.constant -0.199999988 : f32
    %215 = vector.broadcast %cst_72 : f32 to vector<128x128xf32>
    %216 = arith.subf %215, %0 : vector<128x128xf32>
    %cst_73 = arith.constant 1.250000e+00 : f32
    %217 = vector.broadcast %cst_73 : f32 to vector<128x128xf32>
    %218 = arith.mulf %216, %217 : vector<128x128xf32>
    %219 = arith.mulf %218, %121 : vector<128x128xf32>
    %220 = arith.addf %214, %219 : vector<128x128xf32>
    %cst_74 = arith.constant -1.000000e+00 : f32
    %221 = vector.broadcast %cst_74 : f32 to vector<128x128xf32>
    %222 = arith.subf %0, %221 : vector<128x128xf32>
    %cst_75 = arith.constant 1.250000e+00 : f32
    %223 = vector.broadcast %cst_75 : f32 to vector<128x128xf32>
    %224 = arith.mulf %222, %223 : vector<128x128xf32>
    %225 = arith.mulf %224, %121 : vector<128x128xf32>
    %cst_76 = arith.constant 0.200000048 : f32
    %226 = vector.broadcast %cst_76 : f32 to vector<128x128xf32>
    %227 = arith.subf %226, %0 : vector<128x128xf32>
    %cst_77 = arith.constant 1.250000e+00 : f32
    %228 = vector.broadcast %cst_77 : f32 to vector<128x128xf32>
    %229 = arith.mulf %227, %228 : vector<128x128xf32>
    %230 = arith.mulf %229, %132 : vector<128x128xf32>
    %231 = arith.addf %225, %230 : vector<128x128xf32>
    %cst_78 = arith.constant -6.000000e-01 : f32
    %232 = vector.broadcast %cst_78 : f32 to vector<128x128xf32>
    %233 = arith.subf %0, %232 : vector<128x128xf32>
    %cst_79 = arith.constant 1.250000e+00 : f32
    %234 = vector.broadcast %cst_79 : f32 to vector<128x128xf32>
    %235 = arith.mulf %233, %234 : vector<128x128xf32>
    %236 = arith.mulf %235, %132 : vector<128x128xf32>
    %cst_80 = arith.constant 6.000000e-01 : f32
    %237 = vector.broadcast %cst_80 : f32 to vector<128x128xf32>
    %238 = arith.subf %237, %0 : vector<128x128xf32>
    %cst_81 = arith.constant 1.250000e+00 : f32
    %239 = vector.broadcast %cst_81 : f32 to vector<128x128xf32>
    %240 = arith.mulf %238, %239 : vector<128x128xf32>
    %241 = arith.mulf %240, %143 : vector<128x128xf32>
    %242 = arith.addf %236, %241 : vector<128x128xf32>
    %cst_82 = arith.constant -0.199999988 : f32
    %243 = vector.broadcast %cst_82 : f32 to vector<128x128xf32>
    %244 = arith.subf %0, %243 : vector<128x128xf32>
    %cst_83 = arith.constant 1.250000e+00 : f32
    %245 = vector.broadcast %cst_83 : f32 to vector<128x128xf32>
    %246 = arith.mulf %244, %245 : vector<128x128xf32>
    %247 = arith.mulf %246, %143 : vector<128x128xf32>
    %cst_84 = arith.constant 1.000000e+00 : f32
    %248 = vector.broadcast %cst_84 : f32 to vector<128x128xf32>
    %249 = arith.subf %248, %0 : vector<128x128xf32>
    %cst_85 = arith.constant 1.250000e+00 : f32
    %250 = vector.broadcast %cst_85 : f32 to vector<128x128xf32>
    %251 = arith.mulf %249, %250 : vector<128x128xf32>
    %252 = arith.mulf %251, %154 : vector<128x128xf32>
    %253 = arith.addf %247, %252 : vector<128x128xf32>
    %cst_86 = arith.constant 0.200000048 : f32
    %254 = vector.broadcast %cst_86 : f32 to vector<128x128xf32>
    %255 = arith.subf %0, %254 : vector<128x128xf32>
    %cst_87 = arith.constant 1.250000e+00 : f32
    %256 = vector.broadcast %cst_87 : f32 to vector<128x128xf32>
    %257 = arith.mulf %255, %256 : vector<128x128xf32>
    %258 = arith.mulf %257, %154 : vector<128x128xf32>
    %cst_88 = arith.constant 1.4000001 : f32
    %259 = vector.broadcast %cst_88 : f32 to vector<128x128xf32>
    %260 = arith.subf %259, %0 : vector<128x128xf32>
    %cst_89 = arith.constant 1.250000e+00 : f32
    %261 = vector.broadcast %cst_89 : f32 to vector<128x128xf32>
    %262 = arith.mulf %260, %261 : vector<128x128xf32>
    %263 = arith.mulf %262, %165 : vector<128x128xf32>
    %264 = arith.addf %258, %263 : vector<128x128xf32>
    %cst_90 = arith.constant 6.000000e-01 : f32
    %265 = vector.broadcast %cst_90 : f32 to vector<128x128xf32>
    %266 = arith.subf %0, %265 : vector<128x128xf32>
    %cst_91 = arith.constant 1.250000e+00 : f32
    %267 = vector.broadcast %cst_91 : f32 to vector<128x128xf32>
    %268 = arith.mulf %266, %267 : vector<128x128xf32>
    %269 = arith.mulf %268, %165 : vector<128x128xf32>
    %cst_92 = arith.constant 1.800000e+00 : f32
    %270 = vector.broadcast %cst_92 : f32 to vector<128x128xf32>
    %271 = arith.subf %270, %0 : vector<128x128xf32>
    %cst_93 = arith.constant 1.250000e+00 : f32
    %272 = vector.broadcast %cst_93 : f32 to vector<128x128xf32>
    %273 = arith.mulf %271, %272 : vector<128x128xf32>
    %274 = arith.mulf %273, %176 : vector<128x128xf32>
    %275 = arith.addf %269, %274 : vector<128x128xf32>
    %cst_94 = arith.constant 1.000000e+00 : f32
    %276 = vector.broadcast %cst_94 : f32 to vector<128x128xf32>
    %277 = arith.subf %0, %276 : vector<128x128xf32>
    %cst_95 = arith.constant 1.250000e+00 : f32
    %278 = vector.broadcast %cst_95 : f32 to vector<128x128xf32>
    %279 = arith.mulf %277, %278 : vector<128x128xf32>
    %280 = arith.mulf %279, %176 : vector<128x128xf32>
    %cst_96 = arith.constant 2.200000e+00 : f32
    %281 = vector.broadcast %cst_96 : f32 to vector<128x128xf32>
    %282 = arith.subf %281, %0 : vector<128x128xf32>
    %cst_97 = arith.constant 1.250000e+00 : f32
    %283 = vector.broadcast %cst_97 : f32 to vector<128x128xf32>
    %284 = arith.mulf %282, %283 : vector<128x128xf32>
    %285 = arith.mulf %284, %187 : vector<128x128xf32>
    %286 = arith.addf %280, %285 : vector<128x128xf32>
    %cst_98 = arith.constant -2.200000e+00 : f32
    %287 = vector.broadcast %cst_98 : f32 to vector<128x128xf32>
    %288 = arith.subf %0, %287 : vector<128x128xf32>
    %cst_99 = arith.constant 0.833333313 : f32
    %289 = vector.broadcast %cst_99 : f32 to vector<128x128xf32>
    %290 = arith.mulf %288, %289 : vector<128x128xf32>
    %291 = arith.mulf %290, %198 : vector<128x128xf32>
    %cst_100 = arith.constant -6.000000e-01 : f32
    %292 = vector.broadcast %cst_100 : f32 to vector<128x128xf32>
    %293 = arith.subf %292, %0 : vector<128x128xf32>
    %cst_101 = arith.constant 0.833333313 : f32
    %294 = vector.broadcast %cst_101 : f32 to vector<128x128xf32>
    %295 = arith.mulf %293, %294 : vector<128x128xf32>
    %296 = arith.mulf %295, %209 : vector<128x128xf32>
    %297 = arith.addf %291, %296 : vector<128x128xf32>
    %cst_102 = arith.constant -1.800000e+00 : f32
    %298 = vector.broadcast %cst_102 : f32 to vector<128x128xf32>
    %299 = arith.subf %0, %298 : vector<128x128xf32>
    %cst_103 = arith.constant 0.833333313 : f32
    %300 = vector.broadcast %cst_103 : f32 to vector<128x128xf32>
    %301 = arith.mulf %299, %300 : vector<128x128xf32>
    %302 = arith.mulf %301, %209 : vector<128x128xf32>
    %cst_104 = arith.constant -0.199999988 : f32
    %303 = vector.broadcast %cst_104 : f32 to vector<128x128xf32>
    %304 = arith.subf %303, %0 : vector<128x128xf32>
    %cst_105 = arith.constant 0.833333313 : f32
    %305 = vector.broadcast %cst_105 : f32 to vector<128x128xf32>
    %306 = arith.mulf %304, %305 : vector<128x128xf32>
    %307 = arith.mulf %306, %220 : vector<128x128xf32>
    %308 = arith.addf %302, %307 : vector<128x128xf32>
    %cst_106 = arith.constant -1.400000e+00 : f32
    %309 = vector.broadcast %cst_106 : f32 to vector<128x128xf32>
    %310 = arith.subf %0, %309 : vector<128x128xf32>
    %cst_107 = arith.constant 0.833333313 : f32
    %311 = vector.broadcast %cst_107 : f32 to vector<128x128xf32>
    %312 = arith.mulf %310, %311 : vector<128x128xf32>
    %313 = arith.mulf %312, %220 : vector<128x128xf32>
    %cst_108 = arith.constant 0.200000048 : f32
    %314 = vector.broadcast %cst_108 : f32 to vector<128x128xf32>
    %315 = arith.subf %314, %0 : vector<128x128xf32>
    %cst_109 = arith.constant 0.833333313 : f32
    %316 = vector.broadcast %cst_109 : f32 to vector<128x128xf32>
    %317 = arith.mulf %315, %316 : vector<128x128xf32>
    %318 = arith.mulf %317, %231 : vector<128x128xf32>
    %319 = arith.addf %313, %318 : vector<128x128xf32>
    %cst_110 = arith.constant -1.000000e+00 : f32
    %320 = vector.broadcast %cst_110 : f32 to vector<128x128xf32>
    %321 = arith.subf %0, %320 : vector<128x128xf32>
    %cst_111 = arith.constant 0.833333313 : f32
    %322 = vector.broadcast %cst_111 : f32 to vector<128x128xf32>
    %323 = arith.mulf %321, %322 : vector<128x128xf32>
    %324 = arith.mulf %323, %231 : vector<128x128xf32>
    %cst_112 = arith.constant 6.000000e-01 : f32
    %325 = vector.broadcast %cst_112 : f32 to vector<128x128xf32>
    %326 = arith.subf %325, %0 : vector<128x128xf32>
    %cst_113 = arith.constant 0.833333313 : f32
    %327 = vector.broadcast %cst_113 : f32 to vector<128x128xf32>
    %328 = arith.mulf %326, %327 : vector<128x128xf32>
    %329 = arith.mulf %328, %242 : vector<128x128xf32>
    %330 = arith.addf %324, %329 : vector<128x128xf32>
    %cst_114 = arith.constant -6.000000e-01 : f32
    %331 = vector.broadcast %cst_114 : f32 to vector<128x128xf32>
    %332 = arith.subf %0, %331 : vector<128x128xf32>
    %cst_115 = arith.constant 0.833333313 : f32
    %333 = vector.broadcast %cst_115 : f32 to vector<128x128xf32>
    %334 = arith.mulf %332, %333 : vector<128x128xf32>
    %335 = arith.mulf %334, %242 : vector<128x128xf32>
    %cst_116 = arith.constant 1.000000e+00 : f32
    %336 = vector.broadcast %cst_116 : f32 to vector<128x128xf32>
    %337 = arith.subf %336, %0 : vector<128x128xf32>
    %cst_117 = arith.constant 0.833333313 : f32
    %338 = vector.broadcast %cst_117 : f32 to vector<128x128xf32>
    %339 = arith.mulf %337, %338 : vector<128x128xf32>
    %340 = arith.mulf %339, %253 : vector<128x128xf32>
    %341 = arith.addf %335, %340 : vector<128x128xf32>
    %cst_118 = arith.constant -0.199999988 : f32
    %342 = vector.broadcast %cst_118 : f32 to vector<128x128xf32>
    %343 = arith.subf %0, %342 : vector<128x128xf32>
    %cst_119 = arith.constant 0.833333313 : f32
    %344 = vector.broadcast %cst_119 : f32 to vector<128x128xf32>
    %345 = arith.mulf %343, %344 : vector<128x128xf32>
    %346 = arith.mulf %345, %253 : vector<128x128xf32>
    %cst_120 = arith.constant 1.4000001 : f32
    %347 = vector.broadcast %cst_120 : f32 to vector<128x128xf32>
    %348 = arith.subf %347, %0 : vector<128x128xf32>
    %cst_121 = arith.constant 0.833333313 : f32
    %349 = vector.broadcast %cst_121 : f32 to vector<128x128xf32>
    %350 = arith.mulf %348, %349 : vector<128x128xf32>
    %351 = arith.mulf %350, %264 : vector<128x128xf32>
    %352 = arith.addf %346, %351 : vector<128x128xf32>
    %cst_122 = arith.constant 0.200000048 : f32
    %353 = vector.broadcast %cst_122 : f32 to vector<128x128xf32>
    %354 = arith.subf %0, %353 : vector<128x128xf32>
    %cst_123 = arith.constant 0.833333313 : f32
    %355 = vector.broadcast %cst_123 : f32 to vector<128x128xf32>
    %356 = arith.mulf %354, %355 : vector<128x128xf32>
    %357 = arith.mulf %356, %264 : vector<128x128xf32>
    %cst_124 = arith.constant 1.800000e+00 : f32
    %358 = vector.broadcast %cst_124 : f32 to vector<128x128xf32>
    %359 = arith.subf %358, %0 : vector<128x128xf32>
    %cst_125 = arith.constant 0.833333313 : f32
    %360 = vector.broadcast %cst_125 : f32 to vector<128x128xf32>
    %361 = arith.mulf %359, %360 : vector<128x128xf32>
    %362 = arith.mulf %361, %275 : vector<128x128xf32>
    %363 = arith.addf %357, %362 : vector<128x128xf32>
    %cst_126 = arith.constant 6.000000e-01 : f32
    %364 = vector.broadcast %cst_126 : f32 to vector<128x128xf32>
    %365 = arith.subf %0, %364 : vector<128x128xf32>
    %cst_127 = arith.constant 0.833333313 : f32
    %366 = vector.broadcast %cst_127 : f32 to vector<128x128xf32>
    %367 = arith.mulf %365, %366 : vector<128x128xf32>
    %368 = arith.mulf %367, %275 : vector<128x128xf32>
    %cst_128 = arith.constant 2.200000e+00 : f32
    %369 = vector.broadcast %cst_128 : f32 to vector<128x128xf32>
    %370 = arith.subf %369, %0 : vector<128x128xf32>
    %cst_129 = arith.constant 0.833333313 : f32
    %371 = vector.broadcast %cst_129 : f32 to vector<128x128xf32>
    %372 = arith.mulf %370, %371 : vector<128x128xf32>
    %373 = arith.mulf %372, %286 : vector<128x128xf32>
    %374 = arith.addf %368, %373 : vector<128x128xf32>
    %375 = arith.negf %0 : vector<128x128xf32>
    %376 = math.exp %375 : vector<128x128xf32>
    %cst_130 = arith.constant 1.000000e+00 : f32
    %377 = vector.broadcast %cst_130 : f32 to vector<128x128xf32>
    %378 = arith.addf %377, %376 : vector<128x128xf32>
    %379 = arith.divf %377, %378 : vector<128x128xf32>
    %380 = arith.mulf %0, %379 : vector<128x128xf32>
    %381 = tpu.concatenate %380, %297, %308, %319, %330, %341, %352, %363, %374 in 1 : vector<128x128xf32>, vector<128x128xf32>, vector<128x128xf32>, vector<128x128xf32>, vector<128x128xf32>, vector<128x128xf32>, vector<128x128xf32>, vector<128x128xf32>, vector<128x128xf32> -> vector<128x1152xf32>
    %c0_131 = arith.constant 0 : index
    %c0_132 = arith.constant 0 : index
    %382 = vector.load %arg2[%c0_131, %c0_132] : memref<1152x128xf32, #tpu.memory_space<vmem>>, vector<1152x128xf32>
    %cst_133 = arith.constant dense<0.000000e+00> : vector<128x128xf32>
    %383 = tpu.matmul %381, %382, %cst_133 {dimension_numbers = #tpu.dot_dimension_numbers<[1], [0], [0], [1], [0, 0, 1, 1], [], []>} : vector<128x1152xf32>, vector<1152x128xf32>, vector<128x128xf32> -> vector<128x128xf32>
    %cst_134 = arith.constant -2.200000e+00 : f32
    %384 = vector.broadcast %cst_134 : f32 to vector<128x128xf32>
    %385 = arith.cmpf oge, %383, %384 : vector<128x128xf32>
    %cst_135 = arith.constant -1.800000e+00 : f32
    %386 = vector.broadcast %cst_135 : f32 to vector<128x128xf32>
    %387 = arith.cmpf olt, %383, %386 : vector<128x128xf32>
    %388 = arith.andi %385, %387 : vector<128x128xi1>
    %389 = arith.extui %388 : vector<128x128xi1> to vector<128x128xi32>
    %390 = arith.sitofp %389 : vector<128x128xi32> to vector<128x128xf32>
    %cst_136 = arith.constant -1.800000e+00 : f32
    %391 = vector.broadcast %cst_136 : f32 to vector<128x128xf32>
    %392 = arith.cmpf oge, %383, %391 : vector<128x128xf32>
    %cst_137 = arith.constant -1.400000e+00 : f32
    %393 = vector.broadcast %cst_137 : f32 to vector<128x128xf32>
    %394 = arith.cmpf olt, %383, %393 : vector<128x128xf32>
    %395 = arith.andi %392, %394 : vector<128x128xi1>
    %396 = arith.extui %395 : vector<128x128xi1> to vector<128x128xi32>
    %397 = arith.sitofp %396 : vector<128x128xi32> to vector<128x128xf32>
    %cst_138 = arith.constant -1.400000e+00 : f32
    %398 = vector.broadcast %cst_138 : f32 to vector<128x128xf32>
    %399 = arith.cmpf oge, %383, %398 : vector<128x128xf32>
    %cst_139 = arith.constant -1.000000e+00 : f32
    %400 = vector.broadcast %cst_139 : f32 to vector<128x128xf32>
    %401 = arith.cmpf olt, %383, %400 : vector<128x128xf32>
    %402 = arith.andi %399, %401 : vector<128x128xi1>
    %403 = arith.extui %402 : vector<128x128xi1> to vector<128x128xi32>
    %404 = arith.sitofp %403 : vector<128x128xi32> to vector<128x128xf32>
    %cst_140 = arith.constant -1.000000e+00 : f32
    %405 = vector.broadcast %cst_140 : f32 to vector<128x128xf32>
    %406 = arith.cmpf oge, %383, %405 : vector<128x128xf32>
    %cst_141 = arith.constant -6.000000e-01 : f32
    %407 = vector.broadcast %cst_141 : f32 to vector<128x128xf32>
    %408 = arith.cmpf olt, %383, %407 : vector<128x128xf32>
    %409 = arith.andi %406, %408 : vector<128x128xi1>
    %410 = arith.extui %409 : vector<128x128xi1> to vector<128x128xi32>
    %411 = arith.sitofp %410 : vector<128x128xi32> to vector<128x128xf32>
    %cst_142 = arith.constant -6.000000e-01 : f32
    %412 = vector.broadcast %cst_142 : f32 to vector<128x128xf32>
    %413 = arith.cmpf oge, %383, %412 : vector<128x128xf32>
    %cst_143 = arith.constant -0.199999988 : f32
    %414 = vector.broadcast %cst_143 : f32 to vector<128x128xf32>
    %415 = arith.cmpf olt, %383, %414 : vector<128x128xf32>
    %416 = arith.andi %413, %415 : vector<128x128xi1>
    %417 = arith.extui %416 : vector<128x128xi1> to vector<128x128xi32>
    %418 = arith.sitofp %417 : vector<128x128xi32> to vector<128x128xf32>
    %cst_144 = arith.constant -0.199999988 : f32
    %419 = vector.broadcast %cst_144 : f32 to vector<128x128xf32>
    %420 = arith.cmpf oge, %383, %419 : vector<128x128xf32>
    %cst_145 = arith.constant 0.200000048 : f32
    %421 = vector.broadcast %cst_145 : f32 to vector<128x128xf32>
    %422 = arith.cmpf olt, %383, %421 : vector<128x128xf32>
    %423 = arith.andi %420, %422 : vector<128x128xi1>
    %424 = arith.extui %423 : vector<128x128xi1> to vector<128x128xi32>
    %425 = arith.sitofp %424 : vector<128x128xi32> to vector<128x128xf32>
    %cst_146 = arith.constant 0.200000048 : f32
    %426 = vector.broadcast %cst_146 : f32 to vector<128x128xf32>
    %427 = arith.cmpf oge, %383, %426 : vector<128x128xf32>
    %cst_147 = arith.constant 6.000000e-01 : f32
    %428 = vector.broadcast %cst_147 : f32 to vector<128x128xf32>
    %429 = arith.cmpf olt, %383, %428 : vector<128x128xf32>
    %430 = arith.andi %427, %429 : vector<128x128xi1>
    %431 = arith.extui %430 : vector<128x128xi1> to vector<128x128xi32>
    %432 = arith.sitofp %431 : vector<128x128xi32> to vector<128x128xf32>
    %cst_148 = arith.constant 6.000000e-01 : f32
    %433 = vector.broadcast %cst_148 : f32 to vector<128x128xf32>
    %434 = arith.cmpf oge, %383, %433 : vector<128x128xf32>
    %cst_149 = arith.constant 1.000000e+00 : f32
    %435 = vector.broadcast %cst_149 : f32 to vector<128x128xf32>
    %436 = arith.cmpf olt, %383, %435 : vector<128x128xf32>
    %437 = arith.andi %434, %436 : vector<128x128xi1>
    %438 = arith.extui %437 : vector<128x128xi1> to vector<128x128xi32>
    %439 = arith.sitofp %438 : vector<128x128xi32> to vector<128x128xf32>
    %cst_150 = arith.constant 1.000000e+00 : f32
    %440 = vector.broadcast %cst_150 : f32 to vector<128x128xf32>
    %441 = arith.cmpf oge, %383, %440 : vector<128x128xf32>
    %cst_151 = arith.constant 1.4000001 : f32
    %442 = vector.broadcast %cst_151 : f32 to vector<128x128xf32>
    %443 = arith.cmpf olt, %383, %442 : vector<128x128xf32>
    %444 = arith.andi %441, %443 : vector<128x128xi1>
    %445 = arith.extui %444 : vector<128x128xi1> to vector<128x128xi32>
    %446 = arith.sitofp %445 : vector<128x128xi32> to vector<128x128xf32>
    %cst_152 = arith.constant 1.4000001 : f32
    %447 = vector.broadcast %cst_152 : f32 to vector<128x128xf32>
    %448 = arith.cmpf oge, %383, %447 : vector<128x128xf32>
    %cst_153 = arith.constant 1.800000e+00 : f32
    %449 = vector.broadcast %cst_153 : f32 to vector<128x128xf32>
    %450 = arith.cmpf olt, %383, %449 : vector<128x128xf32>
    %451 = arith.andi %448, %450 : vector<128x128xi1>
    %452 = arith.extui %451 : vector<128x128xi1> to vector<128x128xi32>
    %453 = arith.sitofp %452 : vector<128x128xi32> to vector<128x128xf32>
    %cst_154 = arith.constant 1.800000e+00 : f32
    %454 = vector.broadcast %cst_154 : f32 to vector<128x128xf32>
    %455 = arith.cmpf oge, %383, %454 : vector<128x128xf32>
    %cst_155 = arith.constant 2.200000e+00 : f32
    %456 = vector.broadcast %cst_155 : f32 to vector<128x128xf32>
    %457 = arith.cmpf olt, %383, %456 : vector<128x128xf32>
    %458 = arith.andi %455, %457 : vector<128x128xi1>
    %459 = arith.extui %458 : vector<128x128xi1> to vector<128x128xi32>
    %460 = arith.sitofp %459 : vector<128x128xi32> to vector<128x128xf32>
    %cst_156 = arith.constant -2.200000e+00 : f32
    %461 = vector.broadcast %cst_156 : f32 to vector<128x128xf32>
    %462 = arith.subf %383, %461 : vector<128x128xf32>
    %cst_157 = arith.constant 2.500000e+00 : f32
    %463 = vector.broadcast %cst_157 : f32 to vector<128x128xf32>
    %464 = arith.mulf %462, %463 : vector<128x128xf32>
    %465 = arith.mulf %464, %390 : vector<128x128xf32>
    %cst_158 = arith.constant -1.400000e+00 : f32
    %466 = vector.broadcast %cst_158 : f32 to vector<128x128xf32>
    %467 = arith.subf %466, %383 : vector<128x128xf32>
    %cst_159 = arith.constant 2.500000e+00 : f32
    %468 = vector.broadcast %cst_159 : f32 to vector<128x128xf32>
    %469 = arith.mulf %467, %468 : vector<128x128xf32>
    %470 = arith.mulf %469, %397 : vector<128x128xf32>
    %471 = arith.addf %465, %470 : vector<128x128xf32>
    %cst_160 = arith.constant -1.800000e+00 : f32
    %472 = vector.broadcast %cst_160 : f32 to vector<128x128xf32>
    %473 = arith.subf %383, %472 : vector<128x128xf32>
    %cst_161 = arith.constant 2.500000e+00 : f32
    %474 = vector.broadcast %cst_161 : f32 to vector<128x128xf32>
    %475 = arith.mulf %473, %474 : vector<128x128xf32>
    %476 = arith.mulf %475, %397 : vector<128x128xf32>
    %cst_162 = arith.constant -1.000000e+00 : f32
    %477 = vector.broadcast %cst_162 : f32 to vector<128x128xf32>
    %478 = arith.subf %477, %383 : vector<128x128xf32>
    %cst_163 = arith.constant 2.500000e+00 : f32
    %479 = vector.broadcast %cst_163 : f32 to vector<128x128xf32>
    %480 = arith.mulf %478, %479 : vector<128x128xf32>
    %481 = arith.mulf %480, %404 : vector<128x128xf32>
    %482 = arith.addf %476, %481 : vector<128x128xf32>
    %cst_164 = arith.constant -1.400000e+00 : f32
    %483 = vector.broadcast %cst_164 : f32 to vector<128x128xf32>
    %484 = arith.subf %383, %483 : vector<128x128xf32>
    %cst_165 = arith.constant 2.500000e+00 : f32
    %485 = vector.broadcast %cst_165 : f32 to vector<128x128xf32>
    %486 = arith.mulf %484, %485 : vector<128x128xf32>
    %487 = arith.mulf %486, %404 : vector<128x128xf32>
    %cst_166 = arith.constant -6.000000e-01 : f32
    %488 = vector.broadcast %cst_166 : f32 to vector<128x128xf32>
    %489 = arith.subf %488, %383 : vector<128x128xf32>
    %cst_167 = arith.constant 2.500000e+00 : f32
    %490 = vector.broadcast %cst_167 : f32 to vector<128x128xf32>
    %491 = arith.mulf %489, %490 : vector<128x128xf32>
    %492 = arith.mulf %491, %411 : vector<128x128xf32>
    %493 = arith.addf %487, %492 : vector<128x128xf32>
    %cst_168 = arith.constant -1.000000e+00 : f32
    %494 = vector.broadcast %cst_168 : f32 to vector<128x128xf32>
    %495 = arith.subf %383, %494 : vector<128x128xf32>
    %cst_169 = arith.constant 2.500000e+00 : f32
    %496 = vector.broadcast %cst_169 : f32 to vector<128x128xf32>
    %497 = arith.mulf %495, %496 : vector<128x128xf32>
    %498 = arith.mulf %497, %411 : vector<128x128xf32>
    %cst_170 = arith.constant -0.199999988 : f32
    %499 = vector.broadcast %cst_170 : f32 to vector<128x128xf32>
    %500 = arith.subf %499, %383 : vector<128x128xf32>
    %cst_171 = arith.constant 2.500000e+00 : f32
    %501 = vector.broadcast %cst_171 : f32 to vector<128x128xf32>
    %502 = arith.mulf %500, %501 : vector<128x128xf32>
    %503 = arith.mulf %502, %418 : vector<128x128xf32>
    %504 = arith.addf %498, %503 : vector<128x128xf32>
    %cst_172 = arith.constant -6.000000e-01 : f32
    %505 = vector.broadcast %cst_172 : f32 to vector<128x128xf32>
    %506 = arith.subf %383, %505 : vector<128x128xf32>
    %cst_173 = arith.constant 2.500000e+00 : f32
    %507 = vector.broadcast %cst_173 : f32 to vector<128x128xf32>
    %508 = arith.mulf %506, %507 : vector<128x128xf32>
    %509 = arith.mulf %508, %418 : vector<128x128xf32>
    %cst_174 = arith.constant 0.200000048 : f32
    %510 = vector.broadcast %cst_174 : f32 to vector<128x128xf32>
    %511 = arith.subf %510, %383 : vector<128x128xf32>
    %cst_175 = arith.constant 2.500000e+00 : f32
    %512 = vector.broadcast %cst_175 : f32 to vector<128x128xf32>
    %513 = arith.mulf %511, %512 : vector<128x128xf32>
    %514 = arith.mulf %513, %425 : vector<128x128xf32>
    %515 = arith.addf %509, %514 : vector<128x128xf32>
    %cst_176 = arith.constant -0.199999988 : f32
    %516 = vector.broadcast %cst_176 : f32 to vector<128x128xf32>
    %517 = arith.subf %383, %516 : vector<128x128xf32>
    %cst_177 = arith.constant 2.500000e+00 : f32
    %518 = vector.broadcast %cst_177 : f32 to vector<128x128xf32>
    %519 = arith.mulf %517, %518 : vector<128x128xf32>
    %520 = arith.mulf %519, %425 : vector<128x128xf32>
    %cst_178 = arith.constant 6.000000e-01 : f32
    %521 = vector.broadcast %cst_178 : f32 to vector<128x128xf32>
    %522 = arith.subf %521, %383 : vector<128x128xf32>
    %cst_179 = arith.constant 2.500000e+00 : f32
    %523 = vector.broadcast %cst_179 : f32 to vector<128x128xf32>
    %524 = arith.mulf %522, %523 : vector<128x128xf32>
    %525 = arith.mulf %524, %432 : vector<128x128xf32>
    %526 = arith.addf %520, %525 : vector<128x128xf32>
    %cst_180 = arith.constant 0.200000048 : f32
    %527 = vector.broadcast %cst_180 : f32 to vector<128x128xf32>
    %528 = arith.subf %383, %527 : vector<128x128xf32>
    %cst_181 = arith.constant 2.500000e+00 : f32
    %529 = vector.broadcast %cst_181 : f32 to vector<128x128xf32>
    %530 = arith.mulf %528, %529 : vector<128x128xf32>
    %531 = arith.mulf %530, %432 : vector<128x128xf32>
    %cst_182 = arith.constant 1.000000e+00 : f32
    %532 = vector.broadcast %cst_182 : f32 to vector<128x128xf32>
    %533 = arith.subf %532, %383 : vector<128x128xf32>
    %cst_183 = arith.constant 2.500000e+00 : f32
    %534 = vector.broadcast %cst_183 : f32 to vector<128x128xf32>
    %535 = arith.mulf %533, %534 : vector<128x128xf32>
    %536 = arith.mulf %535, %439 : vector<128x128xf32>
    %537 = arith.addf %531, %536 : vector<128x128xf32>
    %cst_184 = arith.constant 6.000000e-01 : f32
    %538 = vector.broadcast %cst_184 : f32 to vector<128x128xf32>
    %539 = arith.subf %383, %538 : vector<128x128xf32>
    %cst_185 = arith.constant 2.500000e+00 : f32
    %540 = vector.broadcast %cst_185 : f32 to vector<128x128xf32>
    %541 = arith.mulf %539, %540 : vector<128x128xf32>
    %542 = arith.mulf %541, %439 : vector<128x128xf32>
    %cst_186 = arith.constant 1.4000001 : f32
    %543 = vector.broadcast %cst_186 : f32 to vector<128x128xf32>
    %544 = arith.subf %543, %383 : vector<128x128xf32>
    %cst_187 = arith.constant 2.500000e+00 : f32
    %545 = vector.broadcast %cst_187 : f32 to vector<128x128xf32>
    %546 = arith.mulf %544, %545 : vector<128x128xf32>
    %547 = arith.mulf %546, %446 : vector<128x128xf32>
    %548 = arith.addf %542, %547 : vector<128x128xf32>
    %cst_188 = arith.constant 1.000000e+00 : f32
    %549 = vector.broadcast %cst_188 : f32 to vector<128x128xf32>
    %550 = arith.subf %383, %549 : vector<128x128xf32>
    %cst_189 = arith.constant 2.500000e+00 : f32
    %551 = vector.broadcast %cst_189 : f32 to vector<128x128xf32>
    %552 = arith.mulf %550, %551 : vector<128x128xf32>
    %553 = arith.mulf %552, %446 : vector<128x128xf32>
    %cst_190 = arith.constant 1.800000e+00 : f32
    %554 = vector.broadcast %cst_190 : f32 to vector<128x128xf32>
    %555 = arith.subf %554, %383 : vector<128x128xf32>
    %cst_191 = arith.constant 2.500000e+00 : f32
    %556 = vector.broadcast %cst_191 : f32 to vector<128x128xf32>
    %557 = arith.mulf %555, %556 : vector<128x128xf32>
    %558 = arith.mulf %557, %453 : vector<128x128xf32>
    %559 = arith.addf %553, %558 : vector<128x128xf32>
    %cst_192 = arith.constant 1.4000001 : f32
    %560 = vector.broadcast %cst_192 : f32 to vector<128x128xf32>
    %561 = arith.subf %383, %560 : vector<128x128xf32>
    %cst_193 = arith.constant 2.500000e+00 : f32
    %562 = vector.broadcast %cst_193 : f32 to vector<128x128xf32>
    %563 = arith.mulf %561, %562 : vector<128x128xf32>
    %564 = arith.mulf %563, %453 : vector<128x128xf32>
    %cst_194 = arith.constant 2.200000e+00 : f32
    %565 = vector.broadcast %cst_194 : f32 to vector<128x128xf32>
    %566 = arith.subf %565, %383 : vector<128x128xf32>
    %cst_195 = arith.constant 2.500000e+00 : f32
    %567 = vector.broadcast %cst_195 : f32 to vector<128x128xf32>
    %568 = arith.mulf %566, %567 : vector<128x128xf32>
    %569 = arith.mulf %568, %460 : vector<128x128xf32>
    %570 = arith.addf %564, %569 : vector<128x128xf32>
    %cst_196 = arith.constant -2.200000e+00 : f32
    %571 = vector.broadcast %cst_196 : f32 to vector<128x128xf32>
    %572 = arith.subf %383, %571 : vector<128x128xf32>
    %cst_197 = arith.constant 1.250000e+00 : f32
    %573 = vector.broadcast %cst_197 : f32 to vector<128x128xf32>
    %574 = arith.mulf %572, %573 : vector<128x128xf32>
    %575 = arith.mulf %574, %471 : vector<128x128xf32>
    %cst_198 = arith.constant -1.000000e+00 : f32
    %576 = vector.broadcast %cst_198 : f32 to vector<128x128xf32>
    %577 = arith.subf %576, %383 : vector<128x128xf32>
    %cst_199 = arith.constant 1.250000e+00 : f32
    %578 = vector.broadcast %cst_199 : f32 to vector<128x128xf32>
    %579 = arith.mulf %577, %578 : vector<128x128xf32>
    %580 = arith.mulf %579, %482 : vector<128x128xf32>
    %581 = arith.addf %575, %580 : vector<128x128xf32>
    %cst_200 = arith.constant -1.800000e+00 : f32
    %582 = vector.broadcast %cst_200 : f32 to vector<128x128xf32>
    %583 = arith.subf %383, %582 : vector<128x128xf32>
    %cst_201 = arith.constant 1.250000e+00 : f32
    %584 = vector.broadcast %cst_201 : f32 to vector<128x128xf32>
    %585 = arith.mulf %583, %584 : vector<128x128xf32>
    %586 = arith.mulf %585, %482 : vector<128x128xf32>
    %cst_202 = arith.constant -6.000000e-01 : f32
    %587 = vector.broadcast %cst_202 : f32 to vector<128x128xf32>
    %588 = arith.subf %587, %383 : vector<128x128xf32>
    %cst_203 = arith.constant 1.250000e+00 : f32
    %589 = vector.broadcast %cst_203 : f32 to vector<128x128xf32>
    %590 = arith.mulf %588, %589 : vector<128x128xf32>
    %591 = arith.mulf %590, %493 : vector<128x128xf32>
    %592 = arith.addf %586, %591 : vector<128x128xf32>
    %cst_204 = arith.constant -1.400000e+00 : f32
    %593 = vector.broadcast %cst_204 : f32 to vector<128x128xf32>
    %594 = arith.subf %383, %593 : vector<128x128xf32>
    %cst_205 = arith.constant 1.250000e+00 : f32
    %595 = vector.broadcast %cst_205 : f32 to vector<128x128xf32>
    %596 = arith.mulf %594, %595 : vector<128x128xf32>
    %597 = arith.mulf %596, %493 : vector<128x128xf32>
    %cst_206 = arith.constant -0.199999988 : f32
    %598 = vector.broadcast %cst_206 : f32 to vector<128x128xf32>
    %599 = arith.subf %598, %383 : vector<128x128xf32>
    %cst_207 = arith.constant 1.250000e+00 : f32
    %600 = vector.broadcast %cst_207 : f32 to vector<128x128xf32>
    %601 = arith.mulf %599, %600 : vector<128x128xf32>
    %602 = arith.mulf %601, %504 : vector<128x128xf32>
    %603 = arith.addf %597, %602 : vector<128x128xf32>
    %cst_208 = arith.constant -1.000000e+00 : f32
    %604 = vector.broadcast %cst_208 : f32 to vector<128x128xf32>
    %605 = arith.subf %383, %604 : vector<128x128xf32>
    %cst_209 = arith.constant 1.250000e+00 : f32
    %606 = vector.broadcast %cst_209 : f32 to vector<128x128xf32>
    %607 = arith.mulf %605, %606 : vector<128x128xf32>
    %608 = arith.mulf %607, %504 : vector<128x128xf32>
    %cst_210 = arith.constant 0.200000048 : f32
    %609 = vector.broadcast %cst_210 : f32 to vector<128x128xf32>
    %610 = arith.subf %609, %383 : vector<128x128xf32>
    %cst_211 = arith.constant 1.250000e+00 : f32
    %611 = vector.broadcast %cst_211 : f32 to vector<128x128xf32>
    %612 = arith.mulf %610, %611 : vector<128x128xf32>
    %613 = arith.mulf %612, %515 : vector<128x128xf32>
    %614 = arith.addf %608, %613 : vector<128x128xf32>
    %cst_212 = arith.constant -6.000000e-01 : f32
    %615 = vector.broadcast %cst_212 : f32 to vector<128x128xf32>
    %616 = arith.subf %383, %615 : vector<128x128xf32>
    %cst_213 = arith.constant 1.250000e+00 : f32
    %617 = vector.broadcast %cst_213 : f32 to vector<128x128xf32>
    %618 = arith.mulf %616, %617 : vector<128x128xf32>
    %619 = arith.mulf %618, %515 : vector<128x128xf32>
    %cst_214 = arith.constant 6.000000e-01 : f32
    %620 = vector.broadcast %cst_214 : f32 to vector<128x128xf32>
    %621 = arith.subf %620, %383 : vector<128x128xf32>
    %cst_215 = arith.constant 1.250000e+00 : f32
    %622 = vector.broadcast %cst_215 : f32 to vector<128x128xf32>
    %623 = arith.mulf %621, %622 : vector<128x128xf32>
    %624 = arith.mulf %623, %526 : vector<128x128xf32>
    %625 = arith.addf %619, %624 : vector<128x128xf32>
    %cst_216 = arith.constant -0.199999988 : f32
    %626 = vector.broadcast %cst_216 : f32 to vector<128x128xf32>
    %627 = arith.subf %383, %626 : vector<128x128xf32>
    %cst_217 = arith.constant 1.250000e+00 : f32
    %628 = vector.broadcast %cst_217 : f32 to vector<128x128xf32>
    %629 = arith.mulf %627, %628 : vector<128x128xf32>
    %630 = arith.mulf %629, %526 : vector<128x128xf32>
    %cst_218 = arith.constant 1.000000e+00 : f32
    %631 = vector.broadcast %cst_218 : f32 to vector<128x128xf32>
    %632 = arith.subf %631, %383 : vector<128x128xf32>
    %cst_219 = arith.constant 1.250000e+00 : f32
    %633 = vector.broadcast %cst_219 : f32 to vector<128x128xf32>
    %634 = arith.mulf %632, %633 : vector<128x128xf32>
    %635 = arith.mulf %634, %537 : vector<128x128xf32>
    %636 = arith.addf %630, %635 : vector<128x128xf32>
    %cst_220 = arith.constant 0.200000048 : f32
    %637 = vector.broadcast %cst_220 : f32 to vector<128x128xf32>
    %638 = arith.subf %383, %637 : vector<128x128xf32>
    %cst_221 = arith.constant 1.250000e+00 : f32
    %639 = vector.broadcast %cst_221 : f32 to vector<128x128xf32>
    %640 = arith.mulf %638, %639 : vector<128x128xf32>
    %641 = arith.mulf %640, %537 : vector<128x128xf32>
    %cst_222 = arith.constant 1.4000001 : f32
    %642 = vector.broadcast %cst_222 : f32 to vector<128x128xf32>
    %643 = arith.subf %642, %383 : vector<128x128xf32>
    %cst_223 = arith.constant 1.250000e+00 : f32
    %644 = vector.broadcast %cst_223 : f32 to vector<128x128xf32>
    %645 = arith.mulf %643, %644 : vector<128x128xf32>
    %646 = arith.mulf %645, %548 : vector<128x128xf32>
    %647 = arith.addf %641, %646 : vector<128x128xf32>
    %cst_224 = arith.constant 6.000000e-01 : f32
    %648 = vector.broadcast %cst_224 : f32 to vector<128x128xf32>
    %649 = arith.subf %383, %648 : vector<128x128xf32>
    %cst_225 = arith.constant 1.250000e+00 : f32
    %650 = vector.broadcast %cst_225 : f32 to vector<128x128xf32>
    %651 = arith.mulf %649, %650 : vector<128x128xf32>
    %652 = arith.mulf %651, %548 : vector<128x128xf32>
    %cst_226 = arith.constant 1.800000e+00 : f32
    %653 = vector.broadcast %cst_226 : f32 to vector<128x128xf32>
    %654 = arith.subf %653, %383 : vector<128x128xf32>
    %cst_227 = arith.constant 1.250000e+00 : f32
    %655 = vector.broadcast %cst_227 : f32 to vector<128x128xf32>
    %656 = arith.mulf %654, %655 : vector<128x128xf32>
    %657 = arith.mulf %656, %559 : vector<128x128xf32>
    %658 = arith.addf %652, %657 : vector<128x128xf32>
    %cst_228 = arith.constant 1.000000e+00 : f32
    %659 = vector.broadcast %cst_228 : f32 to vector<128x128xf32>
    %660 = arith.subf %383, %659 : vector<128x128xf32>
    %cst_229 = arith.constant 1.250000e+00 : f32
    %661 = vector.broadcast %cst_229 : f32 to vector<128x128xf32>
    %662 = arith.mulf %660, %661 : vector<128x128xf32>
    %663 = arith.mulf %662, %559 : vector<128x128xf32>
    %cst_230 = arith.constant 2.200000e+00 : f32
    %664 = vector.broadcast %cst_230 : f32 to vector<128x128xf32>
    %665 = arith.subf %664, %383 : vector<128x128xf32>
    %cst_231 = arith.constant 1.250000e+00 : f32
    %666 = vector.broadcast %cst_231 : f32 to vector<128x128xf32>
    %667 = arith.mulf %665, %666 : vector<128x128xf32>
    %668 = arith.mulf %667, %570 : vector<128x128xf32>
    %669 = arith.addf %663, %668 : vector<128x128xf32>
    %cst_232 = arith.constant -2.200000e+00 : f32
    %670 = vector.broadcast %cst_232 : f32 to vector<128x128xf32>
    %671 = arith.subf %383, %670 : vector<128x128xf32>
    %cst_233 = arith.constant 0.833333313 : f32
    %672 = vector.broadcast %cst_233 : f32 to vector<128x128xf32>
    %673 = arith.mulf %671, %672 : vector<128x128xf32>
    %674 = arith.mulf %673, %581 : vector<128x128xf32>
    %cst_234 = arith.constant -6.000000e-01 : f32
    %675 = vector.broadcast %cst_234 : f32 to vector<128x128xf32>
    %676 = arith.subf %675, %383 : vector<128x128xf32>
    %cst_235 = arith.constant 0.833333313 : f32
    %677 = vector.broadcast %cst_235 : f32 to vector<128x128xf32>
    %678 = arith.mulf %676, %677 : vector<128x128xf32>
    %679 = arith.mulf %678, %592 : vector<128x128xf32>
    %680 = arith.addf %674, %679 : vector<128x128xf32>
    %cst_236 = arith.constant -1.800000e+00 : f32
    %681 = vector.broadcast %cst_236 : f32 to vector<128x128xf32>
    %682 = arith.subf %383, %681 : vector<128x128xf32>
    %cst_237 = arith.constant 0.833333313 : f32
    %683 = vector.broadcast %cst_237 : f32 to vector<128x128xf32>
    %684 = arith.mulf %682, %683 : vector<128x128xf32>
    %685 = arith.mulf %684, %592 : vector<128x128xf32>
    %cst_238 = arith.constant -0.199999988 : f32
    %686 = vector.broadcast %cst_238 : f32 to vector<128x128xf32>
    %687 = arith.subf %686, %383 : vector<128x128xf32>
    %cst_239 = arith.constant 0.833333313 : f32
    %688 = vector.broadcast %cst_239 : f32 to vector<128x128xf32>
    %689 = arith.mulf %687, %688 : vector<128x128xf32>
    %690 = arith.mulf %689, %603 : vector<128x128xf32>
    %691 = arith.addf %685, %690 : vector<128x128xf32>
    %cst_240 = arith.constant -1.400000e+00 : f32
    %692 = vector.broadcast %cst_240 : f32 to vector<128x128xf32>
    %693 = arith.subf %383, %692 : vector<128x128xf32>
    %cst_241 = arith.constant 0.833333313 : f32
    %694 = vector.broadcast %cst_241 : f32 to vector<128x128xf32>
    %695 = arith.mulf %693, %694 : vector<128x128xf32>
    %696 = arith.mulf %695, %603 : vector<128x128xf32>
    %cst_242 = arith.constant 0.200000048 : f32
    %697 = vector.broadcast %cst_242 : f32 to vector<128x128xf32>
    %698 = arith.subf %697, %383 : vector<128x128xf32>
    %cst_243 = arith.constant 0.833333313 : f32
    %699 = vector.broadcast %cst_243 : f32 to vector<128x128xf32>
    %700 = arith.mulf %698, %699 : vector<128x128xf32>
    %701 = arith.mulf %700, %614 : vector<128x128xf32>
    %702 = arith.addf %696, %701 : vector<128x128xf32>
    %cst_244 = arith.constant -1.000000e+00 : f32
    %703 = vector.broadcast %cst_244 : f32 to vector<128x128xf32>
    %704 = arith.subf %383, %703 : vector<128x128xf32>
    %cst_245 = arith.constant 0.833333313 : f32
    %705 = vector.broadcast %cst_245 : f32 to vector<128x128xf32>
    %706 = arith.mulf %704, %705 : vector<128x128xf32>
    %707 = arith.mulf %706, %614 : vector<128x128xf32>
    %cst_246 = arith.constant 6.000000e-01 : f32
    %708 = vector.broadcast %cst_246 : f32 to vector<128x128xf32>
    %709 = arith.subf %708, %383 : vector<128x128xf32>
    %cst_247 = arith.constant 0.833333313 : f32
    %710 = vector.broadcast %cst_247 : f32 to vector<128x128xf32>
    %711 = arith.mulf %709, %710 : vector<128x128xf32>
    %712 = arith.mulf %711, %625 : vector<128x128xf32>
    %713 = arith.addf %707, %712 : vector<128x128xf32>
    %cst_248 = arith.constant -6.000000e-01 : f32
    %714 = vector.broadcast %cst_248 : f32 to vector<128x128xf32>
    %715 = arith.subf %383, %714 : vector<128x128xf32>
    %cst_249 = arith.constant 0.833333313 : f32
    %716 = vector.broadcast %cst_249 : f32 to vector<128x128xf32>
    %717 = arith.mulf %715, %716 : vector<128x128xf32>
    %718 = arith.mulf %717, %625 : vector<128x128xf32>
    %cst_250 = arith.constant 1.000000e+00 : f32
    %719 = vector.broadcast %cst_250 : f32 to vector<128x128xf32>
    %720 = arith.subf %719, %383 : vector<128x128xf32>
    %cst_251 = arith.constant 0.833333313 : f32
    %721 = vector.broadcast %cst_251 : f32 to vector<128x128xf32>
    %722 = arith.mulf %720, %721 : vector<128x128xf32>
    %723 = arith.mulf %722, %636 : vector<128x128xf32>
    %724 = arith.addf %718, %723 : vector<128x128xf32>
    %cst_252 = arith.constant -0.199999988 : f32
    %725 = vector.broadcast %cst_252 : f32 to vector<128x128xf32>
    %726 = arith.subf %383, %725 : vector<128x128xf32>
    %cst_253 = arith.constant 0.833333313 : f32
    %727 = vector.broadcast %cst_253 : f32 to vector<128x128xf32>
    %728 = arith.mulf %726, %727 : vector<128x128xf32>
    %729 = arith.mulf %728, %636 : vector<128x128xf32>
    %cst_254 = arith.constant 1.4000001 : f32
    %730 = vector.broadcast %cst_254 : f32 to vector<128x128xf32>
    %731 = arith.subf %730, %383 : vector<128x128xf32>
    %cst_255 = arith.constant 0.833333313 : f32
    %732 = vector.broadcast %cst_255 : f32 to vector<128x128xf32>
    %733 = arith.mulf %731, %732 : vector<128x128xf32>
    %734 = arith.mulf %733, %647 : vector<128x128xf32>
    %735 = arith.addf %729, %734 : vector<128x128xf32>
    %cst_256 = arith.constant 0.200000048 : f32
    %736 = vector.broadcast %cst_256 : f32 to vector<128x128xf32>
    %737 = arith.subf %383, %736 : vector<128x128xf32>
    %cst_257 = arith.constant 0.833333313 : f32
    %738 = vector.broadcast %cst_257 : f32 to vector<128x128xf32>
    %739 = arith.mulf %737, %738 : vector<128x128xf32>
    %740 = arith.mulf %739, %647 : vector<128x128xf32>
    %cst_258 = arith.constant 1.800000e+00 : f32
    %741 = vector.broadcast %cst_258 : f32 to vector<128x128xf32>
    %742 = arith.subf %741, %383 : vector<128x128xf32>
    %cst_259 = arith.constant 0.833333313 : f32
    %743 = vector.broadcast %cst_259 : f32 to vector<128x128xf32>
    %744 = arith.mulf %742, %743 : vector<128x128xf32>
    %745 = arith.mulf %744, %658 : vector<128x128xf32>
    %746 = arith.addf %740, %745 : vector<128x128xf32>
    %cst_260 = arith.constant 6.000000e-01 : f32
    %747 = vector.broadcast %cst_260 : f32 to vector<128x128xf32>
    %748 = arith.subf %383, %747 : vector<128x128xf32>
    %cst_261 = arith.constant 0.833333313 : f32
    %749 = vector.broadcast %cst_261 : f32 to vector<128x128xf32>
    %750 = arith.mulf %748, %749 : vector<128x128xf32>
    %751 = arith.mulf %750, %658 : vector<128x128xf32>
    %cst_262 = arith.constant 2.200000e+00 : f32
    %752 = vector.broadcast %cst_262 : f32 to vector<128x128xf32>
    %753 = arith.subf %752, %383 : vector<128x128xf32>
    %cst_263 = arith.constant 0.833333313 : f32
    %754 = vector.broadcast %cst_263 : f32 to vector<128x128xf32>
    %755 = arith.mulf %753, %754 : vector<128x128xf32>
    %756 = arith.mulf %755, %669 : vector<128x128xf32>
    %757 = arith.addf %751, %756 : vector<128x128xf32>
    %758 = arith.negf %383 : vector<128x128xf32>
    %759 = math.exp %758 : vector<128x128xf32>
    %cst_264 = arith.constant 1.000000e+00 : f32
    %760 = vector.broadcast %cst_264 : f32 to vector<128x128xf32>
    %761 = arith.addf %760, %759 : vector<128x128xf32>
    %762 = arith.divf %760, %761 : vector<128x128xf32>
    %763 = arith.mulf %383, %762 : vector<128x128xf32>
    %764 = tpu.concatenate %763, %680, %691, %702, %713, %724, %735, %746, %757 in 1 : vector<128x128xf32>, vector<128x128xf32>, vector<128x128xf32>, vector<128x128xf32>, vector<128x128xf32>, vector<128x128xf32>, vector<128x128xf32>, vector<128x128xf32>, vector<128x128xf32> -> vector<128x1152xf32>
    %c0_265 = arith.constant 0 : index
    %c0_266 = arith.constant 0 : index
    %765 = vector.load %arg3[%c0_265, %c0_266] : memref<1152x128xf32, #tpu.memory_space<vmem>>, vector<1152x128xf32>
    %cst_267 = arith.constant dense<0.000000e+00> : vector<128x128xf32>
    %766 = tpu.matmul %764, %765, %cst_267 {dimension_numbers = #tpu.dot_dimension_numbers<[1], [0], [0], [1], [0, 0, 1, 1], [], []>} : vector<128x1152xf32>, vector<1152x128xf32>, vector<128x128xf32> -> vector<128x128xf32>
    %c0_268 = arith.constant 0 : index
    %c0_269 = arith.constant 0 : index
    %767 = vector.load %arg4[%c0_268, %c0_269] : memref<128x128xf32, #tpu.memory_space<vmem>>, vector<128x128xf32>
    tpu.vector_store %arg4[%c0_268, %c0_269], %766 {strides = array<i32>} : memref<128x128xf32, #tpu.memory_space<vmem>>, vector<128x128xf32>,
    return
  }
  func.func @transform_0(%arg0: i32) -> (i32, i32) {
    %c0_i32 = arith.constant 0 : i32
    %c0_i32_0 = arith.constant 0 : i32
    return %arg0, %c0_i32 : i32, i32
  }
  func.func @transform_1(%arg0: i32) -> (i32, i32) {
    %c0_i32 = arith.constant 0 : i32
    %c0_i32_0 = arith.constant 0 : i32
    %c0_i32_1 = arith.constant 0 : i32
    return %c0_i32, %c0_i32_0 : i32, i32
  }
  func.func @transform_2(%arg0: i32) -> (i32, i32) {
    %c0_i32 = arith.constant 0 : i32
    %c0_i32_0 = arith.constant 0 : i32
    %c0_i32_1 = arith.constant 0 : i32
    return %c0_i32, %c0_i32_0 : i32, i32
  }
  func.func @transform_3(%arg0: i32) -> (i32, i32) {
    %c0_i32 = arith.constant 0 : i32
    %c0_i32_0 = arith.constant 0 : i32
    return %arg0, %c0_i32 : i32, i32
  }
}

</mosaic_0001>

<llo_original>
// kernel: kan_forward.1
$region0: #{kan_forward.1}
  #allocation0 [shape = 'u32[]', space=smem, size = 0x4, offset = 0x4, fixed_abs, tag = 'smem constant byte address 0x4 - core index']
  #allocation1 [shape = 'u32[144,128]{1,0:T(1,128)}', space=vmem, size = 0x12000, scoped, tag = 'internal scratch']
  %s0 = inlined_call_operand.vmem [shape: f32[128,128], index: 0, kind: input, shape index: {}]
  %s1 = inlined_call_operand.hbm [shape: f32[1152,128], index: 1, kind: input, shape index: {}]
  %s2 = inlined_call_operand.hbm [shape: f32[1152,128], index: 2, kind: input, shape index: {}]
  %s3 = inlined_call_operand.vmem [shape: f32[128,128], index: 3, kind: output, shape index: {}]
  %s4 = sld [smem:[#allocation0]]
  $region30: #{kan_forward.1} parent=0
    _
  %s6 = ssub.s32 1, %s4
  %s7 = scalar_select 0, %s6, %s4
  $region1: #{kan_forward.1} parent=0
    #allocation2 [shape = 'u8[589824]{0}', space=vmem, size = 0x90000, scoped, tag = 'input window, operand 1, single buffered']
    #allocation3 [shape = 's32[1]{0}', space=sflag, size = 0x4, scoped, tag = 'scoped memory for kan_forward.1']
    #allocation4 [shape = 'u8[589824]{0}', space=vmem, size = 0x90000, scoped, tag = 'input window, operand 2, single buffered']
    #allocation5 [shape = 's32[1]{0}', space=sflag, size = 0x4, scoped, tag = 'scoped memory for kan_forward.1']
    %8 = vsyncpa [#allocation3], 0
    %9 = vsyncpa [#allocation5], 0
    // Predicated region
    $region2: #{kan_forward.1} parent=1 // pred_check
      _
    $region3: #{kan_forward.1} parent=1 // pred_check_branch
      %11 = sbr.rel (0) target = $region5
    $region4: #{kan_forward.1} parent=1 // pred_region
      _
    $region5: #{kan_forward.1} parent=1 // pred_fallthru
      _
    // Predicated region
    $region6: #{kan_forward.1} parent=1 // pred_check
      _
    $region7: #{kan_forward.1} parent=1 // pred_check_branch
      %13 = sbr.rel (0) target = $region9
    $region8: #{kan_forward.1} parent=1 // pred_region
      %s15 = ssub.s32 18432, 18432
      %16 = vsyncadd [#allocation3], %s15
      %s17 = sshll.u32 [#allocation2], 4
      %s18 = int_to_ptr.vmem [resolvable:$true] %s17
      %23 = dma.hbm_to_vmem [thread:$0]  %s1, 18432, %s18, [#allocation3], 128, 128, 8
    $region9: #{kan_forward.1} parent=1 // pred_fallthru
      _
    // Predicated region
    $region10: #{kan_forward.1} parent=1 // pred_check
      _
    $region11: #{kan_forward.1} parent=1 // pred_check_branch
      %25 = sbr.rel (0) target = $region13
    $region12: #{kan_forward.1} parent=1 // pred_region
      %s27 = ssub.s32 18432, 18432
      %28 = vsyncadd [#allocation5], %s27
      %s29 = sshll.u32 [#allocation4], 4
      %s30 = int_to_ptr.vmem [resolvable:$true] %s29
      %35 = dma.hbm_to_vmem [thread:$0]  %s2, 18432, %s30, [#allocation5], 128, 128, 8
    $region13: #{kan_forward.1} parent=1 // pred_fallthru
      _
    // Predicated region
    $region14: #{kan_forward.1} parent=1 // pred_check
      _
    $region15: #{kan_forward.1} parent=1 // pred_check_branch
      %37 = sbr.rel (0) target = $region17
    $region16: #{kan_forward.1} parent=1 // pred_region
      %38 = dma.done [#allocation3], 18432
    $region17: #{kan_forward.1} parent=1 // pred_fallthru
      _
    // Predicated region
    $region18: #{kan_forward.1} parent=1 // pred_check
      _
    $region19: #{kan_forward.1} parent=1 // pred_check_branch
      %40 = sbr.rel (0) target = $region21
    $region20: #{kan_forward.1} parent=1 // pred_region
      %41 = dma.done [#allocation5], 18432
    $region21: #{kan_forward.1} parent=1 // pred_fallthru
      _
    %v42 = vld [vmem:[%s0] sm:$0xff]
    %v43 = vld [vmem:[%s0 + $0x8] sm:$0xff]
    %v44 = vld [vmem:[%s0 + $0x10] sm:$0xff]
    %v45 = vld [vmem:[%s0 + $0x18] sm:$0xff]
    %v46 = vld [vmem:[%s0 + $0x20] sm:$0xff]
    %v47 = vld [vmem:[%s0 + $0x28] sm:$0xff]
    %v48 = vld [vmem:[%s0 + $0x30] sm:$0xff]
    %v49 = vld [vmem:[%s0 + $0x38] sm:$0xff]
    %v50 = vld [vmem:[%s0 + $0x40] sm:$0xff]
    %v51 = vld [vmem:[%s0 + $0x48] sm:$0xff]
    %v52 = vld [vmem:[%s0 + $0x50] sm:$0xff]
    %v53 = vld [vmem:[%s0 + $0x58] sm:$0xff]
    %v54 = vld [vmem:[%s0 + $0x60] sm:$0xff]
    %v55 = vld [vmem:[%s0 + $0x68] sm:$0xff]
    %v56 = vld [vmem:[%s0 + $0x70] sm:$0xff]
    %v57 = vld [vmem:[%s0 + $0x78] sm:$0xff]
    %vm58 = vcmp.ge.f32.partialorder %v42, -2.2
    %vm59 = vcmp.ge.f32.partialorder %v43, -2.2
    %vm60 = vcmp.ge.f32.partialorder %v44, -2.2
    %vm61 = vcmp.ge.f32.partialorder %v45, -2.2
    %vm62 = vcmp.ge.f32.partialorder %v46, -2.2
    %vm63 = vcmp.ge.f32.partialorder %v47, -2.2
    %vm64 = vcmp.ge.f32.partialorder %v48, -2.2
    %vm65 = vcmp.ge.f32.partialorder %v49, -2.2
    %vm66 = vcmp.ge.f32.partialorder %v50, -2.2
    %vm67 = vcmp.ge.f32.partialorder %v51, -2.2
    %vm68 = vcmp.ge.f32.partialorder %v52, -2.2
    %vm69 = vcmp.ge.f32.partialorder %v53, -2.2
    %vm70 = vcmp.ge.f32.partialorder %v54, -2.2
    %vm71 = vcmp.ge.f32.partialorder %v55, -2.2
    %vm72 = vcmp.ge.f32.partialorder %v56, -2.2
    %vm73 = vcmp.ge.f32.partialorder %v57, -2.2
    %vm74 = vcmp.lt.f32.partialorder %v42, -1.8
    %vm75 = vcmp.lt.f32.partialorder %v43, -1.8
    %vm76 = vcmp.lt.f32.partialorder %v44, -1.8
    %vm77 = vcmp.lt.f32.partialorder %v45, -1.8
    %vm78 = vcmp.lt.f32.partialorder %v46, -1.8
    %vm79 = vcmp.lt.f32.partialorder %v47, -1.8
    %vm80 = vcmp.lt.f32.partialorder %v48, -1.8
    %vm81 = vcmp.lt.f32.partialorder %v49, -1.8
    %vm82 = vcmp.lt.f32.partialorder %v50, -1.8
    %vm83 = vcmp.lt.f32.partialorder %v51, -1.8
    %vm84 = vcmp.lt.f32.partialorder %v52, -1.8
    %vm85 = vcmp.lt.f32.partialorder %v53, -1.8
    %vm86 = vcmp.lt.f32.partialorder %v54, -1.8
    %vm87 = vcmp.lt.f32.partialorder %v55, -1.8
    %vm88 = vcmp.lt.f32.partialorder %v56, -1.8
    %vm89 = vcmp.lt.f32.partialorder %v57, -1.8
    %vm90 = vmand %vm58, %vm74
    %vm91 = vmand %vm59, %vm75
    %vm92 = vmand %vm60, %vm76
    %vm93 = vmand %vm61, %vm77
    %vm94 = vmand %vm62, %vm78
    %vm95 = vmand %vm63, %vm79
    %vm96 = vmand %vm64, %vm80
    %vm97 = vmand %vm65, %vm81
    %vm98 = vmand %vm66, %vm82
    %vm99 = vmand %vm67, %vm83
    %vm100 = vmand %vm68, %vm84
    %vm101 = vmand %vm69, %vm85
    %vm102 = vmand %vm70, %vm86
    %vm103 = vmand %vm71, %vm87
    %vm104 = vmand %vm72, %vm88
    %vm105 = vmand %vm73, %vm89
    %v106 = vsel %vm90, 1, 0
    %v107 = vsel %vm91, 1, 0
    %v108 = vsel %vm92, 1, 0
    %v109 = vsel %vm93, 1, 0
    %v110 = vsel %vm94, 1, 0
    %v111 = vsel %vm95, 1, 0
    %v112 = vsel %vm96, 1, 0
    %v113 = vsel %vm97, 1, 0
    %v114 = vsel %vm98, 1, 0
    %v115 = vsel %vm99, 1, 0
    %v116 = vsel %vm100, 1, 0
    %v117 = vsel %vm101, 1, 0
    %v118 = vsel %vm102, 1, 0
    %v119 = vsel %vm103, 1, 0
    %v120 = vsel %vm104, 1, 0
    %v121 = vsel %vm105, 1, 0
    %v122 = vcvt.s32.f32 %v106
    %v123 = vcvt.s32.f32 %v107
    %v124 = vcvt.s32.f32 %v108
    %v125 = vcvt.s32.f32 %v109
    %v126 = vcvt.s32.f32 %v110
    %v127 = vcvt.s32.f32 %v111
    %v128 = vcvt.s32.f32 %v112
    %v129 = vcvt.s32.f32 %v113
    %v130 = vcvt.s32.f32 %v114
    %v131 = vcvt.s32.f32 %v115
    %v132 = vcvt.s32.f32 %v116
    %v133 = vcvt.s32.f32 %v117
    %v134 = vcvt.s32.f32 %v118
    %v135 = vcvt.s32.f32 %v119
    %v136 = vcvt.s32.f32 %v120
    %v137 = vcvt.s32.f32 %v121
    %vm138 = vcmp.ge.f32.partialorder %v42, -1.8
    %vm139 = vcmp.ge.f32.partialorder %v43, -1.8
    %vm140 = vcmp.ge.f32.partialorder %v44, -1.8
    %vm141 = vcmp.ge.f32.partialorder %v45, -1.8
    %vm142 = vcmp.ge.f32.partialorder %v46, -1.8
    %vm143 = vcmp.ge.f32.partialorder %v47, -1.8
    %vm144 = vcmp.ge.f32.partialorder %v48, -1.8
    %vm145 = vcmp.ge.f32.partialorder %v49, -1.8
    %vm146 = vcmp.ge.f32.partialorder %v50, -1.8
    %vm147 = vcmp.ge.f32.partialorder %v51, -1.8
    %vm148 = vcmp.ge.f32.partialorder %v52, -1.8
    %vm149 = vcmp.ge.f32.partialorder %v53, -1.8
    %vm150 = vcmp.ge.f32.partialorder %v54, -1.8
    %vm151 = vcmp.ge.f32.partialorder %v55, -1.8
    %vm152 = vcmp.ge.f32.partialorder %v56, -1.8
    %vm153 = vcmp.ge.f32.partialorder %v57, -1.8
    %vm154 = vcmp.lt.f32.partialorder %v42, -1.4
    %vm155 = vcmp.lt.f32.partialorder %v43, -1.4
    %vm156 = vcmp.lt.f32.partialorder %v44, -1.4
    %vm157 = vcmp.lt.f32.partialorder %v45, -1.4
    %vm158 = vcmp.lt.f32.partialorder %v46, -1.4
    %vm159 = vcmp.lt.f32.partialorder %v47, -1.4
    %vm160 = vcmp.lt.f32.partialorder %v48, -1.4
    %vm161 = vcmp.lt.f32.partialorder %v49, -1.4
    %vm162 = vcmp.lt.f32.partialorder %v50, -1.4
    %vm163 = vcmp.lt.f32.partialorder %v51, -1.4
    %vm164 = vcmp.lt.f32.partialorder %v52, -1.4
    %vm165 = vcmp.lt.f32.partialorder %v53, -1.4
    %vm166 = vcmp.lt.f32.partialorder %v54, -1.4
    %vm167 = vcmp.lt.f32.partialorder %v55, -1.4
    %vm168 = vcmp.lt.f32.partialorder %v56, -1.4
    %vm169 = vcmp.lt.f32.partialorder %v57, -1.4
    %vm170 = vmand %vm138, %vm154
    %vm171 = vmand %vm139, %vm155
    %vm172 = vmand %vm140, %vm156
    %vm173 = vmand %vm141, %vm157
    %vm174 = vmand %vm142, %vm158
    %vm175 = vmand %vm143, %vm159
    %vm176 = vmand %vm144, %vm160
    %vm177 = vmand %vm145, %vm161
    %vm178 = vmand %vm146, %vm162
    %vm179 = vmand %vm147, %vm163
    %vm180 = vmand %vm148, %vm164
    %vm181 = vmand %vm149, %vm165
    %vm182 = vmand %vm150, %vm166
    %vm183 = vmand %vm151, %vm167
    %vm184 = vmand %vm152, %vm168
    %vm185 = vmand %vm153, %vm169
    %v186 = vsel %vm170, 1, 0
    %v187 = vsel %vm171, 1, 0
    %v188 = vsel %vm172, 1, 0
    %v189 = vsel %vm173, 1, 0
    %v190 = vsel %vm174, 1, 0
    %v191 = vsel %vm175, 1, 0
    %v192 = vsel %vm176, 1, 0
    %v193 = vsel %vm177, 1, 0
    %v194 = vsel %vm178, 1, 0
    %v195 = vsel %vm179, 1, 0
    %v196 = vsel %vm180, 1, 0
    %v197 = vsel %vm181, 1, 0
    %v198 = vsel %vm182, 1, 0
    %v199 = vsel %vm183, 1, 0
    %v200 = vsel %vm184, 1, 0
    %v201 = vsel %vm185, 1, 0
    %v202 = vcvt.s32.f32 %v186
    %v203 = vcvt.s32.f32 %v187
    %v204 = vcvt.s32.f32 %v188
    %v205 = vcvt.s32.f32 %v189
    %v206 = vcvt.s32.f32 %v190
    %v207 = vcvt.s32.f32 %v191
    %v208 = vcvt.s32.f32 %v192
    %v209 = vcvt.s32.f32 %v193
    %v210 = vcvt.s32.f32 %v194
    %v211 = vcvt.s32.f32 %v195
    %v212 = vcvt.s32.f32 %v196
    %v213 = vcvt.s32.f32 %v197
    %v214 = vcvt.s32.f32 %v198
    %v215 = vcvt.s32.f32 %v199
    %v216 = vcvt.s32.f32 %v200
    %v217 = vcvt.s32.f32 %v201
    %vm218 = vcmp.ge.f32.partialorder %v42, -1.4
    %vm219 = vcmp.ge.f32.partialorder %v43, -1.4
    %vm220 = vcmp.ge.f32.partialorder %v44, -1.4
    %vm221 = vcmp.ge.f32.partialorder %v45, -1.4
    %vm222 = vcmp.ge.f32.partialorder %v46, -1.4
    %vm223 = vcmp.ge.f32.partialorder %v47, -1.4
    %vm224 = vcmp.ge.f32.partialorder %v48, -1.4
    %vm225 = vcmp.ge.f32.partialorder %v49, -1.4
    %vm226 = vcmp.ge.f32.partialorder %v50, -1.4
    %vm227 = vcmp.ge.f32.partialorder %v51, -1.4
    %vm228 = vcmp.ge.f32.partialorder %v52, -1.4
    %vm229 = vcmp.ge.f32.partialorder %v53, -1.4
    %vm230 = vcmp.ge.f32.partialorder %v54, -1.4
    %vm231 = vcmp.ge.f32.partialorder %v55, -1.4
    %vm232 = vcmp.ge.f32.partialorder %v56, -1.4
    %vm233 = vcmp.ge.f32.partialorder %v57, -1.4
    %vm234 = vcmp.lt.f32.partialorder %v42, -1.0
    %vm235 = vcmp.lt.f32.partialorder %v43, -1.0
    %vm236 = vcmp.lt.f32.partialorder %v44, -1.0
    %vm237 = vcmp.lt.f32.partialorder %v45, -1.0
    %vm238 = vcmp.lt.f32.partialorder %v46, -1.0
    %vm239 = vcmp.lt.f32.partialorder %v47, -1.0
    %vm240 = vcmp.lt.f32.partialorder %v48, -1.0
    %vm241 = vcmp.lt.f32.partialorder %v49, -1.0
    %vm242 = vcmp.lt.f32.partialorder %v50, -1.0
    %vm243 = vcmp.lt.f32.partialorder %v51, -1.0
    %vm244 = vcmp.lt.f32.partialorder %v52, -1.0
    %vm245 = vcmp.lt.f32.partialorder %v53, -1.0
    %vm246 = vcmp.lt.f32.partialorder %v54, -1.0
    %vm247 = vcmp.lt.f32.partialorder %v55, -1.0
    %vm248 = vcmp.lt.f32.partialorder %v56, -1.0
    %vm249 = vcmp.lt.f32.partialorder %v57, -1.0
    %vm250 = vmand %vm218, %vm234
    %vm251 = vmand %vm219, %vm235
    %vm252 = vmand %vm220, %vm236
    %vm253 = vmand %vm221, %vm237
    %vm254 = vmand %vm222, %vm238
    %vm255 = vmand %vm223, %vm239
    %vm256 = vmand %vm224, %vm240
    %vm257 = vmand %vm225, %vm241
    %vm258 = vmand %vm226, %vm242
    %vm259 = vmand %vm227, %vm243
    %vm260 = vmand %vm228, %vm244
    %vm261 = vmand %vm229, %vm245
    %vm262 = vmand %vm230, %vm246
    %vm263 = vmand %vm231, %vm247
    %vm264 = vmand %vm232, %vm248
    %vm265 = vmand %vm233, %vm249
    %v266 = vsel %vm250, 1, 0
    %v267 = vsel %vm251, 1, 0
    %v268 = vsel %vm252, 1, 0
    %v269 = vsel %vm253, 1, 0
    %v270 = vsel %vm254, 1, 0
    %v271 = vsel %vm255, 1, 0
    %v272 = vsel %vm256, 1, 0
    %v273 = vsel %vm257, 1, 0
    %v274 = vsel %vm258, 1, 0
    %v275 = vsel %vm259, 1, 0
    %v276 = vsel %vm260, 1, 0
    %v277 = vsel %vm261, 1, 0
    %v278 = vsel %vm262, 1, 0
    %v279 = vsel %vm263, 1, 0
    %v280 = vsel %vm264, 1, 0
    %v281 = vsel %vm265, 1, 0
    %v282 = vcvt.s32.f32 %v266
    %v283 = vcvt.s32.f32 %v267
    %v284 = vcvt.s32.f32 %v268
    %v285 = vcvt.s32.f32 %v269
    %v286 = vcvt.s32.f32 %v270
    %v287 = vcvt.s32.f32 %v271
    %v288 = vcvt.s32.f32 %v272
    %v289 = vcvt.s32.f32 %v273
    %v290 = vcvt.s32.f32 %v274
    %v291 = vcvt.s32.f32 %v275
    %v292 = vcvt.s32.f32 %v276
    %v293 = vcvt.s32.f32 %v277
    %v294 = vcvt.s32.f32 %v278
    %v295 = vcvt.s32.f32 %v279
    %v296 = vcvt.s32.f32 %v280
    %v297 = vcvt.s32.f32 %v281
    %vm298 = vcmp.ge.f32.partialorder %v42, -1.0
    %vm299 = vcmp.ge.f32.partialorder %v43, -1.0
    %vm300 = vcmp.ge.f32.partialorder %v44, -1.0
    %vm301 = vcmp.ge.f32.partialorder %v45, -1.0
    %vm302 = vcmp.ge.f32.partialorder %v46, -1.0
    %vm303 = vcmp.ge.f32.partialorder %v47, -1.0
    %vm304 = vcmp.ge.f32.partialorder %v48, -1.0
    %vm305 = vcmp.ge.f32.partialorder %v49, -1.0
    %vm306 = vcmp.ge.f32.partialorder %v50, -1.0
    %vm307 = vcmp.ge.f32.partialorder %v51, -1.0
    %vm308 = vcmp.ge.f32.partialorder %v52, -1.0
    %vm309 = vcmp.ge.f32.partialorder %v53, -1.0
    %vm310 = vcmp.ge.f32.partialorder %v54, -1.0
    %vm311 = vcmp.ge.f32.partialorder %v55, -1.0
    %vm312 = vcmp.ge.f32.partialorder %v56, -1.0
    %vm313 = vcmp.ge.f32.partialorder %v57, -1.0
    %vm314 = vcmp.lt.f32.partialorder %v42, -0.6
    %vm315 = vcmp.lt.f32.partialorder %v43, -0.6
    %vm316 = vcmp.lt.f32.partialorder %v44, -0.6
    %vm317 = vcmp.lt.f32.partialorder %v45, -0.6
    %vm318 = vcmp.lt.f32.partialorder %v46, -0.6
    %vm319 = vcmp.lt.f32.partialorder %v47, -0.6
    %vm320 = vcmp.lt.f32.partialorder %v48, -0.6
    %vm321 = vcmp.lt.f32.partialorder %v49, -0.6
    %vm322 = vcmp.lt.f32.partialorder %v50, -0.6
    %vm323 = vcmp.lt.f32.partialorder %v51, -0.6
    %vm324 = vcmp.lt.f32.partialorder %v52, -0.6
    %vm325 = vcmp.lt.f32.partialorder %v53, -0.6
    %vm326 = vcmp.lt.f32.partialorder %v54, -0.6
    %vm327 = vcmp.lt.f32.partialorder %v55, -0.6
    %vm328 = vcmp.lt.f32.partialorder %v56, -0.6
    %vm329 = vcmp.lt.f32.partialorder %v57, -0.6
    %vm330 = vmand %vm298, %vm314
    %vm331 = vmand %vm299, %vm315
    %vm332 = vmand %vm300, %vm316
    %vm333 = vmand %vm301, %vm317
    %vm334 = vmand %vm302, %vm318
    %vm335 = vmand %vm303, %vm319
    %vm336 = vmand %vm304, %vm320
    %vm337 = vmand %vm305, %vm321
    %vm338 = vmand %vm306, %vm322
    %vm339 = vmand %vm307, %vm323
    %vm340 = vmand %vm308, %vm324
    %vm341 = vmand %vm309, %vm325
    %vm342 = vmand %vm310, %vm326
    %vm343 = vmand %vm311, %vm327
    %vm344 = vmand %vm312, %vm328
    %vm345 = vmand %vm313, %vm329
    %v346 = vsel %vm330, 1, 0
    %v347 = vsel %vm331, 1, 0
    %v348 = vsel %vm332, 1, 0
    %v349 = vsel %vm333, 1, 0
    %v350 = vsel %vm334, 1, 0
    %v351 = vsel %vm335, 1, 0
    %v352 = vsel %vm336, 1, 0
    %v353 = vsel %vm337, 1, 0
    %v354 = vsel %vm338, 1, 0
    %v355 = vsel %vm339, 1, 0
    %v356 = vsel %vm340, 1, 0
    %v357 = vsel %vm341, 1, 0
    %v358 = vsel %vm342, 1, 0
    %v359 = vsel %vm343, 1, 0
    %v360 = vsel %vm344, 1, 0
    %v361 = vsel %vm345, 1, 0
    %v362 = vcvt.s32.f32 %v346
    %v363 = vcvt.s32.f32 %v347
    %v364 = vcvt.s32.f32 %v348
    %v365 = vcvt.s32.f32 %v349
    %v366 = vcvt.s32.f32 %v350
    %v367 = vcvt.s32.f32 %v351
    %v368 = vcvt.s32.f32 %v352
    %v369 = vcvt.s32.f32 %v353
    %v370 = vcvt.s32.f32 %v354
    %v371 = vcvt.s32.f32 %v355
    %v372 = vcvt.s32.f32 %v356
    %v373 = vcvt.s32.f32 %v357
    %v374 = vcvt.s32.f32 %v358
    %v375 = vcvt.s32.f32 %v359
    %v376 = vcvt.s32.f32 %v360
    %v377 = vcvt.s32.f32 %v361
    %vm378 = vcmp.ge.f32.partialorder %v42, -0.6
    %vm379 = vcmp.ge.f32.partialorder %v43, -0.6
    %vm380 = vcmp.ge.f32.partialorder %v44, -0.6
    %vm381 = vcmp.ge.f32.partialorder %v45, -0.6
    %vm382 = vcmp.ge.f32.partialorder %v46, -0.6
    %vm383 = vcmp.ge.f32.partialorder %v47, -0.6
    %vm384 = vcmp.ge.f32.partialorder %v48, -0.6
    %vm385 = vcmp.ge.f32.partialorder %v49, -0.6
    %vm386 = vcmp.ge.f32.partialorder %v50, -0.6
    %vm387 = vcmp.ge.f32.partialorder %v51, -0.6
    %vm388 = vcmp.ge.f32.partialorder %v52, -0.6
    %vm389 = vcmp.ge.f32.partialorder %v53, -0.6
    %vm390 = vcmp.ge.f32.partialorder %v54, -0.6
    %vm391 = vcmp.ge.f32.partialorder %v55, -0.6
    %vm392 = vcmp.ge.f32.partialorder %v56, -0.6
    %vm393 = vcmp.ge.f32.partialorder %v57, -0.6
    %vm394 = vcmp.lt.f32.partialorder %v42, -0.19999999
    %vm395 = vcmp.lt.f32.partialorder %v43, -0.19999999
    %vm396 = vcmp.lt.f32.partialorder %v44, -0.19999999
    %vm397 = vcmp.lt.f32.partialorder %v45, -0.19999999
    %vm398 = vcmp.lt.f32.partialorder %v46, -0.19999999
    %vm399 = vcmp.lt.f32.partialorder %v47, -0.19999999
    %vm400 = vcmp.lt.f32.partialorder %v48, -0.19999999
    %vm401 = vcmp.lt.f32.partialorder %v49, -0.19999999
    %vm402 = vcmp.lt.f32.partialorder %v50, -0.19999999
    %vm403 = vcmp.lt.f32.partialorder %v51, -0.19999999
    %vm404 = vcmp.lt.f32.partialorder %v52, -0.19999999
    %vm405 = vcmp.lt.f32.partialorder %v53, -0.19999999
    %vm406 = vcmp.lt.f32.partialorder %v54, -0.19999999
    %vm407 = vcmp.lt.f32.partialorder %v55, -0.19999999
    %vm408 = vcmp.lt.f32.partialorder %v56, -0.19999999
    %vm409 = vcmp.lt.f32.partialorder %v57, -0.19999999
    %vm410 = vmand %vm378, %vm394
    %vm411 = vmand %vm379, %vm395
    %vm412 = vmand %vm380, %vm396
    %vm413 = vmand %vm381, %vm397
    %vm414 = vmand %vm382, %vm398
    %vm415 = vmand %vm383, %vm399
    %vm416 = vmand %vm384, %vm400
    %vm417 = vmand %vm385, %vm401
    %vm418 = vmand %vm386, %vm402
    %vm419 = vmand %vm387, %vm403
    %vm420 = vmand %vm388, %vm404
    %vm421 = vmand %vm389, %vm405
    %vm422 = vmand %vm390, %vm406
    %vm423 = vmand %vm391, %vm407
    %vm424 = vmand %vm392, %vm408
    %vm425 = vmand %vm393, %vm409
    %v426 = vsel %vm410, 1, 0
    %v427 = vsel %vm411, 1, 0
    %v428 = vsel %vm412, 1, 0
    %v429 = vsel %vm413, 1, 0
    %v430 = vsel %vm414, 1, 0
    %v431 = vsel %vm415, 1, 0
    %v432 = vsel %vm416, 1, 0
    %v433 = vsel %vm417, 1, 0
    %v434 = vsel %vm418, 1, 0
    %v435 = vsel %vm419, 1, 0
    %v436 = vsel %vm420, 1, 0
    %v437 = vsel %vm421, 1, 0
    %v438 = vsel %vm422, 1, 0
    %v439 = vsel %vm423, 1, 0
    %v440 = vsel %vm424, 1, 0
    %v441 = vsel %vm425, 1, 0
    %v442 = vcvt.s32.f32 %v426
    %v443 = vcvt.s32.f32 %v427
    %v444 = vcvt.s32.f32 %v428
    %v445 = vcvt.s32.f32 %v429
    %v446 = vcvt.s32.f32 %v430
    %v447 = vcvt.s32.f32 %v431
    %v448 = vcvt.s32.f32 %v432
    %v449 = vcvt.s32.f32 %v433
    %v450 = vcvt.s32.f32 %v434
    %v451 = vcvt.s32.f32 %v435
    %v452 = vcvt.s32.f32 %v436
    %v453 = vcvt.s32.f32 %v437
    %v454 = vcvt.s32.f32 %v438
    %v455 = vcvt.s32.f32 %v439
    %v456 = vcvt.s32.f32 %v440
    %v457 = vcvt.s32.f32 %v441
    %vm458 = vcmp.ge.f32.partialorder %v42, -0.19999999
    %vm459 = vcmp.ge.f32.partialorder %v43, -0.19999999
    %vm460 = vcmp.ge.f32.partialorder %v44, -0.19999999
    %vm461 = vcmp.ge.f32.partialorder %v45, -0.19999999
    %vm462 = vcmp.ge.f32.partialorder %v46, -0.19999999
    %vm463 = vcmp.ge.f32.partialorder %v47, -0.19999999
    %vm464 = vcmp.ge.f32.partialorder %v48, -0.19999999
    %vm465 = vcmp.ge.f32.partialorder %v49, -0.19999999
    %vm466 = vcmp.ge.f32.partialorder %v50, -0.19999999
    %vm467 = vcmp.ge.f32.partialorder %v51, -0.19999999
    %vm468 = vcmp.ge.f32.partialorder %v52, -0.19999999
    %vm469 = vcmp.ge.f32.partialorder %v53, -0.19999999
    %vm470 = vcmp.ge.f32.partialorder %v54, -0.19999999
    %vm471 = vcmp.ge.f32.partialorder %v55, -0.19999999
    %vm472 = vcmp.ge.f32.partialorder %v56, -0.19999999
    %vm473 = vcmp.ge.f32.partialorder %v57, -0.19999999
    %vm474 = vcmp.lt.f32.partialorder %v42, 0.20000005
    %vm475 = vcmp.lt.f32.partialorder %v43, 0.20000005
    %vm476 = vcmp.lt.f32.partialorder %v44, 0.20000005
    %vm477 = vcmp.lt.f32.partialorder %v45, 0.20000005
    %vm478 = vcmp.lt.f32.partialorder %v46, 0.20000005
    %vm479 = vcmp.lt.f32.partialorder %v47, 0.20000005
    %vm480 = vcmp.lt.f32.partialorder %v48, 0.20000005
    %vm481 = vcmp.lt.f32.partialorder %v49, 0.20000005
    %vm482 = vcmp.lt.f32.partialorder %v50, 0.20000005
    %vm483 = vcmp.lt.f32.partialorder %v51, 0.20000005
    %vm484 = vcmp.lt.f32.partialorder %v52, 0.20000005
    %vm485 = vcmp.lt.f32.partialorder %v53, 0.20000005
    %vm486 = vcmp.lt.f32.partialorder %v54, 0.20000005
    %vm487 = vcmp.lt.f32.partialorder %v55, 0.20000005
    %vm488 = vcmp.lt.f32.partialorder %v56, 0.20000005
    %vm489 = vcmp.lt.f32.partialorder %v57, 0.20000005
    %vm490 = vmand %vm458, %vm474
    %vm491 = vmand %vm459, %vm475
    %vm492 = vmand %vm460, %vm476
    %vm493 = vmand %vm461, %vm477
    %vm494 = vmand %vm462, %vm478
    %vm495 = vmand %vm463, %vm479
    %vm496 = vmand %vm464, %vm480
    %vm497 = vmand %vm465, %vm481
    %vm498 = vmand %vm466, %vm482
    %vm499 = vmand %vm467, %vm483
    %vm500 = vmand %vm468, %vm484
    %vm501 = vmand %vm469, %vm485
    %vm502 = vmand %vm470, %vm486
    %vm503 = vmand %vm471, %vm487
    %vm504 = vmand %vm472, %vm488
    %vm505 = vmand %vm473, %vm489
    %v506 = vsel %vm490, 1, 0
    %v507 = vsel %vm491, 1, 0
    %v508 = vsel %vm492, 1, 0
    %v509 = vsel %vm493, 1, 0
    %v510 = vsel %vm494, 1, 0
    %v511 = vsel %vm495, 1, 0
    %v512 = vsel %vm496, 1, 0
    %v513 = vsel %vm497, 1, 0
    %v514 = vsel %vm498, 1, 0
    %v515 = vsel %vm499, 1, 0
    %v516 = vsel %vm500, 1, 0
    %v517 = vsel %vm501, 1, 0
    %v518 = vsel %vm502, 1, 0
    %v519 = vsel %vm503, 1, 0
    %v520 = vsel %vm504, 1, 0
    %v521 = vsel %vm505, 1, 0
    %v522 = vcvt.s32.f32 %v506
    %v523 = vcvt.s32.f32 %v507
    %v524 = vcvt.s32.f32 %v508
    %v525 = vcvt.s32.f32 %v509
    %v526 = vcvt.s32.f32 %v510
    %v527 = vcvt.s32.f32 %v511
    %v528 = vcvt.s32.f32 %v512
    %v529 = vcvt.s32.f32 %v513
    %v530 = vcvt.s32.f32 %v514
    %v531 = vcvt.s32.f32 %v515
    %v532 = vcvt.s32.f32 %v516
    %v533 = vcvt.s32.f32 %v517
    %v534 = vcvt.s32.f32 %v518
    %v535 = vcvt.s32.f32 %v519
    %v536 = vcvt.s32.f32 %v520
    %v537 = vcvt.s32.f32 %v521
    %vm538 = vcmp.ge.f32.partialorder %v42, 0.20000005
    %vm539 = vcmp.ge.f32.partialorder %v43, 0.20000005
    %vm540 = vcmp.ge.f32.partialorder %v44, 0.20000005
    %vm541 = vcmp.ge.f32.partialorder %v45, 0.20000005
    %vm542 = vcmp.ge.f32.partialorder %v46, 0.20000005
    %vm543 = vcmp.ge.f32.partialorder %v47, 0.20000005
    %vm544 = vcmp.ge.f32.partialorder %v48, 0.20000005
    %vm545 = vcmp.ge.f32.partialorder %v49, 0.20000005
    %vm546 = vcmp.ge.f32.partialorder %v50, 0.20000005
    %vm547 = vcmp.ge.f32.partialorder %v51, 0.20000005
    %vm548 = vcmp.ge.f32.partialorder %v52, 0.20000005
    %vm549 = vcmp.ge.f32.partialorder %v53, 0.20000005
    %vm550 = vcmp.ge.f32.partialorder %v54, 0.20000005
    %vm551 = vcmp.ge.f32.partialorder %v55, 0.20000005
    %vm552 = vcmp.ge.f32.partialorder %v56, 0.20000005
    %vm553 = vcmp.ge.f32.partialorder %v57, 0.20000005
    %vm554 = vcmp.lt.f32.partialorder %v42, 0.6
    %vm555 = vcmp.lt.f32.partialorder %v43, 0.6
    %vm556 = vcmp.lt.f32.partialorder %v44, 0.6
    %vm557 = vcmp.lt.f32.partialorder %v45, 0.6
    %vm558 = vcmp.lt.f32.partialorder %v46, 0.6
    %vm559 = vcmp.lt.f32.partialorder %v47, 0.6
    %vm560 = vcmp.lt.f32.partialorder %v48, 0.6
    %vm561 = vcmp.lt.f32.partialorder %v49, 0.6
    %vm562 = vcmp.lt.f32.partialorder %v50, 0.6
    %vm563 = vcmp.lt.f32.partialorder %v51, 0.6
    %vm564 = vcmp.lt.f32.partialorder %v52, 0.6
    %vm565 = vcmp.lt.f32.partialorder %v53, 0.6
    %vm566 = vcmp.lt.f32.partialorder %v54, 0.6
    %vm567 = vcmp.lt.f32.partialorder %v55, 0.6
    %vm568 = vcmp.lt.f32.partialorder %v56, 0.6
    %vm569 = vcmp.lt.f32.partialorder %v57, 0.6
    %vm570 = vmand %vm538, %vm554
    %vm571 = vmand %vm539, %vm555
    %vm572 = vmand %vm540, %vm556
    %vm573 = vmand %vm541, %vm557
    %vm574 = vmand %vm542, %vm558
    %vm575 = vmand %vm543, %vm559
    %vm576 = vmand %vm544, %vm560
    %vm577 = vmand %vm545, %vm561
    %vm578 = vmand %vm546, %vm562
    %vm579 = vmand %vm547, %vm563
    %vm580 = vmand %vm548, %vm564
    %vm581 = vmand %vm549, %vm565
    %vm582 = vmand %vm550, %vm566
    %vm583 = vmand %vm551, %vm567
    %vm584 = vmand %vm552, %vm568
    %vm585 = vmand %vm553, %vm569
    %v586 = vsel %vm570, 1, 0
    %v587 = vsel %vm571, 1, 0
    %v588 = vsel %vm572, 1, 0
    %v589 = vsel %vm573, 1, 0
    %v590 = vsel %vm574, 1, 0
    %v591 = vsel %vm575, 1, 0
    %v592 = vsel %vm576, 1, 0
    %v593 = vsel %vm577, 1, 0
    %v594 = vsel %vm578, 1, 0
    %v595 = vsel %vm579, 1, 0
    %v596 = vsel %vm580, 1, 0
    %v597 = vsel %vm581, 1, 0
    %v598 = vsel %vm582, 1, 0
    %v599 = vsel %vm583, 1, 0
    %v600 = vsel %vm584, 1, 0
    %v601 = vsel %vm585, 1, 0
    %v602 = vcvt.s32.f32 %v586
    %v603 = vcvt.s32.f32 %v587
    %v604 = vcvt.s32.f32 %v588
    %v605 = vcvt.s32.f32 %v589
    %v606 = vcvt.s32.f32 %v590
    %v607 = vcvt.s32.f32 %v591
    %v608 = vcvt.s32.f32 %v592
    %v609 = vcvt.s32.f32 %v593
    %v610 = vcvt.s32.f32 %v594
    %v611 = vcvt.s32.f32 %v595
    %v612 = vcvt.s32.f32 %v596
    %v613 = vcvt.s32.f32 %v597
    %v614 = vcvt.s32.f32 %v598
    %v615 = vcvt.s32.f32 %v599
    %v616 = vcvt.s32.f32 %v600
    %v617 = vcvt.s32.f32 %v601
    %vm618 = vcmp.ge.f32.partialorder %v42, 0.6
    %vm619 = vcmp.ge.f32.partialorder %v43, 0.6
    %vm620 = vcmp.ge.f32.partialorder %v44, 0.6
    %vm621 = vcmp.ge.f32.partialorder %v45, 0.6
    %vm622 = vcmp.ge.f32.partialorder %v46, 0.6
    %vm623 = vcmp.ge.f32.partialorder %v47, 0.6
    %vm624 = vcmp.ge.f32.partialorder %v48, 0.6
    %vm625 = vcmp.ge.f32.partialorder %v49, 0.6
    %vm626 = vcmp.ge.f32.partialorder %v50, 0.6
    %vm627 = vcmp.ge.f32.partialorder %v51, 0.6
    %vm628 = vcmp.ge.f32.partialorder %v52, 0.6
    %vm629 = vcmp.ge.f32.partialorder %v53, 0.6
    %vm630 = vcmp.ge.f32.partialorder %v54, 0.6
    %vm631 = vcmp.ge.f32.partialorder %v55, 0.6
    %vm632 = vcmp.ge.f32.partialorder %v56, 0.6
    %vm633 = vcmp.ge.f32.partialorder %v57, 0.6
    %vm634 = vcmp.lt.f32.partialorder %v42, 1.0
    %vm635 = vcmp.lt.f32.partialorder %v43, 1.0
    %vm636 = vcmp.lt.f32.partialorder %v44, 1.0
    %vm637 = vcmp.lt.f32.partialorder %v45, 1.0
    %vm638 = vcmp.lt.f32.partialorder %v46, 1.0
    %vm639 = vcmp.lt.f32.partialorder %v47, 1.0
    %vm640 = vcmp.lt.f32.partialorder %v48, 1.0
    %vm641 = vcmp.lt.f32.partialorder %v49, 1.0
    %vm642 = vcmp.lt.f32.partialorder %v50, 1.0
    %vm643 = vcmp.lt.f32.partialorder %v51, 1.0
    %vm644 = vcmp.lt.f32.partialorder %v52, 1.0
    %vm645 = vcmp.lt.f32.partialorder %v53, 1.0
    %vm646 = vcmp.lt.f32.partialorder %v54, 1.0
    %vm647 = vcmp.lt.f32.partialorder %v55, 1.0
    %vm648 = vcmp.lt.f32.partialorder %v56, 1.0
    %vm649 = vcmp.lt.f32.partialorder %v57, 1.0
    %vm650 = vmand %vm618, %vm634
    %vm651 = vmand %vm619, %vm635
    %vm652 = vmand %vm620, %vm636
    %vm653 = vmand %vm621, %vm637
    %vm654 = vmand %vm622, %vm638
    %vm655 = vmand %vm623, %vm639
    %vm656 = vmand %vm624, %vm640
    %vm657 = vmand %vm625, %vm641
    %vm658 = vmand %vm626, %vm642
    %vm659 = vmand %vm627, %vm643
    %vm660 = vmand %vm628, %vm644
    %vm661 = vmand %vm629, %vm645
    %vm662 = vmand %vm630, %vm646
    %vm663 = vmand %vm631, %vm647
    %vm664 = vmand %vm632, %vm648
    %vm665 = vmand %vm633, %vm649
    %v666 = vsel %vm650, 1, 0
    %v667 = vsel %vm651, 1, 0
    %v668 = vsel %vm652, 1, 0
    %v669 = vsel %vm653, 1, 0
    %v670 = vsel %vm654, 1, 0
    %v671 = vsel %vm655, 1, 0
    %v672 = vsel %vm656, 1, 0
    %v673 = vsel %vm657, 1, 0
    %v674 = vsel %vm658, 1, 0
    %v675 = vsel %vm659, 1, 0
    %v676 = vsel %vm660, 1, 0
    %v677 = vsel %vm661, 1, 0
    %v678 = vsel %vm662, 1, 0
    %v679 = vsel %vm663, 1, 0
    %v680 = vsel %vm664, 1, 0
    %v681 = vsel %vm665, 1, 0
    %v682 = vcvt.s32.f32 %v666
    %v683 = vcvt.s32.f32 %v667
    %v684 = vcvt.s32.f32 %v668
    %v685 = vcvt.s32.f32 %v669
    %v686 = vcvt.s32.f32 %v670
    %v687 = vcvt.s32.f32 %v671
    %v688 = vcvt.s32.f32 %v672
    %v689 = vcvt.s32.f32 %v673
    %v690 = vcvt.s32.f32 %v674
    %v691 = vcvt.s32.f32 %v675
    %v692 = vcvt.s32.f32 %v676
    %v693 = vcvt.s32.f32 %v677
    %v694 = vcvt.s32.f32 %v678
    %v695 = vcvt.s32.f32 %v679
    %v696 = vcvt.s32.f32 %v680
    %v697 = vcvt.s32.f32 %v681
    %vm698 = vcmp.ge.f32.partialorder %v42, 1.0
    %vm699 = vcmp.ge.f32.partialorder %v43, 1.0
    %vm700 = vcmp.ge.f32.partialorder %v44, 1.0
    %vm701 = vcmp.ge.f32.partialorder %v45, 1.0
    %vm702 = vcmp.ge.f32.partialorder %v46, 1.0
    %vm703 = vcmp.ge.f32.partialorder %v47, 1.0
    %vm704 = vcmp.ge.f32.partialorder %v48, 1.0
    %vm705 = vcmp.ge.f32.partialorder %v49, 1.0
    %vm706 = vcmp.ge.f32.partialorder %v50, 1.0
    %vm707 = vcmp.ge.f32.partialorder %v51, 1.0
    %vm708 = vcmp.ge.f32.partialorder %v52, 1.0
    %vm709 = vcmp.ge.f32.partialorder %v53, 1.0
    %vm710 = vcmp.ge.f32.partialorder %v54, 1.0
    %vm711 = vcmp.ge.f32.partialorder %v55, 1.0
    %vm712 = vcmp.ge.f32.partialorder %v56, 1.0
    %vm713 = vcmp.ge.f32.partialorder %v57, 1.0
    %vm714 = vcmp.lt.f32.partialorder %v42, 1.4000001
    %vm715 = vcmp.lt.f32.partialorder %v43, 1.4000001
    %vm716 = vcmp.lt.f32.partialorder %v44, 1.4000001
    %vm717 = vcmp.lt.f32.partialorder %v45, 1.4000001
    %vm718 = vcmp.lt.f32.partialorder %v46, 1.4000001
    %vm719 = vcmp.lt.f32.partialorder %v47, 1.4000001
    %vm720 = vcmp.lt.f32.partialorder %v48, 1.4000001
    %vm721 = vcmp.lt.f32.partialorder %v49, 1.4000001
    %vm722 = vcmp.lt.f32.partialorder %v50, 1.4000001
    %vm723 = vcmp.lt.f32.partialorder %v51, 1.4000001
    %vm724 = vcmp.lt.f32.partialorder %v52, 1.4000001
    %vm725 = vcmp.lt.f32.partialorder %v53, 1.4000001
    %vm726 = vcmp.lt.f32.partialorder %v54, 1.4000001
    %vm727 = vcmp.lt.f32.partialorder %v55, 1.4000001
    %vm728 = vcmp.lt.f32.partialorder %v56, 1.4000001
    %vm729 = vcmp.lt.f32.partialorder %v57, 1.4000001
    %vm730 = vmand %vm698, %vm714
    %vm731 = vmand %vm699, %vm715
    %vm732 = vmand %vm700, %vm716
    %vm733 = vmand %vm701, %vm717
    %vm734 = vmand %vm702, %vm718
    %vm735 = vmand %vm703, %vm719
    %vm736 = vmand %vm704, %vm720
    %vm737 = vmand %vm705, %vm721
    %vm738 = vmand %vm706, %vm722
    %vm739 = vmand %vm707, %vm723
    %vm740 = vmand %vm708, %vm724
    %vm741 = vmand %vm709, %vm725
    %vm742 = vmand %vm710, %vm726
    %vm743 = vmand %vm711, %vm727
    %vm744 = vmand %vm712, %vm728
    %vm745 = vmand %vm713, %vm729
    %v746 = vsel %vm730, 1, 0
    %v747 = vsel %vm731, 1, 0
    %v748 = vsel %vm732, 1, 0
    %v749 = vsel %vm733, 1, 0
    %v750 = vsel %vm734, 1, 0
    %v751 = vsel %vm735, 1, 0
    %v752 = vsel %vm736, 1, 0
    %v753 = vsel %vm737, 1, 0
    %v754 = vsel %vm738, 1, 0
    %v755 = vsel %vm739, 1, 0
    %v756 = vsel %vm740, 1, 0
    %v757 = vsel %vm741, 1, 0
    %v758 = vsel %vm742, 1, 0
    %v759 = vsel %vm743, 1, 0
    %v760 = vsel %vm744, 1, 0
    %v761 = vsel %vm745, 1, 0
    %v762 = vcvt.s32.f32 %v746
    %v763 = vcvt.s32.f32 %v747
    %v764 = vcvt.s32.f32 %v748
    %v765 = vcvt.s32.f32 %v749
    %v766 = vcvt.s32.f32 %v750
    %v767 = vcvt.s32.f32 %v751
    %v768 = vcvt.s32.f32 %v752
    %v769 = vcvt.s32.f32 %v753
    %v770 = vcvt.s32.f32 %v754
    %v771 = vcvt.s32.f32 %v755
    %v772 = vcvt.s32.f32 %v756
    %v773 = vcvt.s32.f32 %v757
    %v774 = vcvt.s32.f32 %v758
    %v775 = vcvt.s32.f32 %v759
    %v776 = vcvt.s32.f32 %v760
    %v777 = vcvt.s32.f32 %v761
    %vm778 = vcmp.ge.f32.partialorder %v42, 1.4000001
    %vm779 = vcmp.ge.f32.partialorder %v43, 1.4000001
    %vm780 = vcmp.ge.f32.partialorder %v44, 1.4000001
    %vm781 = vcmp.ge.f32.partialorder %v45, 1.4000001
    %vm782 = vcmp.ge.f32.partialorder %v46, 1.4000001
    %vm783 = vcmp.ge.f32.partialorder %v47, 1.4000001
    %vm784 = vcmp.ge.f32.partialorder %v48, 1.4000001
    %vm785 = vcmp.ge.f32.partialorder %v49, 1.4000001
    %vm786 = vcmp.ge.f32.partialorder %v50, 1.4000001
    %vm787 = vcmp.ge.f32.partialorder %v51, 1.4000001
    %vm788 = vcmp.ge.f32.partialorder %v52, 1.4000001
    %vm789 = vcmp.ge.f32.partialorder %v53, 1.4000001
    %vm790 = vcmp.ge.f32.partialorder %v54, 1.4000001
    %vm791 = vcmp.ge.f32.partialorder %v55, 1.4000001
    %vm792 = vcmp.ge.f32.partialorder %v56, 1.4000001
    %vm793 = vcmp.ge.f32.partialorder %v57, 1.4000001
    %vm794 = vcmp.lt.f32.partialorder %v42, 1.8
    %vm795 = vcmp.lt.f32.partialorder %v43, 1.8
    %vm796 = vcmp.lt.f32.partialorder %v44, 1.8
    %vm797 = vcmp.lt.f32.partialorder %v45, 1.8
    %vm798 = vcmp.lt.f32.partialorder %v46, 1.8
    %vm799 = vcmp.lt.f32.partialorder %v47, 1.8
    %vm800 = vcmp.lt.f32.partialorder %v48, 1.8
    %vm801 = vcmp.lt.f32.partialorder %v49, 1.8
    %vm802 = vcmp.lt.f32.partialorder %v50, 1.8
    %vm803 = vcmp.lt.f32.partialorder %v51, 1.8
    %vm804 = vcmp.lt.f32.partialorder %v52, 1.8
    %vm805 = vcmp.lt.f32.partialorder %v53, 1.8
    %vm806 = vcmp.lt.f32.partialorder %v54, 1.8
    %vm807 = vcmp.lt.f32.partialorder %v55, 1.8
    %vm808 = vcmp.lt.f32.partialorder %v56, 1.8
    %vm809 = vcmp.lt.f32.partialorder %v57, 1.8
    %vm810 = vmand %vm778, %vm794
    %vm811 = vmand %vm779, %vm795
    %vm812 = vmand %vm780, %vm796
    %vm813 = vmand %vm781, %vm797
    %vm814 = vmand %vm782, %vm798
    %vm815 = vmand %vm783, %vm799
    %vm816 = vmand %vm784, %vm800
    %vm817 = vmand %vm785, %vm801
    %vm818 = vmand %vm786, %vm802
    %vm819 = vmand %vm787, %vm803
    %vm820 = vmand %vm788, %vm804
    %vm821 = vmand %vm789, %vm805
    %vm822 = vmand %vm790, %vm806
    %vm823 = vmand %vm791, %vm807
    %vm824 = vmand %vm792, %vm808
    %vm825 = vmand %vm793, %vm809
    %v826 = vsel %vm810, 1, 0
    %v827 = vsel %vm811, 1, 0
    %v828 = vsel %vm812, 1, 0
    %v829 = vsel %vm813, 1, 0
    %v830 = vsel %vm814, 1, 0
    %v831 = vsel %vm815, 1, 0
    %v832 = vsel %vm816, 1, 0
    %v833 = vsel %vm817, 1, 0
    %v834 = vsel %vm818, 1, 0
    %v835 = vsel %vm819, 1, 0
    %v836 = vsel %vm820, 1, 0
    %v837 = vsel %vm821, 1, 0
    %v838 = vsel %vm822, 1, 0
    %v839 = vsel %vm823, 1, 0
    %v840 = vsel %vm824, 1, 0
    %v841 = vsel %vm825, 1, 0
    %v842 = vcvt.s32.f32 %v826
    %v843 = vcvt.s32.f32 %v827
    %v844 = vcvt.s32.f32 %v828
    %v845 = vcvt.s32.f32 %v829
    %v846 = vcvt.s32.f32 %v830
    %v847 = vcvt.s32.f32 %v831
    %v848 = vcvt.s32.f32 %v832
    %v849 = vcvt.s32.f32 %v833
    %v850 = vcvt.s32.f32 %v834
    %v851 = vcvt.s32.f32 %v835
    %v852 = vcvt.s32.f32 %v836
    %v853 = vcvt.s32.f32 %v837
    %v854 = vcvt.s32.f32 %v838
    %v855 = vcvt.s32.f32 %v839
    %v856 = vcvt.s32.f32 %v840
    %v857 = vcvt.s32.f32 %v841
    %vm858 = vcmp.ge.f32.partialorder %v42, 1.8
    %vm859 = vcmp.ge.f32.partialorder %v43, 1.8
    %vm860 = vcmp.ge.f32.partialorder %v44, 1.8
    %vm861 = vcmp.ge.f32.partialorder %v45, 1.8
    %vm862 = vcmp.ge.f32.partialorder %v46, 1.8
    %vm863 = vcmp.ge.f32.partialorder %v47, 1.8
    %vm864 = vcmp.ge.f32.partialorder %v48, 1.8
    %vm865 = vcmp.ge.f32.partialorder %v49, 1.8
    %vm866 = vcmp.ge.f32.partialorder %v50, 1.8
    %vm867 = vcmp.ge.f32.partialorder %v51, 1.8
    %vm868 = vcmp.ge.f32.partialorder %v52, 1.8
    %vm869 = vcmp.ge.f32.partialorder %v53, 1.8
    %vm870 = vcmp.ge.f32.partialorder %v54, 1.8
    %vm871 = vcmp.ge.f32.partialorder %v55, 1.8
    %vm872 = vcmp.ge.f32.partialorder %v56, 1.8
    %vm873 = vcmp.ge.f32.partialorder %v57, 1.8
    %vm874 = vcmp.lt.f32.partialorder %v42, 2.2
    %vm875 = vcmp.lt.f32.partialorder %v43, 2.2
    %vm876 = vcmp.lt.f32.partialorder %v44, 2.2
    %vm877 = vcmp.lt.f32.partialorder %v45, 2.2
    %vm878 = vcmp.lt.f32.partialorder %v46, 2.2
    %vm879 = vcmp.lt.f32.partialorder %v47, 2.2
    %vm880 = vcmp.lt.f32.partialorder %v48, 2.2
    %vm881 = vcmp.lt.f32.partialorder %v49, 2.2
    %vm882 = vcmp.lt.f32.partialorder %v50, 2.2
    %vm883 = vcmp.lt.f32.partialorder %v51, 2.2
    %vm884 = vcmp.lt.f32.partialorder %v52, 2.2
    %vm885 = vcmp.lt.f32.partialorder %v53, 2.2
    %vm886 = vcmp.lt.f32.partialorder %v54, 2.2
    %vm887 = vcmp.lt.f32.partialorder %v55, 2.2
    %vm888 = vcmp.lt.f32.partialorder %v56, 2.2
    %vm889 = vcmp.lt.f32.partialorder %v57, 2.2
    %vm890 = vmand %vm858, %vm874
    %vm891 = vmand %vm859, %vm875
    %vm892 = vmand %vm860, %vm876
    %vm893 = vmand %vm861, %vm877
    %vm894 = vmand %vm862, %vm878
    %vm895 = vmand %vm863, %vm879
    %vm896 = vmand %vm864, %vm880
    %vm897 = vmand %vm865, %vm881
    %vm898 = vmand %vm866, %vm882
    %vm899 = vmand %vm867, %vm883
    %vm900 = vmand %vm868, %vm884
    %vm901 = vmand %vm869, %vm885
    %vm902 = vmand %vm870, %vm886
    %vm903 = vmand %vm871, %vm887
    %vm904 = vmand %vm872, %vm888
    %vm905 = vmand %vm873, %vm889
    %v906 = vsel %vm890, 1, 0
    %v907 = vsel %vm891, 1, 0
    %v908 = vsel %vm892, 1, 0
    %v909 = vsel %vm893, 1, 0
    %v910 = vsel %vm894, 1, 0
    %v911 = vsel %vm895, 1, 0
    %v912 = vsel %vm896, 1, 0
    %v913 = vsel %vm897, 1, 0
    %v914 = vsel %vm898, 1, 0
    %v915 = vsel %vm899, 1, 0
    %v916 = vsel %vm900, 1, 0
    %v917 = vsel %vm901, 1, 0
    %v918 = vsel %vm902, 1, 0
    %v919 = vsel %vm903, 1, 0
    %v920 = vsel %vm904, 1, 0
    %v921 = vsel %vm905, 1, 0
    %v922 = vcvt.s32.f32 %v906
    %v923 = vcvt.s32.f32 %v907
    %v924 = vcvt.s32.f32 %v908
    %v925 = vcvt.s32.f32 %v909
    %v926 = vcvt.s32.f32 %v910
    %v927 = vcvt.s32.f32 %v911
    %v928 = vcvt.s32.f32 %v912
    %v929 = vcvt.s32.f32 %v913
    %v930 = vcvt.s32.f32 %v914
    %v931 = vcvt.s32.f32 %v915
    %v932 = vcvt.s32.f32 %v916
    %v933 = vcvt.s32.f32 %v917
    %v934 = vcvt.s32.f32 %v918
    %v935 = vcvt.s32.f32 %v919
    %v936 = vcvt.s32.f32 %v920
    %v937 = vcvt.s32.f32 %v921
    %v938 = vsub.f32 %v42, -2.2
    %v939 = vsub.f32 %v43, -2.2
    %v940 = vsub.f32 %v44, -2.2
    %v941 = vsub.f32 %v45, -2.2
    %v942 = vsub.f32 %v46, -2.2
    %v943 = vsub.f32 %v47, -2.2
    %v944 = vsub.f32 %v48, -2.2
    %v945 = vsub.f32 %v49, -2.2
    %v946 = vsub.f32 %v50, -2.2
    %v947 = vsub.f32 %v51, -2.2
    %v948 = vsub.f32 %v52, -2.2
    %v949 = vsub.f32 %v53, -2.2
    %v950 = vsub.f32 %v54, -2.2
    %v951 = vsub.f32 %v55, -2.2
    %v952 = vsub.f32 %v56, -2.2
    %v953 = vsub.f32 %v57, -2.2
    %v954 = vmul.f32 %v938, 2.5
    %v955 = vmul.f32 %v939, 2.5
    %v956 = vmul.f32 %v940, 2.5
    %v957 = vmul.f32 %v941, 2.5
    %v958 = vmul.f32 %v942, 2.5
    %v959 = vmul.f32 %v943, 2.5
    %v960 = vmul.f32 %v944, 2.5
    %v961 = vmul.f32 %v945, 2.5
    %v962 = vmul.f32 %v946, 2.5
    %v963 = vmul.f32 %v947, 2.5
    %v964 = vmul.f32 %v948, 2.5
    %v965 = vmul.f32 %v949, 2.5
    %v966 = vmul.f32 %v950, 2.5
    %v967 = vmul.f32 %v951, 2.5
    %v968 = vmul.f32 %v952, 2.5
    %v969 = vmul.f32 %v953, 2.5
    %v970 = vmul.f32 %v954, %v122
    %v971 = vmul.f32 %v955, %v123
    %v972 = vmul.f32 %v956, %v124
    %v973 = vmul.f32 %v957, %v125
    %v974 = vmul.f32 %v958, %v126
    %v975 = vmul.f32 %v959, %v127
    %v976 = vmul.f32 %v960, %v128
    %v977 = vmul.f32 %v961, %v129
    %v978 = vmul.f32 %v962, %v130
    %v979 = vmul.f32 %v963, %v131
    %v980 = vmul.f32 %v964, %v132
    %v981 = vmul.f32 %v965, %v133
    %v982 = vmul.f32 %v966, %v134
    %v983 = vmul.f32 %v967, %v135
    %v984 = vmul.f32 %v968, %v136
    %v985 = vmul.f32 %v969, %v137
    %v986 = vsub.f32 -1.4, %v42
    %v987 = vsub.f32 -1.4, %v43
    %v988 = vsub.f32 -1.4, %v44
    %v989 = vsub.f32 -1.4, %v45
    %v990 = vsub.f32 -1.4, %v46
    %v991 = vsub.f32 -1.4, %v47
    %v992 = vsub.f32 -1.4, %v48
    %v993 = vsub.f32 -1.4, %v49
    %v994 = vsub.f32 -1.4, %v50
    %v995 = vsub.f32 -1.4, %v51
    %v996 = vsub.f32 -1.4, %v52
    %v997 = vsub.f32 -1.4, %v53
    %v998 = vsub.f32 -1.4, %v54
    %v999 = vsub.f32 -1.4, %v55
    %v1000 = vsub.f32 -1.4, %v56
    %v1001 = vsub.f32 -1.4, %v57
    %v1002 = vmul.f32 %v986, 2.5
    %v1003 = vmul.f32 %v987, 2.5
    %v1004 = vmul.f32 %v988, 2.5
    %v1005 = vmul.f32 %v989, 2.5
    %v1006 = vmul.f32 %v990, 2.5
    %v1007 = vmul.f32 %v991, 2.5
    %v1008 = vmul.f32 %v992, 2.5
    %v1009 = vmul.f32 %v993, 2.5
    %v1010 = vmul.f32 %v994, 2.5
    %v1011 = vmul.f32 %v995, 2.5
    %v1012 = vmul.f32 %v996, 2.5
    %v1013 = vmul.f32 %v997, 2.5
    %v1014 = vmul.f32 %v998, 2.5
    %v1015 = vmul.f32 %v999, 2.5
    %v1016 = vmul.f32 %v1000, 2.5
    %v1017 = vmul.f32 %v1001, 2.5
    %v1018 = vmul.f32 %v1002, %v202
    %v1019 = vmul.f32 %v1003, %v203
    %v1020 = vmul.f32 %v1004, %v204
    %v1021 = vmul.f32 %v1005, %v205
    %v1022 = vmul.f32 %v1006, %v206
    %v1023 = vmul.f32 %v1007, %v207
    %v1024 = vmul.f32 %v1008, %v208
    %v1025 = vmul.f32 %v1009, %v209
    %v1026 = vmul.f32 %v1010, %v210
    %v1027 = vmul.f32 %v1011, %v211
    %v1028 = vmul.f32 %v1012, %v212
    %v1029 = vmul.f32 %v1013, %v213
    %v1030 = vmul.f32 %v1014, %v214
    %v1031 = vmul.f32 %v1015, %v215
    %v1032 = vmul.f32 %v1016, %v216
    %v1033 = vmul.f32 %v1017, %v217
    %v1034 = vadd.f32 %v970, %v1018
    %v1035 = vadd.f32 %v971, %v1019
    %v1036 = vadd.f32 %v972, %v1020
    %v1037 = vadd.f32 %v973, %v1021
    %v1038 = vadd.f32 %v974, %v1022
    %v1039 = vadd.f32 %v975, %v1023
    %v1040 = vadd.f32 %v976, %v1024
    %v1041 = vadd.f32 %v977, %v1025
    %v1042 = vadd.f32 %v978, %v1026
    %v1043 = vadd.f32 %v979, %v1027
    %v1044 = vadd.f32 %v980, %v1028
    %v1045 = vadd.f32 %v981, %v1029
    %v1046 = vadd.f32 %v982, %v1030
    %v1047 = vadd.f32 %v983, %v1031
    %v1048 = vadd.f32 %v984, %v1032
    %v1049 = vadd.f32 %v985, %v1033
    %v1050 = vsub.f32 %v42, -1.8
    %v1051 = vsub.f32 %v43, -1.8
    %v1052 = vsub.f32 %v44, -1.8
    %v1053 = vsub.f32 %v45, -1.8
    %v1054 = vsub.f32 %v46, -1.8
    %v1055 = vsub.f32 %v47, -1.8
    %v1056 = vsub.f32 %v48, -1.8
    %v1057 = vsub.f32 %v49, -1.8
    %v1058 = vsub.f32 %v50, -1.8
    %v1059 = vsub.f32 %v51, -1.8
    %v1060 = vsub.f32 %v52, -1.8
    %v1061 = vsub.f32 %v53, -1.8
    %v1062 = vsub.f32 %v54, -1.8
    %v1063 = vsub.f32 %v55, -1.8
    %v1064 = vsub.f32 %v56, -1.8
    %v1065 = vsub.f32 %v57, -1.8
    %v1066 = vmul.f32 %v1050, 2.5
    %v1067 = vmul.f32 %v1051, 2.5
    %v1068 = vmul.f32 %v1052, 2.5
    %v1069 = vmul.f32 %v1053, 2.5
    %v1070 = vmul.f32 %v1054, 2.5
    %v1071 = vmul.f32 %v1055, 2.5
    %v1072 = vmul.f32 %v1056, 2.5
    %v1073 = vmul.f32 %v1057, 2.5
    %v1074 = vmul.f32 %v1058, 2.5
    %v1075 = vmul.f32 %v1059, 2.5
    %v1076 = vmul.f32 %v1060, 2.5
    %v1077 = vmul.f32 %v1061, 2.5
    %v1078 = vmul.f32 %v1062, 2.5
    %v1079 = vmul.f32 %v1063, 2.5
    %v1080 = vmul.f32 %v1064, 2.5
    %v1081 = vmul.f32 %v1065, 2.5
    %v1082 = vmul.f32 %v1066, %v202
    %v1083 = vmul.f32 %v1067, %v203
    %v1084 = vmul.f32 %v1068, %v204
    %v1085 = vmul.f32 %v1069, %v205
    %v1086 = vmul.f32 %v1070, %v206
    %v1087 = vmul.f32 %v1071, %v207
    %v1088 = vmul.f32 %v1072, %v208
    %v1089 = vmul.f32 %v1073, %v209
    %v1090 = vmul.f32 %v1074, %v210
    %v1091 = vmul.f32 %v1075, %v211
    %v1092 = vmul.f32 %v1076, %v212
    %v1093 = vmul.f32 %v1077, %v213
    %v1094 = vmul.f32 %v1078, %v214
    %v1095 = vmul.f32 %v1079, %v215
    %v1096 = vmul.f32 %v1080, %v216
    %v1097 = vmul.f32 %v1081, %v217
    %v1098 = vsub.f32 -1.0, %v42
    %v1099 = vsub.f32 -1.0, %v43
    %v1100 = vsub.f32 -1.0, %v44
    %v1101 = vsub.f32 -1.0, %v45
    %v1102 = vsub.f32 -1.0, %v46
    %v1103 = vsub.f32 -1.0, %v47
    %v1104 = vsub.f32 -1.0, %v48
    %v1105 = vsub.f32 -1.0, %v49
    %v1106 = vsub.f32 -1.0, %v50
    %v1107 = vsub.f32 -1.0, %v51
    %v1108 = vsub.f32 -1.0, %v52
    %v1109 = vsub.f32 -1.0, %v53
    %v1110 = vsub.f32 -1.0, %v54
    %v1111 = vsub.f32 -1.0, %v55
    %v1112 = vsub.f32 -1.0, %v56
    %v1113 = vsub.f32 -1.0, %v57
    %v1114 = vmul.f32 %v1098, 2.5
    %v1115 = vmul.f32 %v1099, 2.5
    %v1116 = vmul.f32 %v1100, 2.5
    %v1117 = vmul.f32 %v1101, 2.5
    %v1118 = vmul.f32 %v1102, 2.5
    %v1119 = vmul.f32 %v1103, 2.5
    %v1120 = vmul.f32 %v1104, 2.5
    %v1121 = vmul.f32 %v1105, 2.5
    %v1122 = vmul.f32 %v1106, 2.5
    %v1123 = vmul.f32 %v1107, 2.5
    %v1124 = vmul.f32 %v1108, 2.5
    %v1125 = vmul.f32 %v1109, 2.5
    %v1126 = vmul.f32 %v1110, 2.5
    %v1127 = vmul.f32 %v1111, 2.5
    %v1128 = vmul.f32 %v1112, 2.5
    %v1129 = vmul.f32 %v1113, 2.5
    %v1130 = vmul.f32 %v1114, %v282
    %v1131 = vmul.f32 %v1115, %v283
    %v1132 = vmul.f32 %v1116, %v284
    %v1133 = vmul.f32 %v1117, %v285
    %v1134 = vmul.f32 %v1118, %v286
    %v1135 = vmul.f32 %v1119, %v287
    %v1136 = vmul.f32 %v1120, %v288
    %v1137 = vmul.f32 %v1121, %v289
    %v1138 = vmul.f32 %v1122, %v290
    %v1139 = vmul.f32 %v1123, %v291
    %v1140 = vmul.f32 %v1124, %v292
    %v1141 = vmul.f32 %v1125, %v293
    %v1142 = vmul.f32 %v1126, %v294
    %v1143 = vmul.f32 %v1127, %v295
    %v1144 = vmul.f32 %v1128, %v296
    %v1145 = vmul.f32 %v1129, %v297
    %v1146 = vadd.f32 %v1082, %v1130
    %v1147 = vadd.f32 %v1083, %v1131
    %v1148 = vadd.f32 %v1084, %v1132
    %v1149 = vadd.f32 %v1085, %v1133
    %v1150 = vadd.f32 %v1086, %v1134
    %v1151 = vadd.f32 %v1087, %v1135
    %v1152 = vadd.f32 %v1088, %v1136
    %v1153 = vadd.f32 %v1089, %v1137
    %v1154 = vadd.f32 %v1090, %v1138
    %v1155 = vadd.f32 %v1091, %v1139
    %v1156 = vadd.f32 %v1092, %v1140
    %v1157 = vadd.f32 %v1093, %v1141
    %v1158 = vadd.f32 %v1094, %v1142
    %v1159 = vadd.f32 %v1095, %v1143
    %v1160 = vadd.f32 %v1096, %v1144
    %v1161 = vadd.f32 %v1097, %v1145
    %v1162 = vsub.f32 %v42, -1.4
    %v1163 = vsub.f32 %v43, -1.4
    %v1164 = vsub.f32 %v44, -1.4
    %v1165 = vsub.f32 %v45, -1.4
    %v1166 = vsub.f32 %v46, -1.4
    %v1167 = vsub.f32 %v47, -1.4
    %v1168 = vsub.f32 %v48, -1.4
    %v1169 = vsub.f32 %v49, -1.4
    %v1170 = vsub.f32 %v50, -1.4
    %v1171 = vsub.f32 %v51, -1.4
    %v1172 = vsub.f32 %v52, -1.4
    %v1173 = vsub.f32 %v53, -1.4
    %v1174 = vsub.f32 %v54, -1.4
    %v1175 = vsub.f32 %v55, -1.4
    %v1176 = vsub.f32 %v56, -1.4
    %v1177 = vsub.f32 %v57, -1.4
    %v1178 = vmul.f32 %v1162, 2.5
    %v1179 = vmul.f32 %v1163, 2.5
    %v1180 = vmul.f32 %v1164, 2.5
    %v1181 = vmul.f32 %v1165, 2.5
    %v1182 = vmul.f32 %v1166, 2.5
    %v1183 = vmul.f32 %v1167, 2.5
    %v1184 = vmul.f32 %v1168, 2.5
    %v1185 = vmul.f32 %v1169, 2.5
    %v1186 = vmul.f32 %v1170, 2.5
    %v1187 = vmul.f32 %v1171, 2.5
    %v1188 = vmul.f32 %v1172, 2.5
    %v1189 = vmul.f32 %v1173, 2.5
    %v1190 = vmul.f32 %v1174, 2.5
    %v1191 = vmul.f32 %v1175, 2.5
    %v1192 = vmul.f32 %v1176, 2.5
    %v1193 = vmul.f32 %v1177, 2.5
    %v1194 = vmul.f32 %v1178, %v282
    %v1195 = vmul.f32 %v1179, %v283
    %v1196 = vmul.f32 %v1180, %v284
    %v1197 = vmul.f32 %v1181, %v285
    %v1198 = vmul.f32 %v1182, %v286
    %v1199 = vmul.f32 %v1183, %v287
    %v1200 = vmul.f32 %v1184, %v288
    %v1201 = vmul.f32 %v1185, %v289
    %v1202 = vmul.f32 %v1186, %v290
    %v1203 = vmul.f32 %v1187, %v291
    %v1204 = vmul.f32 %v1188, %v292
    %v1205 = vmul.f32 %v1189, %v293
    %v1206 = vmul.f32 %v1190, %v294
    %v1207 = vmul.f32 %v1191, %v295
    %v1208 = vmul.f32 %v1192, %v296
    %v1209 = vmul.f32 %v1193, %v297
    %v1210 = vsub.f32 -0.6, %v42
    %v1211 = vsub.f32 -0.6, %v43
    %v1212 = vsub.f32 -0.6, %v44
    %v1213 = vsub.f32 -0.6, %v45
    %v1214 = vsub.f32 -0.6, %v46
    %v1215 = vsub.f32 -0.6, %v47
    %v1216 = vsub.f32 -0.6, %v48
    %v1217 = vsub.f32 -0.6, %v49
    %v1218 = vsub.f32 -0.6, %v50
    %v1219 = vsub.f32 -0.6, %v51
    %v1220 = vsub.f32 -0.6, %v52
    %v1221 = vsub.f32 -0.6, %v53
    %v1222 = vsub.f32 -0.6, %v54
    %v1223 = vsub.f32 -0.6, %v55
    %v1224 = vsub.f32 -0.6, %v56
    %v1225 = vsub.f32 -0.6, %v57
    %v1226 = vmul.f32 %v1210, 2.5
    %v1227 = vmul.f32 %v1211, 2.5
    %v1228 = vmul.f32 %v1212, 2.5
    %v1229 = vmul.f32 %v1213, 2.5
    %v1230 = vmul.f32 %v1214, 2.5
    %v1231 = vmul.f32 %v1215, 2.5
    %v1232 = vmul.f32 %v1216, 2.5
    %v1233 = vmul.f32 %v1217, 2.5
    %v1234 = vmul.f32 %v1218, 2.5
    %v1235 = vmul.f32 %v1219, 2.5
    %v1236 = vmul.f32 %v1220, 2.5
    %v1237 = vmul.f32 %v1221, 2.5
    %v1238 = vmul.f32 %v1222, 2.5
    %v1239 = vmul.f32 %v1223, 2.5
    %v1240 = vmul.f32 %v1224, 2.5
    %v1241 = vmul.f32 %v1225, 2.5
    %v1242 = vmul.f32 %v1226, %v362
    %v1243 = vmul.f32 %v1227, %v363
    %v1244 = vmul.f32 %v1228, %v364
    %v1245 = vmul.f32 %v1229, %v365
    %v1246 = vmul.f32 %v1230, %v366
    %v1247 = vmul.f32 %v1231, %v367
    %v1248 = vmul.f32 %v1232, %v368
    %v1249 = vmul.f32 %v1233, %v369
    %v1250 = vmul.f32 %v1234, %v370
    %v1251 = vmul.f32 %v1235, %v371
    %v1252 = vmul.f32 %v1236, %v372
    %v1253 = vmul.f32 %v1237, %v373
    %v1254 = vmul.f32 %v1238, %v374
    %v1255 = vmul.f32 %v1239, %v375
    %v1256 = vmul.f32 %v1240, %v376
    %v1257 = vmul.f32 %v1241, %v377
    %v1258 = vadd.f32 %v1194, %v1242
    %v1259 = vadd.f32 %v1195, %v1243
    %v1260 = vadd.f32 %v1196, %v1244
    %v1261 = vadd.f32 %v1197, %v1245
    %v1262 = vadd.f32 %v1198, %v1246
    %v1263 = vadd.f32 %v1199, %v1247
    %v1264 = vadd.f32 %v1200, %v1248
    %v1265 = vadd.f32 %v1201, %v1249
    %v1266 = vadd.f32 %v1202, %v1250
    %v1267 = vadd.f32 %v1203, %v1251
    %v1268 = vadd.f32 %v1204, %v1252
    %v1269 = vadd.f32 %v1205, %v1253
    %v1270 = vadd.f32 %v1206, %v1254
    %v1271 = vadd.f32 %v1207, %v1255
    %v1272 = vadd.f32 %v1208, %v1256
    %v1273 = vadd.f32 %v1209, %v1257
    %v1274 = vsub.f32 %v42, -1.0
    %v1275 = vsub.f32 %v43, -1.0
    %v1276 = vsub.f32 %v44, -1.0
    %v1277 = vsub.f32 %v45, -1.0
    %v1278 = vsub.f32 %v46, -1.0
    %v1279 = vsub.f32 %v47, -1.0
    %v1280 = vsub.f32 %v48, -1.0
    %v1281 = vsub.f32 %v49, -1.0
    %v1282 = vsub.f32 %v50, -1.0
    %v1283 = vsub.f32 %v51, -1.0
    %v1284 = vsub.f32 %v52, -1.0
    %v1285 = vsub.f32 %v53, -1.0
    %v1286 = vsub.f32 %v54, -1.0
    %v1287 = vsub.f32 %v55, -1.0
    %v1288 = vsub.f32 %v56, -1.0
    %v1289 = vsub.f32 %v57, -1.0
    %v1290 = vmul.f32 %v1274, 2.5
    %v1291 = vmul.f32 %v1275, 2.5
    %v1292 = vmul.f32 %v1276, 2.5
    %v1293 = vmul.f32 %v1277, 2.5
    %v1294 = vmul.f32 %v1278, 2.5
    %v1295 = vmul.f32 %v1279, 2.5
    %v1296 = vmul.f32 %v1280, 2.5
    %v1297 = vmul.f32 %v1281, 2.5
    %v1298 = vmul.f32 %v1282, 2.5
    %v1299 = vmul.f32 %v1283, 2.5
    %v1300 = vmul.f32 %v1284, 2.5
    %v1301 = vmul.f32 %v1285, 2.5
    %v1302 = vmul.f32 %v1286, 2.5
    %v1303 = vmul.f32 %v1287, 2.5
    %v1304 = vmul.f32 %v1288, 2.5
    %v1305 = vmul.f32 %v1289, 2.5
    %v1306 = vmul.f32 %v1290, %v362
    %v1307 = vmul.f32 %v1291, %v363
    %v1308 = vmul.f32 %v1292, %v364
    %v1309 = vmul.f32 %v1293, %v365
    %v1310 = vmul.f32 %v1294, %v366
    %v1311 = vmul.f32 %v1295, %v367
    %v1312 = vmul.f32 %v1296, %v368
    %v1313 = vmul.f32 %v1297, %v369
    %v1314 = vmul.f32 %v1298, %v370
    %v1315 = vmul.f32 %v1299, %v371
    %v1316 = vmul.f32 %v1300, %v372
    %v1317 = vmul.f32 %v1301, %v373
    %v1318 = vmul.f32 %v1302, %v374
    %v1319 = vmul.f32 %v1303, %v375
    %v1320 = vmul.f32 %v1304, %v376
    %v1321 = vmul.f32 %v1305, %v377
    %v1322 = vsub.f32 -0.19999999, %v42
    %v1323 = vsub.f32 -0.19999999, %v43
    %v1324 = vsub.f32 -0.19999999, %v44
    %v1325 = vsub.f32 -0.19999999, %v45
    %v1326 = vsub.f32 -0.19999999, %v46
    %v1327 = vsub.f32 -0.19999999, %v47
    %v1328 = vsub.f32 -0.19999999, %v48
    %v1329 = vsub.f32 -0.19999999, %v49
    %v1330 = vsub.f32 -0.19999999, %v50
    %v1331 = vsub.f32 -0.19999999, %v51
    %v1332 = vsub.f32 -0.19999999, %v52
    %v1333 = vsub.f32 -0.19999999, %v53
    %v1334 = vsub.f32 -0.19999999, %v54
    %v1335 = vsub.f32 -0.19999999, %v55
    %v1336 = vsub.f32 -0.19999999, %v56
    %v1337 = vsub.f32 -0.19999999, %v57
    %v1338 = vmul.f32 %v1322, 2.5
    %v1339 = vmul.f32 %v1323, 2.5
    %v1340 = vmul.f32 %v1324, 2.5
    %v1341 = vmul.f32 %v1325, 2.5
    %v1342 = vmul.f32 %v1326, 2.5
    %v1343 = vmul.f32 %v1327, 2.5
    %v1344 = vmul.f32 %v1328, 2.5
    %v1345 = vmul.f32 %v1329, 2.5
    %v1346 = vmul.f32 %v1330, 2.5
    %v1347 = vmul.f32 %v1331, 2.5
    %v1348 = vmul.f32 %v1332, 2.5
    %v1349 = vmul.f32 %v1333, 2.5
    %v1350 = vmul.f32 %v1334, 2.5
    %v1351 = vmul.f32 %v1335, 2.5
    %v1352 = vmul.f32 %v1336, 2.5
    %v1353 = vmul.f32 %v1337, 2.5
    %v1354 = vmul.f32 %v1338, %v442
    %v1355 = vmul.f32 %v1339, %v443
    %v1356 = vmul.f32 %v1340, %v444
    %v1357 = vmul.f32 %v1341, %v445
    %v1358 = vmul.f32 %v1342, %v446
    %v1359 = vmul.f32 %v1343, %v447
    %v1360 = vmul.f32 %v1344, %v448
    %v1361 = vmul.f32 %v1345, %v449
    %v1362 = vmul.f32 %v1346, %v450
    %v1363 = vmul.f32 %v1347, %v451
    %v1364 = vmul.f32 %v1348, %v452
    %v1365 = vmul.f32 %v1349, %v453
    %v1366 = vmul.f32 %v1350, %v454
    %v1367 = vmul.f32 %v1351, %v455
    %v1368 = vmul.f32 %v1352, %v456
    %v1369 = vmul.f32 %v1353, %v457
    %v1370 = vadd.f32 %v1306, %v1354
    %v1371 = vadd.f32 %v1307, %v1355
    %v1372 = vadd.f32 %v1308, %v1356
    %v1373 = vadd.f32 %v1309, %v1357
    %v1374 = vadd.f32 %v1310, %v1358
    %v1375 = vadd.f32 %v1311, %v1359
    %v1376 = vadd.f32 %v1312, %v1360
    %v1377 = vadd.f32 %v1313, %v1361
    %v1378 = vadd.f32 %v1314, %v1362
    %v1379 = vadd.f32 %v1315, %v1363
    %v1380 = vadd.f32 %v1316, %v1364
    %v1381 = vadd.f32 %v1317, %v1365
    %v1382 = vadd.f32 %v1318, %v1366
    %v1383 = vadd.f32 %v1319, %v1367
    %v1384 = vadd.f32 %v1320, %v1368
    %v1385 = vadd.f32 %v1321, %v1369
    %v1386 = vsub.f32 %v42, -0.6
    %v1387 = vsub.f32 %v43, -0.6
    %v1388 = vsub.f32 %v44, -0.6
    %v1389 = vsub.f32 %v45, -0.6
    %v1390 = vsub.f32 %v46, -0.6
    %v1391 = vsub.f32 %v47, -0.6
    %v1392 = vsub.f32 %v48, -0.6
    %v1393 = vsub.f32 %v49, -0.6
    %v1394 = vsub.f32 %v50, -0.6
    %v1395 = vsub.f32 %v51, -0.6
    %v1396 = vsub.f32 %v52, -0.6
    %v1397 = vsub.f32 %v53, -0.6
    %v1398 = vsub.f32 %v54, -0.6
    %v1399 = vsub.f32 %v55, -0.6
    %v1400 = vsub.f32 %v56, -0.6
    %v1401 = vsub.f32 %v57, -0.6
    %v1402 = vmul.f32 %v1386, 2.5
    %v1403 = vmul.f32 %v1387, 2.5
    %v1404 = vmul.f32 %v1388, 2.5
    %v1405 = vmul.f32 %v1389, 2.5
    %v1406 = vmul.f32 %v1390, 2.5
    %v1407 = vmul.f32 %v1391, 2.5
    %v1408 = vmul.f32 %v1392, 2.5
    %v1409 = vmul.f32 %v1393, 2.5
    %v1410 = vmul.f32 %v1394, 2.5
    %v1411 = vmul.f32 %v1395, 2.5
    %v1412 = vmul.f32 %v1396, 2.5
    %v1413 = vmul.f32 %v1397, 2.5
    %v1414 = vmul.f32 %v1398, 2.5
    %v1415 = vmul.f32 %v1399, 2.5
    %v1416 = vmul.f32 %v1400, 2.5
    %v1417 = vmul.f32 %v1401, 2.5
    %v1418 = vmul.f32 %v1402, %v442
    %v1419 = vmul.f32 %v1403, %v443
    %v1420 = vmul.f32 %v1404, %v444
    %v1421 = vmul.f32 %v1405, %v445
    %v1422 = vmul.f32 %v1406, %v446
    %v1423 = vmul.f32 %v1407, %v447
    %v1424 = vmul.f32 %v1408, %v448
    %v1425 = vmul.f32 %v1409, %v449
    %v1426 = vmul.f32 %v1410, %v450
    %v1427 = vmul.f32 %v1411, %v451
    %v1428 = vmul.f32 %v1412, %v452
    %v1429 = vmul.f32 %v1413, %v453
    %v1430 = vmul.f32 %v1414, %v454
    %v1431 = vmul.f32 %v1415, %v455
    %v1432 = vmul.f32 %v1416, %v456
    %v1433 = vmul.f32 %v1417, %v457
    %v1434 = vsub.f32 0.20000005, %v42
    %v1435 = vsub.f32 0.20000005, %v43
    %v1436 = vsub.f32 0.20000005, %v44
    %v1437 = vsub.f32 0.20000005, %v45
    %v1438 = vsub.f32 0.20000005, %v46
    %v1439 = vsub.f32 0.20000005, %v47
    %v1440 = vsub.f32 0.20000005, %v48
    %v1441 = vsub.f32 0.20000005, %v49
    %v1442 = vsub.f32 0.20000005, %v50
    %v1443 = vsub.f32 0.20000005, %v51
    %v1444 = vsub.f32 0.20000005, %v52
    %v1445 = vsub.f32 0.20000005, %v53
    %v1446 = vsub.f32 0.20000005, %v54
    %v1447 = vsub.f32 0.20000005, %v55
    %v1448 = vsub.f32 0.20000005, %v56
    %v1449 = vsub.f32 0.20000005, %v57
    %v1450 = vmul.f32 %v1434, 2.5
    %v1451 = vmul.f32 %v1435, 2.5
    %v1452 = vmul.f32 %v1436, 2.5
    %v1453 = vmul.f32 %v1437, 2.5
    %v1454 = vmul.f32 %v1438, 2.5
    %v1455 = vmul.f32 %v1439, 2.5
    %v1456 = vmul.f32 %v1440, 2.5
    %v1457 = vmul.f32 %v1441, 2.5
    %v1458 = vmul.f32 %v1442, 2.5
    %v1459 = vmul.f32 %v1443, 2.5
    %v1460 = vmul.f32 %v1444, 2.5
    %v1461 = vmul.f32 %v1445, 2.5
    %v1462 = vmul.f32 %v1446, 2.5
    %v1463 = vmul.f32 %v1447, 2.5
    %v1464 = vmul.f32 %v1448, 2.5
    %v1465 = vmul.f32 %v1449, 2.5
    %v1466 = vmul.f32 %v1450, %v522
    %v1467 = vmul.f32 %v1451, %v523
    %v1468 = vmul.f32 %v1452, %v524
    %v1469 = vmul.f32 %v1453, %v525
    %v1470 = vmul.f32 %v1454, %v526
    %v1471 = vmul.f32 %v1455, %v527
    %v1472 = vmul.f32 %v1456, %v528
    %v1473 = vmul.f32 %v1457, %v529
    %v1474 = vmul.f32 %v1458, %v530
    %v1475 = vmul.f32 %v1459, %v531
    %v1476 = vmul.f32 %v1460, %v532
    %v1477 = vmul.f32 %v1461, %v533
    %v1478 = vmul.f32 %v1462, %v534
    %v1479 = vmul.f32 %v1463, %v535
    %v1480 = vmul.f32 %v1464, %v536
    %v1481 = vmul.f32 %v1465, %v537
    %v1482 = vadd.f32 %v1418, %v1466
    %v1483 = vadd.f32 %v1419, %v1467
    %v1484 = vadd.f32 %v1420, %v1468
    %v1485 = vadd.f32 %v1421, %v1469
    %v1486 = vadd.f32 %v1422, %v1470
    %v1487 = vadd.f32 %v1423, %v1471
    %v1488 = vadd.f32 %v1424, %v1472
    %v1489 = vadd.f32 %v1425, %v1473
    %v1490 = vadd.f32 %v1426, %v1474
    %v1491 = vadd.f32 %v1427, %v1475
    %v1492 = vadd.f32 %v1428, %v1476
    %v1493 = vadd.f32 %v1429, %v1477
    %v1494 = vadd.f32 %v1430, %v1478
    %v1495 = vadd.f32 %v1431, %v1479
    %v1496 = vadd.f32 %v1432, %v1480
    %v1497 = vadd.f32 %v1433, %v1481
    %v1498 = vsub.f32 %v42, -0.19999999
    %v1499 = vsub.f32 %v43, -0.19999999
    %v1500 = vsub.f32 %v44, -0.19999999
    %v1501 = vsub.f32 %v45, -0.19999999
    %v1502 = vsub.f32 %v46, -0.19999999
    %v1503 = vsub.f32 %v47, -0.19999999
    %v1504 = vsub.f32 %v48, -0.19999999
    %v1505 = vsub.f32 %v49, -0.19999999
    %v1506 = vsub.f32 %v50, -0.19999999
    %v1507 = vsub.f32 %v51, -0.19999999
    %v1508 = vsub.f32 %v52, -0.19999999
    %v1509 = vsub.f32 %v53, -0.19999999
    %v1510 = vsub.f32 %v54, -0.19999999
    %v1511 = vsub.f32 %v55, -0.19999999
    %v1512 = vsub.f32 %v56, -0.19999999
    %v1513 = vsub.f32 %v57, -0.19999999
    %v1514 = vmul.f32 %v1498, 2.5
    %v1515 = vmul.f32 %v1499, 2.5
    %v1516 = vmul.f32 %v1500, 2.5
    %v1517 = vmul.f32 %v1501, 2.5
    %v1518 = vmul.f32 %v1502, 2.5
    %v1519 = vmul.f32 %v1503, 2.5
    %v1520 = vmul.f32 %v1504, 2.5
    %v1521 = vmul.f32 %v1505, 2.5
    %v1522 = vmul.f32 %v1506, 2.5
    %v1523 = vmul.f32 %v1507, 2.5
    %v1524 = vmul.f32 %v1508, 2.5
    %v1525 = vmul.f32 %v1509, 2.5
    %v1526 = vmul.f32 %v1510, 2.5
    %v1527 = vmul.f32 %v1511, 2.5
    %v1528 = vmul.f32 %v1512, 2.5
    %v1529 = vmul.f32 %v1513, 2.5
    %v1530 = vmul.f32 %v1514, %v522
    %v1531 = vmul.f32 %v1515, %v523
    %v1532 = vmul.f32 %v1516, %v524
    %v1533 = vmul.f32 %v1517, %v525
    %v1534 = vmul.f32 %v1518, %v526
    %v1535 = vmul.f32 %v1519, %v527
    %v1536 = vmul.f32 %v1520, %v528
    %v1537 = vmul.f32 %v1521, %v529
    %v1538 = vmul.f32 %v1522, %v530
    %v1539 = vmul.f32 %v1523, %v531
    %v1540 = vmul.f32 %v1524, %v532
    %v1541 = vmul.f32 %v1525, %v533
    %v1542 = vmul.f32 %v1526, %v534
    %v1543 = vmul.f32 %v1527, %v535
    %v1544 = vmul.f32 %v1528, %v536
    %v1545 = vmul.f32 %v1529, %v537
    %v1546 = vsub.f32 0.6, %v42
    %v1547 = vsub.f32 0.6, %v43
    %v1548 = vsub.f32 0.6, %v44
    %v1549 = vsub.f32 0.6, %v45
    %v1550 = vsub.f32 0.6, %v46
    %v1551 = vsub.f32 0.6, %v47
    %v1552 = vsub.f32 0.6, %v48
    %v1553 = vsub.f32 0.6, %v49
    %v1554 = vsub.f32 0.6, %v50
    %v1555 = vsub.f32 0.6, %v51
    %v1556 = vsub.f32 0.6, %v52
    %v1557 = vsub.f32 0.6, %v53
    %v1558 = vsub.f32 0.6, %v54
    %v1559 = vsub.f32 0.6, %v55
    %v1560 = vsub.f32 0.6, %v56
    %v1561 = vsub.f32 0.6, %v57
    %v1562 = vmul.f32 %v1546, 2.5
    %v1563 = vmul.f32 %v1547, 2.5
    %v1564 = vmul.f32 %v1548, 2.5
    %v1565 = vmul.f32 %v1549, 2.5
    %v1566 = vmul.f32 %v1550, 2.5
    %v1567 = vmul.f32 %v1551, 2.5
    %v1568 = vmul.f32 %v1552, 2.5
    %v1569 = vmul.f32 %v1553, 2.5
    %v1570 = vmul.f32 %v1554, 2.5
    %v1571 = vmul.f32 %v1555, 2.5
    %v1572 = vmul.f32 %v1556, 2.5
    %v1573 = vmul.f32 %v1557, 2.5
    %v1574 = vmul.f32 %v1558, 2.5
    %v1575 = vmul.f32 %v1559, 2.5
    %v1576 = vmul.f32 %v1560, 2.5
    %v1577 = vmul.f32 %v1561, 2.5
    %v1578 = vmul.f32 %v1562, %v602
    %v1579 = vmul.f32 %v1563, %v603
    %v1580 = vmul.f32 %v1564, %v604
    %v1581 = vmul.f32 %v1565, %v605
    %v1582 = vmul.f32 %v1566, %v606
    %v1583 = vmul.f32 %v1567, %v607
    %v1584 = vmul.f32 %v1568, %v608
    %v1585 = vmul.f32 %v1569, %v609
    %v1586 = vmul.f32 %v1570, %v610
    %v1587 = vmul.f32 %v1571, %v611
    %v1588 = vmul.f32 %v1572, %v612
    %v1589 = vmul.f32 %v1573, %v613
    %v1590 = vmul.f32 %v1574, %v614
    %v1591 = vmul.f32 %v1575, %v615
    %v1592 = vmul.f32 %v1576, %v616
    %v1593 = vmul.f32 %v1577, %v617
    %v1594 = vadd.f32 %v1530, %v1578
    %v1595 = vadd.f32 %v1531, %v1579
    %v1596 = vadd.f32 %v1532, %v1580
    %v1597 = vadd.f32 %v1533, %v1581
    %v1598 = vadd.f32 %v1534, %v1582
    %v1599 = vadd.f32 %v1535, %v1583
    %v1600 = vadd.f32 %v1536, %v1584
    %v1601 = vadd.f32 %v1537, %v1585
    %v1602 = vadd.f32 %v1538, %v1586
    %v1603 = vadd.f32 %v1539, %v1587
    %v1604 = vadd.f32 %v1540, %v1588
    %v1605 = vadd.f32 %v1541, %v1589
    %v1606 = vadd.f32 %v1542, %v1590
    %v1607 = vadd.f32 %v1543, %v1591
    %v1608 = vadd.f32 %v1544, %v1592
    %v1609 = vadd.f32 %v1545, %v1593
    %v1610 = vsub.f32 %v42, 0.20000005
    %v1611 = vsub.f32 %v43, 0.20000005
    %v1612 = vsub.f32 %v44, 0.20000005
    %v1613 = vsub.f32 %v45, 0.20000005
    %v1614 = vsub.f32 %v46, 0.20000005
    %v1615 = vsub.f32 %v47, 0.20000005
    %v1616 = vsub.f32 %v48, 0.20000005
    %v1617 = vsub.f32 %v49, 0.20000005
    %v1618 = vsub.f32 %v50, 0.20000005
    %v1619 = vsub.f32 %v51, 0.20000005
    %v1620 = vsub.f32 %v52, 0.20000005
    %v1621 = vsub.f32 %v53, 0.20000005
    %v1622 = vsub.f32 %v54, 0.20000005
    %v1623 = vsub.f32 %v55, 0.20000005
    %v1624 = vsub.f32 %v56, 0.20000005
    %v1625 = vsub.f32 %v57, 0.20000005
    %v1626 = vmul.f32 %v1610, 2.5
    %v1627 = vmul.f32 %v1611, 2.5
    %v1628 = vmul.f32 %v1612, 2.5
    %v1629 = vmul.f32 %v1613, 2.5
    %v1630 = vmul.f32 %v1614, 2.5
    %v1631 = vmul.f32 %v1615, 2.5
    %v1632 = vmul.f32 %v1616, 2.5
    %v1633 = vmul.f32 %v1617, 2.5
    %v1634 = vmul.f32 %v1618, 2.5
    %v1635 = vmul.f32 %v1619, 2.5
    %v1636 = vmul.f32 %v1620, 2.5
    %v1637 = vmul.f32 %v1621, 2.5
    %v1638 = vmul.f32 %v1622, 2.5
    %v1639 = vmul.f32 %v1623, 2.5
    %v1640 = vmul.f32 %v1624, 2.5
    %v1641 = vmul.f32 %v1625, 2.5
    %v1642 = vmul.f32 %v1626, %v602
    %v1643 = vmul.f32 %v1627, %v603
    %v1644 = vmul.f32 %v1628, %v604
    %v1645 = vmul.f32 %v1629, %v605
    %v1646 = vmul.f32 %v1630, %v606
    %v1647 = vmul.f32 %v1631, %v607
    %v1648 = vmul.f32 %v1632, %v608
    %v1649 = vmul.f32 %v1633, %v609
    %v1650 = vmul.f32 %v1634, %v610
    %v1651 = vmul.f32 %v1635, %v611
    %v1652 = vmul.f32 %v1636, %v612
    %v1653 = vmul.f32 %v1637, %v613
    %v1654 = vmul.f32 %v1638, %v614
    %v1655 = vmul.f32 %v1639, %v615
    %v1656 = vmul.f32 %v1640, %v616
    %v1657 = vmul.f32 %v1641, %v617
    %v1658 = vsub.f32 1.0, %v42
    %v1659 = vsub.f32 1.0, %v43
    %v1660 = vsub.f32 1.0, %v44
    %v1661 = vsub.f32 1.0, %v45
    %v1662 = vsub.f32 1.0, %v46
    %v1663 = vsub.f32 1.0, %v47
    %v1664 = vsub.f32 1.0, %v48
    %v1665 = vsub.f32 1.0, %v49
    %v1666 = vsub.f32 1.0, %v50
    %v1667 = vsub.f32 1.0, %v51
    %v1668 = vsub.f32 1.0, %v52
    %v1669 = vsub.f32 1.0, %v53
    %v1670 = vsub.f32 1.0, %v54
    %v1671 = vsub.f32 1.0, %v55
    %v1672 = vsub.f32 1.0, %v56
    %v1673 = vsub.f32 1.0, %v57
    %v1674 = vmul.f32 %v1658, 2.5
    %v1675 = vmul.f32 %v1659, 2.5
    %v1676 = vmul.f32 %v1660, 2.5
    %v1677 = vmul.f32 %v1661, 2.5
    %v1678 = vmul.f32 %v1662, 2.5
    %v1679 = vmul.f32 %v1663, 2.5
    %v1680 = vmul.f32 %v1664, 2.5
    %v1681 = vmul.f32 %v1665, 2.5
    %v1682 = vmul.f32 %v1666, 2.5
    %v1683 = vmul.f32 %v1667, 2.5
    %v1684 = vmul.f32 %v1668, 2.5
    %v1685 = vmul.f32 %v1669, 2.5
    %v1686 = vmul.f32 %v1670, 2.5
    %v1687 = vmul.f32 %v1671, 2.5
    %v1688 = vmul.f32 %v1672, 2.5
    %v1689 = vmul.f32 %v1673, 2.5
    %v1690 = vmul.f32 %v1674, %v682
    %v1691 = vmul.f32 %v1675, %v683
    %v1692 = vmul.f32 %v1676, %v684
    %v1693 = vmul.f32 %v1677, %v685
    %v1694 = vmul.f32 %v1678, %v686
    %v1695 = vmul.f32 %v1679, %v687
    %v1696 = vmul.f32 %v1680, %v688
    %v1697 = vmul.f32 %v1681, %v689
    %v1698 = vmul.f32 %v1682, %v690
    %v1699 = vmul.f32 %v1683, %v691
    %v1700 = vmul.f32 %v1684, %v692
    %v1701 = vmul.f32 %v1685, %v693
    %v1702 = vmul.f32 %v1686, %v694
    %v1703 = vmul.f32 %v1687, %v695
    %v1704 = vmul.f32 %v1688, %v696
    %v1705 = vmul.f32 %v1689, %v697
    %v1706 = vadd.f32 %v1642, %v1690
    %v1707 = vadd.f32 %v1643, %v1691
    %v1708 = vadd.f32 %v1644, %v1692
    %v1709 = vadd.f32 %v1645, %v1693
    %v1710 = vadd.f32 %v1646, %v1694
    %v1711 = vadd.f32 %v1647, %v1695
    %v1712 = vadd.f32 %v1648, %v1696
    %v1713 = vadd.f32 %v1649, %v1697
    %v1714 = vadd.f32 %v1650, %v1698
    %v1715 = vadd.f32 %v1651, %v1699
    %v1716 = vadd.f32 %v1652, %v1700
    %v1717 = vadd.f32 %v1653, %v1701
    %v1718 = vadd.f32 %v1654, %v1702
    %v1719 = vadd.f32 %v1655, %v1703
    %v1720 = vadd.f32 %v1656, %v1704
    %v1721 = vadd.f32 %v1657, %v1705
    %v1722 = vsub.f32 %v42, 0.6
    %v1723 = vsub.f32 %v43, 0.6
    %v1724 = vsub.f32 %v44, 0.6
    %v1725 = vsub.f32 %v45, 0.6
    %v1726 = vsub.f32 %v46, 0.6
    %v1727 = vsub.f32 %v47, 0.6
    %v1728 = vsub.f32 %v48, 0.6
    %v1729 = vsub.f32 %v49, 0.6
    %v1730 = vsub.f32 %v50, 0.6
    %v1731 = vsub.f32 %v51, 0.6
    %v1732 = vsub.f32 %v52, 0.6
    %v1733 = vsub.f32 %v53, 0.6
    %v1734 = vsub.f32 %v54, 0.6
    %v1735 = vsub.f32 %v55, 0.6
    %v1736 = vsub.f32 %v56, 0.6
    %v1737 = vsub.f32 %v57, 0.6
    %v1738 = vmul.f32 %v1722, 2.5
    %v1739 = vmul.f32 %v1723, 2.5
    %v1740 = vmul.f32 %v1724, 2.5
    %v1741 = vmul.f32 %v1725, 2.5
    %v1742 = vmul.f32 %v1726, 2.5
    %v1743 = vmul.f32 %v1727, 2.5
    %v1744 = vmul.f32 %v1728, 2.5
    %v1745 = vmul.f32 %v1729, 2.5
    %v1746 = vmul.f32 %v1730, 2.5
    %v1747 = vmul.f32 %v1731, 2.5
    %v1748 = vmul.f32 %v1732, 2.5
    %v1749 = vmul.f32 %v1733, 2.5
    %v1750 = vmul.f32 %v1734, 2.5
    %v1751 = vmul.f32 %v1735, 2.5
    %v1752 = vmul.f32 %v1736, 2.5
    %v1753 = vmul.f32 %v1737, 2.5
    %v1754 = vmul.f32 %v1738, %v682
    %v1755 = vmul.f32 %v1739, %v683
    %v1756 = vmul.f32 %v1740, %v684
    %v1757 = vmul.f32 %v1741, %v685
    %v1758 = vmul.f32 %v1742, %v686
    %v1759 = vmul.f32 %v1743, %v687
    %v1760 = vmul.f32 %v1744, %v688
    %v1761 = vmul.f32 %v1745, %v689
    %v1762 = vmul.f32 %v1746, %v690
    %v1763 = vmul.f32 %v1747, %v691
    %v1764 = vmul.f32 %v1748, %v692
    %v1765 = vmul.f32 %v1749, %v693
    %v1766 = vmul.f32 %v1750, %v694
    %v1767 = vmul.f32 %v1751, %v695
    %v1768 = vmul.f32 %v1752, %v696
    %v1769 = vmul.f32 %v1753, %v697
    %v1770 = vsub.f32 1.4000001, %v42
    %v1771 = vsub.f32 1.4000001, %v43
    %v1772 = vsub.f32 1.4000001, %v44
    %v1773 = vsub.f32 1.4000001, %v45
    %v1774 = vsub.f32 1.4000001, %v46
    %v1775 = vsub.f32 1.4000001, %v47
    %v1776 = vsub.f32 1.4000001, %v48
    %v1777 = vsub.f32 1.4000001, %v49
    %v1778 = vsub.f32 1.4000001, %v50
    %v1779 = vsub.f32 1.4000001, %v51
    %v1780 = vsub.f32 1.4000001, %v52
    %v1781 = vsub.f32 1.4000001, %v53
    %v1782 = vsub.f32 1.4000001, %v54
    %v1783 = vsub.f32 1.4000001, %v55
    %v1784 = vsub.f32 1.4000001, %v56
    %v1785 = vsub.f32 1.4000001, %v57
    %v1786 = vmul.f32 %v1770, 2.5
    %v1787 = vmul.f32 %v1771, 2.5
    %v1788 = vmul.f32 %v1772, 2.5
    %v1789 = vmul.f32 %v1773, 2.5
    %v1790 = vmul.f32 %v1774, 2.5
    %v1791 = vmul.f32 %v1775, 2.5
    %v1792 = vmul.f32 %v1776, 2.5
    %v1793 = vmul.f32 %v1777, 2.5
    %v1794 = vmul.f32 %v1778, 2.5
    %v1795 = vmul.f32 %v1779, 2.5
    %v1796 = vmul.f32 %v1780, 2.5
    %v1797 = vmul.f32 %v1781, 2.5
    %v1798 = vmul.f32 %v1782, 2.5
    %v1799 = vmul.f32 %v1783, 2.5
    %v1800 = vmul.f32 %v1784, 2.5
    %v1801 = vmul.f32 %v1785, 2.5
    %v1802 = vmul.f32 %v1786, %v762
    %v1803 = vmul.f32 %v1787, %v763
    %v1804 = vmul.f32 %v1788, %v764
    %v1805 = vmul.f32 %v1789, %v765
    %v1806 = vmul.f32 %v1790, %v766
    %v1807 = vmul.f32 %v1791, %v767
    %v1808 = vmul.f32 %v1792, %v768
    %v1809 = vmul.f32 %v1793, %v769
    %v1810 = vmul.f32 %v1794, %v770
    %v1811 = vmul.f32 %v1795, %v771
    %v1812 = vmul.f32 %v1796, %v772
    %v1813 = vmul.f32 %v1797, %v773
    %v1814 = vmul.f32 %v1798, %v774
    %v1815 = vmul.f32 %v1799, %v775
    %v1816 = vmul.f32 %v1800, %v776
    %v1817 = vmul.f32 %v1801, %v777
    %v1818 = vadd.f32 %v1754, %v1802
    %v1819 = vadd.f32 %v1755, %v1803
    %v1820 = vadd.f32 %v1756, %v1804
    %v1821 = vadd.f32 %v1757, %v1805
    %v1822 = vadd.f32 %v1758, %v1806
    %v1823 = vadd.f32 %v1759, %v1807
    %v1824 = vadd.f32 %v1760, %v1808
    %v1825 = vadd.f32 %v1761, %v1809
    %v1826 = vadd.f32 %v1762, %v1810
    %v1827 = vadd.f32 %v1763, %v1811
    %v1828 = vadd.f32 %v1764, %v1812
    %v1829 = vadd.f32 %v1765, %v1813
    %v1830 = vadd.f32 %v1766, %v1814
    %v1831 = vadd.f32 %v1767, %v1815
    %v1832 = vadd.f32 %v1768, %v1816
    %v1833 = vadd.f32 %v1769, %v1817
    %v1834 = vsub.f32 %v42, 1.0
    %v1835 = vsub.f32 %v43, 1.0
    %v1836 = vsub.f32 %v44, 1.0
    %v1837 = vsub.f32 %v45, 1.0
    %v1838 = vsub.f32 %v46, 1.0
    %v1839 = vsub.f32 %v47, 1.0
    %v1840 = vsub.f32 %v48, 1.0
    %v1841 = vsub.f32 %v49, 1.0
    %v1842 = vsub.f32 %v50, 1.0
    %v1843 = vsub.f32 %v51, 1.0
    %v1844 = vsub.f32 %v52, 1.0
    %v1845 = vsub.f32 %v53, 1.0
    %v1846 = vsub.f32 %v54, 1.0
    %v1847 = vsub.f32 %v55, 1.0
    %v1848 = vsub.f32 %v56, 1.0
    %v1849 = vsub.f32 %v57, 1.0
    %v1850 = vmul.f32 %v1834, 2.5
    %v1851 = vmul.f32 %v1835, 2.5
    %v1852 = vmul.f32 %v1836, 2.5
    %v1853 = vmul.f32 %v1837, 2.5
    %v1854 = vmul.f32 %v1838, 2.5
    %v1855 = vmul.f32 %v1839, 2.5
    %v1856 = vmul.f32 %v1840, 2.5
    %v1857 = vmul.f32 %v1841, 2.5
    %v1858 = vmul.f32 %v1842, 2.5
    %v1859 = vmul.f32 %v1843, 2.5
    %v1860 = vmul.f32 %v1844, 2.5
    %v1861 = vmul.f32 %v1845, 2.5
    %v1862 = vmul.f32 %v1846, 2.5
    %v1863 = vmul.f32 %v1847, 2.5
    %v1864 = vmul.f32 %v1848, 2.5
    %v1865 = vmul.f32 %v1849, 2.5
    %v1866 = vmul.f32 %v1850, %v762
    %v1867 = vmul.f32 %v1851, %v763
    %v1868 = vmul.f32 %v1852, %v764
    %v1869 = vmul.f32 %v1853, %v765
    %v1870 = vmul.f32 %v1854, %v766
    %v1871 = vmul.f32 %v1855, %v767
    %v1872 = vmul.f32 %v1856, %v768
    %v1873 = vmul.f32 %v1857, %v769
    %v1874 = vmul.f32 %v1858, %v770
    %v1875 = vmul.f32 %v1859, %v771
    %v1876 = vmul.f32 %v1860, %v772
    %v1877 = vmul.f32 %v1861, %v773
    %v1878 = vmul.f32 %v1862, %v774
    %v1879 = vmul.f32 %v1863, %v775
    %v1880 = vmul.f32 %v1864, %v776
    %v1881 = vmul.f32 %v1865, %v777
    %v1882 = vsub.f32 1.8, %v42
    %v1883 = vsub.f32 1.8, %v43
    %v1884 = vsub.f32 1.8, %v44
    %v1885 = vsub.f32 1.8, %v45
    %v1886 = vsub.f32 1.8, %v46
    %v1887 = vsub.f32 1.8, %v47
    %v1888 = vsub.f32 1.8, %v48
    %v1889 = vsub.f32 1.8, %v49
    %v1890 = vsub.f32 1.8, %v50
    %v1891 = vsub.f32 1.8, %v51
    %v1892 = vsub.f32 1.8, %v52
    %v1893 = vsub.f32 1.8, %v53
    %v1894 = vsub.f32 1.8, %v54
    %v1895 = vsub.f32 1.8, %v55
    %v1896 = vsub.f32 1.8, %v56
    %v1897 = vsub.f32 1.8, %v57
    %v1898 = vmul.f32 %v1882, 2.5
    %v1899 = vmul.f32 %v1883, 2.5
    %v1900 = vmul.f32 %v1884, 2.5
    %v1901 = vmul.f32 %v1885, 2.5
    %v1902 = vmul.f32 %v1886, 2.5
    %v1903 = vmul.f32 %v1887, 2.5
    %v1904 = vmul.f32 %v1888, 2.5
    %v1905 = vmul.f32 %v1889, 2.5
    %v1906 = vmul.f32 %v1890, 2.5
    %v1907 = vmul.f32 %v1891, 2.5
    %v1908 = vmul.f32 %v1892, 2.5
    %v1909 = vmul.f32 %v1893, 2.5
    %v1910 = vmul.f32 %v1894, 2.5
    %v1911 = vmul.f32 %v1895, 2.5
    %v1912 = vmul.f32 %v1896, 2.5
    %v1913 = vmul.f32 %v1897, 2.5
    %v1914 = vmul.f32 %v1898, %v842
    %v1915 = vmul.f32 %v1899, %v843
    %v1916 = vmul.f32 %v1900, %v844
    %v1917 = vmul.f32 %v1901, %v845
    %v1918 = vmul.f32 %v1902, %v846
    %v1919 = vmul.f32 %v1903, %v847
    %v1920 = vmul.f32 %v1904, %v848
    %v1921 = vmul.f32 %v1905, %v849
    %v1922 = vmul.f32 %v1906, %v850
    %v1923 = vmul.f32 %v1907, %v851
    %v1924 = vmul.f32 %v1908, %v852
    %v1925 = vmul.f32 %v1909, %v853
    %v1926 = vmul.f32 %v1910, %v854
    %v1927 = vmul.f32 %v1911, %v855
    %v1928 = vmul.f32 %v1912, %v856
    %v1929 = vmul.f32 %v1913, %v857
    %v1930 = vadd.f32 %v1866, %v1914
    %v1931 = vadd.f32 %v1867, %v1915
    %v1932 = vadd.f32 %v1868, %v1916
    %v1933 = vadd.f32 %v1869, %v1917
    %v1934 = vadd.f32 %v1870, %v1918
    %v1935 = vadd.f32 %v1871, %v1919
    %v1936 = vadd.f32 %v1872, %v1920
    %v1937 = vadd.f32 %v1873, %v1921
    %v1938 = vadd.f32 %v1874, %v1922
    %v1939 = vadd.f32 %v1875, %v1923
    %v1940 = vadd.f32 %v1876, %v1924
    %v1941 = vadd.f32 %v1877, %v1925
    %v1942 = vadd.f32 %v1878, %v1926
    %v1943 = vadd.f32 %v1879, %v1927
    %v1944 = vadd.f32 %v1880, %v1928
    %v1945 = vadd.f32 %v1881, %v1929
    %v1946 = vsub.f32 %v42, 1.4000001
    %v1947 = vsub.f32 %v43, 1.4000001
    %v1948 = vsub.f32 %v44, 1.4000001
    %v1949 = vsub.f32 %v45, 1.4000001
    %v1950 = vsub.f32 %v46, 1.4000001
    %v1951 = vsub.f32 %v47, 1.4000001
    %v1952 = vsub.f32 %v48, 1.4000001
    %v1953 = vsub.f32 %v49, 1.4000001
    %v1954 = vsub.f32 %v50, 1.4000001
    %v1955 = vsub.f32 %v51, 1.4000001
    %v1956 = vsub.f32 %v52, 1.4000001
    %v1957 = vsub.f32 %v53, 1.4000001
    %v1958 = vsub.f32 %v54, 1.4000001
    %v1959 = vsub.f32 %v55, 1.4000001
    %v1960 = vsub.f32 %v56, 1.4000001
    %v1961 = vsub.f32 %v57, 1.4000001
    %v1962 = vmul.f32 %v1946, 2.5
    %v1963 = vmul.f32 %v1947, 2.5
    %v1964 = vmul.f32 %v1948, 2.5
    %v1965 = vmul.f32 %v1949, 2.5
    %v1966 = vmul.f32 %v1950, 2.5
    %v1967 = vmul.f32 %v1951, 2.5
    %v1968 = vmul.f32 %v1952, 2.5
    %v1969 = vmul.f32 %v1953, 2.5
    %v1970 = vmul.f32 %v1954, 2.5
    %v1971 = vmul.f32 %v1955, 2.5
    %v1972 = vmul.f32 %v1956, 2.5
    %v1973 = vmul.f32 %v1957, 2.5
    %v1974 = vmul.f32 %v1958, 2.5
    %v1975 = vmul.f32 %v1959, 2.5
    %v1976 = vmul.f32 %v1960, 2.5
    %v1977 = vmul.f32 %v1961, 2.5
    %v1978 = vmul.f32 %v1962, %v842
    %v1979 = vmul.f32 %v1963, %v843
    %v1980 = vmul.f32 %v1964, %v844
    %v1981 = vmul.f32 %v1965, %v845
    %v1982 = vmul.f32 %v1966, %v846
    %v1983 = vmul.f32 %v1967, %v847
    %v1984 = vmul.f32 %v1968, %v848
    %v1985 = vmul.f32 %v1969, %v849
    %v1986 = vmul.f32 %v1970, %v850
    %v1987 = vmul.f32 %v1971, %v851
    %v1988 = vmul.f32 %v1972, %v852
    %v1989 = vmul.f32 %v1973, %v853
    %v1990 = vmul.f32 %v1974, %v854
    %v1991 = vmul.f32 %v1975, %v855
    %v1992 = vmul.f32 %v1976, %v856
    %v1993 = vmul.f32 %v1977, %v857
    %v1994 = vsub.f32 2.2, %v42
    %v1995 = vsub.f32 2.2, %v43
    %v1996 = vsub.f32 2.2, %v44
    %v1997 = vsub.f32 2.2, %v45
    %v1998 = vsub.f32 2.2, %v46
    %v1999 = vsub.f32 2.2, %v47
    %v2000 = vsub.f32 2.2, %v48
    %v2001 = vsub.f32 2.2, %v49
    %v2002 = vsub.f32 2.2, %v50
    %v2003 = vsub.f32 2.2, %v51
    %v2004 = vsub.f32 2.2, %v52
    %v2005 = vsub.f32 2.2, %v53
    %v2006 = vsub.f32 2.2, %v54
    %v2007 = vsub.f32 2.2, %v55
    %v2008 = vsub.f32 2.2, %v56
    %v2009 = vsub.f32 2.2, %v57
    %v2010 = vmul.f32 %v1994, 2.5
    %v2011 = vmul.f32 %v1995, 2.5
    %v2012 = vmul.f32 %v1996, 2.5
    %v2013 = vmul.f32 %v1997, 2.5
    %v2014 = vmul.f32 %v1998, 2.5
    %v2015 = vmul.f32 %v1999, 2.5
    %v2016 = vmul.f32 %v2000, 2.5
    %v2017 = vmul.f32 %v2001, 2.5
    %v2018 = vmul.f32 %v2002, 2.5
    %v2019 = vmul.f32 %v2003, 2.5
    %v2020 = vmul.f32 %v2004, 2.5
    %v2021 = vmul.f32 %v2005, 2.5
    %v2022 = vmul.f32 %v2006, 2.5
    %v2023 = vmul.f32 %v2007, 2.5
    %v2024 = vmul.f32 %v2008, 2.5
    %v2025 = vmul.f32 %v2009, 2.5
    %v2026 = vmul.f32 %v2010, %v922
    %v2027 = vmul.f32 %v2011, %v923
    %v2028 = vmul.f32 %v2012, %v924
    %v2029 = vmul.f32 %v2013, %v925
    %v2030 = vmul.f32 %v2014, %v926
    %v2031 = vmul.f32 %v2015, %v927
    %v2032 = vmul.f32 %v2016, %v928
    %v2033 = vmul.f32 %v2017, %v929
    %v2034 = vmul.f32 %v2018, %v930
    %v2035 = vmul.f32 %v2019, %v931
    %v2036 = vmul.f32 %v2020, %v932
    %v2037 = vmul.f32 %v2021, %v933
    %v2038 = vmul.f32 %v2022, %v934
    %v2039 = vmul.f32 %v2023, %v935
    %v2040 = vmul.f32 %v2024, %v936
    %v2041 = vmul.f32 %v2025, %v937
    %v2042 = vadd.f32 %v1978, %v2026
    %v2043 = vadd.f32 %v1979, %v2027
    %v2044 = vadd.f32 %v1980, %v2028
    %v2045 = vadd.f32 %v1981, %v2029
    %v2046 = vadd.f32 %v1982, %v2030
    %v2047 = vadd.f32 %v1983, %v2031
    %v2048 = vadd.f32 %v1984, %v2032
    %v2049 = vadd.f32 %v1985, %v2033
    %v2050 = vadd.f32 %v1986, %v2034
    %v2051 = vadd.f32 %v1987, %v2035
    %v2052 = vadd.f32 %v1988, %v2036
    %v2053 = vadd.f32 %v1989, %v2037
    %v2054 = vadd.f32 %v1990, %v2038
    %v2055 = vadd.f32 %v1991, %v2039
    %v2056 = vadd.f32 %v1992, %v2040
    %v2057 = vadd.f32 %v1993, %v2041
    %v2058 = vmul.f32 %v938, 1.25
    %v2059 = vmul.f32 %v939, 1.25
    %v2060 = vmul.f32 %v940, 1.25
    %v2061 = vmul.f32 %v941, 1.25
    %v2062 = vmul.f32 %v942, 1.25
    %v2063 = vmul.f32 %v943, 1.25
    %v2064 = vmul.f32 %v944, 1.25
    %v2065 = vmul.f32 %v945, 1.25
    %v2066 = vmul.f32 %v946, 1.25
    %v2067 = vmul.f32 %v947, 1.25
    %v2068 = vmul.f32 %v948, 1.25
    %v2069 = vmul.f32 %v949, 1.25
    %v2070 = vmul.f32 %v950, 1.25
    %v2071 = vmul.f32 %v951, 1.25
    %v2072 = vmul.f32 %v952, 1.25
    %v2073 = vmul.f32 %v953, 1.25
    %v2074 = vmul.f32 %v2058, %v1034
    %v2075 = vmul.f32 %v2059, %v1035
    %v2076 = vmul.f32 %v2060, %v1036
    %v2077 = vmul.f32 %v2061, %v1037
    %v2078 = vmul.f32 %v2062, %v1038
    %v2079 = vmul.f32 %v2063, %v1039
    %v2080 = vmul.f32 %v2064, %v1040
    %v2081 = vmul.f32 %v2065, %v1041
    %v2082 = vmul.f32 %v2066, %v1042
    %v2083 = vmul.f32 %v2067, %v1043
    %v2084 = vmul.f32 %v2068, %v1044
    %v2085 = vmul.f32 %v2069, %v1045
    %v2086 = vmul.f32 %v2070, %v1046
    %v2087 = vmul.f32 %v2071, %v1047
    %v2088 = vmul.f32 %v2072, %v1048
    %v2089 = vmul.f32 %v2073, %v1049
    %v2090 = vmul.f32 %v1098, 1.25
    %v2091 = vmul.f32 %v1099, 1.25
    %v2092 = vmul.f32 %v1100, 1.25
    %v2093 = vmul.f32 %v1101, 1.25
    %v2094 = vmul.f32 %v1102, 1.25
    %v2095 = vmul.f32 %v1103, 1.25
    %v2096 = vmul.f32 %v1104, 1.25
    %v2097 = vmul.f32 %v1105, 1.25
    %v2098 = vmul.f32 %v1106, 1.25
    %v2099 = vmul.f32 %v1107, 1.25
    %v2100 = vmul.f32 %v1108, 1.25
    %v2101 = vmul.f32 %v1109, 1.25
    %v2102 = vmul.f32 %v1110, 1.25
    %v2103 = vmul.f32 %v1111, 1.25
    %v2104 = vmul.f32 %v1112, 1.25
    %v2105 = vmul.f32 %v1113, 1.25
    %v2106 = vmul.f32 %v2090, %v1146
    %v2107 = vmul.f32 %v2091, %v1147
    %v2108 = vmul.f32 %v2092, %v1148
    %v2109 = vmul.f32 %v2093, %v1149
    %v2110 = vmul.f32 %v2094, %v1150
    %v2111 = vmul.f32 %v2095, %v1151
    %v2112 = vmul.f32 %v2096, %v1152
    %v2113 = vmul.f32 %v2097, %v1153
    %v2114 = vmul.f32 %v2098, %v1154
    %v2115 = vmul.f32 %v2099, %v1155
    %v2116 = vmul.f32 %v2100, %v1156
    %v2117 = vmul.f32 %v2101, %v1157
    %v2118 = vmul.f32 %v2102, %v1158
    %v2119 = vmul.f32 %v2103, %v1159
    %v2120 = vmul.f32 %v2104, %v1160
    %v2121 = vmul.f32 %v2105, %v1161
    %v2122 = vadd.f32 %v2074, %v2106
    %v2123 = vadd.f32 %v2075, %v2107
    %v2124 = vadd.f32 %v2076, %v2108
    %v2125 = vadd.f32 %v2077, %v2109
    %v2126 = vadd.f32 %v2078, %v2110
    %v2127 = vadd.f32 %v2079, %v2111
    %v2128 = vadd.f32 %v2080, %v2112
    %v2129 = vadd.f32 %v2081, %v2113
    %v2130 = vadd.f32 %v2082, %v2114
    %v2131 = vadd.f32 %v2083, %v2115
    %v2132 = vadd.f32 %v2084, %v2116
    %v2133 = vadd.f32 %v2085, %v2117
    %v2134 = vadd.f32 %v2086, %v2118
    %v2135 = vadd.f32 %v2087, %v2119
    %v2136 = vadd.f32 %v2088, %v2120
    %v2137 = vadd.f32 %v2089, %v2121
    %v2138 = vmul.f32 %v1050, 1.25
    %v2139 = vmul.f32 %v1051, 1.25
    %v2140 = vmul.f32 %v1052, 1.25
    %v2141 = vmul.f32 %v1053, 1.25
    %v2142 = vmul.f32 %v1054, 1.25
    %v2143 = vmul.f32 %v1055, 1.25
    %v2144 = vmul.f32 %v1056, 1.25
    %v2145 = vmul.f32 %v1057, 1.25
    %v2146 = vmul.f32 %v1058, 1.25
    %v2147 = vmul.f32 %v1059, 1.25
    %v2148 = vmul.f32 %v1060, 1.25
    %v2149 = vmul.f32 %v1061, 1.25
    %v2150 = vmul.f32 %v1062, 1.25
    %v2151 = vmul.f32 %v1063, 1.25
    %v2152 = vmul.f32 %v1064, 1.25
    %v2153 = vmul.f32 %v1065, 1.25
    %v2154 = vmul.f32 %v2138, %v1146
    %v2155 = vmul.f32 %v2139, %v1147
    %v2156 = vmul.f32 %v2140, %v1148
    %v2157 = vmul.f32 %v2141, %v1149
    %v2158 = vmul.f32 %v2142, %v1150
    %v2159 = vmul.f32 %v2143, %v1151
    %v2160 = vmul.f32 %v2144, %v1152
    %v2161 = vmul.f32 %v2145, %v1153
    %v2162 = vmul.f32 %v2146, %v1154
    %v2163 = vmul.f32 %v2147, %v1155
    %v2164 = vmul.f32 %v2148, %v1156
    %v2165 = vmul.f32 %v2149, %v1157
    %v2166 = vmul.f32 %v2150, %v1158
    %v2167 = vmul.f32 %v2151, %v1159
    %v2168 = vmul.f32 %v2152, %v1160
    %v2169 = vmul.f32 %v2153, %v1161
    %v2170 = vmul.f32 %v1210, 1.25
    %v2171 = vmul.f32 %v1211, 1.25
    %v2172 = vmul.f32 %v1212, 1.25
    %v2173 = vmul.f32 %v1213, 1.25
    %v2174 = vmul.f32 %v1214, 1.25
    %v2175 = vmul.f32 %v1215, 1.25
    %v2176 = vmul.f32 %v1216, 1.25
    %v2177 = vmul.f32 %v1217, 1.25
    %v2178 = vmul.f32 %v1218, 1.25
    %v2179 = vmul.f32 %v1219, 1.25
    %v2180 = vmul.f32 %v1220, 1.25
    %v2181 = vmul.f32 %v1221, 1.25
    %v2182 = vmul.f32 %v1222, 1.25
    %v2183 = vmul.f32 %v1223, 1.25
    %v2184 = vmul.f32 %v1224, 1.25
    %v2185 = vmul.f32 %v1225, 1.25
    %v2186 = vmul.f32 %v2170, %v1258
    %v2187 = vmul.f32 %v2171, %v1259
    %v2188 = vmul.f32 %v2172, %v1260
    %v2189 = vmul.f32 %v2173, %v1261
    %v2190 = vmul.f32 %v2174, %v1262
    %v2191 = vmul.f32 %v2175, %v1263
    %v2192 = vmul.f32 %v2176, %v1264
    %v2193 = vmul.f32 %v2177, %v1265
    %v2194 = vmul.f32 %v2178, %v1266
    %v2195 = vmul.f32 %v2179, %v1267
    %v2196 = vmul.f32 %v2180, %v1268
    %v2197 = vmul.f32 %v2181, %v1269
    %v2198 = vmul.f32 %v2182, %v1270
    %v2199 = vmul.f32 %v2183, %v1271
    %v2200 = vmul.f32 %v2184, %v1272
    %v2201 = vmul.f32 %v2185, %v1273
    %v2202 = vadd.f32 %v2154, %v2186
    %v2203 = vadd.f32 %v2155, %v2187
    %v2204 = vadd.f32 %v2156, %v2188
    %v2205 = vadd.f32 %v2157, %v2189
    %v2206 = vadd.f32 %v2158, %v2190
    %v2207 = vadd.f32 %v2159, %v2191
    %v2208 = vadd.f32 %v2160, %v2192
    %v2209 = vadd.f32 %v2161, %v2193
    %v2210 = vadd.f32 %v2162, %v2194
    %v2211 = vadd.f32 %v2163, %v2195
    %v2212 = vadd.f32 %v2164, %v2196
    %v2213 = vadd.f32 %v2165, %v2197
    %v2214 = vadd.f32 %v2166, %v2198
    %v2215 = vadd.f32 %v2167, %v2199
    %v2216 = vadd.f32 %v2168, %v2200
    %v2217 = vadd.f32 %v2169, %v2201
    %v2218 = vmul.f32 %v1162, 1.25
    %v2219 = vmul.f32 %v1163, 1.25
    %v2220 = vmul.f32 %v1164, 1.25
    %v2221 = vmul.f32 %v1165, 1.25
    %v2222 = vmul.f32 %v1166, 1.25
    %v2223 = vmul.f32 %v1167, 1.25
    %v2224 = vmul.f32 %v1168, 1.25
    %v2225 = vmul.f32 %v1169, 1.25
    %v2226 = vmul.f32 %v1170, 1.25
    %v2227 = vmul.f32 %v1171, 1.25
    %v2228 = vmul.f32 %v1172, 1.25
    %v2229 = vmul.f32 %v1173, 1.25
    %v2230 = vmul.f32 %v1174, 1.25
    %v2231 = vmul.f32 %v1175, 1.25
    %v2232 = vmul.f32 %v1176, 1.25
    %v2233 = vmul.f32 %v1177, 1.25
    %v2234 = vmul.f32 %v2218, %v1258
    %v2235 = vmul.f32 %v2219, %v1259
    %v2236 = vmul.f32 %v2220, %v1260
    %v2237 = vmul.f32 %v2221, %v1261
    %v2238 = vmul.f32 %v2222, %v1262
    %v2239 = vmul.f32 %v2223, %v1263
    %v2240 = vmul.f32 %v2224, %v1264
    %v2241 = vmul.f32 %v2225, %v1265
    %v2242 = vmul.f32 %v2226, %v1266
    %v2243 = vmul.f32 %v2227, %v1267
    %v2244 = vmul.f32 %v2228, %v1268
    %v2245 = vmul.f32 %v2229, %v1269
    %v2246 = vmul.f32 %v2230, %v1270
    %v2247 = vmul.f32 %v2231, %v1271
    %v2248 = vmul.f32 %v2232, %v1272
    %v2249 = vmul.f32 %v2233, %v1273
    %v2250 = vmul.f32 %v1322, 1.25
    %v2251 = vmul.f32 %v1323, 1.25
    %v2252 = vmul.f32 %v1324, 1.25
    %v2253 = vmul.f32 %v1325, 1.25
    %v2254 = vmul.f32 %v1326, 1.25
    %v2255 = vmul.f32 %v1327, 1.25
    %v2256 = vmul.f32 %v1328, 1.25
    %v2257 = vmul.f32 %v1329, 1.25
    %v2258 = vmul.f32 %v1330, 1.25
    %v2259 = vmul.f32 %v1331, 1.25
    %v2260 = vmul.f32 %v1332, 1.25
    %v2261 = vmul.f32 %v1333, 1.25
    %v2262 = vmul.f32 %v1334, 1.25
    %v2263 = vmul.f32 %v1335, 1.25
    %v2264 = vmul.f32 %v1336, 1.25
    %v2265 = vmul.f32 %v1337, 1.25
    %v2266 = vmul.f32 %v2250, %v1370
    %v2267 = vmul.f32 %v2251, %v1371
    %v2268 = vmul.f32 %v2252, %v1372
    %v2269 = vmul.f32 %v2253, %v1373
    %v2270 = vmul.f32 %v2254, %v1374
    %v2271 = vmul.f32 %v2255, %v1375
    %v2272 = vmul.f32 %v2256, %v1376
    %v2273 = vmul.f32 %v2257, %v1377
    %v2274 = vmul.f32 %v2258, %v1378
    %v2275 = vmul.f32 %v2259, %v1379
    %v2276 = vmul.f32 %v2260, %v1380
    %v2277 = vmul.f32 %v2261, %v1381
    %v2278 = vmul.f32 %v2262, %v1382
    %v2279 = vmul.f32 %v2263, %v1383
    %v2280 = vmul.f32 %v2264, %v1384
    %v2281 = vmul.f32 %v2265, %v1385
    %v2282 = vadd.f32 %v2234, %v2266
    %v2283 = vadd.f32 %v2235, %v2267
    %v2284 = vadd.f32 %v2236, %v2268
    %v2285 = vadd.f32 %v2237, %v2269
    %v2286 = vadd.f32 %v2238, %v2270
    %v2287 = vadd.f32 %v2239, %v2271
    %v2288 = vadd.f32 %v2240, %v2272
    %v2289 = vadd.f32 %v2241, %v2273
    %v2290 = vadd.f32 %v2242, %v2274
    %v2291 = vadd.f32 %v2243, %v2275
    %v2292 = vadd.f32 %v2244, %v2276
    %v2293 = vadd.f32 %v2245, %v2277
    %v2294 = vadd.f32 %v2246, %v2278
    %v2295 = vadd.f32 %v2247, %v2279
    %v2296 = vadd.f32 %v2248, %v2280
    %v2297 = vadd.f32 %v2249, %v2281
    %v2298 = vmul.f32 %v1274, 1.25
    %v2299 = vmul.f32 %v1275, 1.25
    %v2300 = vmul.f32 %v1276, 1.25
    %v2301 = vmul.f32 %v1277, 1.25
    %v2302 = vmul.f32 %v1278, 1.25
    %v2303 = vmul.f32 %v1279, 1.25
    %v2304 = vmul.f32 %v1280, 1.25
    %v2305 = vmul.f32 %v1281, 1.25
    %v2306 = vmul.f32 %v1282, 1.25
    %v2307 = vmul.f32 %v1283, 1.25
    %v2308 = vmul.f32 %v1284, 1.25
    %v2309 = vmul.f32 %v1285, 1.25
    %v2310 = vmul.f32 %v1286, 1.25
    %v2311 = vmul.f32 %v1287, 1.25
    %v2312 = vmul.f32 %v1288, 1.25
    %v2313 = vmul.f32 %v1289, 1.25
    %v2314 = vmul.f32 %v2298, %v1370
    %v2315 = vmul.f32 %v2299, %v1371
    %v2316 = vmul.f32 %v2300, %v1372
    %v2317 = vmul.f32 %v2301, %v1373
    %v2318 = vmul.f32 %v2302, %v1374
    %v2319 = vmul.f32 %v2303, %v1375
    %v2320 = vmul.f32 %v2304, %v1376
    %v2321 = vmul.f32 %v2305, %v1377
    %v2322 = vmul.f32 %v2306, %v1378
    %v2323 = vmul.f32 %v2307, %v1379
    %v2324 = vmul.f32 %v2308, %v1380
    %v2325 = vmul.f32 %v2309, %v1381
    %v2326 = vmul.f32 %v2310, %v1382
    %v2327 = vmul.f32 %v2311, %v1383
    %v2328 = vmul.f32 %v2312, %v1384
    %v2329 = vmul.f32 %v2313, %v1385
    %v2330 = vmul.f32 %v1434, 1.25
    %v2331 = vmul.f32 %v1435, 1.25
    %v2332 = vmul.f32 %v1436, 1.25
    %v2333 = vmul.f32 %v1437, 1.25
    %v2334 = vmul.f32 %v1438, 1.25
    %v2335 = vmul.f32 %v1439, 1.25
    %v2336 = vmul.f32 %v1440, 1.25
    %v2337 = vmul.f32 %v1441, 1.25
    %v2338 = vmul.f32 %v1442, 1.25
    %v2339 = vmul.f32 %v1443, 1.25
    %v2340 = vmul.f32 %v1444, 1.25
    %v2341 = vmul.f32 %v1445, 1.25
    %v2342 = vmul.f32 %v1446, 1.25
    %v2343 = vmul.f32 %v1447, 1.25
    %v2344 = vmul.f32 %v1448, 1.25
    %v2345 = vmul.f32 %v1449, 1.25
    %v2346 = vmul.f32 %v2330, %v1482
    %v2347 = vmul.f32 %v2331, %v1483
    %v2348 = vmul.f32 %v2332, %v1484
    %v2349 = vmul.f32 %v2333, %v1485
    %v2350 = vmul.f32 %v2334, %v1486
    %v2351 = vmul.f32 %v2335, %v1487
    %v2352 = vmul.f32 %v2336, %v1488
    %v2353 = vmul.f32 %v2337, %v1489
    %v2354 = vmul.f32 %v2338, %v1490
    %v2355 = vmul.f32 %v2339, %v1491
    %v2356 = vmul.f32 %v2340, %v1492
    %v2357 = vmul.f32 %v2341, %v1493
    %v2358 = vmul.f32 %v2342, %v1494
    %v2359 = vmul.f32 %v2343, %v1495
    %v2360 = vmul.f32 %v2344, %v1496
    %v2361 = vmul.f32 %v2345, %v1497
    %v2362 = vadd.f32 %v2314, %v2346
    %v2363 = vadd.f32 %v2315, %v2347
    %v2364 = vadd.f32 %v2316, %v2348
    %v2365 = vadd.f32 %v2317, %v2349
    %v2366 = vadd.f32 %v2318, %v2350
    %v2367 = vadd.f32 %v2319, %v2351
    %v2368 = vadd.f32 %v2320, %v2352
    %v2369 = vadd.f32 %v2321, %v2353
    %v2370 = vadd.f32 %v2322, %v2354
    %v2371 = vadd.f32 %v2323, %v2355
    %v2372 = vadd.f32 %v2324, %v2356
    %v2373 = vadd.f32 %v2325, %v2357
    %v2374 = vadd.f32 %v2326, %v2358
    %v2375 = vadd.f32 %v2327, %v2359
    %v2376 = vadd.f32 %v2328, %v2360
    %v2377 = vadd.f32 %v2329, %v2361
    %v2378 = vmul.f32 %v1386, 1.25
    %v2379 = vmul.f32 %v1387, 1.25
    %v2380 = vmul.f32 %v1388, 1.25
    %v2381 = vmul.f32 %v1389, 1.25
    %v2382 = vmul.f32 %v1390, 1.25
    %v2383 = vmul.f32 %v1391, 1.25
    %v2384 = vmul.f32 %v1392, 1.25
    %v2385 = vmul.f32 %v1393, 1.25
    %v2386 = vmul.f32 %v1394, 1.25
    %v2387 = vmul.f32 %v1395, 1.25
    %v2388 = vmul.f32 %v1396, 1.25
    %v2389 = vmul.f32 %v1397, 1.25
    %v2390 = vmul.f32 %v1398, 1.25
    %v2391 = vmul.f32 %v1399, 1.25
    %v2392 = vmul.f32 %v1400, 1.25
    %v2393 = vmul.f32 %v1401, 1.25
    %v2394 = vmul.f32 %v2378, %v1482
    %v2395 = vmul.f32 %v2379, %v1483
    %v2396 = vmul.f32 %v2380, %v1484
    %v2397 = vmul.f32 %v2381, %v1485
    %v2398 = vmul.f32 %v2382, %v1486
    %v2399 = vmul.f32 %v2383, %v1487
    %v2400 = vmul.f32 %v2384, %v1488
    %v2401 = vmul.f32 %v2385, %v1489
    %v2402 = vmul.f32 %v2386, %v1490
    %v2403 = vmul.f32 %v2387, %v1491
    %v2404 = vmul.f32 %v2388, %v1492
    %v2405 = vmul.f32 %v2389, %v1493
    %v2406 = vmul.f32 %v2390, %v1494
    %v2407 = vmul.f32 %v2391, %v1495
    %v2408 = vmul.f32 %v2392, %v1496
    %v2409 = vmul.f32 %v2393, %v1497
    %v2410 = vmul.f32 %v1546, 1.25
    %v2411 = vmul.f32 %v1547, 1.25
    %v2412 = vmul.f32 %v1548, 1.25
    %v2413 = vmul.f32 %v1549, 1.25
    %v2414 = vmul.f32 %v1550, 1.25
    %v2415 = vmul.f32 %v1551, 1.25
    %v2416 = vmul.f32 %v1552, 1.25
    %v2417 = vmul.f32 %v1553, 1.25
    %v2418 = vmul.f32 %v1554, 1.25
    %v2419 = vmul.f32 %v1555, 1.25
    %v2420 = vmul.f32 %v1556, 1.25
    %v2421 = vmul.f32 %v1557, 1.25
    %v2422 = vmul.f32 %v1558, 1.25
    %v2423 = vmul.f32 %v1559, 1.25
    %v2424 = vmul.f32 %v1560, 1.25
    %v2425 = vmul.f32 %v1561, 1.25
    %v2426 = vmul.f32 %v2410, %v1594
    %v2427 = vmul.f32 %v2411, %v1595
    %v2428 = vmul.f32 %v2412, %v1596
    %v2429 = vmul.f32 %v2413, %v1597
    %v2430 = vmul.f32 %v2414, %v1598
    %v2431 = vmul.f32 %v2415, %v1599
    %v2432 = vmul.f32 %v2416, %v1600
    %v2433 = vmul.f32 %v2417, %v1601
    %v2434 = vmul.f32 %v2418, %v1602
    %v2435 = vmul.f32 %v2419, %v1603
    %v2436 = vmul.f32 %v2420, %v1604
    %v2437 = vmul.f32 %v2421, %v1605
    %v2438 = vmul.f32 %v2422, %v1606
    %v2439 = vmul.f32 %v2423, %v1607
    %v2440 = vmul.f32 %v2424, %v1608
    %v2441 = vmul.f32 %v2425, %v1609
    %v2442 = vadd.f32 %v2394, %v2426
    %v2443 = vadd.f32 %v2395, %v2427
    %v2444 = vadd.f32 %v2396, %v2428
    %v2445 = vadd.f32 %v2397, %v2429
    %v2446 = vadd.f32 %v2398, %v2430
    %v2447 = vadd.f32 %v2399, %v2431
    %v2448 = vadd.f32 %v2400, %v2432
    %v2449 = vadd.f32 %v2401, %v2433
    %v2450 = vadd.f32 %v2402, %v2434
    %v2451 = vadd.f32 %v2403, %v2435
    %v2452 = vadd.f32 %v2404, %v2436
    %v2453 = vadd.f32 %v2405, %v2437
    %v2454 = vadd.f32 %v2406, %v2438
    %v2455 = vadd.f32 %v2407, %v2439
    %v2456 = vadd.f32 %v2408, %v2440
    %v2457 = vadd.f32 %v2409, %v2441
    %v2458 = vmul.f32 %v1498, 1.25
    %v2459 = vmul.f32 %v1499, 1.25
    %v2460 = vmul.f32 %v1500, 1.25
    %v2461 = vmul.f32 %v1501, 1.25
    %v2462 = vmul.f32 %v1502, 1.25
    %v2463 = vmul.f32 %v1503, 1.25
    %v2464 = vmul.f32 %v1504, 1.25
    %v2465 = vmul.f32 %v1505, 1.25
    %v2466 = vmul.f32 %v1506, 1.25
    %v2467 = vmul.f32 %v1507, 1.25
    %v2468 = vmul.f32 %v1508, 1.25
    %v2469 = vmul.f32 %v1509, 1.25
    %v2470 = vmul.f32 %v1510, 1.25
    %v2471 = vmul.f32 %v1511, 1.25
    %v2472 = vmul.f32 %v1512, 1.25
    %v2473 = vmul.f32 %v1513, 1.25
    %v2474 = vmul.f32 %v2458, %v1594
    %v2475 = vmul.f32 %v2459, %v1595
    %v2476 = vmul.f32 %v2460, %v1596
    %v2477 = vmul.f32 %v2461, %v1597
    %v2478 = vmul.f32 %v2462, %v1598
    %v2479 = vmul.f32 %v2463, %v1599
    %v2480 = vmul.f32 %v2464, %v1600
    %v2481 = vmul.f32 %v2465, %v1601
    %v2482 = vmul.f32 %v2466, %v1602
    %v2483 = vmul.f32 %v2467, %v1603
    %v2484 = vmul.f32 %v2468, %v1604
    %v2485 = vmul.f32 %v2469, %v1605
    %v2486 = vmul.f32 %v2470, %v1606
    %v2487 = vmul.f32 %v2471, %v1607
    %v2488 = vmul.f32 %v2472, %v1608
    %v2489 = vmul.f32 %v2473, %v1609
    %v2490 = vmul.f32 %v1658, 1.25
    %v2491 = vmul.f32 %v1659, 1.25
    %v2492 = vmul.f32 %v1660, 1.25
    %v2493 = vmul.f32 %v1661, 1.25
    %v2494 = vmul.f32 %v1662, 1.25
    %v2495 = vmul.f32 %v1663, 1.25
    %v2496 = vmul.f32 %v1664, 1.25
    %v2497 = vmul.f32 %v1665, 1.25
    %v2498 = vmul.f32 %v1666, 1.25
    %v2499 = vmul.f32 %v1667, 1.25
    %v2500 = vmul.f32 %v1668, 1.25
    %v2501 = vmul.f32 %v1669, 1.25
    %v2502 = vmul.f32 %v1670, 1.25
    %v2503 = vmul.f32 %v1671, 1.25
    %v2504 = vmul.f32 %v1672, 1.25
    %v2505 = vmul.f32 %v1673, 1.25
    %v2506 = vmul.f32 %v2490, %v1706
    %v2507 = vmul.f32 %v2491, %v1707
    %v2508 = vmul.f32 %v2492, %v1708
    %v2509 = vmul.f32 %v2493, %v1709
    %v2510 = vmul.f32 %v2494, %v1710
    %v2511 = vmul.f32 %v2495, %v1711
    %v2512 = vmul.f32 %v2496, %v1712
    %v2513 = vmul.f32 %v2497, %v1713
    %v2514 = vmul.f32 %v2498, %v1714
    %v2515 = vmul.f32 %v2499, %v1715
    %v2516 = vmul.f32 %v2500, %v1716
    %v2517 = vmul.f32 %v2501, %v1717
    %v2518 = vmul.f32 %v2502, %v1718
    %v2519 = vmul.f32 %v2503, %v1719
    %v2520 = vmul.f32 %v2504, %v1720
    %v2521 = vmul.f32 %v2505, %v1721
    %v2522 = vadd.f32 %v2474, %v2506
    %v2523 = vadd.f32 %v2475, %v2507
    %v2524 = vadd.f32 %v2476, %v2508
    %v2525 = vadd.f32 %v2477, %v2509
    %v2526 = vadd.f32 %v2478, %v2510
    %v2527 = vadd.f32 %v2479, %v2511
    %v2528 = vadd.f32 %v2480, %v2512
    %v2529 = vadd.f32 %v2481, %v2513
    %v2530 = vadd.f32 %v2482, %v2514
    %v2531 = vadd.f32 %v2483, %v2515
    %v2532 = vadd.f32 %v2484, %v2516
    %v2533 = vadd.f32 %v2485, %v2517
    %v2534 = vadd.f32 %v2486, %v2518
    %v2535 = vadd.f32 %v2487, %v2519
    %v2536 = vadd.f32 %v2488, %v2520
    %v2537 = vadd.f32 %v2489, %v2521
    %v2538 = vmul.f32 %v1610, 1.25
    %v2539 = vmul.f32 %v1611, 1.25
    %v2540 = vmul.f32 %v1612, 1.25
    %v2541 = vmul.f32 %v1613, 1.25
    %v2542 = vmul.f32 %v1614, 1.25
    %v2543 = vmul.f32 %v1615, 1.25
    %v2544 = vmul.f32 %v1616, 1.25
    %v2545 = vmul.f32 %v1617, 1.25
    %v2546 = vmul.f32 %v1618, 1.25
    %v2547 = vmul.f32 %v1619, 1.25
    %v2548 = vmul.f32 %v1620, 1.25
    %v2549 = vmul.f32 %v1621, 1.25
    %v2550 = vmul.f32 %v1622, 1.25
    %v2551 = vmul.f32 %v1623, 1.25
    %v2552 = vmul.f32 %v1624, 1.25
    %v2553 = vmul.f32 %v1625, 1.25
    %v2554 = vmul.f32 %v2538, %v1706
    %v2555 = vmul.f32 %v2539, %v1707
    %v2556 = vmul.f32 %v2540, %v1708
    %v2557 = vmul.f32 %v2541, %v1709
    %v2558 = vmul.f32 %v2542, %v1710
    %v2559 = vmul.f32 %v2543, %v1711
    %v2560 = vmul.f32 %v2544, %v1712
    %v2561 = vmul.f32 %v2545, %v1713
    %v2562 = vmul.f32 %v2546, %v1714
    %v2563 = vmul.f32 %v2547, %v1715
    %v2564 = vmul.f32 %v2548, %v1716
    %v2565 = vmul.f32 %v2549, %v1717
    %v2566 = vmul.f32 %v2550, %v1718
    %v2567 = vmul.f32 %v2551, %v1719
    %v2568 = vmul.f32 %v2552, %v1720
    %v2569 = vmul.f32 %v2553, %v1721
    %v2570 = vmul.f32 %v1770, 1.25
    %v2571 = vmul.f32 %v1771, 1.25
    %v2572 = vmul.f32 %v1772, 1.25
    %v2573 = vmul.f32 %v1773, 1.25
    %v2574 = vmul.f32 %v1774, 1.25
    %v2575 = vmul.f32 %v1775, 1.25
    %v2576 = vmul.f32 %v1776, 1.25
    %v2577 = vmul.f32 %v1777, 1.25
    %v2578 = vmul.f32 %v1778, 1.25
    %v2579 = vmul.f32 %v1779, 1.25
    %v2580 = vmul.f32 %v1780, 1.25
    %v2581 = vmul.f32 %v1781, 1.25
    %v2582 = vmul.f32 %v1782, 1.25
    %v2583 = vmul.f32 %v1783, 1.25
    %v2584 = vmul.f32 %v1784, 1.25
    %v2585 = vmul.f32 %v1785, 1.25
    %v2586 = vmul.f32 %v2570, %v1818
    %v2587 = vmul.f32 %v2571, %v1819
    %v2588 = vmul.f32 %v2572, %v1820
    %v2589 = vmul.f32 %v2573, %v1821
    %v2590 = vmul.f32 %v2574, %v1822
    %v2591 = vmul.f32 %v2575, %v1823
    %v2592 = vmul.f32 %v2576, %v1824
    %v2593 = vmul.f32 %v2577, %v1825
    %v2594 = vmul.f32 %v2578, %v1826
    %v2595 = vmul.f32 %v2579, %v1827
    %v2596 = vmul.f32 %v2580, %v1828
    %v2597 = vmul.f32 %v2581, %v1829
    %v2598 = vmul.f32 %v2582, %v1830
    %v2599 = vmul.f32 %v2583, %v1831
    %v2600 = vmul.f32 %v2584, %v1832
    %v2601 = vmul.f32 %v2585, %v1833
    %v2602 = vadd.f32 %v2554, %v2586
    %v2603 = vadd.f32 %v2555, %v2587
    %v2604 = vadd.f32 %v2556, %v2588
    %v2605 = vadd.f32 %v2557, %v2589
    %v2606 = vadd.f32 %v2558, %v2590
    %v2607 = vadd.f32 %v2559, %v2591
    %v2608 = vadd.f32 %v2560, %v2592
    %v2609 = vadd.f32 %v2561, %v2593
    %v2610 = vadd.f32 %v2562, %v2594
    %v2611 = vadd.f32 %v2563, %v2595
    %v2612 = vadd.f32 %v2564, %v2596
    %v2613 = vadd.f32 %v2565, %v2597
    %v2614 = vadd.f32 %v2566, %v2598
    %v2615 = vadd.f32 %v2567, %v2599
    %v2616 = vadd.f32 %v2568, %v2600
    %v2617 = vadd.f32 %v2569, %v2601
    %v2618 = vmul.f32 %v1722, 1.25
    %v2619 = vmul.f32 %v1723, 1.25
    %v2620 = vmul.f32 %v1724, 1.25
    %v2621 = vmul.f32 %v1725, 1.25
    %v2622 = vmul.f32 %v1726, 1.25
    %v2623 = vmul.f32 %v1727, 1.25
    %v2624 = vmul.f32 %v1728, 1.25
    %v2625 = vmul.f32 %v1729, 1.25
    %v2626 = vmul.f32 %v1730, 1.25
    %v2627 = vmul.f32 %v1731, 1.25
    %v2628 = vmul.f32 %v1732, 1.25
    %v2629 = vmul.f32 %v1733, 1.25
    %v2630 = vmul.f32 %v1734, 1.25
    %v2631 = vmul.f32 %v1735, 1.25
    %v2632 = vmul.f32 %v1736, 1.25
    %v2633 = vmul.f32 %v1737, 1.25
    %v2634 = vmul.f32 %v2618, %v1818
    %v2635 = vmul.f32 %v2619, %v1819
    %v2636 = vmul.f32 %v2620, %v1820
    %v2637 = vmul.f32 %v2621, %v1821
    %v2638 = vmul.f32 %v2622, %v1822
    %v2639 = vmul.f32 %v2623, %v1823
    %v2640 = vmul.f32 %v2624, %v1824
    %v2641 = vmul.f32 %v2625, %v1825
    %v2642 = vmul.f32 %v2626, %v1826
    %v2643 = vmul.f32 %v2627, %v1827
    %v2644 = vmul.f32 %v2628, %v1828
    %v2645 = vmul.f32 %v2629, %v1829
    %v2646 = vmul.f32 %v2630, %v1830
    %v2647 = vmul.f32 %v2631, %v1831
    %v2648 = vmul.f32 %v2632, %v1832
    %v2649 = vmul.f32 %v2633, %v1833
    %v2650 = vmul.f32 %v1882, 1.25
    %v2651 = vmul.f32 %v1883, 1.25
    %v2652 = vmul.f32 %v1884, 1.25
    %v2653 = vmul.f32 %v1885, 1.25
    %v2654 = vmul.f32 %v1886, 1.25
    %v2655 = vmul.f32 %v1887, 1.25
    %v2656 = vmul.f32 %v1888, 1.25
    %v2657 = vmul.f32 %v1889, 1.25
    %v2658 = vmul.f32 %v1890, 1.25
    %v2659 = vmul.f32 %v1891, 1.25
    %v2660 = vmul.f32 %v1892, 1.25
    %v2661 = vmul.f32 %v1893, 1.25
    %v2662 = vmul.f32 %v1894, 1.25
    %v2663 = vmul.f32 %v1895, 1.25
    %v2664 = vmul.f32 %v1896, 1.25
    %v2665 = vmul.f32 %v1897, 1.25
    %v2666 = vmul.f32 %v2650, %v1930
    %v2667 = vmul.f32 %v2651, %v1931
    %v2668 = vmul.f32 %v2652, %v1932
    %v2669 = vmul.f32 %v2653, %v1933
    %v2670 = vmul.f32 %v2654, %v1934
    %v2671 = vmul.f32 %v2655, %v1935
    %v2672 = vmul.f32 %v2656, %v1936
    %v2673 = vmul.f32 %v2657, %v1937
    %v2674 = vmul.f32 %v2658, %v1938
    %v2675 = vmul.f32 %v2659, %v1939
    %v2676 = vmul.f32 %v2660, %v1940
    %v2677 = vmul.f32 %v2661, %v1941
    %v2678 = vmul.f32 %v2662, %v1942
    %v2679 = vmul.f32 %v2663, %v1943
    %v2680 = vmul.f32 %v2664, %v1944
    %v2681 = vmul.f32 %v2665, %v1945
    %v2682 = vadd.f32 %v2634, %v2666
    %v2683 = vadd.f32 %v2635, %v2667
    %v2684 = vadd.f32 %v2636, %v2668
    %v2685 = vadd.f32 %v2637, %v2669
    %v2686 = vadd.f32 %v2638, %v2670
    %v2687 = vadd.f32 %v2639, %v2671
    %v2688 = vadd.f32 %v2640, %v2672
    %v2689 = vadd.f32 %v2641, %v2673
    %v2690 = vadd.f32 %v2642, %v2674
    %v2691 = vadd.f32 %v2643, %v2675
    %v2692 = vadd.f32 %v2644, %v2676
    %v2693 = vadd.f32 %v2645, %v2677
    %v2694 = vadd.f32 %v2646, %v2678
    %v2695 = vadd.f32 %v2647, %v2679
    %v2696 = vadd.f32 %v2648, %v2680
    %v2697 = vadd.f32 %v2649, %v2681
    %v2698 = vmul.f32 %v1834, 1.25
    %v2699 = vmul.f32 %v1835, 1.25
    %v2700 = vmul.f32 %v1836, 1.25
    %v2701 = vmul.f32 %v1837, 1.25
    %v2702 = vmul.f32 %v1838, 1.25
    %v2703 = vmul.f32 %v1839, 1.25
    %v2704 = vmul.f32 %v1840, 1.25
    %v2705 = vmul.f32 %v1841, 1.25
    %v2706 = vmul.f32 %v1842, 1.25
    %v2707 = vmul.f32 %v1843, 1.25
    %v2708 = vmul.f32 %v1844, 1.25
    %v2709 = vmul.f32 %v1845, 1.25
    %v2710 = vmul.f32 %v1846, 1.25
    %v2711 = vmul.f32 %v1847, 1.25
    %v2712 = vmul.f32 %v1848, 1.25
    %v2713 = vmul.f32 %v1849, 1.25
    %v2714 = vmul.f32 %v2698, %v1930
    %v2715 = vmul.f32 %v2699, %v1931
    %v2716 = vmul.f32 %v2700, %v1932
    %v2717 = vmul.f32 %v2701, %v1933
    %v2718 = vmul.f32 %v2702, %v1934
    %v2719 = vmul.f32 %v2703, %v1935
    %v2720 = vmul.f32 %v2704, %v1936
    %v2721 = vmul.f32 %v2705, %v1937
    %v2722 = vmul.f32 %v2706, %v1938
    %v2723 = vmul.f32 %v2707, %v1939
    %v2724 = vmul.f32 %v2708, %v1940
    %v2725 = vmul.f32 %v2709, %v1941
    %v2726 = vmul.f32 %v2710, %v1942
    %v2727 = vmul.f32 %v2711, %v1943
    %v2728 = vmul.f32 %v2712, %v1944
    %v2729 = vmul.f32 %v2713, %v1945
    %v2730 = vmul.f32 %v1994, 1.25
    %v2731 = vmul.f32 %v1995, 1.25
    %v2732 = vmul.f32 %v1996, 1.25
    %v2733 = vmul.f32 %v1997, 1.25
    %v2734 = vmul.f32 %v1998, 1.25
    %v2735 = vmul.f32 %v1999, 1.25
    %v2736 = vmul.f32 %v2000, 1.25
    %v2737 = vmul.f32 %v2001, 1.25
    %v2738 = vmul.f32 %v2002, 1.25
    %v2739 = vmul.f32 %v2003, 1.25
    %v2740 = vmul.f32 %v2004, 1.25
    %v2741 = vmul.f32 %v2005, 1.25
    %v2742 = vmul.f32 %v2006, 1.25
    %v2743 = vmul.f32 %v2007, 1.25
    %v2744 = vmul.f32 %v2008, 1.25
    %v2745 = vmul.f32 %v2009, 1.25
    %v2746 = vmul.f32 %v2730, %v2042
    %v2747 = vmul.f32 %v2731, %v2043
    %v2748 = vmul.f32 %v2732, %v2044
    %v2749 = vmul.f32 %v2733, %v2045
    %v2750 = vmul.f32 %v2734, %v2046
    %v2751 = vmul.f32 %v2735, %v2047
    %v2752 = vmul.f32 %v2736, %v2048
    %v2753 = vmul.f32 %v2737, %v2049
    %v2754 = vmul.f32 %v2738, %v2050
    %v2755 = vmul.f32 %v2739, %v2051
    %v2756 = vmul.f32 %v2740, %v2052
    %v2757 = vmul.f32 %v2741, %v2053
    %v2758 = vmul.f32 %v2742, %v2054
    %v2759 = vmul.f32 %v2743, %v2055
    %v2760 = vmul.f32 %v2744, %v2056
    %v2761 = vmul.f32 %v2745, %v2057
    %v2762 = vadd.f32 %v2714, %v2746
    %v2763 = vadd.f32 %v2715, %v2747
    %v2764 = vadd.f32 %v2716, %v2748
    %v2765 = vadd.f32 %v2717, %v2749
    %v2766 = vadd.f32 %v2718, %v2750
    %v2767 = vadd.f32 %v2719, %v2751
    %v2768 = vadd.f32 %v2720, %v2752
    %v2769 = vadd.f32 %v2721, %v2753
    %v2770 = vadd.f32 %v2722, %v2754
    %v2771 = vadd.f32 %v2723, %v2755
    %v2772 = vadd.f32 %v2724, %v2756
    %v2773 = vadd.f32 %v2725, %v2757
    %v2774 = vadd.f32 %v2726, %v2758
    %v2775 = vadd.f32 %v2727, %v2759
    %v2776 = vadd.f32 %v2728, %v2760
    %v2777 = vadd.f32 %v2729, %v2761
    %v2778 = vmul.f32 %v938, 0.8333333
    %v2779 = vmul.f32 %v939, 0.8333333
    %v2780 = vmul.f32 %v940, 0.8333333
    %v2781 = vmul.f32 %v941, 0.8333333
    %v2782 = vmul.f32 %v942, 0.8333333
    %v2783 = vmul.f32 %v943, 0.8333333
    %v2784 = vmul.f32 %v944, 0.8333333
    %v2785 = vmul.f32 %v945, 0.8333333
    %v2786 = vmul.f32 %v946, 0.8333333
    %v2787 = vmul.f32 %v947, 0.8333333
    %v2788 = vmul.f32 %v948, 0.8333333
    %v2789 = vmul.f32 %v949, 0.8333333
    %v2790 = vmul.f32 %v950, 0.8333333
    %v2791 = vmul.f32 %v951, 0.8333333
    %v2792 = vmul.f32 %v952, 0.8333333
    %v2793 = vmul.f32 %v953, 0.8333333
    %v2794 = vmul.f32 %v2778, %v2122
    %v2795 = vmul.f32 %v2779, %v2123
    %v2796 = vmul.f32 %v2780, %v2124
    %v2797 = vmul.f32 %v2781, %v2125
    %v2798 = vmul.f32 %v2782, %v2126
    %v2799 = vmul.f32 %v2783, %v2127
    %v2800 = vmul.f32 %v2784, %v2128
    %v2801 = vmul.f32 %v2785, %v2129
    %v2802 = vmul.f32 %v2786, %v2130
    %v2803 = vmul.f32 %v2787, %v2131
    %v2804 = vmul.f32 %v2788, %v2132
    %v2805 = vmul.f32 %v2789, %v2133
    %v2806 = vmul.f32 %v2790, %v2134
    %v2807 = vmul.f32 %v2791, %v2135
    %v2808 = vmul.f32 %v2792, %v2136
    %v2809 = vmul.f32 %v2793, %v2137
    %v2810 = vmul.f32 %v1210, 0.8333333
    %v2811 = vmul.f32 %v1211, 0.8333333
    %v2812 = vmul.f32 %v1212, 0.8333333
    %v2813 = vmul.f32 %v1213, 0.8333333
    %v2814 = vmul.f32 %v1214, 0.8333333
    %v2815 = vmul.f32 %v1215, 0.8333333
    %v2816 = vmul.f32 %v1216, 0.8333333
    %v2817 = vmul.f32 %v1217, 0.8333333
    %v2818 = vmul.f32 %v1218, 0.8333333
    %v2819 = vmul.f32 %v1219, 0.8333333
    %v2820 = vmul.f32 %v1220, 0.8333333
    %v2821 = vmul.f32 %v1221, 0.8333333
    %v2822 = vmul.f32 %v1222, 0.8333333
    %v2823 = vmul.f32 %v1223, 0.8333333
    %v2824 = vmul.f32 %v1224, 0.8333333
    %v2825 = vmul.f32 %v1225, 0.8333333
    %v2826 = vmul.f32 %v2810, %v2202
    %v2827 = vmul.f32 %v2811, %v2203
    %v2828 = vmul.f32 %v2812, %v2204
    %v2829 = vmul.f32 %v2813, %v2205
    %v2830 = vmul.f32 %v2814, %v2206
    %v2831 = vmul.f32 %v2815, %v2207
    %v2832 = vmul.f32 %v2816, %v2208
    %v2833 = vmul.f32 %v2817, %v2209
    %v2834 = vmul.f32 %v2818, %v2210
    %v2835 = vmul.f32 %v2819, %v2211
    %v2836 = vmul.f32 %v2820, %v2212
    %v2837 = vmul.f32 %v2821, %v2213
    %v2838 = vmul.f32 %v2822, %v2214
    %v2839 = vmul.f32 %v2823, %v2215
    %v2840 = vmul.f32 %v2824, %v2216
    %v2841 = vmul.f32 %v2825, %v2217
    %v2842 = vadd.f32 %v2794, %v2826
    %v2843 = vadd.f32 %v2795, %v2827
    %v2844 = vadd.f32 %v2796, %v2828
    %v2845 = vadd.f32 %v2797, %v2829
    %v2846 = vadd.f32 %v2798, %v2830
    %v2847 = vadd.f32 %v2799, %v2831
    %v2848 = vadd.f32 %v2800, %v2832
    %v2849 = vadd.f32 %v2801, %v2833
    %v2850 = vadd.f32 %v2802, %v2834
    %v2851 = vadd.f32 %v2803, %v2835
    %v2852 = vadd.f32 %v2804, %v2836
    %v2853 = vadd.f32 %v2805, %v2837
    %v2854 = vadd.f32 %v2806, %v2838
    %v2855 = vadd.f32 %v2807, %v2839
    %v2856 = vadd.f32 %v2808, %v2840
    %v2857 = vadd.f32 %v2809, %v2841
    %v2858 = vmul.f32 %v1050, 0.8333333
    %v2859 = vmul.f32 %v1051, 0.8333333
    %v2860 = vmul.f32 %v1052, 0.8333333
    %v2861 = vmul.f32 %v1053, 0.8333333
    %v2862 = vmul.f32 %v1054, 0.8333333
    %v2863 = vmul.f32 %v1055, 0.8333333
    %v2864 = vmul.f32 %v1056, 0.8333333
    %v2865 = vmul.f32 %v1057, 0.8333333
    %v2866 = vmul.f32 %v1058, 0.8333333
    %v2867 = vmul.f32 %v1059, 0.8333333
    %v2868 = vmul.f32 %v1060, 0.8333333
    %v2869 = vmul.f32 %v1061, 0.8333333
    %v2870 = vmul.f32 %v1062, 0.8333333
    %v2871 = vmul.f32 %v1063, 0.8333333
    %v2872 = vmul.f32 %v1064, 0.8333333
    %v2873 = vmul.f32 %v1065, 0.8333333
    %v2874 = vmul.f32 %v2858, %v2202
    %v2875 = vmul.f32 %v2859, %v2203
    %v2876 = vmul.f32 %v2860, %v2204
    %v2877 = vmul.f32 %v2861, %v2205
    %v2878 = vmul.f32 %v2862, %v2206
    %v2879 = vmul.f32 %v2863, %v2207
    %v2880 = vmul.f32 %v2864, %v2208
    %v2881 = vmul.f32 %v2865, %v2209
    %v2882 = vmul.f32 %v2866, %v2210
    %v2883 = vmul.f32 %v2867, %v2211
    %v2884 = vmul.f32 %v2868, %v2212
    %v2885 = vmul.f32 %v2869, %v2213
    %v2886 = vmul.f32 %v2870, %v2214
    %v2887 = vmul.f32 %v2871, %v2215
    %v2888 = vmul.f32 %v2872, %v2216
    %v2889 = vmul.f32 %v2873, %v2217
    %v2890 = vmul.f32 %v1322, 0.8333333
    %v2891 = vmul.f32 %v1323, 0.8333333
    %v2892 = vmul.f32 %v1324, 0.8333333
    %v2893 = vmul.f32 %v1325, 0.8333333
    %v2894 = vmul.f32 %v1326, 0.8333333
    %v2895 = vmul.f32 %v1327, 0.8333333
    %v2896 = vmul.f32 %v1328, 0.8333333
    %v2897 = vmul.f32 %v1329, 0.8333333
    %v2898 = vmul.f32 %v1330, 0.8333333
    %v2899 = vmul.f32 %v1331, 0.8333333
    %v2900 = vmul.f32 %v1332, 0.8333333
    %v2901 = vmul.f32 %v1333, 0.8333333
    %v2902 = vmul.f32 %v1334, 0.8333333
    %v2903 = vmul.f32 %v1335, 0.8333333
    %v2904 = vmul.f32 %v1336, 0.8333333
    %v2905 = vmul.f32 %v1337, 0.8333333
    %v2906 = vmul.f32 %v2890, %v2282
    %v2907 = vmul.f32 %v2891, %v2283
    %v2908 = vmul.f32 %v2892, %v2284
    %v2909 = vmul.f32 %v2893, %v2285
    %v2910 = vmul.f32 %v2894, %v2286
    %v2911 = vmul.f32 %v2895, %v2287
    %v2912 = vmul.f32 %v2896, %v2288
    %v2913 = vmul.f32 %v2897, %v2289
    %v2914 = vmul.f32 %v2898, %v2290
    %v2915 = vmul.f32 %v2899, %v2291
    %v2916 = vmul.f32 %v2900, %v2292
    %v2917 = vmul.f32 %v2901, %v2293
    %v2918 = vmul.f32 %v2902, %v2294
    %v2919 = vmul.f32 %v2903, %v2295
    %v2920 = vmul.f32 %v2904, %v2296
    %v2921 = vmul.f32 %v2905, %v2297
    %v2922 = vadd.f32 %v2874, %v2906
    %v2923 = vadd.f32 %v2875, %v2907
    %v2924 = vadd.f32 %v2876, %v2908
    %v2925 = vadd.f32 %v2877, %v2909
    %v2926 = vadd.f32 %v2878, %v2910
    %v2927 = vadd.f32 %v2879, %v2911
    %v2928 = vadd.f32 %v2880, %v2912
    %v2929 = vadd.f32 %v2881, %v2913
    %v2930 = vadd.f32 %v2882, %v2914
    %v2931 = vadd.f32 %v2883, %v2915
    %v2932 = vadd.f32 %v2884, %v2916
    %v2933 = vadd.f32 %v2885, %v2917
    %v2934 = vadd.f32 %v2886, %v2918
    %v2935 = vadd.f32 %v2887, %v2919
    %v2936 = vadd.f32 %v2888, %v2920
    %v2937 = vadd.f32 %v2889, %v2921
    %v2938 = vmul.f32 %v1162, 0.8333333
    %v2939 = vmul.f32 %v1163, 0.8333333
    %v2940 = vmul.f32 %v1164, 0.8333333
    %v2941 = vmul.f32 %v1165, 0.8333333
    %v2942 = vmul.f32 %v1166, 0.8333333
    %v2943 = vmul.f32 %v1167, 0.8333333
    %v2944 = vmul.f32 %v1168, 0.8333333
    %v2945 = vmul.f32 %v1169, 0.8333333
    %v2946 = vmul.f32 %v1170, 0.8333333
    %v2947 = vmul.f32 %v1171, 0.8333333
    %v2948 = vmul.f32 %v1172, 0.8333333
    %v2949 = vmul.f32 %v1173, 0.8333333
    %v2950 = vmul.f32 %v1174, 0.8333333
    %v2951 = vmul.f32 %v1175, 0.8333333
    %v2952 = vmul.f32 %v1176, 0.8333333
    %v2953 = vmul.f32 %v1177, 0.8333333
    %v2954 = vmul.f32 %v2938, %v2282
    %v2955 = vmul.f32 %v2939, %v2283
    %v2956 = vmul.f32 %v2940, %v2284
    %v2957 = vmul.f32 %v2941, %v2285
    %v2958 = vmul.f32 %v2942, %v2286
    %v2959 = vmul.f32 %v2943, %v2287
    %v2960 = vmul.f32 %v2944, %v2288
    %v2961 = vmul.f32 %v2945, %v2289
    %v2962 = vmul.f32 %v2946, %v2290
    %v2963 = vmul.f32 %v2947, %v2291
    %v2964 = vmul.f32 %v2948, %v2292
    %v2965 = vmul.f32 %v2949, %v2293
    %v2966 = vmul.f32 %v2950, %v2294
    %v2967 = vmul.f32 %v2951, %v2295
    %v2968 = vmul.f32 %v2952, %v2296
    %v2969 = vmul.f32 %v2953, %v2297
    %v2970 = vmul.f32 %v1434, 0.8333333
    %v2971 = vmul.f32 %v1435, 0.8333333
    %v2972 = vmul.f32 %v1436, 0.8333333
    %v2973 = vmul.f32 %v1437, 0.8333333
    %v2974 = vmul.f32 %v1438, 0.8333333
    %v2975 = vmul.f32 %v1439, 0.8333333
    %v2976 = vmul.f32 %v1440, 0.8333333
    %v2977 = vmul.f32 %v1441, 0.8333333
    %v2978 = vmul.f32 %v1442, 0.8333333
    %v2979 = vmul.f32 %v1443, 0.8333333
    %v2980 = vmul.f32 %v1444, 0.8333333
    %v2981 = vmul.f32 %v1445, 0.8333333
    %v2982 = vmul.f32 %v1446, 0.8333333
    %v2983 = vmul.f32 %v1447, 0.8333333
    %v2984 = vmul.f32 %v1448, 0.8333333
    %v2985 = vmul.f32 %v1449, 0.8333333
    %v2986 = vmul.f32 %v2970, %v2362
    %v2987 = vmul.f32 %v2971, %v2363
    %v2988 = vmul.f32 %v2972, %v2364
    %v2989 = vmul.f32 %v2973, %v2365
    %v2990 = vmul.f32 %v2974, %v2366
    %v2991 = vmul.f32 %v2975, %v2367
    %v2992 = vmul.f32 %v2976, %v2368
    %v2993 = vmul.f32 %v2977, %v2369
    %v2994 = vmul.f32 %v2978, %v2370
    %v2995 = vmul.f32 %v2979, %v2371
    %v2996 = vmul.f32 %v2980, %v2372
    %v2997 = vmul.f32 %v2981, %v2373
    %v2998 = vmul.f32 %v2982, %v2374
    %v2999 = vmul.f32 %v2983, %v2375
    %v3000 = vmul.f32 %v2984, %v2376
    %v3001 = vmul.f32 %v2985, %v2377
    %v3002 = vadd.f32 %v2954, %v2986
    %v3003 = vadd.f32 %v2955, %v2987
    %v3004 = vadd.f32 %v2956, %v2988
    %v3005 = vadd.f32 %v2957, %v2989
    %v3006 = vadd.f32 %v2958, %v2990
    %v3007 = vadd.f32 %v2959, %v2991
    %v3008 = vadd.f32 %v2960, %v2992
    %v3009 = vadd.f32 %v2961, %v2993
    %v3010 = vadd.f32 %v2962, %v2994
    %v3011 = vadd.f32 %v2963, %v2995
    %v3012 = vadd.f32 %v2964, %v2996
    %v3013 = vadd.f32 %v2965, %v2997
    %v3014 = vadd.f32 %v2966, %v2998
    %v3015 = vadd.f32 %v2967, %v2999
    %v3016 = vadd.f32 %v2968, %v3000
    %v3017 = vadd.f32 %v2969, %v3001
    %v3018 = vmul.f32 %v1274, 0.8333333
    %v3019 = vmul.f32 %v1275, 0.8333333
    %v3020 = vmul.f32 %v1276, 0.8333333
    %v3021 = vmul.f32 %v1277, 0.8333333
    %v3022 = vmul.f32 %v1278, 0.8333333
    %v3023 = vmul.f32 %v1279, 0.8333333
    %v3024 = vmul.f32 %v1280, 0.8333333
    %v3025 = vmul.f32 %v1281, 0.8333333
    %v3026 = vmul.f32 %v1282, 0.8333333
    %v3027 = vmul.f32 %v1283, 0.8333333
    %v3028 = vmul.f32 %v1284, 0.8333333
    %v3029 = vmul.f32 %v1285, 0.8333333
    %v3030 = vmul.f32 %v1286, 0.8333333
    %v3031 = vmul.f32 %v1287, 0.8333333
    %v3032 = vmul.f32 %v1288, 0.8333333
    %v3033 = vmul.f32 %v1289, 0.8333333
    %v3034 = vmul.f32 %v3018, %v2362
    %v3035 = vmul.f32 %v3019, %v2363
    %v3036 = vmul.f32 %v3020, %v2364
    %v3037 = vmul.f32 %v3021, %v2365
    %v3038 = vmul.f32 %v3022, %v2366
    %v3039 = vmul.f32 %v3023, %v2367
    %v3040 = vmul.f32 %v3024, %v2368
    %v3041 = vmul.f32 %v3025, %v2369
    %v3042 = vmul.f32 %v3026, %v2370
    %v3043 = vmul.f32 %v3027, %v2371
    %v3044 = vmul.f32 %v3028, %v2372
    %v3045 = vmul.f32 %v3029, %v2373
    %v3046 = vmul.f32 %v3030, %v2374
    %v3047 = vmul.f32 %v3031, %v2375
    %v3048 = vmul.f32 %v3032, %v2376
    %v3049 = vmul.f32 %v3033, %v2377
    %v3050 = vmul.f32 %v1546, 0.8333333
    %v3051 = vmul.f32 %v1547, 0.8333333
    %v3052 = vmul.f32 %v1548, 0.8333333
    %v3053 = vmul.f32 %v1549, 0.8333333
    %v3054 = vmul.f32 %v1550, 0.8333333
    %v3055 = vmul.f32 %v1551, 0.8333333
    %v3056 = vmul.f32 %v1552, 0.8333333
    %v3057 = vmul.f32 %v1553, 0.8333333
    %v3058 = vmul.f32 %v1554, 0.8333333
    %v3059 = vmul.f32 %v1555, 0.8333333
    %v3060 = vmul.f32 %v1556, 0.8333333
    %v3061 = vmul.f32 %v1557, 0.8333333
    %v3062 = vmul.f32 %v1558, 0.8333333
    %v3063 = vmul.f32 %v1559, 0.8333333
    %v3064 = vmul.f32 %v1560, 0.8333333
    %v3065 = vmul.f32 %v1561, 0.8333333
    %v3066 = vmul.f32 %v3050, %v2442
    %v3067 = vmul.f32 %v3051, %v2443
    %v3068 = vmul.f32 %v3052, %v2444
    %v3069 = vmul.f32 %v3053, %v2445
    %v3070 = vmul.f32 %v3054, %v2446
    %v3071 = vmul.f32 %v3055, %v2447
    %v3072 = vmul.f32 %v3056, %v2448
    %v3073 = vmul.f32 %v3057, %v2449
    %v3074 = vmul.f32 %v3058, %v2450
    %v3075 = vmul.f32 %v3059, %v2451
    %v3076 = vmul.f32 %v3060, %v2452
    %v3077 = vmul.f32 %v3061, %v2453
    %v3078 = vmul.f32 %v3062, %v2454
    %v3079 = vmul.f32 %v3063, %v2455
    %v3080 = vmul.f32 %v3064, %v2456
    %v3081 = vmul.f32 %v3065, %v2457
    %v3082 = vadd.f32 %v3034, %v3066
    %v3083 = vadd.f32 %v3035, %v3067
    %v3084 = vadd.f32 %v3036, %v3068
    %v3085 = vadd.f32 %v3037, %v3069
    %v3086 = vadd.f32 %v3038, %v3070
    %v3087 = vadd.f32 %v3039, %v3071
    %v3088 = vadd.f32 %v3040, %v3072
    %v3089 = vadd.f32 %v3041, %v3073
    %v3090 = vadd.f32 %v3042, %v3074
    %v3091 = vadd.f32 %v3043, %v3075
    %v3092 = vadd.f32 %v3044, %v3076
    %v3093 = vadd.f32 %v3045, %v3077
    %v3094 = vadd.f32 %v3046, %v3078
    %v3095 = vadd.f32 %v3047, %v3079
    %v3096 = vadd.f32 %v3048, %v3080
    %v3097 = vadd.f32 %v3049, %v3081
    %v3098 = vmul.f32 %v1386, 0.8333333
    %v3099 = vmul.f32 %v1387, 0.8333333
    %v3100 = vmul.f32 %v1388, 0.8333333
    %v3101 = vmul.f32 %v1389, 0.8333333
    %v3102 = vmul.f32 %v1390, 0.8333333
    %v3103 = vmul.f32 %v1391, 0.8333333
    %v3104 = vmul.f32 %v1392, 0.8333333
    %v3105 = vmul.f32 %v1393, 0.8333333
    %v3106 = vmul.f32 %v1394, 0.8333333
    %v3107 = vmul.f32 %v1395, 0.8333333
    %v3108 = vmul.f32 %v1396, 0.8333333
    %v3109 = vmul.f32 %v1397, 0.8333333
    %v3110 = vmul.f32 %v1398, 0.8333333
    %v3111 = vmul.f32 %v1399, 0.8333333
    %v3112 = vmul.f32 %v1400, 0.8333333
    %v3113 = vmul.f32 %v1401, 0.8333333
    %v3114 = vmul.f32 %v3098, %v2442
    %v3115 = vmul.f32 %v3099, %v2443
    %v3116 = vmul.f32 %v3100, %v2444
    %v3117 = vmul.f32 %v3101, %v2445
    %v3118 = vmul.f32 %v3102, %v2446
    %v3119 = vmul.f32 %v3103, %v2447
    %v3120 = vmul.f32 %v3104, %v2448
    %v3121 = vmul.f32 %v3105, %v2449
    %v3122 = vmul.f32 %v3106, %v2450
    %v3123 = vmul.f32 %v3107, %v2451
    %v3124 = vmul.f32 %v3108, %v2452
    %v3125 = vmul.f32 %v3109, %v2453
    %v3126 = vmul.f32 %v3110, %v2454
    %v3127 = vmul.f32 %v3111, %v2455
    %v3128 = vmul.f32 %v3112, %v2456
    %v3129 = vmul.f32 %v3113, %v2457
    %v3130 = vmul.f32 %v1658, 0.8333333
    %v3131 = vmul.f32 %v1659, 0.8333333
    %v3132 = vmul.f32 %v1660, 0.8333333
    %v3133 = vmul.f32 %v1661, 0.8333333
    %v3134 = vmul.f32 %v1662, 0.8333333
    %v3135 = vmul.f32 %v1663, 0.8333333
    %v3136 = vmul.f32 %v1664, 0.8333333
    %v3137 = vmul.f32 %v1665, 0.8333333
    %v3138 = vmul.f32 %v1666, 0.8333333
    %v3139 = vmul.f32 %v1667, 0.8333333
    %v3140 = vmul.f32 %v1668, 0.8333333
    %v3141 = vmul.f32 %v1669, 0.8333333
    %v3142 = vmul.f32 %v1670, 0.8333333
    %v3143 = vmul.f32 %v1671, 0.8333333
    %v3144 = vmul.f32 %v1672, 0.8333333
    %v3145 = vmul.f32 %v1673, 0.8333333
    %v3146 = vmul.f32 %v3130, %v2522
    %v3147 = vmul.f32 %v3131, %v2523
    %v3148 = vmul.f32 %v3132, %v2524
    %v3149 = vmul.f32 %v3133, %v2525
    %v3150 = vmul.f32 %v3134, %v2526
    %v3151 = vmul.f32 %v3135, %v2527
    %v3152 = vmul.f32 %v3136, %v2528
    %v3153 = vmul.f32 %v3137, %v2529
    %v3154 = vmul.f32 %v3138, %v2530
    %v3155 = vmul.f32 %v3139, %v2531
    %v3156 = vmul.f32 %v3140, %v2532
    %v3157 = vmul.f32 %v3141, %v2533
    %v3158 = vmul.f32 %v3142, %v2534
    %v3159 = vmul.f32 %v3143, %v2535
    %v3160 = vmul.f32 %v3144, %v2536
    %v3161 = vmul.f32 %v3145, %v2537
    %v3162 = vadd.f32 %v3114, %v3146
    %v3163 = vadd.f32 %v3115, %v3147
    %v3164 = vadd.f32 %v3116, %v3148
    %v3165 = vadd.f32 %v3117, %v3149
    %v3166 = vadd.f32 %v3118, %v3150
    %v3167 = vadd.f32 %v3119, %v3151
    %v3168 = vadd.f32 %v3120, %v3152
    %v3169 = vadd.f32 %v3121, %v3153
    %v3170 = vadd.f32 %v3122, %v3154
    %v3171 = vadd.f32 %v3123, %v3155
    %v3172 = vadd.f32 %v3124, %v3156
    %v3173 = vadd.f32 %v3125, %v3157
    %v3174 = vadd.f32 %v3126, %v3158
    %v3175 = vadd.f32 %v3127, %v3159
    %v3176 = vadd.f32 %v3128, %v3160
    %v3177 = vadd.f32 %v3129, %v3161
    %v3178 = vmul.f32 %v1498, 0.8333333
    %v3179 = vmul.f32 %v1499, 0.8333333
    %v3180 = vmul.f32 %v1500, 0.8333333
    %v3181 = vmul.f32 %v1501, 0.8333333
    %v3182 = vmul.f32 %v1502, 0.8333333
    %v3183 = vmul.f32 %v1503, 0.8333333
    %v3184 = vmul.f32 %v1504, 0.8333333
    %v3185 = vmul.f32 %v1505, 0.8333333
    %v3186 = vmul.f32 %v1506, 0.8333333
    %v3187 = vmul.f32 %v1507, 0.8333333
    %v3188 = vmul.f32 %v1508, 0.8333333
    %v3189 = vmul.f32 %v1509, 0.8333333
    %v3190 = vmul.f32 %v1510, 0.8333333
    %v3191 = vmul.f32 %v1511, 0.8333333
    %v3192 = vmul.f32 %v1512, 0.8333333
    %v3193 = vmul.f32 %v1513, 0.8333333
    %v3194 = vmul.f32 %v3178, %v2522
    %v3195 = vmul.f32 %v3179, %v2523
    %v3196 = vmul.f32 %v3180, %v2524
    %v3197 = vmul.f32 %v3181, %v2525
    %v3198 = vmul.f32 %v3182, %v2526
    %v3199 = vmul.f32 %v3183, %v2527
    %v3200 = vmul.f32 %v3184, %v2528
    %v3201 = vmul.f32 %v3185, %v2529
    %v3202 = vmul.f32 %v3186, %v2530
    %v3203 = vmul.f32 %v3187, %v2531
    %v3204 = vmul.f32 %v3188, %v2532
    %v3205 = vmul.f32 %v3189, %v2533
    %v3206 = vmul.f32 %v3190, %v2534
    %v3207 = vmul.f32 %v3191, %v2535
    %v3208 = vmul.f32 %v3192, %v2536
    %v3209 = vmul.f32 %v3193, %v2537
    %v3210 = vmul.f32 %v1770, 0.8333333
    %v3211 = vmul.f32 %v1771, 0.8333333
    %v3212 = vmul.f32 %v1772, 0.8333333
    %v3213 = vmul.f32 %v1773, 0.8333333
    %v3214 = vmul.f32 %v1774, 0.8333333
    %v3215 = vmul.f32 %v1775, 0.8333333
    %v3216 = vmul.f32 %v1776, 0.8333333
    %v3217 = vmul.f32 %v1777, 0.8333333
    %v3218 = vmul.f32 %v1778, 0.8333333
    %v3219 = vmul.f32 %v1779, 0.8333333
    %v3220 = vmul.f32 %v1780, 0.8333333
    %v3221 = vmul.f32 %v1781, 0.8333333
    %v3222 = vmul.f32 %v1782, 0.8333333
    %v3223 = vmul.f32 %v1783, 0.8333333
    %v3224 = vmul.f32 %v1784, 0.8333333
    %v3225 = vmul.f32 %v1785, 0.8333333
    %v3226 = vmul.f32 %v3210, %v2602
    %v3227 = vmul.f32 %v3211, %v2603
    %v3228 = vmul.f32 %v3212, %v2604
    %v3229 = vmul.f32 %v3213, %v2605
    %v3230 = vmul.f32 %v3214, %v2606
    %v3231 = vmul.f32 %v3215, %v2607
    %v3232 = vmul.f32 %v3216, %v2608
    %v3233 = vmul.f32 %v3217, %v2609
    %v3234 = vmul.f32 %v3218, %v2610
    %v3235 = vmul.f32 %v3219, %v2611
    %v3236 = vmul.f32 %v3220, %v2612
    %v3237 = vmul.f32 %v3221, %v2613
    %v3238 = vmul.f32 %v3222, %v2614
    %v3239 = vmul.f32 %v3223, %v2615
    %v3240 = vmul.f32 %v3224, %v2616
    %v3241 = vmul.f32 %v3225, %v2617
    %v3242 = vadd.f32 %v3194, %v3226
    %v3243 = vadd.f32 %v3195, %v3227
    %v3244 = vadd.f32 %v3196, %v3228
    %v3245 = vadd.f32 %v3197, %v3229
    %v3246 = vadd.f32 %v3198, %v3230
    %v3247 = vadd.f32 %v3199, %v3231
    %v3248 = vadd.f32 %v3200, %v3232
    %v3249 = vadd.f32 %v3201, %v3233
    %v3250 = vadd.f32 %v3202, %v3234
    %v3251 = vadd.f32 %v3203, %v3235
    %v3252 = vadd.f32 %v3204, %v3236
    %v3253 = vadd.f32 %v3205, %v3237
    %v3254 = vadd.f32 %v3206, %v3238
    %v3255 = vadd.f32 %v3207, %v3239
    %v3256 = vadd.f32 %v3208, %v3240
    %v3257 = vadd.f32 %v3209, %v3241
    %v3258 = vmul.f32 %v1610, 0.8333333
    %v3259 = vmul.f32 %v1611, 0.8333333
    %v3260 = vmul.f32 %v1612, 0.8333333
    %v3261 = vmul.f32 %v1613, 0.8333333
    %v3262 = vmul.f32 %v1614, 0.8333333
    %v3263 = vmul.f32 %v1615, 0.8333333
    %v3264 = vmul.f32 %v1616, 0.8333333
    %v3265 = vmul.f32 %v1617, 0.8333333
    %v3266 = vmul.f32 %v1618, 0.8333333
    %v3267 = vmul.f32 %v1619, 0.8333333
    %v3268 = vmul.f32 %v1620, 0.8333333
    %v3269 = vmul.f32 %v1621, 0.8333333
    %v3270 = vmul.f32 %v1622, 0.8333333
    %v3271 = vmul.f32 %v1623, 0.8333333
    %v3272 = vmul.f32 %v1624, 0.8333333
    %v3273 = vmul.f32 %v1625, 0.8333333
    %v3274 = vmul.f32 %v3258, %v2602
    %v3275 = vmul.f32 %v3259, %v2603
    %v3276 = vmul.f32 %v3260, %v2604
    %v3277 = vmul.f32 %v3261, %v2605
    %v3278 = vmul.f32 %v3262, %v2606
    %v3279 = vmul.f32 %v3263, %v2607
    %v3280 = vmul.f32 %v3264, %v2608
    %v3281 = vmul.f32 %v3265, %v2609
    %v3282 = vmul.f32 %v3266, %v2610
    %v3283 = vmul.f32 %v3267, %v2611
    %v3284 = vmul.f32 %v3268, %v2612
    %v3285 = vmul.f32 %v3269, %v2613
    %v3286 = vmul.f32 %v3270, %v2614
    %v3287 = vmul.f32 %v3271, %v2615
    %v3288 = vmul.f32 %v3272, %v2616
    %v3289 = vmul.f32 %v3273, %v2617
    %v3290 = vmul.f32 %v1882, 0.8333333
    %v3291 = vmul.f32 %v1883, 0.8333333
    %v3292 = vmul.f32 %v1884, 0.8333333
    %v3293 = vmul.f32 %v1885, 0.8333333
    %v3294 = vmul.f32 %v1886, 0.8333333
    %v3295 = vmul.f32 %v1887, 0.8333333
    %v3296 = vmul.f32 %v1888, 0.8333333
    %v3297 = vmul.f32 %v1889, 0.8333333
    %v3298 = vmul.f32 %v1890, 0.8333333
    %v3299 = vmul.f32 %v1891, 0.8333333
    %v3300 = vmul.f32 %v1892, 0.8333333
    %v3301 = vmul.f32 %v1893, 0.8333333
    %v3302 = vmul.f32 %v1894, 0.8333333
    %v3303 = vmul.f32 %v1895, 0.8333333
    %v3304 = vmul.f32 %v1896, 0.8333333
    %v3305 = vmul.f32 %v1897, 0.8333333
    %v3306 = vmul.f32 %v3290, %v2682
    %v3307 = vmul.f32 %v3291, %v2683
    %v3308 = vmul.f32 %v3292, %v2684
    %v3309 = vmul.f32 %v3293, %v2685
    %v3310 = vmul.f32 %v3294, %v2686
    %v3311 = vmul.f32 %v3295, %v2687
    %v3312 = vmul.f32 %v3296, %v2688
    %v3313 = vmul.f32 %v3297, %v2689
    %v3314 = vmul.f32 %v3298, %v2690
    %v3315 = vmul.f32 %v3299, %v2691
    %v3316 = vmul.f32 %v3300, %v2692
    %v3317 = vmul.f32 %v3301, %v2693
    %v3318 = vmul.f32 %v3302, %v2694
    %v3319 = vmul.f32 %v3303, %v2695
    %v3320 = vmul.f32 %v3304, %v2696
    %v3321 = vmul.f32 %v3305, %v2697
    %v3322 = vadd.f32 %v3274, %v3306
    %v3323 = vadd.f32 %v3275, %v3307
    %v3324 = vadd.f32 %v3276, %v3308
    %v3325 = vadd.f32 %v3277, %v3309
    %v3326 = vadd.f32 %v3278, %v3310
    %v3327 = vadd.f32 %v3279, %v3311
    %v3328 = vadd.f32 %v3280, %v3312
    %v3329 = vadd.f32 %v3281, %v3313
    %v3330 = vadd.f32 %v3282, %v3314
    %v3331 = vadd.f32 %v3283, %v3315
    %v3332 = vadd.f32 %v3284, %v3316
    %v3333 = vadd.f32 %v3285, %v3317
    %v3334 = vadd.f32 %v3286, %v3318
    %v3335 = vadd.f32 %v3287, %v3319
    %v3336 = vadd.f32 %v3288, %v3320
    %v3337 = vadd.f32 %v3289, %v3321
    %v3338 = vmul.f32 %v1722, 0.8333333
    %v3339 = vmul.f32 %v1723, 0.8333333
    %v3340 = vmul.f32 %v1724, 0.8333333
    %v3341 = vmul.f32 %v1725, 0.8333333
    %v3342 = vmul.f32 %v1726, 0.8333333
    %v3343 = vmul.f32 %v1727, 0.8333333
    %v3344 = vmul.f32 %v1728, 0.8333333
    %v3345 = vmul.f32 %v1729, 0.8333333
    %v3346 = vmul.f32 %v1730, 0.8333333
    %v3347 = vmul.f32 %v1731, 0.8333333
    %v3348 = vmul.f32 %v1732, 0.8333333
    %v3349 = vmul.f32 %v1733, 0.8333333
    %v3350 = vmul.f32 %v1734, 0.8333333
    %v3351 = vmul.f32 %v1735, 0.8333333
    %v3352 = vmul.f32 %v1736, 0.8333333
    %v3353 = vmul.f32 %v1737, 0.8333333
    %v3354 = vmul.f32 %v3338, %v2682
    %v3355 = vmul.f32 %v3339, %v2683
    %v3356 = vmul.f32 %v3340, %v2684
    %v3357 = vmul.f32 %v3341, %v2685
    %v3358 = vmul.f32 %v3342, %v2686
    %v3359 = vmul.f32 %v3343, %v2687
    %v3360 = vmul.f32 %v3344, %v2688
    %v3361 = vmul.f32 %v3345, %v2689
    %v3362 = vmul.f32 %v3346, %v2690
    %v3363 = vmul.f32 %v3347, %v2691
    %v3364 = vmul.f32 %v3348, %v2692
    %v3365 = vmul.f32 %v3349, %v2693
    %v3366 = vmul.f32 %v3350, %v2694
    %v3367 = vmul.f32 %v3351, %v2695
    %v3368 = vmul.f32 %v3352, %v2696
    %v3369 = vmul.f32 %v3353, %v2697
    %v3370 = vmul.f32 %v1994, 0.8333333
    %v3371 = vmul.f32 %v1995, 0.8333333
    %v3372 = vmul.f32 %v1996, 0.8333333
    %v3373 = vmul.f32 %v1997, 0.8333333
    %v3374 = vmul.f32 %v1998, 0.8333333
    %v3375 = vmul.f32 %v1999, 0.8333333
    %v3376 = vmul.f32 %v2000, 0.8333333
    %v3377 = vmul.f32 %v2001, 0.8333333
    %v3378 = vmul.f32 %v2002, 0.8333333
    %v3379 = vmul.f32 %v2003, 0.8333333
    %v3380 = vmul.f32 %v2004, 0.8333333
    %v3381 = vmul.f32 %v2005, 0.8333333
    %v3382 = vmul.f32 %v2006, 0.8333333
    %v3383 = vmul.f32 %v2007, 0.8333333
    %v3384 = vmul.f32 %v2008, 0.8333333
    %v3385 = vmul.f32 %v2009, 0.8333333
    %v3386 = vmul.f32 %v3370, %v2762
    %v3387 = vmul.f32 %v3371, %v2763
    %v3388 = vmul.f32 %v3372, %v2764
    %v3389 = vmul.f32 %v3373, %v2765
    %v3390 = vmul.f32 %v3374, %v2766
    %v3391 = vmul.f32 %v3375, %v2767
    %v3392 = vmul.f32 %v3376, %v2768
    %v3393 = vmul.f32 %v3377, %v2769
    %v3394 = vmul.f32 %v3378, %v2770
    %v3395 = vmul.f32 %v3379, %v2771
    %v3396 = vmul.f32 %v3380, %v2772
    %v3397 = vmul.f32 %v3381, %v2773
    %v3398 = vmul.f32 %v3382, %v2774
    %v3399 = vmul.f32 %v3383, %v2775
    %v3400 = vmul.f32 %v3384, %v2776
    %v3401 = vmul.f32 %v3385, %v2777
    %v3402 = vadd.f32 %v3354, %v3386
    %v3403 = vadd.f32 %v3355, %v3387
    %v3404 = vadd.f32 %v3356, %v3388
    %v3405 = vadd.f32 %v3357, %v3389
    %v3406 = vadd.f32 %v3358, %v3390
    %v3407 = vadd.f32 %v3359, %v3391
    %v3408 = vadd.f32 %v3360, %v3392
    %v3409 = vadd.f32 %v3361, %v3393
    %v3410 = vadd.f32 %v3362, %v3394
    %v3411 = vadd.f32 %v3363, %v3395
    %v3412 = vadd.f32 %v3364, %v3396
    %v3413 = vadd.f32 %v3365, %v3397
    %v3414 = vadd.f32 %v3366, %v3398
    %v3415 = vadd.f32 %v3367, %v3399
    %v3416 = vadd.f32 %v3368, %v3400
    %v3417 = vadd.f32 %v3369, %v3401
    %v3418 = vxor.u32 %v42, 2147483648
    %v3419 = vxor.u32 %v43, 2147483648
    %v3420 = vxor.u32 %v44, 2147483648
    %v3421 = vxor.u32 %v45, 2147483648
    %v3422 = vxor.u32 %v46, 2147483648
    %v3423 = vxor.u32 %v47, 2147483648
    %v3424 = vxor.u32 %v48, 2147483648
    %v3425 = vxor.u32 %v49, 2147483648
    %v3426 = vxor.u32 %v50, 2147483648
    %v3427 = vxor.u32 %v51, 2147483648
    %v3428 = vxor.u32 %v52, 2147483648
    %v3429 = vxor.u32 %v53, 2147483648
    %v3430 = vxor.u32 %v54, 2147483648
    %v3431 = vxor.u32 %v55, 2147483648
    %v3432 = vxor.u32 %v56, 2147483648
    %v3433 = vxor.u32 %v57, 2147483648
    %v3434 = vmul.f32 %v3418, 1.442695
    %v3435 = vpow.pop %v3434
    %v3436 = vmul.f32 %v3419, 1.442695
    %v3437 = vpow.pop %v3436
    %v3438 = vmul.f32 %v3420, 1.442695
    %v3439 = vpow.pop %v3438
    %v3440 = vmul.f32 %v3421, 1.442695
    %v3441 = vpow.pop %v3440
    %v3442 = vmul.f32 %v3422, 1.442695
    %v3443 = vpow.pop %v3442
    %v3444 = vmul.f32 %v3423, 1.442695
    %v3445 = vpow.pop %v3444
    %v3446 = vmul.f32 %v3424, 1.442695
    %v3447 = vpow.pop %v3446
    %v3448 = vmul.f32 %v3425, 1.442695
    %v3449 = vpow.pop %v3448
    %v3450 = vmul.f32 %v3426, 1.442695
    %v3451 = vpow.pop %v3450
    %v3452 = vmul.f32 %v3427, 1.442695
    %v3453 = vpow.pop %v3452
    %v3454 = vmul.f32 %v3428, 1.442695
    %v3455 = vpow.pop %v3454
    %v3456 = vmul.f32 %v3429, 1.442695
    %v3457 = vpow.pop %v3456
    %v3458 = vmul.f32 %v3430, 1.442695
    %v3459 = vpow.pop %v3458
    %v3460 = vmul.f32 %v3431, 1.442695
    %v3461 = vpow.pop %v3460
    %v3462 = vmul.f32 %v3432, 1.442695
    %v3463 = vpow.pop %v3462
    %v3464 = vmul.f32 %v3433, 1.442695
    %v3465 = vpow.pop %v3464
    %v3466 = vadd.f32 %v3435, 1.0
    %v3467 = vadd.f32 %v3437, 1.0
    %v3468 = vadd.f32 %v3439, 1.0
    %v3469 = vadd.f32 %v3441, 1.0
    %v3470 = vadd.f32 %v3443, 1.0
    %v3471 = vadd.f32 %v3445, 1.0
    %v3472 = vadd.f32 %v3447, 1.0
    %v3473 = vadd.f32 %v3449, 1.0
    %v3474 = vadd.f32 %v3451, 1.0
    %v3475 = vadd.f32 %v3453, 1.0
    %v3476 = vadd.f32 %v3455, 1.0
    %v3477 = vadd.f32 %v3457, 1.0
    %v3478 = vadd.f32 %v3459, 1.0
    %v3479 = vadd.f32 %v3461, 1.0
    %v3480 = vadd.f32 %v3463, 1.0
    %v3481 = vadd.f32 %v3465, 1.0
    %v3482 = vrcp.pop %v3466
    %v3483 = vmul.f32 1.0, %v3482
    %v3484 = vrcp.pop %v3467
    %v3485 = vmul.f32 1.0, %v3484
    %v3486 = vrcp.pop %v3468
    %v3487 = vmul.f32 1.0, %v3486
    %v3488 = vrcp.pop %v3469
    %v3489 = vmul.f32 1.0, %v3488
    %v3490 = vrcp.pop %v3470
    %v3491 = vmul.f32 1.0, %v3490
    %v3492 = vrcp.pop %v3471
    %v3493 = vmul.f32 1.0, %v3492
    %v3494 = vrcp.pop %v3472
    %v3495 = vmul.f32 1.0, %v3494
    %v3496 = vrcp.pop %v3473
    %v3497 = vmul.f32 1.0, %v3496
    %v3498 = vrcp.pop %v3474
    %v3499 = vmul.f32 1.0, %v3498
    %v3500 = vrcp.pop %v3475
    %v3501 = vmul.f32 1.0, %v3500
    %v3502 = vrcp.pop %v3476
    %v3503 = vmul.f32 1.0, %v3502
    %v3504 = vrcp.pop %v3477
    %v3505 = vmul.f32 1.0, %v3504
    %v3506 = vrcp.pop %v3478
    %v3507 = vmul.f32 1.0, %v3506
    %v3508 = vrcp.pop %v3479
    %v3509 = vmul.f32 1.0, %v3508
    %v3510 = vrcp.pop %v3480
    %v3511 = vmul.f32 1.0, %v3510
    %v3512 = vrcp.pop %v3481
    %v3513 = vmul.f32 1.0, %v3512
    %v3514 = vmul.f32 %v42, %v3483
    %v3515 = vmul.f32 %v43, %v3485
    %v3516 = vmul.f32 %v44, %v3487
    %v3517 = vmul.f32 %v45, %v3489
    %v3518 = vmul.f32 %v46, %v3491
    %v3519 = vmul.f32 %v47, %v3493
    %v3520 = vmul.f32 %v48, %v3495
    %v3521 = vmul.f32 %v49, %v3497
    %v3522 = vmul.f32 %v50, %v3499
    %v3523 = vmul.f32 %v51, %v3501
    %v3524 = vmul.f32 %v52, %v3503
    %v3525 = vmul.f32 %v53, %v3505
    %v3526 = vmul.f32 %v54, %v3507
    %v3527 = vmul.f32 %v55, %v3509
    %v3528 = vmul.f32 %v56, %v3511
    %v3529 = vmul.f32 %v57, %v3513
    %v3530 = vld [vmem:[#allocation2] sm:$0xff]
    %v3531 = vld [vmem:[#allocation2 + $0x8] sm:$0xff]
    %v3532 = vld [vmem:[#allocation2 + $0x10] sm:$0xff]
    %v3533 = vld [vmem:[#allocation2 + $0x18] sm:$0xff]
    %v3534 = vld [vmem:[#allocation2 + $0x20] sm:$0xff]
    %v3535 = vld [vmem:[#allocation2 + $0x28] sm:$0xff]
    %v3536 = vld [vmem:[#allocation2 + $0x30] sm:$0xff]
    %v3537 = vld [vmem:[#allocation2 + $0x38] sm:$0xff]
    %v3538 = vld [vmem:[#allocation2 + $0x40] sm:$0xff]
    %v3539 = vld [vmem:[#allocation2 + $0x48] sm:$0xff]
    %v3540 = vld [vmem:[#allocation2 + $0x50] sm:$0xff]
    %v3541 = vld [vmem:[#allocation2 + $0x58] sm:$0xff]
    %v3542 = vld [vmem:[#allocation2 + $0x60] sm:$0xff]
    %v3543 = vld [vmem:[#allocation2 + $0x68] sm:$0xff]
    %v3544 = vld [vmem:[#allocation2 + $0x70] sm:$0xff]
    %v3545 = vld [vmem:[#allocation2 + $0x78] sm:$0xff]
    %v3546 = vld [vmem:[#allocation2 + $0x80] sm:$0xff]
    %v3547 = vld [vmem:[#allocation2 + $0x88] sm:$0xff]
    %v3548 = vld [vmem:[#allocation2 + $0x90] sm:$0xff]
    %v3549 = vld [vmem:[#allocation2 + $0x98] sm:$0xff]
    %v3550 = vld [vmem:[#allocation2 + $0xa0] sm:$0xff]
    %v3551 = vld [vmem:[#allocation2 + $0xa8] sm:$0xff]
    %v3552 = vld [vmem:[#allocation2 + $0xb0] sm:$0xff]
    %v3553 = vld [vmem:[#allocation2 + $0xb8] sm:$0xff]
    %v3554 = vld [vmem:[#allocation2 + $0xc0] sm:$0xff]
    %v3555 = vld [vmem:[#allocation2 + $0xc8] sm:$0xff]
    %v3556 = vld [vmem:[#allocation2 + $0xd0] sm:$0xff]
    %v3557 = vld [vmem:[#allocation2 + $0xd8] sm:$0xff]
    %v3558 = vld [vmem:[#allocation2 + $0xe0] sm:$0xff]
    %v3559 = vld [vmem:[#allocation2 + $0xe8] sm:$0xff]
    %v3560 = vld [vmem:[#allocation2 + $0xf0] sm:$0xff]
    %v3561 = vld [vmem:[#allocation2 + $0xf8] sm:$0xff]
    %v3562 = vld [vmem:[#allocation2 + $0x100] sm:$0xff]
    %v3563 = vld [vmem:[#allocation2 + $0x108] sm:$0xff]
    %v3564 = vld [vmem:[#allocation2 + $0x110] sm:$0xff]
    %v3565 = vld [vmem:[#allocation2 + $0x118] sm:$0xff]
    %v3566 = vld [vmem:[#allocation2 + $0x120] sm:$0xff]
    %v3567 = vld [vmem:[#allocation2 + $0x128] sm:$0xff]
    %v3568 = vld [vmem:[#allocation2 + $0x130] sm:$0xff]
    %v3569 = vld [vmem:[#allocation2 + $0x138] sm:$0xff]
    %v3570 = vld [vmem:[#allocation2 + $0x140] sm:$0xff]
    %v3571 = vld [vmem:[#allocation2 + $0x148] sm:$0xff]
    %v3572 = vld [vmem:[#allocation2 + $0x150] sm:$0xff]
    %v3573 = vld [vmem:[#allocation2 + $0x158] sm:$0xff]
    %v3574 = vld [vmem:[#allocation2 + $0x160] sm:$0xff]
    %v3575 = vld [vmem:[#allocation2 + $0x168] sm:$0xff]
    %v3576 = vld [vmem:[#allocation2 + $0x170] sm:$0xff]
    %v3577 = vld [vmem:[#allocation2 + $0x178] sm:$0xff]
    %v3578 = vld [vmem:[#allocation2 + $0x180] sm:$0xff]
    %v3579 = vld [vmem:[#allocation2 + $0x188] sm:$0xff]
    %v3580 = vld [vmem:[#allocation2 + $0x190] sm:$0xff]
    %v3581 = vld [vmem:[#allocation2 + $0x198] sm:$0xff]
    %v3582 = vld [vmem:[#allocation2 + $0x1a0] sm:$0xff]
    %v3583 = vld [vmem:[#allocation2 + $0x1a8] sm:$0xff]
    %v3584 = vld [vmem:[#allocation2 + $0x1b0] sm:$0xff]
    %v3585 = vld [vmem:[#allocation2 + $0x1b8] sm:$0xff]
    %v3586 = vld [vmem:[#allocation2 + $0x1c0] sm:$0xff]
    %v3587 = vld [vmem:[#allocation2 + $0x1c8] sm:$0xff]
    %v3588 = vld [vmem:[#allocation2 + $0x1d0] sm:$0xff]
    %v3589 = vld [vmem:[#allocation2 + $0x1d8] sm:$0xff]
    %v3590 = vld [vmem:[#allocation2 + $0x1e0] sm:$0xff]
    %v3591 = vld [vmem:[#allocation2 + $0x1e8] sm:$0xff]
    %v3592 = vld [vmem:[#allocation2 + $0x1f0] sm:$0xff]
    %v3593 = vld [vmem:[#allocation2 + $0x1f8] sm:$0xff]
    %v3594 = vld [vmem:[#allocation2 + $0x200] sm:$0xff]
    %v3595 = vld [vmem:[#allocation2 + $0x208] sm:$0xff]
    %v3596 = vld [vmem:[#allocation2 + $0x210] sm:$0xff]
    %v3597 = vld [vmem:[#allocation2 + $0x218] sm:$0xff]
    %v3598 = vld [vmem:[#allocation2 + $0x220] sm:$0xff]
    %v3599 = vld [vmem:[#allocation2 + $0x228] sm:$0xff]
    %v3600 = vld [vmem:[#allocation2 + $0x230] sm:$0xff]
    %v3601 = vld [vmem:[#allocation2 + $0x238] sm:$0xff]
    %v3602 = vld [vmem:[#allocation2 + $0x240] sm:$0xff]
    %v3603 = vld [vmem:[#allocation2 + $0x248] sm:$0xff]
    %v3604 = vld [vmem:[#allocation2 + $0x250] sm:$0xff]
    %v3605 = vld [vmem:[#allocation2 + $0x258] sm:$0xff]
    %v3606 = vld [vmem:[#allocation2 + $0x260] sm:$0xff]
    %v3607 = vld [vmem:[#allocation2 + $0x268] sm:$0xff]
    %v3608 = vld [vmem:[#allocation2 + $0x270] sm:$0xff]
    %v3609 = vld [vmem:[#allocation2 + $0x278] sm:$0xff]
    %v3610 = vld [vmem:[#allocation2 + $0x280] sm:$0xff]
    %v3611 = vld [vmem:[#allocation2 + $0x288] sm:$0xff]
    %v3612 = vld [vmem:[#allocation2 + $0x290] sm:$0xff]
    %v3613 = vld [vmem:[#allocation2 + $0x298] sm:$0xff]
    %v3614 = vld [vmem:[#allocation2 + $0x2a0] sm:$0xff]
    %v3615 = vld [vmem:[#allocation2 + $0x2a8] sm:$0xff]
    %v3616 = vld [vmem:[#allocation2 + $0x2b0] sm:$0xff]
    %v3617 = vld [vmem:[#allocation2 + $0x2b8] sm:$0xff]
    %v3618 = vld [vmem:[#allocation2 + $0x2c0] sm:$0xff]
    %v3619 = vld [vmem:[#allocation2 + $0x2c8] sm:$0xff]
    %v3620 = vld [vmem:[#allocation2 + $0x2d0] sm:$0xff]
    %v3621 = vld [vmem:[#allocation2 + $0x2d8] sm:$0xff]
    %v3622 = vld [vmem:[#allocation2 + $0x2e0] sm:$0xff]
    %v3623 = vld [vmem:[#allocation2 + $0x2e8] sm:$0xff]
    %v3624 = vld [vmem:[#allocation2 + $0x2f0] sm:$0xff]
    %v3625 = vld [vmem:[#allocation2 + $0x2f8] sm:$0xff]
    %v3626 = vld [vmem:[#allocation2 + $0x300] sm:$0xff]
    %v3627 = vld [vmem:[#allocation2 + $0x308] sm:$0xff]
    %v3628 = vld [vmem:[#allocation2 + $0x310] sm:$0xff]
    %v3629 = vld [vmem:[#allocation2 + $0x318] sm:$0xff]
    %v3630 = vld [vmem:[#allocation2 + $0x320] sm:$0xff]
    %v3631 = vld [vmem:[#allocation2 + $0x328] sm:$0xff]
    %v3632 = vld [vmem:[#allocation2 + $0x330] sm:$0xff]
    %v3633 = vld [vmem:[#allocation2 + $0x338] sm:$0xff]
    %v3634 = vld [vmem:[#allocation2 + $0x340] sm:$0xff]
    %v3635 = vld [vmem:[#allocation2 + $0x348] sm:$0xff]
    %v3636 = vld [vmem:[#allocation2 + $0x350] sm:$0xff]
    %v3637 = vld [vmem:[#allocation2 + $0x358] sm:$0xff]
    %v3638 = vld [vmem:[#allocation2 + $0x360] sm:$0xff]
    %v3639 = vld [vmem:[#allocation2 + $0x368] sm:$0xff]
    %v3640 = vld [vmem:[#allocation2 + $0x370] sm:$0xff]
    %v3641 = vld [vmem:[#allocation2 + $0x378] sm:$0xff]
    %v3642 = vld [vmem:[#allocation2 + $0x380] sm:$0xff]
    %v3643 = vld [vmem:[#allocation2 + $0x388] sm:$0xff]
    %v3644 = vld [vmem:[#allocation2 + $0x390] sm:$0xff]
    %v3645 = vld [vmem:[#allocation2 + $0x398] sm:$0xff]
    %v3646 = vld [vmem:[#allocation2 + $0x3a0] sm:$0xff]
    %v3647 = vld [vmem:[#allocation2 + $0x3a8] sm:$0xff]
    %v3648 = vld [vmem:[#allocation2 + $0x3b0] sm:$0xff]
    %v3649 = vld [vmem:[#allocation2 + $0x3b8] sm:$0xff]
    %v3650 = vld [vmem:[#allocation2 + $0x3c0] sm:$0xff]
    %v3651 = vld [vmem:[#allocation2 + $0x3c8] sm:$0xff]
    %v3652 = vld [vmem:[#allocation2 + $0x3d0] sm:$0xff]
    %v3653 = vld [vmem:[#allocation2 + $0x3d8] sm:$0xff]
    %v3654 = vld [vmem:[#allocation2 + $0x3e0] sm:$0xff]
    %v3655 = vld [vmem:[#allocation2 + $0x3e8] sm:$0xff]
    %v3656 = vld [vmem:[#allocation2 + $0x3f0] sm:$0xff]
    %v3657 = vld [vmem:[#allocation2 + $0x3f8] sm:$0xff]
    %v3658 = vld [vmem:[#allocation2 + $0x400] sm:$0xff]
    %v3659 = vld [vmem:[#allocation2 + $0x408] sm:$0xff]
    %v3660 = vld [vmem:[#allocation2 + $0x410] sm:$0xff]
    %v3661 = vld [vmem:[#allocation2 + $0x418] sm:$0xff]
    %v3662 = vld [vmem:[#allocation2 + $0x420] sm:$0xff]
    %v3663 = vld [vmem:[#allocation2 + $0x428] sm:$0xff]
    %v3664 = vld [vmem:[#allocation2 + $0x430] sm:$0xff]
    %v3665 = vld [vmem:[#allocation2 + $0x438] sm:$0xff]
    %v3666 = vld [vmem:[#allocation2 + $0x440] sm:$0xff]
    %v3667 = vld [vmem:[#allocation2 + $0x448] sm:$0xff]
    %v3668 = vld [vmem:[#allocation2 + $0x450] sm:$0xff]
    %v3669 = vld [vmem:[#allocation2 + $0x458] sm:$0xff]
    %v3670 = vld [vmem:[#allocation2 + $0x460] sm:$0xff]
    %v3671 = vld [vmem:[#allocation2 + $0x468] sm:$0xff]
    %v3672 = vld [vmem:[#allocation2 + $0x470] sm:$0xff]
    %v3673 = vld [vmem:[#allocation2 + $0x478] sm:$0xff]
    %3674 = vmatprep.subr.mxu0 0.0
    %3675 = vmatpush1.msra.mxu0 %v3545
    %3676 = vmatprep.subr.mxu0 0.0
    %3677 = vmatpush1.msra.mxu0 %v3544
    %3678 = vmatprep.subr.mxu0 0.0
    %3679 = vmatpush1.msra.mxu0 %v3543
    %3680 = vmatprep.subr.mxu0 0.0
    %3681 = vmatpush1.msra.mxu0 %v3542
    %3682 = vmatprep.subr.mxu0 0.0
    %3683 = vmatpush1.msra.mxu0 %v3541
    %3684 = vmatprep.subr.mxu0 0.0
    %3685 = vmatpush1.msra.mxu0 %v3540
    %3686 = vmatprep.subr.mxu0 0.0
    %3687 = vmatpush1.msra.mxu0 %v3539
    %3688 = vmatprep.subr.mxu0 0.0
    %3689 = vmatpush1.msra.mxu0 %v3538
    %3690 = vmatprep.subr.mxu0 0.0
    %3691 = vmatpush1.msra.mxu0 %v3537
    %3692 = vmatprep.subr.mxu0 0.0
    %3693 = vmatpush1.msra.mxu0 %v3536
    %3694 = vmatprep.subr.mxu0 0.0
    %3695 = vmatpush1.msra.mxu0 %v3535
    %3696 = vmatprep.subr.mxu0 0.0
    %3697 = vmatpush1.msra.mxu0 %v3534
    %3698 = vmatprep.subr.mxu0 0.0
    %3699 = vmatpush1.msra.mxu0 %v3533
    %3700 = vmatprep.subr.mxu0 0.0
    %3701 = vmatpush1.msra.mxu0 %v3532
    %3702 = vmatprep.subr.mxu0 0.0
    %3703 = vmatpush1.msra.mxu0 %v3531
    %3704 = vmatprep.subr.mxu0 0.0
    %3705 = vmatpush1.msra.mxu0 %v3530
    %3706 = vmatprep.subr.mxu0 0.0
    %3707 = vmatpush2.msra.mxu0 %v3561
    %3708 = vmatprep.subr.mxu0 0.0
    %3709 = vmatpush2.msra.mxu0 %v3560
    %3710 = vmatprep.subr.mxu0 0.0
    %3711 = vmatpush2.msra.mxu0 %v3559
    %3712 = vmatprep.subr.mxu0 0.0
    %3713 = vmatpush2.msra.mxu0 %v3558
    %3714 = vmatprep.subr.mxu0 0.0
    %3715 = vmatpush2.msra.mxu0 %v3557
    %3716 = vmatprep.subr.mxu0 0.0
    %3717 = vmatpush2.msra.mxu0 %v3556
    %3718 = vmatprep.subr.mxu0 0.0
    %3719 = vmatpush2.msra.mxu0 %v3555
    %3720 = vmatprep.subr.mxu0 0.0
    %3721 = vmatpush2.msra.mxu0 %v3554
    %3722 = vmatprep.subr.mxu0 0.0
    %3723 = vmatpush2.msra.mxu0 %v3553
    %3724 = vmatprep.subr.mxu0 0.0
    %3725 = vmatpush2.msra.mxu0 %v3552
    %3726 = vmatprep.subr.mxu0 0.0
    %3727 = vmatpush2.msra.mxu0 %v3551
    %3728 = vmatprep.subr.mxu0 0.0
    %3729 = vmatpush2.msra.mxu0 %v3550
    %3730 = vmatprep.subr.mxu0 0.0
    %3731 = vmatpush2.msra.mxu0 %v3549
    %3732 = vmatprep.subr.mxu0 0.0
    %3733 = vmatpush2.msra.mxu0 %v3548
    %3734 = vmatprep.subr.mxu0 0.0
    %3735 = vmatpush2.msra.mxu0 %v3547
    %3736 = vmatprep.subr.mxu0 0.0
    %3737 = vmatpush2.msra.mxu0 %v3546
    %3738 = vmatprep.mubr.f32.mxu0 %v2842
    %3739 = vmatmul.mubr.f32.gmra.mxu0 %v3514
    %v3740 = vpop.f32.mrf.mxu0
    %v3741 = vadd.f32 0.0, %v3740
    %v3742 = vpop.f32.mrf.mxu0
    %3743 = vmatprep.mubr.f32.mxu0 %v2843
    %3744 = vmatmul.mubr.f32.gmra.mxu0 %v3515
    %v3745 = vpop.f32.mrf.mxu0
    %v3746 = vadd.f32 0.0, %v3745
    %v3747 = vpop.f32.mrf.mxu0
    %3748 = vmatprep.mubr.f32.mxu0 %v2844
    %3749 = vmatmul.mubr.f32.gmra.mxu0 %v3516
    %v3750 = vpop.f32.mrf.mxu0
    %v3751 = vadd.f32 0.0, %v3750
    %v3752 = vpop.f32.mrf.mxu0
    %3753 = vmatprep.mubr.f32.mxu0 %v2845
    %3754 = vmatmul.mubr.f32.gmra.mxu0 %v3517
    %v3755 = vpop.f32.mrf.mxu0
    %v3756 = vadd.f32 0.0, %v3755
    %v3757 = vpop.f32.mrf.mxu0
    %3758 = vmatprep.mubr.f32.mxu0 %v2846
    %3759 = vmatmul.mubr.f32.gmra.mxu0 %v3518
    %v3760 = vpop.f32.mrf.mxu0
    %v3761 = vadd.f32 0.0, %v3760
    %v3762 = vpop.f32.mrf.mxu0
    %3763 = vmatprep.mubr.f32.mxu0 %v2847
    %3764 = vmatmul.mubr.f32.gmra.mxu0 %v3519
    %v3765 = vpop.f32.mrf.mxu0
    %v3766 = vadd.f32 0.0, %v3765
    %v3767 = vpop.f32.mrf.mxu0
    %3768 = vmatprep.mubr.f32.mxu0 %v2848
    %3769 = vmatmul.mubr.f32.gmra.mxu0 %v3520
    %v3770 = vpop.f32.mrf.mxu0
    %v3771 = vadd.f32 0.0, %v3770
    %v3772 = vpop.f32.mrf.mxu0
    %3773 = vmatprep.mubr.f32.mxu0 %v2849
    %3774 = vmatmul.mubr.f32.gmra.mxu0 %v3521
    %v3775 = vpop.f32.mrf.mxu0
    %v3776 = vadd.f32 0.0, %v3775
    %v3777 = vpop.f32.mrf.mxu0
    %3778 = vmatprep.mubr.f32.mxu0 %v2850
    %3779 = vmatmul.mubr.f32.gmra.mxu0 %v3522
    %v3780 = vpop.f32.mrf.mxu0
    %v3781 = vadd.f32 0.0, %v3780
    %v3782 = vpop.f32.mrf.mxu0
    %3783 = vmatprep.mubr.f32.mxu0 %v2851
    %3784 = vmatmul.mubr.f32.gmra.mxu0 %v3523
    %v3785 = vpop.f32.mrf.mxu0
    %v3786 = vadd.f32 0.0, %v3785
    %v3787 = vpop.f32.mrf.mxu0
    %3788 = vmatprep.mubr.f32.mxu0 %v2852
    %3789 = vmatmul.mubr.f32.gmra.mxu0 %v3524
    %v3790 = vpop.f32.mrf.mxu0
    %v3791 = vadd.f32 0.0, %v3790
    %v3792 = vpop.f32.mrf.mxu0
    %3793 = vmatprep.mubr.f32.mxu0 %v2853
    %3794 = vmatmul.mubr.f32.gmra.mxu0 %v3525
    %v3795 = vpop.f32.mrf.mxu0
    %v3796 = vadd.f32 0.0, %v3795
    %v3797 = vpop.f32.mrf.mxu0
    %3798 = vmatprep.mubr.f32.mxu0 %v2854
    %3799 = vmatmul.mubr.f32.gmra.mxu0 %v3526
    %v3800 = vpop.f32.mrf.mxu0
    %v3801 = vadd.f32 0.0, %v3800
    %v3802 = vpop.f32.mrf.mxu0
    %3803 = vmatprep.mubr.f32.mxu0 %v2855
    %3804 = vmatmul.mubr.f32.gmra.mxu0 %v3527
    %v3805 = vpop.f32.mrf.mxu0
    %v3806 = vadd.f32 0.0, %v3805
    %v3807 = vpop.f32.mrf.mxu0
    %3808 = vmatprep.mubr.f32.mxu0 %v2856
    %3809 = vmatmul.mubr.f32.gmra.mxu0 %v3528
    %v3810 = vpop.f32.mrf.mxu0
    %v3811 = vadd.f32 0.0, %v3810
    %v3812 = vpop.f32.mrf.mxu0
    %3813 = vmatprep.mubr.f32.mxu0 %v2857
    %3814 = vmatmul.mubr.f32.gmra.mxu0 %v3529
    %v3815 = vpop.f32.mrf.mxu0
    %v3816 = vadd.f32 0.0, %v3815
    %v3817 = vpop.f32.mrf.mxu0
    %3818 = vdwg.mxu0
    %3819 = vmatprep.subr.mxu0 0.0
    %3820 = vmatpush1.msra.mxu0 %v3577
    %3821 = vmatprep.subr.mxu0 0.0
    %3822 = vmatpush1.msra.mxu0 %v3576
    %3823 = vmatprep.subr.mxu0 0.0
    %3824 = vmatpush1.msra.mxu0 %v3575
    %3825 = vmatprep.subr.mxu0 0.0
    %3826 = vmatpush1.msra.mxu0 %v3574
    %3827 = vmatprep.subr.mxu0 0.0
    %3828 = vmatpush1.msra.mxu0 %v3573
    %3829 = vmatprep.subr.mxu0 0.0
    %3830 = vmatpush1.msra.mxu0 %v3572
    %3831 = vmatprep.subr.mxu0 0.0
    %3832 = vmatpush1.msra.mxu0 %v3571
    %3833 = vmatprep.subr.mxu0 0.0
    %3834 = vmatpush1.msra.mxu0 %v3570
    %3835 = vmatprep.subr.mxu0 0.0
    %3836 = vmatpush1.msra.mxu0 %v3569
    %3837 = vmatprep.subr.mxu0 0.0
    %3838 = vmatpush1.msra.mxu0 %v3568
    %3839 = vmatprep.subr.mxu0 0.0
    %3840 = vmatpush1.msra.mxu0 %v3567
    %3841 = vmatprep.subr.mxu0 0.0
    %3842 = vmatpush1.msra.mxu0 %v3566
    %3843 = vmatprep.subr.mxu0 0.0
    %3844 = vmatpush1.msra.mxu0 %v3565
    %3845 = vmatprep.subr.mxu0 0.0
    %3846 = vmatpush1.msra.mxu0 %v3564
    %3847 = vmatprep.subr.mxu0 0.0
    %3848 = vmatpush1.msra.mxu0 %v3563
    %3849 = vmatprep.subr.mxu0 0.0
    %3850 = vmatpush1.msra.mxu0 %v3562
    %3851 = vmatprep.subr.mxu0 0.0
    %3852 = vmatpush2.msra.mxu0 %v3593
    %3853 = vmatprep.subr.mxu0 0.0
    %3854 = vmatpush2.msra.mxu0 %v3592
    %3855 = vmatprep.subr.mxu0 0.0
    %3856 = vmatpush2.msra.mxu0 %v3591
    %3857 = vmatprep.subr.mxu0 0.0
    %3858 = vmatpush2.msra.mxu0 %v3590
    %3859 = vmatprep.subr.mxu0 0.0
    %3860 = vmatpush2.msra.mxu0 %v3589
    %3861 = vmatprep.subr.mxu0 0.0
    %3862 = vmatpush2.msra.mxu0 %v3588
    %3863 = vmatprep.subr.mxu0 0.0
    %3864 = vmatpush2.msra.mxu0 %v3587
    %3865 = vmatprep.subr.mxu0 0.0
    %3866 = vmatpush2.msra.mxu0 %v3586
    %3867 = vmatprep.subr.mxu0 0.0
    %3868 = vmatpush2.msra.mxu0 %v3585
    %3869 = vmatprep.subr.mxu0 0.0
    %3870 = vmatpush2.msra.mxu0 %v3584
    %3871 = vmatprep.subr.mxu0 0.0
    %3872 = vmatpush2.msra.mxu0 %v3583
    %3873 = vmatprep.subr.mxu0 0.0
    %3874 = vmatpush2.msra.mxu0 %v3582
    %3875 = vmatprep.subr.mxu0 0.0
    %3876 = vmatpush2.msra.mxu0 %v3581
    %3877 = vmatprep.subr.mxu0 0.0
    %3878 = vmatpush2.msra.mxu0 %v3580
    %3879 = vmatprep.subr.mxu0 0.0
    %3880 = vmatpush2.msra.mxu0 %v3579
    %3881 = vmatprep.subr.mxu0 0.0
    %3882 = vmatpush2.msra.mxu0 %v3578
    %3883 = vmatprep.mubr.f32.mxu0 %v3002
    %3884 = vmatmul.mubr.f32.gmra.mxu0 %v2922
    %v3885 = vpop.f32.mrf.mxu0
    %v3886 = vadd.f32 %v3741, %v3885
    %v3887 = vpop.f32.mrf.mxu0
    %3888 = vmatprep.mubr.f32.mxu0 %v3003
    %3889 = vmatmul.mubr.f32.gmra.mxu0 %v2923
    %v3890 = vpop.f32.mrf.mxu0
    %v3891 = vadd.f32 %v3746, %v3890
    %v3892 = vpop.f32.mrf.mxu0
    %3893 = vmatprep.mubr.f32.mxu0 %v3004
    %3894 = vmatmul.mubr.f32.gmra.mxu0 %v2924
    %v3895 = vpop.f32.mrf.mxu0
    %v3896 = vadd.f32 %v3751, %v3895
    %v3897 = vpop.f32.mrf.mxu0
    %3898 = vmatprep.mubr.f32.mxu0 %v3005
    %3899 = vmatmul.mubr.f32.gmra.mxu0 %v2925
    %v3900 = vpop.f32.mrf.mxu0
    %v3901 = vadd.f32 %v3756, %v3900
    %v3902 = vpop.f32.mrf.mxu0
    %3903 = vmatprep.mubr.f32.mxu0 %v3006
    %3904 = vmatmul.mubr.f32.gmra.mxu0 %v2926
    %v3905 = vpop.f32.mrf.mxu0
    %v3906 = vadd.f32 %v3761, %v3905
    %v3907 = vpop.f32.mrf.mxu0
    %3908 = vmatprep.mubr.f32.mxu0 %v3007
    %3909 = vmatmul.mubr.f32.gmra.mxu0 %v2927
    %v3910 = vpop.f32.mrf.mxu0
    %v3911 = vadd.f32 %v3766, %v3910
    %v3912 = vpop.f32.mrf.mxu0
    %3913 = vmatprep.mubr.f32.mxu0 %v3008
    %3914 = vmatmul.mubr.f32.gmra.mxu0 %v2928
    %v3915 = vpop.f32.mrf.mxu0
    %v3916 = vadd.f32 %v3771, %v3915
    %v3917 = vpop.f32.mrf.mxu0
    %3918 = vmatprep.mubr.f32.mxu0 %v3009
    %3919 = vmatmul.mubr.f32.gmra.mxu0 %v2929
    %v3920 = vpop.f32.mrf.mxu0
    %v3921 = vadd.f32 %v3776, %v3920
    %v3922 = vpop.f32.mrf.mxu0
    %3923 = vmatprep.mubr.f32.mxu0 %v3010
    %3924 = vmatmul.mubr.f32.gmra.mxu0 %v2930
    %v3925 = vpop.f32.mrf.mxu0
    %v3926 = vadd.f32 %v3781, %v3925
    %v3927 = vpop.f32.mrf.mxu0
    %3928 = vmatprep.mubr.f32.mxu0 %v3011
    %3929 = vmatmul.mubr.f32.gmra.mxu0 %v2931
    %v3930 = vpop.f32.mrf.mxu0
    %v3931 = vadd.f32 %v3786, %v3930
    %v3932 = vpop.f32.mrf.mxu0
    %3933 = vmatprep.mubr.f32.mxu0 %v3012
    %3934 = vmatmul.mubr.f32.gmra.mxu0 %v2932
    %v3935 = vpop.f32.mrf.mxu0
    %v3936 = vadd.f32 %v3791, %v3935
    %v3937 = vpop.f32.mrf.mxu0
    %3938 = vmatprep.mubr.f32.mxu0 %v3013
    %3939 = vmatmul.mubr.f32.gmra.mxu0 %v2933
    %v3940 = vpop.f32.mrf.mxu0
    %v3941 = vadd.f32 %v3796, %v3940
    %v3942 = vpop.f32.mrf.mxu0
    %3943 = vmatprep.mubr.f32.mxu0 %v3014
    %3944 = vmatmul.mubr.f32.gmra.mxu0 %v2934
    %v3945 = vpop.f32.mrf.mxu0
    %v3946 = vadd.f32 %v3801, %v3945
    %v3947 = vpop.f32.mrf.mxu0
    %3948 = vmatprep.mubr.f32.mxu0 %v3015
    %3949 = vmatmul.mubr.f32.gmra.mxu0 %v2935
    %v3950 = vpop.f32.mrf.mxu0
    %v3951 = vadd.f32 %v3806, %v3950
    %v3952 = vpop.f32.mrf.mxu0
    %3953 = vmatprep.mubr.f32.mxu0 %v3016
    %3954 = vmatmul.mubr.f32.gmra.mxu0 %v2936
    %v3955 = vpop.f32.mrf.mxu0
    %v3956 = vadd.f32 %v3811, %v3955
    %v3957 = vpop.f32.mrf.mxu0
    %3958 = vmatprep.mubr.f32.mxu0 %v3017
    %3959 = vmatmul.mubr.f32.gmra.mxu0 %v2937
    %v3960 = vpop.f32.mrf.mxu0
    %v3961 = vadd.f32 %v3816, %v3960
    %v3962 = vpop.f32.mrf.mxu0
    %3963 = vdwg.mxu0
    %3964 = vmatprep.subr.mxu0 0.0
    %3965 = vmatpush1.msra.mxu0 %v3609
    %3966 = vmatprep.subr.mxu0 0.0
    %3967 = vmatpush1.msra.mxu0 %v3608
    %3968 = vmatprep.subr.mxu0 0.0
    %3969 = vmatpush1.msra.mxu0 %v3607
    %3970 = vmatprep.subr.mxu0 0.0
    %3971 = vmatpush1.msra.mxu0 %v3606
    %3972 = vmatprep.subr.mxu0 0.0
    %3973 = vmatpush1.msra.mxu0 %v3605
    %3974 = vmatprep.subr.mxu0 0.0
    %3975 = vmatpush1.msra.mxu0 %v3604
    %3976 = vmatprep.subr.mxu0 0.0
    %3977 = vmatpush1.msra.mxu0 %v3603
    %3978 = vmatprep.subr.mxu0 0.0
    %3979 = vmatpush1.msra.mxu0 %v3602
    %3980 = vmatprep.subr.mxu0 0.0
    %3981 = vmatpush1.msra.mxu0 %v3601
    %3982 = vmatprep.subr.mxu0 0.0
    %3983 = vmatpush1.msra.mxu0 %v3600
    %3984 = vmatprep.subr.mxu0 0.0
    %3985 = vmatpush1.msra.mxu0 %v3599
    %3986 = vmatprep.subr.mxu0 0.0
    %3987 = vmatpush1.msra.mxu0 %v3598
    %3988 = vmatprep.subr.mxu0 0.0
    %3989 = vmatpush1.msra.mxu0 %v3597
    %3990 = vmatprep.subr.mxu0 0.0
    %3991 = vmatpush1.msra.mxu0 %v3596
    %3992 = vmatprep.subr.mxu0 0.0
    %3993 = vmatpush1.msra.mxu0 %v3595
    %3994 = vmatprep.subr.mxu0 0.0
    %3995 = vmatpush1.msra.mxu0 %v3594
    %3996 = vmatprep.subr.mxu0 0.0
    %3997 = vmatpush2.msra.mxu0 %v3625
    %3998 = vmatprep.subr.mxu0 0.0
    %3999 = vmatpush2.msra.mxu0 %v3624
    %4000 = vmatprep.subr.mxu0 0.0
    %4001 = vmatpush2.msra.mxu0 %v3623
    %4002 = vmatprep.subr.mxu0 0.0
    %4003 = vmatpush2.msra.mxu0 %v3622
    %4004 = vmatprep.subr.mxu0 0.0
    %4005 = vmatpush2.msra.mxu0 %v3621
    %4006 = vmatprep.subr.mxu0 0.0
    %4007 = vmatpush2.msra.mxu0 %v3620
    %4008 = vmatprep.subr.mxu0 0.0
    %4009 = vmatpush2.msra.mxu0 %v3619
    %4010 = vmatprep.subr.mxu0 0.0
    %4011 = vmatpush2.msra.mxu0 %v3618
    %4012 = vmatprep.subr.mxu0 0.0
    %4013 = vmatpush2.msra.mxu0 %v3617
    %4014 = vmatprep.subr.mxu0 0.0
    %4015 = vmatpush2.msra.mxu0 %v3616
    %4016 = vmatprep.subr.mxu0 0.0
    %4017 = vmatpush2.msra.mxu0 %v3615
    %4018 = vmatprep.subr.mxu0 0.0
    %4019 = vmatpush2.msra.mxu0 %v3614
    %4020 = vmatprep.subr.mxu0 0.0
    %4021 = vmatpush2.msra.mxu0 %v3613
    %4022 = vmatprep.subr.mxu0 0.0
    %4023 = vmatpush2.msra.mxu0 %v3612
    %4024 = vmatprep.subr.mxu0 0.0
    %4025 = vmatpush2.msra.mxu0 %v3611
    %4026 = vmatprep.subr.mxu0 0.0
    %4027 = vmatpush2.msra.mxu0 %v3610
    %4028 = vmatprep.mubr.f32.mxu0 %v3162
    %4029 = vmatmul.mubr.f32.gmra.mxu0 %v3082
    %v4030 = vpop.f32.mrf.mxu0
    %v4031 = vadd.f32 %v3886, %v4030
    %v4032 = vpop.f32.mrf.mxu0
    %4033 = vmatprep.mubr.f32.mxu0 %v3163
    %4034 = vmatmul.mubr.f32.gmra.mxu0 %v3083
    %v4035 = vpop.f32.mrf.mxu0
    %v4036 = vadd.f32 %v3891, %v4035
    %v4037 = vpop.f32.mrf.mxu0
    %4038 = vmatprep.mubr.f32.mxu0 %v3164
    %4039 = vmatmul.mubr.f32.gmra.mxu0 %v3084
    %v4040 = vpop.f32.mrf.mxu0
    %v4041 = vadd.f32 %v3896, %v4040
    %v4042 = vpop.f32.mrf.mxu0
    %4043 = vmatprep.mubr.f32.mxu0 %v3165
    %4044 = vmatmul.mubr.f32.gmra.mxu0 %v3085
    %v4045 = vpop.f32.mrf.mxu0
    %v4046 = vadd.f32 %v3901, %v4045
    %v4047 = vpop.f32.mrf.mxu0
    %4048 = vmatprep.mubr.f32.mxu0 %v3166
    %4049 = vmatmul.mubr.f32.gmra.mxu0 %v3086
    %v4050 = vpop.f32.mrf.mxu0
    %v4051 = vadd.f32 %v3906, %v4050
    %v4052 = vpop.f32.mrf.mxu0
    %4053 = vmatprep.mubr.f32.mxu0 %v3167
    %4054 = vmatmul.mubr.f32.gmra.mxu0 %v3087
    %v4055 = vpop.f32.mrf.mxu0
    %v4056 = vadd.f32 %v3911, %v4055
    %v4057 = vpop.f32.mrf.mxu0
    %4058 = vmatprep.mubr.f32.mxu0 %v3168
    %4059 = vmatmul.mubr.f32.gmra.mxu0 %v3088
    %v4060 = vpop.f32.mrf.mxu0
    %v4061 = vadd.f32 %v3916, %v4060
    %v4062 = vpop.f32.mrf.mxu0
    %4063 = vmatprep.mubr.f32.mxu0 %v3169
    %4064 = vmatmul.mubr.f32.gmra.mxu0 %v3089
    %v4065 = vpop.f32.mrf.mxu0
    %v4066 = vadd.f32 %v3921, %v4065
    %v4067 = vpop.f32.mrf.mxu0
    %4068 = vmatprep.mubr.f32.mxu0 %v3170
    %4069 = vmatmul.mubr.f32.gmra.mxu0 %v3090
    %v4070 = vpop.f32.mrf.mxu0
    %v4071 = vadd.f32 %v3926, %v4070
    %v4072 = vpop.f32.mrf.mxu0
    %4073 = vmatprep.mubr.f32.mxu0 %v3171
    %4074 = vmatmul.mubr.f32.gmra.mxu0 %v3091
    %v4075 = vpop.f32.mrf.mxu0
    %v4076 = vadd.f32 %v3931, %v4075
    %v4077 = vpop.f32.mrf.mxu0
    %4078 = vmatprep.mubr.f32.mxu0 %v3172
    %4079 = vmatmul.mubr.f32.gmra.mxu0 %v3092
    %v4080 = vpop.f32.mrf.mxu0
    %v4081 = vadd.f32 %v3936, %v4080
    %v4082 = vpop.f32.mrf.mxu0
    %4083 = vmatprep.mubr.f32.mxu0 %v3173
    %4084 = vmatmul.mubr.f32.gmra.mxu0 %v3093
    %v4085 = vpop.f32.mrf.mxu0
    %v4086 = vadd.f32 %v3941, %v4085
    %v4087 = vpop.f32.mrf.mxu0
    %4088 = vmatprep.mubr.f32.mxu0 %v3174
    %4089 = vmatmul.mubr.f32.gmra.mxu0 %v3094
    %v4090 = vpop.f32.mrf.mxu0
    %v4091 = vadd.f32 %v3946, %v4090
    %v4092 = vpop.f32.mrf.mxu0
    %4093 = vmatprep.mubr.f32.mxu0 %v3175
    %4094 = vmatmul.mubr.f32.gmra.mxu0 %v3095
    %v4095 = vpop.f32.mrf.mxu0
    %v4096 = vadd.f32 %v3951, %v4095
    %v4097 = vpop.f32.mrf.mxu0
    %4098 = vmatprep.mubr.f32.mxu0 %v3176
    %4099 = vmatmul.mubr.f32.gmra.mxu0 %v3096
    %v4100 = vpop.f32.mrf.mxu0
    %v4101 = vadd.f32 %v3956, %v4100
    %v4102 = vpop.f32.mrf.mxu0
    %4103 = vmatprep.mubr.f32.mxu0 %v3177
    %4104 = vmatmul.mubr.f32.gmra.mxu0 %v3097
    %v4105 = vpop.f32.mrf.mxu0
    %v4106 = vadd.f32 %v3961, %v4105
    %v4107 = vpop.f32.mrf.mxu0
    %4108 = vdwg.mxu0
    %4109 = vmatprep.subr.mxu0 0.0
    %4110 = vmatpush1.msra.mxu0 %v3641
    %4111 = vmatprep.subr.mxu0 0.0
    %4112 = vmatpush1.msra.mxu0 %v3640
    %4113 = vmatprep.subr.mxu0 0.0
    %4114 = vmatpush1.msra.mxu0 %v3639
    %4115 = vmatprep.subr.mxu0 0.0
    %4116 = vmatpush1.msra.mxu0 %v3638
    %4117 = vmatprep.subr.mxu0 0.0
    %4118 = vmatpush1.msra.mxu0 %v3637
    %4119 = vmatprep.subr.mxu0 0.0
    %4120 = vmatpush1.msra.mxu0 %v3636
    %4121 = vmatprep.subr.mxu0 0.0
    %4122 = vmatpush1.msra.mxu0 %v3635
    %4123 = vmatprep.subr.mxu0 0.0
    %4124 = vmatpush1.msra.mxu0 %v3634
    %4125 = vmatprep.subr.mxu0 0.0
    %4126 = vmatpush1.msra.mxu0 %v3633
    %4127 = vmatprep.subr.mxu0 0.0
    %4128 = vmatpush1.msra.mxu0 %v3632
    %4129 = vmatprep.subr.mxu0 0.0
    %4130 = vmatpush1.msra.mxu0 %v3631
    %4131 = vmatprep.subr.mxu0 0.0
    %4132 = vmatpush1.msra.mxu0 %v3630
    %4133 = vmatprep.subr.mxu0 0.0
    %4134 = vmatpush1.msra.mxu0 %v3629
    %4135 = vmatprep.subr.mxu0 0.0
    %4136 = vmatpush1.msra.mxu0 %v3628
    %4137 = vmatprep.subr.mxu0 0.0
    %4138 = vmatpush1.msra.mxu0 %v3627
    %4139 = vmatprep.subr.mxu0 0.0
    %4140 = vmatpush1.msra.mxu0 %v3626
    %4141 = vmatprep.subr.mxu0 0.0
    %4142 = vmatpush2.msra.mxu0 %v3657
    %4143 = vmatprep.subr.mxu0 0.0
    %4144 = vmatpush2.msra.mxu0 %v3656
    %4145 = vmatprep.subr.mxu0 0.0
    %4146 = vmatpush2.msra.mxu0 %v3655
    %4147 = vmatprep.subr.mxu0 0.0
    %4148 = vmatpush2.msra.mxu0 %v3654
    %4149 = vmatprep.subr.mxu0 0.0
    %4150 = vmatpush2.msra.mxu0 %v3653
    %4151 = vmatprep.subr.mxu0 0.0
    %4152 = vmatpush2.msra.mxu0 %v3652
    %4153 = vmatprep.subr.mxu0 0.0
    %4154 = vmatpush2.msra.mxu0 %v3651
    %4155 = vmatprep.subr.mxu0 0.0
    %4156 = vmatpush2.msra.mxu0 %v3650
    %4157 = vmatprep.subr.mxu0 0.0
    %4158 = vmatpush2.msra.mxu0 %v3649
    %4159 = vmatprep.subr.mxu0 0.0
    %4160 = vmatpush2.msra.mxu0 %v3648
    %4161 = vmatprep.subr.mxu0 0.0
    %4162 = vmatpush2.msra.mxu0 %v3647
    %4163 = vmatprep.subr.mxu0 0.0
    %4164 = vmatpush2.msra.mxu0 %v3646
    %4165 = vmatprep.subr.mxu0 0.0
    %4166 = vmatpush2.msra.mxu0 %v3645
    %4167 = vmatprep.subr.mxu0 0.0
    %4168 = vmatpush2.msra.mxu0 %v3644
    %4169 = vmatprep.subr.mxu0 0.0
    %4170 = vmatpush2.msra.mxu0 %v3643
    %4171 = vmatprep.subr.mxu0 0.0
    %4172 = vmatpush2.msra.mxu0 %v3642
    %4173 = vmatprep.mubr.f32.mxu0 %v3322
    %4174 = vmatmul.mubr.f32.gmra.mxu0 %v3242
    %v4175 = vpop.f32.mrf.mxu0
    %v4176 = vadd.f32 %v4031, %v4175
    %v4177 = vpop.f32.mrf.mxu0
    %4178 = vmatprep.mubr.f32.mxu0 %v3323
    %4179 = vmatmul.mubr.f32.gmra.mxu0 %v3243
    %v4180 = vpop.f32.mrf.mxu0
    %v4181 = vadd.f32 %v4036, %v4180
    %v4182 = vpop.f32.mrf.mxu0
    %4183 = vmatprep.mubr.f32.mxu0 %v3324
    %4184 = vmatmul.mubr.f32.gmra.mxu0 %v3244
    %v4185 = vpop.f32.mrf.mxu0
    %v4186 = vadd.f32 %v4041, %v4185
    %v4187 = vpop.f32.mrf.mxu0
    %4188 = vmatprep.mubr.f32.mxu0 %v3325
    %4189 = vmatmul.mubr.f32.gmra.mxu0 %v3245
    %v4190 = vpop.f32.mrf.mxu0
    %v4191 = vadd.f32 %v4046, %v4190
    %v4192 = vpop.f32.mrf.mxu0
    %4193 = vmatprep.mubr.f32.mxu0 %v3326
    %4194 = vmatmul.mubr.f32.gmra.mxu0 %v3246
    %v4195 = vpop.f32.mrf.mxu0
    %v4196 = vadd.f32 %v4051, %v4195
    %v4197 = vpop.f32.mrf.mxu0
    %4198 = vmatprep.mubr.f32.mxu0 %v3327
    %4199 = vmatmul.mubr.f32.gmra.mxu0 %v3247
    %v4200 = vpop.f32.mrf.mxu0
    %v4201 = vadd.f32 %v4056, %v4200
    %v4202 = vpop.f32.mrf.mxu0
    %4203 = vmatprep.mubr.f32.mxu0 %v3328
    %4204 = vmatmul.mubr.f32.gmra.mxu0 %v3248
    %v4205 = vpop.f32.mrf.mxu0
    %v4206 = vadd.f32 %v4061, %v4205
    %v4207 = vpop.f32.mrf.mxu0
    %4208 = vmatprep.mubr.f32.mxu0 %v3329
    %4209 = vmatmul.mubr.f32.gmra.mxu0 %v3249
    %v4210 = vpop.f32.mrf.mxu0
    %v4211 = vadd.f32 %v4066, %v4210
    %v4212 = vpop.f32.mrf.mxu0
    %4213 = vmatprep.mubr.f32.mxu0 %v3330
    %4214 = vmatmul.mubr.f32.gmra.mxu0 %v3250
    %v4215 = vpop.f32.mrf.mxu0
    %v4216 = vadd.f32 %v4071, %v4215
    %v4217 = vpop.f32.mrf.mxu0
    %4218 = vmatprep.mubr.f32.mxu0 %v3331
    %4219 = vmatmul.mubr.f32.gmra.mxu0 %v3251
    %v4220 = vpop.f32.mrf.mxu0
    %v4221 = vadd.f32 %v4076, %v4220
    %v4222 = vpop.f32.mrf.mxu0
    %4223 = vmatprep.mubr.f32.mxu0 %v3332
    %4224 = vmatmul.mubr.f32.gmra.mxu0 %v3252
    %v4225 = vpop.f32.mrf.mxu0
    %v4226 = vadd.f32 %v4081, %v4225
    %v4227 = vpop.f32.mrf.mxu0
    %4228 = vmatprep.mubr.f32.mxu0 %v3333
    %4229 = vmatmul.mubr.f32.gmra.mxu0 %v3253
    %v4230 = vpop.f32.mrf.mxu0
    %v4231 = vadd.f32 %v4086, %v4230
    %v4232 = vpop.f32.mrf.mxu0
    %4233 = vmatprep.mubr.f32.mxu0 %v3334
    %4234 = vmatmul.mubr.f32.gmra.mxu0 %v3254
    %v4235 = vpop.f32.mrf.mxu0
    %v4236 = vadd.f32 %v4091, %v4235
    %v4237 = vpop.f32.mrf.mxu0
    %4238 = vmatprep.mubr.f32.mxu0 %v3335
    %4239 = vmatmul.mubr.f32.gmra.mxu0 %v3255
    %v4240 = vpop.f32.mrf.mxu0
    %v4241 = vadd.f32 %v4096, %v4240
    %v4242 = vpop.f32.mrf.mxu0
    %4243 = vmatprep.mubr.f32.mxu0 %v3336
    %4244 = vmatmul.mubr.f32.gmra.mxu0 %v3256
    %v4245 = vpop.f32.mrf.mxu0
    %v4246 = vadd.f32 %v4101, %v4245
    %v4247 = vpop.f32.mrf.mxu0
    %4248 = vmatprep.mubr.f32.mxu0 %v3337
    %4249 = vmatmul.mubr.f32.gmra.mxu0 %v3257
    %v4250 = vpop.f32.mrf.mxu0
    %v4251 = vadd.f32 %v4106, %v4250
    %v4252 = vpop.f32.mrf.mxu0
    %4253 = vdwg.mxu0
    %4254 = vmatprep.subr.mxu0 0.0
    %4255 = vmatpush1.msra.mxu0 %v3673
    %4256 = vmatprep.subr.mxu0 0.0
    %4257 = vmatpush1.msra.mxu0 %v3672
    %4258 = vmatprep.subr.mxu0 0.0
    %4259 = vmatpush1.msra.mxu0 %v3671
    %4260 = vmatprep.subr.mxu0 0.0
    %4261 = vmatpush1.msra.mxu0 %v3670
    %4262 = vmatprep.subr.mxu0 0.0
    %4263 = vmatpush1.msra.mxu0 %v3669
    %4264 = vmatprep.subr.mxu0 0.0
    %4265 = vmatpush1.msra.mxu0 %v3668
    %4266 = vmatprep.subr.mxu0 0.0
    %4267 = vmatpush1.msra.mxu0 %v3667
    %4268 = vmatprep.subr.mxu0 0.0
    %4269 = vmatpush1.msra.mxu0 %v3666
    %4270 = vmatprep.subr.mxu0 0.0
    %4271 = vmatpush1.msra.mxu0 %v3665
    %4272 = vmatprep.subr.mxu0 0.0
    %4273 = vmatpush1.msra.mxu0 %v3664
    %4274 = vmatprep.subr.mxu0 0.0
    %4275 = vmatpush1.msra.mxu0 %v3663
    %4276 = vmatprep.subr.mxu0 0.0
    %4277 = vmatpush1.msra.mxu0 %v3662
    %4278 = vmatprep.subr.mxu0 0.0
    %4279 = vmatpush1.msra.mxu0 %v3661
    %4280 = vmatprep.subr.mxu0 0.0
    %4281 = vmatpush1.msra.mxu0 %v3660
    %4282 = vmatprep.subr.mxu0 0.0
    %4283 = vmatpush1.msra.mxu0 %v3659
    %4284 = vmatprep.subr.mxu0 0.0
    %4285 = vmatpush1.msra.mxu0 %v3658
    %4286 = vmatprep.subr.mxu0 0.0
    %4287 = vmatpush2.msra.mxu0 0.0
    %4288 = vmatprep.subr.mxu0 0.0
    %4289 = vmatpush2.msra.mxu0 0.0
    %4290 = vmatprep.subr.mxu0 0.0
    %4291 = vmatpush2.msra.mxu0 0.0
    %4292 = vmatprep.subr.mxu0 0.0
    %4293 = vmatpush2.msra.mxu0 0.0
    %4294 = vmatprep.subr.mxu0 0.0
    %4295 = vmatpush2.msra.mxu0 0.0
    %4296 = vmatprep.subr.mxu0 0.0
    %4297 = vmatpush2.msra.mxu0 0.0
    %4298 = vmatprep.subr.mxu0 0.0
    %4299 = vmatpush2.msra.mxu0 0.0
    %4300 = vmatprep.subr.mxu0 0.0
    %4301 = vmatpush2.msra.mxu0 0.0
    %4302 = vmatprep.subr.mxu0 0.0
    %4303 = vmatpush2.msra.mxu0 0.0
    %4304 = vmatprep.subr.mxu0 0.0
    %4305 = vmatpush2.msra.mxu0 0.0
    %4306 = vmatprep.subr.mxu0 0.0
    %4307 = vmatpush2.msra.mxu0 0.0
    %4308 = vmatprep.subr.mxu0 0.0
    %4309 = vmatpush2.msra.mxu0 0.0
    %4310 = vmatprep.subr.mxu0 0.0
    %4311 = vmatpush2.msra.mxu0 0.0
    %4312 = vmatprep.subr.mxu0 0.0
    %4313 = vmatpush2.msra.mxu0 0.0
    %4314 = vmatprep.subr.mxu0 0.0
    %4315 = vmatpush2.msra.mxu0 0.0
    %4316 = vmatprep.subr.mxu0 0.0
    %4317 = vmatpush2.msra.mxu0 0.0
    %4318 = vmatprep.mubr.f32.mxu0 0.0
    %4319 = vmatmul.mubr.f32.gmra.mxu0 %v3402
    %v4320 = vpop.f32.mrf.mxu0
    %v4321 = vadd.f32 %v4176, %v4320
    %v4322 = vpop.f32.mrf.mxu0
    %4323 = vmatprep.mubr.f32.mxu0 0.0
    %4324 = vmatmul.mubr.f32.gmra.mxu0 %v3403
    %v4325 = vpop.f32.mrf.mxu0
    %v4326 = vadd.f32 %v4181, %v4325
    %v4327 = vpop.f32.mrf.mxu0
    %4328 = vmatprep.mubr.f32.mxu0 0.0
    %4329 = vmatmul.mubr.f32.gmra.mxu0 %v3404
    %v4330 = vpop.f32.mrf.mxu0
    %v4331 = vadd.f32 %v4186, %v4330
    %v4332 = vpop.f32.mrf.mxu0
    %4333 = vmatprep.mubr.f32.mxu0 0.0
    %4334 = vmatmul.mubr.f32.gmra.mxu0 %v3405
    %v4335 = vpop.f32.mrf.mxu0
    %v4336 = vadd.f32 %v4191, %v4335
    %v4337 = vpop.f32.mrf.mxu0
    %4338 = vmatprep.mubr.f32.mxu0 0.0
    %4339 = vmatmul.mubr.f32.gmra.mxu0 %v3406
    %v4340 = vpop.f32.mrf.mxu0
    %v4341 = vadd.f32 %v4196, %v4340
    %v4342 = vpop.f32.mrf.mxu0
    %4343 = vmatprep.mubr.f32.mxu0 0.0
    %4344 = vmatmul.mubr.f32.gmra.mxu0 %v3407
    %v4345 = vpop.f32.mrf.mxu0
    %v4346 = vadd.f32 %v4201, %v4345
    %v4347 = vpop.f32.mrf.mxu0
    %4348 = vmatprep.mubr.f32.mxu0 0.0
    %4349 = vmatmul.mubr.f32.gmra.mxu0 %v3408
    %v4350 = vpop.f32.mrf.mxu0
    %v4351 = vadd.f32 %v4206, %v4350
    %v4352 = vpop.f32.mrf.mxu0
    %4353 = vmatprep.mubr.f32.mxu0 0.0
    %4354 = vmatmul.mubr.f32.gmra.mxu0 %v3409
    %v4355 = vpop.f32.mrf.mxu0
    %v4356 = vadd.f32 %v4211, %v4355
    %v4357 = vpop.f32.mrf.mxu0
    %4358 = vmatprep.mubr.f32.mxu0 0.0
    %4359 = vmatmul.mubr.f32.gmra.mxu0 %v3410
    %v4360 = vpop.f32.mrf.mxu0
    %v4361 = vadd.f32 %v4216, %v4360
    %v4362 = vpop.f32.mrf.mxu0
    %4363 = vmatprep.mubr.f32.mxu0 0.0
    %4364 = vmatmul.mubr.f32.gmra.mxu0 %v3411
    %v4365 = vpop.f32.mrf.mxu0
    %v4366 = vadd.f32 %v4221, %v4365
    %v4367 = vpop.f32.mrf.mxu0
    %4368 = vmatprep.mubr.f32.mxu0 0.0
    %4369 = vmatmul.mubr.f32.gmra.mxu0 %v3412
    %v4370 = vpop.f32.mrf.mxu0
    %v4371 = vadd.f32 %v4226, %v4370
    %v4372 = vpop.f32.mrf.mxu0
    %4373 = vmatprep.mubr.f32.mxu0 0.0
    %4374 = vmatmul.mubr.f32.gmra.mxu0 %v3413
    %v4375 = vpop.f32.mrf.mxu0
    %v4376 = vadd.f32 %v4231, %v4375
    %v4377 = vpop.f32.mrf.mxu0
    %4378 = vmatprep.mubr.f32.mxu0 0.0
    %4379 = vmatmul.mubr.f32.gmra.mxu0 %v3414
    %v4380 = vpop.f32.mrf.mxu0
    %v4381 = vadd.f32 %v4236, %v4380
    %v4382 = vpop.f32.mrf.mxu0
    %4383 = vmatprep.mubr.f32.mxu0 0.0
    %4384 = vmatmul.mubr.f32.gmra.mxu0 %v3415
    %v4385 = vpop.f32.mrf.mxu0
    %v4386 = vadd.f32 %v4241, %v4385
    %v4387 = vpop.f32.mrf.mxu0
    %4388 = vmatprep.mubr.f32.mxu0 0.0
    %4389 = vmatmul.mubr.f32.gmra.mxu0 %v3416
    %v4390 = vpop.f32.mrf.mxu0
    %v4391 = vadd.f32 %v4246, %v4390
    %v4392 = vpop.f32.mrf.mxu0
    %4393 = vmatprep.mubr.f32.mxu0 0.0
    %4394 = vmatmul.mubr.f32.gmra.mxu0 %v3417
    %v4395 = vpop.f32.mrf.mxu0
    %v4396 = vadd.f32 %v4251, %v4395
    %v4397 = vpop.f32.mrf.mxu0
    %4398 = vdwg.mxu0
    %vm4399 = vcmp.ge.f32.partialorder %v4321, -2.2
    %vm4400 = vcmp.ge.f32.partialorder %v4326, -2.2
    %vm4401 = vcmp.ge.f32.partialorder %v4331, -2.2
    %vm4402 = vcmp.ge.f32.partialorder %v4336, -2.2
    %vm4403 = vcmp.ge.f32.partialorder %v4341, -2.2
    %vm4404 = vcmp.ge.f32.partialorder %v4346, -2.2
    %vm4405 = vcmp.ge.f32.partialorder %v4351, -2.2
    %vm4406 = vcmp.ge.f32.partialorder %v4356, -2.2
    %vm4407 = vcmp.ge.f32.partialorder %v4361, -2.2
    %vm4408 = vcmp.ge.f32.partialorder %v4366, -2.2
    %vm4409 = vcmp.ge.f32.partialorder %v4371, -2.2
    %vm4410 = vcmp.ge.f32.partialorder %v4376, -2.2
    %vm4411 = vcmp.ge.f32.partialorder %v4381, -2.2
    %vm4412 = vcmp.ge.f32.partialorder %v4386, -2.2
    %vm4413 = vcmp.ge.f32.partialorder %v4391, -2.2
    %vm4414 = vcmp.ge.f32.partialorder %v4396, -2.2
    %vm4415 = vcmp.lt.f32.partialorder %v4321, -1.8
    %vm4416 = vcmp.lt.f32.partialorder %v4326, -1.8
    %vm4417 = vcmp.lt.f32.partialorder %v4331, -1.8
    %vm4418 = vcmp.lt.f32.partialorder %v4336, -1.8
    %vm4419 = vcmp.lt.f32.partialorder %v4341, -1.8
    %vm4420 = vcmp.lt.f32.partialorder %v4346, -1.8
    %vm4421 = vcmp.lt.f32.partialorder %v4351, -1.8
    %vm4422 = vcmp.lt.f32.partialorder %v4356, -1.8
    %vm4423 = vcmp.lt.f32.partialorder %v4361, -1.8
    %vm4424 = vcmp.lt.f32.partialorder %v4366, -1.8
    %vm4425 = vcmp.lt.f32.partialorder %v4371, -1.8
    %vm4426 = vcmp.lt.f32.partialorder %v4376, -1.8
    %vm4427 = vcmp.lt.f32.partialorder %v4381, -1.8
    %vm4428 = vcmp.lt.f32.partialorder %v4386, -1.8
    %vm4429 = vcmp.lt.f32.partialorder %v4391, -1.8
    %vm4430 = vcmp.lt.f32.partialorder %v4396, -1.8
    %vm4431 = vmand %vm4399, %vm4415
    %vm4432 = vmand %vm4400, %vm4416
    %vm4433 = vmand %vm4401, %vm4417
    %vm4434 = vmand %vm4402, %vm4418
    %vm4435 = vmand %vm4403, %vm4419
    %vm4436 = vmand %vm4404, %vm4420
    %vm4437 = vmand %vm4405, %vm4421
    %vm4438 = vmand %vm4406, %vm4422
    %vm4439 = vmand %vm4407, %vm4423
    %vm4440 = vmand %vm4408, %vm4424
    %vm4441 = vmand %vm4409, %vm4425
    %vm4442 = vmand %vm4410, %vm4426
    %vm4443 = vmand %vm4411, %vm4427
    %vm4444 = vmand %vm4412, %vm4428
    %vm4445 = vmand %vm4413, %vm4429
    %vm4446 = vmand %vm4414, %vm4430
    %v4447 = vsel %vm4431, 1, 0
    %v4448 = vsel %vm4432, 1, 0
    %v4449 = vsel %vm4433, 1, 0
    %v4450 = vsel %vm4434, 1, 0
    %v4451 = vsel %vm4435, 1, 0
    %v4452 = vsel %vm4436, 1, 0
    %v4453 = vsel %vm4437, 1, 0
    %v4454 = vsel %vm4438, 1, 0
    %v4455 = vsel %vm4439, 1, 0
    %v4456 = vsel %vm4440, 1, 0
    %v4457 = vsel %vm4441, 1, 0
    %v4458 = vsel %vm4442, 1, 0
    %v4459 = vsel %vm4443, 1, 0
    %v4460 = vsel %vm4444, 1, 0
    %v4461 = vsel %vm4445, 1, 0
    %v4462 = vsel %vm4446, 1, 0
    %v4463 = vcvt.s32.f32 %v4447
    %v4464 = vcvt.s32.f32 %v4448
    %v4465 = vcvt.s32.f32 %v4449
    %v4466 = vcvt.s32.f32 %v4450
    %v4467 = vcvt.s32.f32 %v4451
    %v4468 = vcvt.s32.f32 %v4452
    %v4469 = vcvt.s32.f32 %v4453
    %v4470 = vcvt.s32.f32 %v4454
    %v4471 = vcvt.s32.f32 %v4455
    %v4472 = vcvt.s32.f32 %v4456
    %v4473 = vcvt.s32.f32 %v4457
    %v4474 = vcvt.s32.f32 %v4458
    %v4475 = vcvt.s32.f32 %v4459
    %v4476 = vcvt.s32.f32 %v4460
    %v4477 = vcvt.s32.f32 %v4461
    %v4478 = vcvt.s32.f32 %v4462
    %vm4479 = vcmp.ge.f32.partialorder %v4321, -1.8
    %vm4480 = vcmp.ge.f32.partialorder %v4326, -1.8
    %vm4481 = vcmp.ge.f32.partialorder %v4331, -1.8
    %vm4482 = vcmp.ge.f32.partialorder %v4336, -1.8
    %vm4483 = vcmp.ge.f32.partialorder %v4341, -1.8
    %vm4484 = vcmp.ge.f32.partialorder %v4346, -1.8
    %vm4485 = vcmp.ge.f32.partialorder %v4351, -1.8
    %vm4486 = vcmp.ge.f32.partialorder %v4356, -1.8
    %vm4487 = vcmp.ge.f32.partialorder %v4361, -1.8
    %vm4488 = vcmp.ge.f32.partialorder %v4366, -1.8
    %vm4489 = vcmp.ge.f32.partialorder %v4371, -1.8
    %vm4490 = vcmp.ge.f32.partialorder %v4376, -1.8
    %vm4491 = vcmp.ge.f32.partialorder %v4381, -1.8
    %vm4492 = vcmp.ge.f32.partialorder %v4386, -1.8
    %vm4493 = vcmp.ge.f32.partialorder %v4391, -1.8
    %vm4494 = vcmp.ge.f32.partialorder %v4396, -1.8
    %vm4495 = vcmp.lt.f32.partialorder %v4321, -1.4
    %vm4496 = vcmp.lt.f32.partialorder %v4326, -1.4
    %vm4497 = vcmp.lt.f32.partialorder %v4331, -1.4
    %vm4498 = vcmp.lt.f32.partialorder %v4336, -1.4
    %vm4499 = vcmp.lt.f32.partialorder %v4341, -1.4
    %vm4500 = vcmp.lt.f32.partialorder %v4346, -1.4
    %vm4501 = vcmp.lt.f32.partialorder %v4351, -1.4
    %vm4502 = vcmp.lt.f32.partialorder %v4356, -1.4
    %vm4503 = vcmp.lt.f32.partialorder %v4361, -1.4
    %vm4504 = vcmp.lt.f32.partialorder %v4366, -1.4
    %vm4505 = vcmp.lt.f32.partialorder %v4371, -1.4
    %vm4506 = vcmp.lt.f32.partialorder %v4376, -1.4
    %vm4507 = vcmp.lt.f32.partialorder %v4381, -1.4
    %vm4508 = vcmp.lt.f32.partialorder %v4386, -1.4
    %vm4509 = vcmp.lt.f32.partialorder %v4391, -1.4
    %vm4510 = vcmp.lt.f32.partialorder %v4396, -1.4
    %vm4511 = vmand %vm4479, %vm4495
    %vm4512 = vmand %vm4480, %vm4496
    %vm4513 = vmand %vm4481, %vm4497
    %vm4514 = vmand %vm4482, %vm4498
    %vm4515 = vmand %vm4483, %vm4499
    %vm4516 = vmand %vm4484, %vm4500
    %vm4517 = vmand %vm4485, %vm4501
    %vm4518 = vmand %vm4486, %vm4502
    %vm4519 = vmand %vm4487, %vm4503
    %vm4520 = vmand %vm4488, %vm4504
    %vm4521 = vmand %vm4489, %vm4505
    %vm4522 = vmand %vm4490, %vm4506
    %vm4523 = vmand %vm4491, %vm4507
    %vm4524 = vmand %vm4492, %vm4508
    %vm4525 = vmand %vm4493, %vm4509
    %vm4526 = vmand %vm4494, %vm4510
    %v4527 = vsel %vm4511, 1, 0
    %v4528 = vsel %vm4512, 1, 0
    %v4529 = vsel %vm4513, 1, 0
    %v4530 = vsel %vm4514, 1, 0
    %v4531 = vsel %vm4515, 1, 0
    %v4532 = vsel %vm4516, 1, 0
    %v4533 = vsel %vm4517, 1, 0
    %v4534 = vsel %vm4518, 1, 0
    %v4535 = vsel %vm4519, 1, 0
    %v4536 = vsel %vm4520, 1, 0
    %v4537 = vsel %vm4521, 1, 0
    %v4538 = vsel %vm4522, 1, 0
    %v4539 = vsel %vm4523, 1, 0
    %v4540 = vsel %vm4524, 1, 0
    %v4541 = vsel %vm4525, 1, 0
    %v4542 = vsel %vm4526, 1, 0
    %v4543 = vcvt.s32.f32 %v4527
    %v4544 = vcvt.s32.f32 %v4528
    %v4545 = vcvt.s32.f32 %v4529
    %v4546 = vcvt.s32.f32 %v4530
    %v4547 = vcvt.s32.f32 %v4531
    %v4548 = vcvt.s32.f32 %v4532
    %v4549 = vcvt.s32.f32 %v4533
    %v4550 = vcvt.s32.f32 %v4534
    %v4551 = vcvt.s32.f32 %v4535
    %v4552 = vcvt.s32.f32 %v4536
    %v4553 = vcvt.s32.f32 %v4537
    %v4554 = vcvt.s32.f32 %v4538
    %v4555 = vcvt.s32.f32 %v4539
    %v4556 = vcvt.s32.f32 %v4540
    %v4557 = vcvt.s32.f32 %v4541
    %v4558 = vcvt.s32.f32 %v4542
    %vm4559 = vcmp.ge.f32.partialorder %v4321, -1.4
    %vm4560 = vcmp.ge.f32.partialorder %v4326, -1.4
    %vm4561 = vcmp.ge.f32.partialorder %v4331, -1.4
    %vm4562 = vcmp.ge.f32.partialorder %v4336, -1.4
    %vm4563 = vcmp.ge.f32.partialorder %v4341, -1.4
    %vm4564 = vcmp.ge.f32.partialorder %v4346, -1.4
    %vm4565 = vcmp.ge.f32.partialorder %v4351, -1.4
    %vm4566 = vcmp.ge.f32.partialorder %v4356, -1.4
    %vm4567 = vcmp.ge.f32.partialorder %v4361, -1.4
    %vm4568 = vcmp.ge.f32.partialorder %v4366, -1.4
    %vm4569 = vcmp.ge.f32.partialorder %v4371, -1.4
    %vm4570 = vcmp.ge.f32.partialorder %v4376, -1.4
    %vm4571 = vcmp.ge.f32.partialorder %v4381, -1.4
    %vm4572 = vcmp.ge.f32.partialorder %v4386, -1.4
    %vm4573 = vcmp.ge.f32.partialorder %v4391, -1.4
    %vm4574 = vcmp.ge.f32.partialorder %v4396, -1.4
    %vm4575 = vcmp.lt.f32.partialorder %v4321, -1.0
    %vm4576 = vcmp.lt.f32.partialorder %v4326, -1.0
    %vm4577 = vcmp.lt.f32.partialorder %v4331, -1.0
    %vm4578 = vcmp.lt.f32.partialorder %v4336, -1.0
    %vm4579 = vcmp.lt.f32.partialorder %v4341, -1.0
    %vm4580 = vcmp.lt.f32.partialorder %v4346, -1.0
    %vm4581 = vcmp.lt.f32.partialorder %v4351, -1.0
    %vm4582 = vcmp.lt.f32.partialorder %v4356, -1.0
    %vm4583 = vcmp.lt.f32.partialorder %v4361, -1.0
    %vm4584 = vcmp.lt.f32.partialorder %v4366, -1.0
    %vm4585 = vcmp.lt.f32.partialorder %v4371, -1.0
    %vm4586 = vcmp.lt.f32.partialorder %v4376, -1.0
    %vm4587 = vcmp.lt.f32.partialorder %v4381, -1.0
    %vm4588 = vcmp.lt.f32.partialorder %v4386, -1.0
    %vm4589 = vcmp.lt.f32.partialorder %v4391, -1.0
    %vm4590 = vcmp.lt.f32.partialorder %v4396, -1.0
    %vm4591 = vmand %vm4559, %vm4575
    %vm4592 = vmand %vm4560, %vm4576
    %vm4593 = vmand %vm4561, %vm4577
    %vm4594 = vmand %vm4562, %vm4578
    %vm4595 = vmand %vm4563, %vm4579
    %vm4596 = vmand %vm4564, %vm4580
    %vm4597 = vmand %vm4565, %vm4581
    %vm4598 = vmand %vm4566, %vm4582
    %vm4599 = vmand %vm4567, %vm4583
    %vm4600 = vmand %vm4568, %vm4584
    %vm4601 = vmand %vm4569, %vm4585
    %vm4602 = vmand %vm4570, %vm4586
    %vm4603 = vmand %vm4571, %vm4587
    %vm4604 = vmand %vm4572, %vm4588
    %vm4605 = vmand %vm4573, %vm4589
    %vm4606 = vmand %vm4574, %vm4590
    %v4607 = vsel %vm4591, 1, 0
    %v4608 = vsel %vm4592, 1, 0
    %v4609 = vsel %vm4593, 1, 0
    %v4610 = vsel %vm4594, 1, 0
    %v4611 = vsel %vm4595, 1, 0
    %v4612 = vsel %vm4596, 1, 0
    %v4613 = vsel %vm4597, 1, 0
    %v4614 = vsel %vm4598, 1, 0
    %v4615 = vsel %vm4599, 1, 0
    %v4616 = vsel %vm4600, 1, 0
    %v4617 = vsel %vm4601, 1, 0
    %v4618 = vsel %vm4602, 1, 0
    %v4619 = vsel %vm4603, 1, 0
    %v4620 = vsel %vm4604, 1, 0
    %v4621 = vsel %vm4605, 1, 0
    %v4622 = vsel %vm4606, 1, 0
    %v4623 = vcvt.s32.f32 %v4607
    %v4624 = vcvt.s32.f32 %v4608
    %v4625 = vcvt.s32.f32 %v4609
    %v4626 = vcvt.s32.f32 %v4610
    %v4627 = vcvt.s32.f32 %v4611
    %v4628 = vcvt.s32.f32 %v4612
    %v4629 = vcvt.s32.f32 %v4613
    %v4630 = vcvt.s32.f32 %v4614
    %v4631 = vcvt.s32.f32 %v4615
    %v4632 = vcvt.s32.f32 %v4616
    %v4633 = vcvt.s32.f32 %v4617
    %v4634 = vcvt.s32.f32 %v4618
    %v4635 = vcvt.s32.f32 %v4619
    %v4636 = vcvt.s32.f32 %v4620
    %v4637 = vcvt.s32.f32 %v4621
    %v4638 = vcvt.s32.f32 %v4622
    %vm4639 = vcmp.ge.f32.partialorder %v4321, -1.0
    %vm4640 = vcmp.ge.f32.partialorder %v4326, -1.0
    %vm4641 = vcmp.ge.f32.partialorder %v4331, -1.0
    %vm4642 = vcmp.ge.f32.partialorder %v4336, -1.0
    %vm4643 = vcmp.ge.f32.partialorder %v4341, -1.0
    %vm4644 = vcmp.ge.f32.partialorder %v4346, -1.0
    %vm4645 = vcmp.ge.f32.partialorder %v4351, -1.0
    %vm4646 = vcmp.ge.f32.partialorder %v4356, -1.0
    %vm4647 = vcmp.ge.f32.partialorder %v4361, -1.0
    %vm4648 = vcmp.ge.f32.partialorder %v4366, -1.0
    %vm4649 = vcmp.ge.f32.partialorder %v4371, -1.0
    %vm4650 = vcmp.ge.f32.partialorder %v4376, -1.0
    %vm4651 = vcmp.ge.f32.partialorder %v4381, -1.0
    %vm4652 = vcmp.ge.f32.partialorder %v4386, -1.0
    %vm4653 = vcmp.ge.f32.partialorder %v4391, -1.0
    %vm4654 = vcmp.ge.f32.partialorder %v4396, -1.0
    %vm4655 = vcmp.lt.f32.partialorder %v4321, -0.6
    %vm4656 = vcmp.lt.f32.partialorder %v4326, -0.6
    %vm4657 = vcmp.lt.f32.partialorder %v4331, -0.6
    %vm4658 = vcmp.lt.f32.partialorder %v4336, -0.6
    %vm4659 = vcmp.lt.f32.partialorder %v4341, -0.6
    %vm4660 = vcmp.lt.f32.partialorder %v4346, -0.6
    %vm4661 = vcmp.lt.f32.partialorder %v4351, -0.6
    %vm4662 = vcmp.lt.f32.partialorder %v4356, -0.6
    %vm4663 = vcmp.lt.f32.partialorder %v4361, -0.6
    %vm4664 = vcmp.lt.f32.partialorder %v4366, -0.6
    %vm4665 = vcmp.lt.f32.partialorder %v4371, -0.6
    %vm4666 = vcmp.lt.f32.partialorder %v4376, -0.6
    %vm4667 = vcmp.lt.f32.partialorder %v4381, -0.6
    %vm4668 = vcmp.lt.f32.partialorder %v4386, -0.6
    %vm4669 = vcmp.lt.f32.partialorder %v4391, -0.6
    %vm4670 = vcmp.lt.f32.partialorder %v4396, -0.6
    %vm4671 = vmand %vm4639, %vm4655
    %vm4672 = vmand %vm4640, %vm4656
    %vm4673 = vmand %vm4641, %vm4657
    %vm4674 = vmand %vm4642, %vm4658
    %vm4675 = vmand %vm4643, %vm4659
    %vm4676 = vmand %vm4644, %vm4660
    %vm4677 = vmand %vm4645, %vm4661
    %vm4678 = vmand %vm4646, %vm4662
    %vm4679 = vmand %vm4647, %vm4663
    %vm4680 = vmand %vm4648, %vm4664
    %vm4681 = vmand %vm4649, %vm4665
    %vm4682 = vmand %vm4650, %vm4666
    %vm4683 = vmand %vm4651, %vm4667
    %vm4684 = vmand %vm4652, %vm4668
    %vm4685 = vmand %vm4653, %vm4669
    %vm4686 = vmand %vm4654, %vm4670
    %v4687 = vsel %vm4671, 1, 0
    %v4688 = vsel %vm4672, 1, 0
    %v4689 = vsel %vm4673, 1, 0
    %v4690 = vsel %vm4674, 1, 0
    %v4691 = vsel %vm4675, 1, 0
    %v4692 = vsel %vm4676, 1, 0
    %v4693 = vsel %vm4677, 1, 0
    %v4694 = vsel %vm4678, 1, 0
    %v4695 = vsel %vm4679, 1, 0
    %v4696 = vsel %vm4680, 1, 0
    %v4697 = vsel %vm4681, 1, 0
    %v4698 = vsel %vm4682, 1, 0
    %v4699 = vsel %vm4683, 1, 0
    %v4700 = vsel %vm4684, 1, 0
    %v4701 = vsel %vm4685, 1, 0
    %v4702 = vsel %vm4686, 1, 0
    %v4703 = vcvt.s32.f32 %v4687
    %v4704 = vcvt.s32.f32 %v4688
    %v4705 = vcvt.s32.f32 %v4689
    %v4706 = vcvt.s32.f32 %v4690
    %v4707 = vcvt.s32.f32 %v4691
    %v4708 = vcvt.s32.f32 %v4692
    %v4709 = vcvt.s32.f32 %v4693
    %v4710 = vcvt.s32.f32 %v4694
    %v4711 = vcvt.s32.f32 %v4695
    %v4712 = vcvt.s32.f32 %v4696
    %v4713 = vcvt.s32.f32 %v4697
    %v4714 = vcvt.s32.f32 %v4698
    %v4715 = vcvt.s32.f32 %v4699
    %v4716 = vcvt.s32.f32 %v4700
    %v4717 = vcvt.s32.f32 %v4701
    %v4718 = vcvt.s32.f32 %v4702
    %vm4719 = vcmp.ge.f32.partialorder %v4321, -0.6
    %vm4720 = vcmp.ge.f32.partialorder %v4326, -0.6
    %vm4721 = vcmp.ge.f32.partialorder %v4331, -0.6
    %vm4722 = vcmp.ge.f32.partialorder %v4336, -0.6
    %vm4723 = vcmp.ge.f32.partialorder %v4341, -0.6
    %vm4724 = vcmp.ge.f32.partialorder %v4346, -0.6
    %vm4725 = vcmp.ge.f32.partialorder %v4351, -0.6
    %vm4726 = vcmp.ge.f32.partialorder %v4356, -0.6
    %vm4727 = vcmp.ge.f32.partialorder %v4361, -0.6
    %vm4728 = vcmp.ge.f32.partialorder %v4366, -0.6
    %vm4729 = vcmp.ge.f32.partialorder %v4371, -0.6
    %vm4730 = vcmp.ge.f32.partialorder %v4376, -0.6
    %vm4731 = vcmp.ge.f32.partialorder %v4381, -0.6
    %vm4732 = vcmp.ge.f32.partialorder %v4386, -0.6
    %vm4733 = vcmp.ge.f32.partialorder %v4391, -0.6
    %vm4734 = vcmp.ge.f32.partialorder %v4396, -0.6
    %vm4735 = vcmp.lt.f32.partialorder %v4321, -0.19999999
    %vm4736 = vcmp.lt.f32.partialorder %v4326, -0.19999999
    %vm4737 = vcmp.lt.f32.partialorder %v4331, -0.19999999
    %vm4738 = vcmp.lt.f32.partialorder %v4336, -0.19999999
    %vm4739 = vcmp.lt.f32.partialorder %v4341, -0.19999999
    %vm4740 = vcmp.lt.f32.partialorder %v4346, -0.19999999
    %vm4741 = vcmp.lt.f32.partialorder %v4351, -0.19999999
    %vm4742 = vcmp.lt.f32.partialorder %v4356, -0.19999999
    %vm4743 = vcmp.lt.f32.partialorder %v4361, -0.19999999
    %vm4744 = vcmp.lt.f32.partialorder %v4366, -0.19999999
    %vm4745 = vcmp.lt.f32.partialorder %v4371, -0.19999999
    %vm4746 = vcmp.lt.f32.partialorder %v4376, -0.19999999
    %vm4747 = vcmp.lt.f32.partialorder %v4381, -0.19999999
    %vm4748 = vcmp.lt.f32.partialorder %v4386, -0.19999999
    %vm4749 = vcmp.lt.f32.partialorder %v4391, -0.19999999
    %vm4750 = vcmp.lt.f32.partialorder %v4396, -0.19999999
    %vm4751 = vmand %vm4719, %vm4735
    %vm4752 = vmand %vm4720, %vm4736
    %vm4753 = vmand %vm4721, %vm4737
    %vm4754 = vmand %vm4722, %vm4738
    %vm4755 = vmand %vm4723, %vm4739
    %vm4756 = vmand %vm4724, %vm4740
    %vm4757 = vmand %vm4725, %vm4741
    %vm4758 = vmand %vm4726, %vm4742
    %vm4759 = vmand %vm4727, %vm4743
    %vm4760 = vmand %vm4728, %vm4744
    %vm4761 = vmand %vm4729, %vm4745
    %vm4762 = vmand %vm4730, %vm4746
    %vm4763 = vmand %vm4731, %vm4747
    %vm4764 = vmand %vm4732, %vm4748
    %vm4765 = vmand %vm4733, %vm4749
    %vm4766 = vmand %vm4734, %vm4750
    %v4767 = vsel %vm4751, 1, 0
    %v4768 = vsel %vm4752, 1, 0
    %v4769 = vsel %vm4753, 1, 0
    %v4770 = vsel %vm4754, 1, 0
    %v4771 = vsel %vm4755, 1, 0
    %v4772 = vsel %vm4756, 1, 0
    %v4773 = vsel %vm4757, 1, 0
    %v4774 = vsel %vm4758, 1, 0
    %v4775 = vsel %vm4759, 1, 0
    %v4776 = vsel %vm4760, 1, 0
    %v4777 = vsel %vm4761, 1, 0
    %v4778 = vsel %vm4762, 1, 0
    %v4779 = vsel %vm4763, 1, 0
    %v4780 = vsel %vm4764, 1, 0
    %v4781 = vsel %vm4765, 1, 0
    %v4782 = vsel %vm4766, 1, 0
    %v4783 = vcvt.s32.f32 %v4767
    %v4784 = vcvt.s32.f32 %v4768
    %v4785 = vcvt.s32.f32 %v4769
    %v4786 = vcvt.s32.f32 %v4770
    %v4787 = vcvt.s32.f32 %v4771
    %v4788 = vcvt.s32.f32 %v4772
    %v4789 = vcvt.s32.f32 %v4773
    %v4790 = vcvt.s32.f32 %v4774
    %v4791 = vcvt.s32.f32 %v4775
    %v4792 = vcvt.s32.f32 %v4776
    %v4793 = vcvt.s32.f32 %v4777
    %v4794 = vcvt.s32.f32 %v4778
    %v4795 = vcvt.s32.f32 %v4779
    %v4796 = vcvt.s32.f32 %v4780
    %v4797 = vcvt.s32.f32 %v4781
    %v4798 = vcvt.s32.f32 %v4782
    %vm4799 = vcmp.ge.f32.partialorder %v4321, -0.19999999
    %vm4800 = vcmp.ge.f32.partialorder %v4326, -0.19999999
    %vm4801 = vcmp.ge.f32.partialorder %v4331, -0.19999999
    %vm4802 = vcmp.ge.f32.partialorder %v4336, -0.19999999
    %vm4803 = vcmp.ge.f32.partialorder %v4341, -0.19999999
    %vm4804 = vcmp.ge.f32.partialorder %v4346, -0.19999999
    %vm4805 = vcmp.ge.f32.partialorder %v4351, -0.19999999
    %vm4806 = vcmp.ge.f32.partialorder %v4356, -0.19999999
    %vm4807 = vcmp.ge.f32.partialorder %v4361, -0.19999999
    %vm4808 = vcmp.ge.f32.partialorder %v4366, -0.19999999
    %vm4809 = vcmp.ge.f32.partialorder %v4371, -0.19999999
    %vm4810 = vcmp.ge.f32.partialorder %v4376, -0.19999999
    %vm4811 = vcmp.ge.f32.partialorder %v4381, -0.19999999
    %vm4812 = vcmp.ge.f32.partialorder %v4386, -0.19999999
    %vm4813 = vcmp.ge.f32.partialorder %v4391, -0.19999999
    %vm4814 = vcmp.ge.f32.partialorder %v4396, -0.19999999
    %vm4815 = vcmp.lt.f32.partialorder %v4321, 0.20000005
    %vm4816 = vcmp.lt.f32.partialorder %v4326, 0.20000005
    %vm4817 = vcmp.lt.f32.partialorder %v4331, 0.20000005
    %vm4818 = vcmp.lt.f32.partialorder %v4336, 0.20000005
    %vm4819 = vcmp.lt.f32.partialorder %v4341, 0.20000005
    %vm4820 = vcmp.lt.f32.partialorder %v4346, 0.20000005
    %vm4821 = vcmp.lt.f32.partialorder %v4351, 0.20000005
    %vm4822 = vcmp.lt.f32.partialorder %v4356, 0.20000005
    %vm4823 = vcmp.lt.f32.partialorder %v4361, 0.20000005
    %vm4824 = vcmp.lt.f32.partialorder %v4366, 0.20000005
    %vm4825 = vcmp.lt.f32.partialorder %v4371, 0.20000005
    %vm4826 = vcmp.lt.f32.partialorder %v4376, 0.20000005
    %vm4827 = vcmp.lt.f32.partialorder %v4381, 0.20000005
    %vm4828 = vcmp.lt.f32.partialorder %v4386, 0.20000005
    %vm4829 = vcmp.lt.f32.partialorder %v4391, 0.20000005
    %vm4830 = vcmp.lt.f32.partialorder %v4396, 0.20000005
    %vm4831 = vmand %vm4799, %vm4815
    %vm4832 = vmand %vm4800, %vm4816
    %vm4833 = vmand %vm4801, %vm4817
    %vm4834 = vmand %vm4802, %vm4818
    %vm4835 = vmand %vm4803, %vm4819
    %vm4836 = vmand %vm4804, %vm4820
    %vm4837 = vmand %vm4805, %vm4821
    %vm4838 = vmand %vm4806, %vm4822
    %vm4839 = vmand %vm4807, %vm4823
    %vm4840 = vmand %vm4808, %vm4824
    %vm4841 = vmand %vm4809, %vm4825
    %vm4842 = vmand %vm4810, %vm4826
    %vm4843 = vmand %vm4811, %vm4827
    %vm4844 = vmand %vm4812, %vm4828
    %vm4845 = vmand %vm4813, %vm4829
    %vm4846 = vmand %vm4814, %vm4830
    %v4847 = vsel %vm4831, 1, 0
    %v4848 = vsel %vm4832, 1, 0
    %v4849 = vsel %vm4833, 1, 0
    %v4850 = vsel %vm4834, 1, 0
    %v4851 = vsel %vm4835, 1, 0
    %v4852 = vsel %vm4836, 1, 0
    %v4853 = vsel %vm4837, 1, 0
    %v4854 = vsel %vm4838, 1, 0
    %v4855 = vsel %vm4839, 1, 0
    %v4856 = vsel %vm4840, 1, 0
    %v4857 = vsel %vm4841, 1, 0
    %v4858 = vsel %vm4842, 1, 0
    %v4859 = vsel %vm4843, 1, 0
    %v4860 = vsel %vm4844, 1, 0
    %v4861 = vsel %vm4845, 1, 0
    %v4862 = vsel %vm4846, 1, 0
    %v4863 = vcvt.s32.f32 %v4847
    %v4864 = vcvt.s32.f32 %v4848
    %v4865 = vcvt.s32.f32 %v4849
    %v4866 = vcvt.s32.f32 %v4850
    %v4867 = vcvt.s32.f32 %v4851
    %v4868 = vcvt.s32.f32 %v4852
    %v4869 = vcvt.s32.f32 %v4853
    %v4870 = vcvt.s32.f32 %v4854
    %v4871 = vcvt.s32.f32 %v4855
    %v4872 = vcvt.s32.f32 %v4856
    %v4873 = vcvt.s32.f32 %v4857
    %v4874 = vcvt.s32.f32 %v4858
    %v4875 = vcvt.s32.f32 %v4859
    %v4876 = vcvt.s32.f32 %v4860
    %v4877 = vcvt.s32.f32 %v4861
    %v4878 = vcvt.s32.f32 %v4862
    %vm4879 = vcmp.ge.f32.partialorder %v4321, 0.20000005
    %vm4880 = vcmp.ge.f32.partialorder %v4326, 0.20000005
    %vm4881 = vcmp.ge.f32.partialorder %v4331, 0.20000005
    %vm4882 = vcmp.ge.f32.partialorder %v4336, 0.20000005
    %vm4883 = vcmp.ge.f32.partialorder %v4341, 0.20000005
    %vm4884 = vcmp.ge.f32.partialorder %v4346, 0.20000005
    %vm4885 = vcmp.ge.f32.partialorder %v4351, 0.20000005
    %vm4886 = vcmp.ge.f32.partialorder %v4356, 0.20000005
    %vm4887 = vcmp.ge.f32.partialorder %v4361, 0.20000005
    %vm4888 = vcmp.ge.f32.partialorder %v4366, 0.20000005
    %vm4889 = vcmp.ge.f32.partialorder %v4371, 0.20000005
    %vm4890 = vcmp.ge.f32.partialorder %v4376, 0.20000005
    %vm4891 = vcmp.ge.f32.partialorder %v4381, 0.20000005
    %vm4892 = vcmp.ge.f32.partialorder %v4386, 0.20000005
    %vm4893 = vcmp.ge.f32.partialorder %v4391, 0.20000005
    %vm4894 = vcmp.ge.f32.partialorder %v4396, 0.20000005
    %vm4895 = vcmp.lt.f32.partialorder %v4321, 0.6
    %vm4896 = vcmp.lt.f32.partialorder %v4326, 0.6
    %vm4897 = vcmp.lt.f32.partialorder %v4331, 0.6
    %vm4898 = vcmp.lt.f32.partialorder %v4336, 0.6
    %vm4899 = vcmp.lt.f32.partialorder %v4341, 0.6
    %vm4900 = vcmp.lt.f32.partialorder %v4346, 0.6
    %vm4901 = vcmp.lt.f32.partialorder %v4351, 0.6
    %vm4902 = vcmp.lt.f32.partialorder %v4356, 0.6
    %vm4903 = vcmp.lt.f32.partialorder %v4361, 0.6
    %vm4904 = vcmp.lt.f32.partialorder %v4366, 0.6
    %vm4905 = vcmp.lt.f32.partialorder %v4371, 0.6
    %vm4906 = vcmp.lt.f32.partialorder %v4376, 0.6
    %vm4907 = vcmp.lt.f32.partialorder %v4381, 0.6
    %vm4908 = vcmp.lt.f32.partialorder %v4386, 0.6
    %vm4909 = vcmp.lt.f32.partialorder %v4391, 0.6
    %vm4910 = vcmp.lt.f32.partialorder %v4396, 0.6
    %vm4911 = vmand %vm4879, %vm4895
    %vm4912 = vmand %vm4880, %vm4896
    %vm4913 = vmand %vm4881, %vm4897
    %vm4914 = vmand %vm4882, %vm4898
    %vm4915 = vmand %vm4883, %vm4899
    %vm4916 = vmand %vm4884, %vm4900
    %vm4917 = vmand %vm4885, %vm4901
    %vm4918 = vmand %vm4886, %vm4902
    %vm4919 = vmand %vm4887, %vm4903
    %vm4920 = vmand %vm4888, %vm4904
    %vm4921 = vmand %vm4889, %vm4905
    %vm4922 = vmand %vm4890, %vm4906
    %vm4923 = vmand %vm4891, %vm4907
    %vm4924 = vmand %vm4892, %vm4908
    %vm4925 = vmand %vm4893, %vm4909
    %vm4926 = vmand %vm4894, %vm4910
    %v4927 = vsel %vm4911, 1, 0
    %v4928 = vsel %vm4912, 1, 0
    %v4929 = vsel %vm4913, 1, 0
    %v4930 = vsel %vm4914, 1, 0
    %v4931 = vsel %vm4915, 1, 0
    %v4932 = vsel %vm4916, 1, 0
    %v4933 = vsel %vm4917, 1, 0
    %v4934 = vsel %vm4918, 1, 0
    %v4935 = vsel %vm4919, 1, 0
    %v4936 = vsel %vm4920, 1, 0
    %v4937 = vsel %vm4921, 1, 0
    %v4938 = vsel %vm4922, 1, 0
    %v4939 = vsel %vm4923, 1, 0
    %v4940 = vsel %vm4924, 1, 0
    %v4941 = vsel %vm4925, 1, 0
    %v4942 = vsel %vm4926, 1, 0
    %v4943 = vcvt.s32.f32 %v4927
    %v4944 = vcvt.s32.f32 %v4928
    %v4945 = vcvt.s32.f32 %v4929
    %v4946 = vcvt.s32.f32 %v4930
    %v4947 = vcvt.s32.f32 %v4931
    %v4948 = vcvt.s32.f32 %v4932
    %v4949 = vcvt.s32.f32 %v4933
    %v4950 = vcvt.s32.f32 %v4934
    %v4951 = vcvt.s32.f32 %v4935
    %v4952 = vcvt.s32.f32 %v4936
    %v4953 = vcvt.s32.f32 %v4937
    %v4954 = vcvt.s32.f32 %v4938
    %v4955 = vcvt.s32.f32 %v4939
    %v4956 = vcvt.s32.f32 %v4940
    %v4957 = vcvt.s32.f32 %v4941
    %v4958 = vcvt.s32.f32 %v4942
    %vm4959 = vcmp.ge.f32.partialorder %v4321, 0.6
    %vm4960 = vcmp.ge.f32.partialorder %v4326, 0.6
    %vm4961 = vcmp.ge.f32.partialorder %v4331, 0.6
    %vm4962 = vcmp.ge.f32.partialorder %v4336, 0.6
    %vm4963 = vcmp.ge.f32.partialorder %v4341, 0.6
    %vm4964 = vcmp.ge.f32.partialorder %v4346, 0.6
    %vm4965 = vcmp.ge.f32.partialorder %v4351, 0.6
    %vm4966 = vcmp.ge.f32.partialorder %v4356, 0.6
    %vm4967 = vcmp.ge.f32.partialorder %v4361, 0.6
    %vm4968 = vcmp.ge.f32.partialorder %v4366, 0.6
    %vm4969 = vcmp.ge.f32.partialorder %v4371, 0.6
    %vm4970 = vcmp.ge.f32.partialorder %v4376, 0.6
    %vm4971 = vcmp.ge.f32.partialorder %v4381, 0.6
    %vm4972 = vcmp.ge.f32.partialorder %v4386, 0.6
    %vm4973 = vcmp.ge.f32.partialorder %v4391, 0.6
    %vm4974 = vcmp.ge.f32.partialorder %v4396, 0.6
    %vm4975 = vcmp.lt.f32.partialorder %v4321, 1.0
    %vm4976 = vcmp.lt.f32.partialorder %v4326, 1.0
    %vm4977 = vcmp.lt.f32.partialorder %v4331, 1.0
    %vm4978 = vcmp.lt.f32.partialorder %v4336, 1.0
    %vm4979 = vcmp.lt.f32.partialorder %v4341, 1.0
    %vm4980 = vcmp.lt.f32.partialorder %v4346, 1.0
    %vm4981 = vcmp.lt.f32.partialorder %v4351, 1.0
    %vm4982 = vcmp.lt.f32.partialorder %v4356, 1.0
    %vm4983 = vcmp.lt.f32.partialorder %v4361, 1.0
    %vm4984 = vcmp.lt.f32.partialorder %v4366, 1.0
    %vm4985 = vcmp.lt.f32.partialorder %v4371, 1.0
    %vm4986 = vcmp.lt.f32.partialorder %v4376, 1.0
    %vm4987 = vcmp.lt.f32.partialorder %v4381, 1.0
    %vm4988 = vcmp.lt.f32.partialorder %v4386, 1.0
    %vm4989 = vcmp.lt.f32.partialorder %v4391, 1.0
    %vm4990 = vcmp.lt.f32.partialorder %v4396, 1.0
    %vm4991 = vmand %vm4959, %vm4975
    %vm4992 = vmand %vm4960, %vm4976
    %vm4993 = vmand %vm4961, %vm4977
    %vm4994 = vmand %vm4962, %vm4978
    %vm4995 = vmand %vm4963, %vm4979
    %vm4996 = vmand %vm4964, %vm4980
    %vm4997 = vmand %vm4965, %vm4981
    %vm4998 = vmand %vm4966, %vm4982
    %vm4999 = vmand %vm4967, %vm4983
    %vm5000 = vmand %vm4968, %vm4984
    %vm5001 = vmand %vm4969, %vm4985
    %vm5002 = vmand %vm4970, %vm4986
    %vm5003 = vmand %vm4971, %vm4987
    %vm5004 = vmand %vm4972, %vm4988
    %vm5005 = vmand %vm4973, %vm4989
    %vm5006 = vmand %vm4974, %vm4990
    %v5007 = vsel %vm4991, 1, 0
    %v5008 = vsel %vm4992, 1, 0
    %v5009 = vsel %vm4993, 1, 0
    %v5010 = vsel %vm4994, 1, 0
    %v5011 = vsel %vm4995, 1, 0
    %v5012 = vsel %vm4996, 1, 0
    %v5013 = vsel %vm4997, 1, 0
    %v5014 = vsel %vm4998, 1, 0
    %v5015 = vsel %vm4999, 1, 0
    %v5016 = vsel %vm5000, 1, 0
    %v5017 = vsel %vm5001, 1, 0
    %v5018 = vsel %vm5002, 1, 0
    %v5019 = vsel %vm5003, 1, 0
    %v5020 = vsel %vm5004, 1, 0
    %v5021 = vsel %vm5005, 1, 0
    %v5022 = vsel %vm5006, 1, 0
    %v5023 = vcvt.s32.f32 %v5007
    %v5024 = vcvt.s32.f32 %v5008
    %v5025 = vcvt.s32.f32 %v5009
    %v5026 = vcvt.s32.f32 %v5010
    %v5027 = vcvt.s32.f32 %v5011
    %v5028 = vcvt.s32.f32 %v5012
    %v5029 = vcvt.s32.f32 %v5013
    %v5030 = vcvt.s32.f32 %v5014
    %v5031 = vcvt.s32.f32 %v5015
    %v5032 = vcvt.s32.f32 %v5016
    %v5033 = vcvt.s32.f32 %v5017
    %v5034 = vcvt.s32.f32 %v5018
    %v5035 = vcvt.s32.f32 %v5019
    %v5036 = vcvt.s32.f32 %v5020
    %v5037 = vcvt.s32.f32 %v5021
    %v5038 = vcvt.s32.f32 %v5022
    %vm5039 = vcmp.ge.f32.partialorder %v4321, 1.0
    %vm5040 = vcmp.ge.f32.partialorder %v4326, 1.0
    %vm5041 = vcmp.ge.f32.partialorder %v4331, 1.0
    %vm5042 = vcmp.ge.f32.partialorder %v4336, 1.0
    %vm5043 = vcmp.ge.f32.partialorder %v4341, 1.0
    %vm5044 = vcmp.ge.f32.partialorder %v4346, 1.0
    %vm5045 = vcmp.ge.f32.partialorder %v4351, 1.0
    %vm5046 = vcmp.ge.f32.partialorder %v4356, 1.0
    %vm5047 = vcmp.ge.f32.partialorder %v4361, 1.0
    %vm5048 = vcmp.ge.f32.partialorder %v4366, 1.0
    %vm5049 = vcmp.ge.f32.partialorder %v4371, 1.0
    %vm5050 = vcmp.ge.f32.partialorder %v4376, 1.0
    %vm5051 = vcmp.ge.f32.partialorder %v4381, 1.0
    %vm5052 = vcmp.ge.f32.partialorder %v4386, 1.0
    %vm5053 = vcmp.ge.f32.partialorder %v4391, 1.0
    %vm5054 = vcmp.ge.f32.partialorder %v4396, 1.0
    %vm5055 = vcmp.lt.f32.partialorder %v4321, 1.4000001
    %vm5056 = vcmp.lt.f32.partialorder %v4326, 1.4000001
    %vm5057 = vcmp.lt.f32.partialorder %v4331, 1.4000001
    %vm5058 = vcmp.lt.f32.partialorder %v4336, 1.4000001
    %vm5059 = vcmp.lt.f32.partialorder %v4341, 1.4000001
    %vm5060 = vcmp.lt.f32.partialorder %v4346, 1.4000001
    %vm5061 = vcmp.lt.f32.partialorder %v4351, 1.4000001
    %vm5062 = vcmp.lt.f32.partialorder %v4356, 1.4000001
    %vm5063 = vcmp.lt.f32.partialorder %v4361, 1.4000001
    %vm5064 = vcmp.lt.f32.partialorder %v4366, 1.4000001
    %vm5065 = vcmp.lt.f32.partialorder %v4371, 1.4000001
    %vm5066 = vcmp.lt.f32.partialorder %v4376, 1.4000001
    %vm5067 = vcmp.lt.f32.partialorder %v4381, 1.4000001
    %vm5068 = vcmp.lt.f32.partialorder %v4386, 1.4000001
    %vm5069 = vcmp.lt.f32.partialorder %v4391, 1.4000001
    %vm5070 = vcmp.lt.f32.partialorder %v4396, 1.4000001
    %vm5071 = vmand %vm5039, %vm5055
    %vm5072 = vmand %vm5040, %vm5056
    %vm5073 = vmand %vm5041, %vm5057
    %vm5074 = vmand %vm5042, %vm5058
    %vm5075 = vmand %vm5043, %vm5059
    %vm5076 = vmand %vm5044, %vm5060
    %vm5077 = vmand %vm5045, %vm5061
    %vm5078 = vmand %vm5046, %vm5062
    %vm5079 = vmand %vm5047, %vm5063
    %vm5080 = vmand %vm5048, %vm5064
    %vm5081 = vmand %vm5049, %vm5065
    %vm5082 = vmand %vm5050, %vm5066
    %vm5083 = vmand %vm5051, %vm5067
    %vm5084 = vmand %vm5052, %vm5068
    %vm5085 = vmand %vm5053, %vm5069
    %vm5086 = vmand %vm5054, %vm5070
    %v5087 = vsel %vm5071, 1, 0
    %v5088 = vsel %vm5072, 1, 0
    %v5089 = vsel %vm5073, 1, 0
    %v5090 = vsel %vm5074, 1, 0
    %v5091 = vsel %vm5075, 1, 0
    %v5092 = vsel %vm5076, 1, 0
    %v5093 = vsel %vm5077, 1, 0
    %v5094 = vsel %vm5078, 1, 0
    %v5095 = vsel %vm5079, 1, 0
    %v5096 = vsel %vm5080, 1, 0
    %v5097 = vsel %vm5081, 1, 0
    %v5098 = vsel %vm5082, 1, 0
    %v5099 = vsel %vm5083, 1, 0
    %v5100 = vsel %vm5084, 1, 0
    %v5101 = vsel %vm5085, 1, 0
    %v5102 = vsel %vm5086, 1, 0
    %v5103 = vcvt.s32.f32 %v5087
    %v5104 = vcvt.s32.f32 %v5088
    %v5105 = vcvt.s32.f32 %v5089
    %v5106 = vcvt.s32.f32 %v5090
    %v5107 = vcvt.s32.f32 %v5091
    %v5108 = vcvt.s32.f32 %v5092
    %v5109 = vcvt.s32.f32 %v5093
    %v5110 = vcvt.s32.f32 %v5094
    %v5111 = vcvt.s32.f32 %v5095
    %v5112 = vcvt.s32.f32 %v5096
    %v5113 = vcvt.s32.f32 %v5097
    %v5114 = vcvt.s32.f32 %v5098
    %v5115 = vcvt.s32.f32 %v5099
    %v5116 = vcvt.s32.f32 %v5100
    %v5117 = vcvt.s32.f32 %v5101
    %v5118 = vcvt.s32.f32 %v5102
    %vm5119 = vcmp.ge.f32.partialorder %v4321, 1.4000001
    %vm5120 = vcmp.ge.f32.partialorder %v4326, 1.4000001
    %vm5121 = vcmp.ge.f32.partialorder %v4331, 1.4000001
    %vm5122 = vcmp.ge.f32.partialorder %v4336, 1.4000001
    %vm5123 = vcmp.ge.f32.partialorder %v4341, 1.4000001
    %vm5124 = vcmp.ge.f32.partialorder %v4346, 1.4000001
    %vm5125 = vcmp.ge.f32.partialorder %v4351, 1.4000001
    %vm5126 = vcmp.ge.f32.partialorder %v4356, 1.4000001
    %vm5127 = vcmp.ge.f32.partialorder %v4361, 1.4000001
    %vm5128 = vcmp.ge.f32.partialorder %v4366, 1.4000001
    %vm5129 = vcmp.ge.f32.partialorder %v4371, 1.4000001
    %vm5130 = vcmp.ge.f32.partialorder %v4376, 1.4000001
    %vm5131 = vcmp.ge.f32.partialorder %v4381, 1.4000001
    %vm5132 = vcmp.ge.f32.partialorder %v4386, 1.4000001
    %vm5133 = vcmp.ge.f32.partialorder %v4391, 1.4000001
    %vm5134 = vcmp.ge.f32.partialorder %v4396, 1.4000001
    %vm5135 = vcmp.lt.f32.partialorder %v4321, 1.8
    %vm5136 = vcmp.lt.f32.partialorder %v4326, 1.8
    %vm5137 = vcmp.lt.f32.partialorder %v4331, 1.8
    %vm5138 = vcmp.lt.f32.partialorder %v4336, 1.8
    %vm5139 = vcmp.lt.f32.partialorder %v4341, 1.8
    %vm5140 = vcmp.lt.f32.partialorder %v4346, 1.8
    %vm5141 = vcmp.lt.f32.partialorder %v4351, 1.8
    %vm5142 = vcmp.lt.f32.partialorder %v4356, 1.8
    %vm5143 = vcmp.lt.f32.partialorder %v4361, 1.8
    %vm5144 = vcmp.lt.f32.partialorder %v4366, 1.8
    %vm5145 = vcmp.lt.f32.partialorder %v4371, 1.8
    %vm5146 = vcmp.lt.f32.partialorder %v4376, 1.8
    %vm5147 = vcmp.lt.f32.partialorder %v4381, 1.8
    %vm5148 = vcmp.lt.f32.partialorder %v4386, 1.8
    %vm5149 = vcmp.lt.f32.partialorder %v4391, 1.8
    %vm5150 = vcmp.lt.f32.partialorder %v4396, 1.8
    %vm5151 = vmand %vm5119, %vm5135
    %vm5152 = vmand %vm5120, %vm5136
    %vm5153 = vmand %vm5121, %vm5137
    %vm5154 = vmand %vm5122, %vm5138
    %vm5155 = vmand %vm5123, %vm5139
    %vm5156 = vmand %vm5124, %vm5140
    %vm5157 = vmand %vm5125, %vm5141
    %vm5158 = vmand %vm5126, %vm5142
    %vm5159 = vmand %vm5127, %vm5143
    %vm5160 = vmand %vm5128, %vm5144
    %vm5161 = vmand %vm5129, %vm5145
    %vm5162 = vmand %vm5130, %vm5146
    %vm5163 = vmand %vm5131, %vm5147
    %vm5164 = vmand %vm5132, %vm5148
    %vm5165 = vmand %vm5133, %vm5149
    %vm5166 = vmand %vm5134, %vm5150
    %v5167 = vsel %vm5151, 1, 0
    %v5168 = vsel %vm5152, 1, 0
    %v5169 = vsel %vm5153, 1, 0
    %v5170 = vsel %vm5154, 1, 0
    %v5171 = vsel %vm5155, 1, 0
    %v5172 = vsel %vm5156, 1, 0
    %v5173 = vsel %vm5157, 1, 0
    %v5174 = vsel %vm5158, 1, 0
    %v5175 = vsel %vm5159, 1, 0
    %v5176 = vsel %vm5160, 1, 0
    %v5177 = vsel %vm5161, 1, 0
    %v5178 = vsel %vm5162, 1, 0
    %v5179 = vsel %vm5163, 1, 0
    %v5180 = vsel %vm5164, 1, 0
    %v5181 = vsel %vm5165, 1, 0
    %v5182 = vsel %vm5166, 1, 0
    %v5183 = vcvt.s32.f32 %v5167
    %v5184 = vcvt.s32.f32 %v5168
    %v5185 = vcvt.s32.f32 %v5169
    %v5186 = vcvt.s32.f32 %v5170
    %v5187 = vcvt.s32.f32 %v5171
    %v5188 = vcvt.s32.f32 %v5172
    %v5189 = vcvt.s32.f32 %v5173
    %v5190 = vcvt.s32.f32 %v5174
    %v5191 = vcvt.s32.f32 %v5175
    %v5192 = vcvt.s32.f32 %v5176
    %v5193 = vcvt.s32.f32 %v5177
    %v5194 = vcvt.s32.f32 %v5178
    %v5195 = vcvt.s32.f32 %v5179
    %v5196 = vcvt.s32.f32 %v5180
    %v5197 = vcvt.s32.f32 %v5181
    %v5198 = vcvt.s32.f32 %v5182
    %vm5199 = vcmp.ge.f32.partialorder %v4321, 1.8
    %vm5200 = vcmp.ge.f32.partialorder %v4326, 1.8
    %vm5201 = vcmp.ge.f32.partialorder %v4331, 1.8
    %vm5202 = vcmp.ge.f32.partialorder %v4336, 1.8
    %vm5203 = vcmp.ge.f32.partialorder %v4341, 1.8
    %vm5204 = vcmp.ge.f32.partialorder %v4346, 1.8
    %vm5205 = vcmp.ge.f32.partialorder %v4351, 1.8
    %vm5206 = vcmp.ge.f32.partialorder %v4356, 1.8
    %vm5207 = vcmp.ge.f32.partialorder %v4361, 1.8
    %vm5208 = vcmp.ge.f32.partialorder %v4366, 1.8
    %vm5209 = vcmp.ge.f32.partialorder %v4371, 1.8
    %vm5210 = vcmp.ge.f32.partialorder %v4376, 1.8
    %vm5211 = vcmp.ge.f32.partialorder %v4381, 1.8
    %vm5212 = vcmp.ge.f32.partialorder %v4386, 1.8
    %vm5213 = vcmp.ge.f32.partialorder %v4391, 1.8
    %vm5214 = vcmp.ge.f32.partialorder %v4396, 1.8
    %vm5215 = vcmp.lt.f32.partialorder %v4321, 2.2
    %vm5216 = vcmp.lt.f32.partialorder %v4326, 2.2
    %vm5217 = vcmp.lt.f32.partialorder %v4331, 2.2
    %vm5218 = vcmp.lt.f32.partialorder %v4336, 2.2
    %vm5219 = vcmp.lt.f32.partialorder %v4341, 2.2
    %vm5220 = vcmp.lt.f32.partialorder %v4346, 2.2
    %vm5221 = vcmp.lt.f32.partialorder %v4351, 2.2
    %vm5222 = vcmp.lt.f32.partialorder %v4356, 2.2
    %vm5223 = vcmp.lt.f32.partialorder %v4361, 2.2
    %vm5224 = vcmp.lt.f32.partialorder %v4366, 2.2
    %vm5225 = vcmp.lt.f32.partialorder %v4371, 2.2
    %vm5226 = vcmp.lt.f32.partialorder %v4376, 2.2
    %vm5227 = vcmp.lt.f32.partialorder %v4381, 2.2
    %vm5228 = vcmp.lt.f32.partialorder %v4386, 2.2
    %vm5229 = vcmp.lt.f32.partialorder %v4391, 2.2
    %vm5230 = vcmp.lt.f32.partialorder %v4396, 2.2
    %vm5231 = vmand %vm5199, %vm5215
    %vm5232 = vmand %vm5200, %vm5216
    %vm5233 = vmand %vm5201, %vm5217
    %vm5234 = vmand %vm5202, %vm5218
    %vm5235 = vmand %vm5203, %vm5219
    %vm5236 = vmand %vm5204, %vm5220
    %vm5237 = vmand %vm5205, %vm5221
    %vm5238 = vmand %vm5206, %vm5222
    %vm5239 = vmand %vm5207, %vm5223
    %vm5240 = vmand %vm5208, %vm5224
    %vm5241 = vmand %vm5209, %vm5225
    %vm5242 = vmand %vm5210, %vm5226
    %vm5243 = vmand %vm5211, %vm5227
    %vm5244 = vmand %vm5212, %vm5228
    %vm5245 = vmand %vm5213, %vm5229
    %vm5246 = vmand %vm5214, %vm5230
    %v5247 = vsel %vm5231, 1, 0
    %v5248 = vsel %vm5232, 1, 0
    %v5249 = vsel %vm5233, 1, 0
    %v5250 = vsel %vm5234, 1, 0
    %v5251 = vsel %vm5235, 1, 0
    %v5252 = vsel %vm5236, 1, 0
    %v5253 = vsel %vm5237, 1, 0
    %v5254 = vsel %vm5238, 1, 0
    %v5255 = vsel %vm5239, 1, 0
    %v5256 = vsel %vm5240, 1, 0
    %v5257 = vsel %vm5241, 1, 0
    %v5258 = vsel %vm5242, 1, 0
    %v5259 = vsel %vm5243, 1, 0
    %v5260 = vsel %vm5244, 1, 0
    %v5261 = vsel %vm5245, 1, 0
    %v5262 = vsel %vm5246, 1, 0
    %v5263 = vcvt.s32.f32 %v5247
    %v5264 = vcvt.s32.f32 %v5248
    %v5265 = vcvt.s32.f32 %v5249
    %v5266 = vcvt.s32.f32 %v5250
    %v5267 = vcvt.s32.f32 %v5251
    %v5268 = vcvt.s32.f32 %v5252
    %v5269 = vcvt.s32.f32 %v5253
    %v5270 = vcvt.s32.f32 %v5254
    %v5271 = vcvt.s32.f32 %v5255
    %v5272 = vcvt.s32.f32 %v5256
    %v5273 = vcvt.s32.f32 %v5257
    %v5274 = vcvt.s32.f32 %v5258
    %v5275 = vcvt.s32.f32 %v5259
    %v5276 = vcvt.s32.f32 %v5260
    %v5277 = vcvt.s32.f32 %v5261
    %v5278 = vcvt.s32.f32 %v5262
    %v5279 = vsub.f32 %v4321, -2.2
    %v5280 = vsub.f32 %v4326, -2.2
    %v5281 = vsub.f32 %v4331, -2.2
    %v5282 = vsub.f32 %v4336, -2.2
    %v5283 = vsub.f32 %v4341, -2.2
    %v5284 = vsub.f32 %v4346, -2.2
    %v5285 = vsub.f32 %v4351, -2.2
    %v5286 = vsub.f32 %v4356, -2.2
    %v5287 = vsub.f32 %v4361, -2.2
    %v5288 = vsub.f32 %v4366, -2.2
    %v5289 = vsub.f32 %v4371, -2.2
    %v5290 = vsub.f32 %v4376, -2.2
    %v5291 = vsub.f32 %v4381, -2.2
    %v5292 = vsub.f32 %v4386, -2.2
    %v5293 = vsub.f32 %v4391, -2.2
    %v5294 = vsub.f32 %v4396, -2.2
    %v5295 = vmul.f32 %v5279, 2.5
    %v5296 = vmul.f32 %v5280, 2.5
    %v5297 = vmul.f32 %v5281, 2.5
    %v5298 = vmul.f32 %v5282, 2.5
    %v5299 = vmul.f32 %v5283, 2.5
    %v5300 = vmul.f32 %v5284, 2.5
    %v5301 = vmul.f32 %v5285, 2.5
    %v5302 = vmul.f32 %v5286, 2.5
    %v5303 = vmul.f32 %v5287, 2.5
    %v5304 = vmul.f32 %v5288, 2.5
    %v5305 = vmul.f32 %v5289, 2.5
    %v5306 = vmul.f32 %v5290, 2.5
    %v5307 = vmul.f32 %v5291, 2.5
    %v5308 = vmul.f32 %v5292, 2.5
    %v5309 = vmul.f32 %v5293, 2.5
    %v5310 = vmul.f32 %v5294, 2.5
    %v5311 = vmul.f32 %v5295, %v4463
    %v5312 = vmul.f32 %v5296, %v4464
    %v5313 = vmul.f32 %v5297, %v4465
    %v5314 = vmul.f32 %v5298, %v4466
    %v5315 = vmul.f32 %v5299, %v4467
    %v5316 = vmul.f32 %v5300, %v4468
    %v5317 = vmul.f32 %v5301, %v4469
    %v5318 = vmul.f32 %v5302, %v4470
    %v5319 = vmul.f32 %v5303, %v4471
    %v5320 = vmul.f32 %v5304, %v4472
    %v5321 = vmul.f32 %v5305, %v4473
    %v5322 = vmul.f32 %v5306, %v4474
    %v5323 = vmul.f32 %v5307, %v4475
    %v5324 = vmul.f32 %v5308, %v4476
    %v5325 = vmul.f32 %v5309, %v4477
    %v5326 = vmul.f32 %v5310, %v4478
    %v5327 = vsub.f32 -1.4, %v4321
    %v5328 = vsub.f32 -1.4, %v4326
    %v5329 = vsub.f32 -1.4, %v4331
    %v5330 = vsub.f32 -1.4, %v4336
    %v5331 = vsub.f32 -1.4, %v4341
    %v5332 = vsub.f32 -1.4, %v4346
    %v5333 = vsub.f32 -1.4, %v4351
    %v5334 = vsub.f32 -1.4, %v4356
    %v5335 = vsub.f32 -1.4, %v4361
    %v5336 = vsub.f32 -1.4, %v4366
    %v5337 = vsub.f32 -1.4, %v4371
    %v5338 = vsub.f32 -1.4, %v4376
    %v5339 = vsub.f32 -1.4, %v4381
    %v5340 = vsub.f32 -1.4, %v4386
    %v5341 = vsub.f32 -1.4, %v4391
    %v5342 = vsub.f32 -1.4, %v4396
    %v5343 = vmul.f32 %v5327, 2.5
    %v5344 = vmul.f32 %v5328, 2.5
    %v5345 = vmul.f32 %v5329, 2.5
    %v5346 = vmul.f32 %v5330, 2.5
    %v5347 = vmul.f32 %v5331, 2.5
    %v5348 = vmul.f32 %v5332, 2.5
    %v5349 = vmul.f32 %v5333, 2.5
    %v5350 = vmul.f32 %v5334, 2.5
    %v5351 = vmul.f32 %v5335, 2.5
    %v5352 = vmul.f32 %v5336, 2.5
    %v5353 = vmul.f32 %v5337, 2.5
    %v5354 = vmul.f32 %v5338, 2.5
    %v5355 = vmul.f32 %v5339, 2.5
    %v5356 = vmul.f32 %v5340, 2.5
    %v5357 = vmul.f32 %v5341, 2.5
    %v5358 = vmul.f32 %v5342, 2.5
    %v5359 = vmul.f32 %v5343, %v4543
    %v5360 = vmul.f32 %v5344, %v4544
    %v5361 = vmul.f32 %v5345, %v4545
    %v5362 = vmul.f32 %v5346, %v4546
    %v5363 = vmul.f32 %v5347, %v4547
    %v5364 = vmul.f32 %v5348, %v4548
    %v5365 = vmul.f32 %v5349, %v4549
    %v5366 = vmul.f32 %v5350, %v4550
    %v5367 = vmul.f32 %v5351, %v4551
    %v5368 = vmul.f32 %v5352, %v4552
    %v5369 = vmul.f32 %v5353, %v4553
    %v5370 = vmul.f32 %v5354, %v4554
    %v5371 = vmul.f32 %v5355, %v4555
    %v5372 = vmul.f32 %v5356, %v4556
    %v5373 = vmul.f32 %v5357, %v4557
    %v5374 = vmul.f32 %v5358, %v4558
    %v5375 = vadd.f32 %v5311, %v5359
    %v5376 = vadd.f32 %v5312, %v5360
    %v5377 = vadd.f32 %v5313, %v5361
    %v5378 = vadd.f32 %v5314, %v5362
    %v5379 = vadd.f32 %v5315, %v5363
    %v5380 = vadd.f32 %v5316, %v5364
    %v5381 = vadd.f32 %v5317, %v5365
    %v5382 = vadd.f32 %v5318, %v5366
    %v5383 = vadd.f32 %v5319, %v5367
    %v5384 = vadd.f32 %v5320, %v5368
    %v5385 = vadd.f32 %v5321, %v5369
    %v5386 = vadd.f32 %v5322, %v5370
    %v5387 = vadd.f32 %v5323, %v5371
    %v5388 = vadd.f32 %v5324, %v5372
    %v5389 = vadd.f32 %v5325, %v5373
    %v5390 = vadd.f32 %v5326, %v5374
    %v5391 = vsub.f32 %v4321, -1.8
    %v5392 = vsub.f32 %v4326, -1.8
    %v5393 = vsub.f32 %v4331, -1.8
    %v5394 = vsub.f32 %v4336, -1.8
    %v5395 = vsub.f32 %v4341, -1.8
    %v5396 = vsub.f32 %v4346, -1.8
    %v5397 = vsub.f32 %v4351, -1.8
    %v5398 = vsub.f32 %v4356, -1.8
    %v5399 = vsub.f32 %v4361, -1.8
    %v5400 = vsub.f32 %v4366, -1.8
    %v5401 = vsub.f32 %v4371, -1.8
    %v5402 = vsub.f32 %v4376, -1.8
    %v5403 = vsub.f32 %v4381, -1.8
    %v5404 = vsub.f32 %v4386, -1.8
    %v5405 = vsub.f32 %v4391, -1.8
    %v5406 = vsub.f32 %v4396, -1.8
    %v5407 = vmul.f32 %v5391, 2.5
    %v5408 = vmul.f32 %v5392, 2.5
    %v5409 = vmul.f32 %v5393, 2.5
    %v5410 = vmul.f32 %v5394, 2.5
    %v5411 = vmul.f32 %v5395, 2.5
    %v5412 = vmul.f32 %v5396, 2.5
    %v5413 = vmul.f32 %v5397, 2.5
    %v5414 = vmul.f32 %v5398, 2.5
    %v5415 = vmul.f32 %v5399, 2.5
    %v5416 = vmul.f32 %v5400, 2.5
    %v5417 = vmul.f32 %v5401, 2.5
    %v5418 = vmul.f32 %v5402, 2.5
    %v5419 = vmul.f32 %v5403, 2.5
    %v5420 = vmul.f32 %v5404, 2.5
    %v5421 = vmul.f32 %v5405, 2.5
    %v5422 = vmul.f32 %v5406, 2.5
    %v5423 = vmul.f32 %v5407, %v4543
    %v5424 = vmul.f32 %v5408, %v4544
    %v5425 = vmul.f32 %v5409, %v4545
    %v5426 = vmul.f32 %v5410, %v4546
    %v5427 = vmul.f32 %v5411, %v4547
    %v5428 = vmul.f32 %v5412, %v4548
    %v5429 = vmul.f32 %v5413, %v4549
    %v5430 = vmul.f32 %v5414, %v4550
    %v5431 = vmul.f32 %v5415, %v4551
    %v5432 = vmul.f32 %v5416, %v4552
    %v5433 = vmul.f32 %v5417, %v4553
    %v5434 = vmul.f32 %v5418, %v4554
    %v5435 = vmul.f32 %v5419, %v4555
    %v5436 = vmul.f32 %v5420, %v4556
    %v5437 = vmul.f32 %v5421, %v4557
    %v5438 = vmul.f32 %v5422, %v4558
    %v5439 = vsub.f32 -1.0, %v4321
    %v5440 = vsub.f32 -1.0, %v4326
    %v5441 = vsub.f32 -1.0, %v4331
    %v5442 = vsub.f32 -1.0, %v4336
    %v5443 = vsub.f32 -1.0, %v4341
    %v5444 = vsub.f32 -1.0, %v4346
    %v5445 = vsub.f32 -1.0, %v4351
    %v5446 = vsub.f32 -1.0, %v4356
    %v5447 = vsub.f32 -1.0, %v4361
    %v5448 = vsub.f32 -1.0, %v4366
    %v5449 = vsub.f32 -1.0, %v4371
    %v5450 = vsub.f32 -1.0, %v4376
    %v5451 = vsub.f32 -1.0, %v4381
    %v5452 = vsub.f32 -1.0, %v4386
    %v5453 = vsub.f32 -1.0, %v4391
    %v5454 = vsub.f32 -1.0, %v4396
    %v5455 = vmul.f32 %v5439, 2.5
    %v5456 = vmul.f32 %v5440, 2.5
    %v5457 = vmul.f32 %v5441, 2.5
    %v5458 = vmul.f32 %v5442, 2.5
    %v5459 = vmul.f32 %v5443, 2.5
    %v5460 = vmul.f32 %v5444, 2.5
    %v5461 = vmul.f32 %v5445, 2.5
    %v5462 = vmul.f32 %v5446, 2.5
    %v5463 = vmul.f32 %v5447, 2.5
    %v5464 = vmul.f32 %v5448, 2.5
    %v5465 = vmul.f32 %v5449, 2.5
    %v5466 = vmul.f32 %v5450, 2.5
    %v5467 = vmul.f32 %v5451, 2.5
    %v5468 = vmul.f32 %v5452, 2.5
    %v5469 = vmul.f32 %v5453, 2.5
    %v5470 = vmul.f32 %v5454, 2.5
    %v5471 = vmul.f32 %v5455, %v4623
    %v5472 = vmul.f32 %v5456, %v4624
    %v5473 = vmul.f32 %v5457, %v4625
    %v5474 = vmul.f32 %v5458, %v4626
    %v5475 = vmul.f32 %v5459, %v4627
    %v5476 = vmul.f32 %v5460, %v4628
    %v5477 = vmul.f32 %v5461, %v4629
    %v5478 = vmul.f32 %v5462, %v4630
    %v5479 = vmul.f32 %v5463, %v4631
    %v5480 = vmul.f32 %v5464, %v4632
    %v5481 = vmul.f32 %v5465, %v4633
    %v5482 = vmul.f32 %v5466, %v4634
    %v5483 = vmul.f32 %v5467, %v4635
    %v5484 = vmul.f32 %v5468, %v4636
    %v5485 = vmul.f32 %v5469, %v4637
    %v5486 = vmul.f32 %v5470, %v4638
    %v5487 = vadd.f32 %v5423, %v5471
    %v5488 = vadd.f32 %v5424, %v5472
    %v5489 = vadd.f32 %v5425, %v5473
    %v5490 = vadd.f32 %v5426, %v5474
    %v5491 = vadd.f32 %v5427, %v5475
    %v5492 = vadd.f32 %v5428, %v5476
    %v5493 = vadd.f32 %v5429, %v5477
    %v5494 = vadd.f32 %v5430, %v5478
    %v5495 = vadd.f32 %v5431, %v5479
    %v5496 = vadd.f32 %v5432, %v5480
    %v5497 = vadd.f32 %v5433, %v5481
    %v5498 = vadd.f32 %v5434, %v5482
    %v5499 = vadd.f32 %v5435, %v5483
    %v5500 = vadd.f32 %v5436, %v5484
    %v5501 = vadd.f32 %v5437, %v5485
    %v5502 = vadd.f32 %v5438, %v5486
    %v5503 = vsub.f32 %v4321, -1.4
    %v5504 = vsub.f32 %v4326, -1.4
    %v5505 = vsub.f32 %v4331, -1.4
    %v5506 = vsub.f32 %v4336, -1.4
    %v5507 = vsub.f32 %v4341, -1.4
    %v5508 = vsub.f32 %v4346, -1.4
    %v5509 = vsub.f32 %v4351, -1.4
    %v5510 = vsub.f32 %v4356, -1.4
    %v5511 = vsub.f32 %v4361, -1.4
    %v5512 = vsub.f32 %v4366, -1.4
    %v5513 = vsub.f32 %v4371, -1.4
    %v5514 = vsub.f32 %v4376, -1.4
    %v5515 = vsub.f32 %v4381, -1.4
    %v5516 = vsub.f32 %v4386, -1.4
    %v5517 = vsub.f32 %v4391, -1.4
    %v5518 = vsub.f32 %v4396, -1.4
    %v5519 = vmul.f32 %v5503, 2.5
    %v5520 = vmul.f32 %v5504, 2.5
    %v5521 = vmul.f32 %v5505, 2.5
    %v5522 = vmul.f32 %v5506, 2.5
    %v5523 = vmul.f32 %v5507, 2.5
    %v5524 = vmul.f32 %v5508, 2.5
    %v5525 = vmul.f32 %v5509, 2.5
    %v5526 = vmul.f32 %v5510, 2.5
    %v5527 = vmul.f32 %v5511, 2.5
    %v5528 = vmul.f32 %v5512, 2.5
    %v5529 = vmul.f32 %v5513, 2.5
    %v5530 = vmul.f32 %v5514, 2.5
    %v5531 = vmul.f32 %v5515, 2.5
    %v5532 = vmul.f32 %v5516, 2.5
    %v5533 = vmul.f32 %v5517, 2.5
    %v5534 = vmul.f32 %v5518, 2.5
    %v5535 = vmul.f32 %v5519, %v4623
    %v5536 = vmul.f32 %v5520, %v4624
    %v5537 = vmul.f32 %v5521, %v4625
    %v5538 = vmul.f32 %v5522, %v4626
    %v5539 = vmul.f32 %v5523, %v4627
    %v5540 = vmul.f32 %v5524, %v4628
    %v5541 = vmul.f32 %v5525, %v4629
    %v5542 = vmul.f32 %v5526, %v4630
    %v5543 = vmul.f32 %v5527, %v4631
    %v5544 = vmul.f32 %v5528, %v4632
    %v5545 = vmul.f32 %v5529, %v4633
    %v5546 = vmul.f32 %v5530, %v4634
    %v5547 = vmul.f32 %v5531, %v4635
    %v5548 = vmul.f32 %v5532, %v4636
    %v5549 = vmul.f32 %v5533, %v4637
    %v5550 = vmul.f32 %v5534, %v4638
    %v5551 = vsub.f32 -0.6, %v4321
    %v5552 = vsub.f32 -0.6, %v4326
    %v5553 = vsub.f32 -0.6, %v4331
    %v5554 = vsub.f32 -0.6, %v4336
    %v5555 = vsub.f32 -0.6, %v4341
    %v5556 = vsub.f32 -0.6, %v4346
    %v5557 = vsub.f32 -0.6, %v4351
    %v5558 = vsub.f32 -0.6, %v4356
    %v5559 = vsub.f32 -0.6, %v4361
    %v5560 = vsub.f32 -0.6, %v4366
    %v5561 = vsub.f32 -0.6, %v4371
    %v5562 = vsub.f32 -0.6, %v4376
    %v5563 = vsub.f32 -0.6, %v4381
    %v5564 = vsub.f32 -0.6, %v4386
    %v5565 = vsub.f32 -0.6, %v4391
    %v5566 = vsub.f32 -0.6, %v4396
    %v5567 = vmul.f32 %v5551, 2.5
    %v5568 = vmul.f32 %v5552, 2.5
    %v5569 = vmul.f32 %v5553, 2.5
    %v5570 = vmul.f32 %v5554, 2.5
    %v5571 = vmul.f32 %v5555, 2.5
    %v5572 = vmul.f32 %v5556, 2.5
    %v5573 = vmul.f32 %v5557, 2.5
    %v5574 = vmul.f32 %v5558, 2.5
    %v5575 = vmul.f32 %v5559, 2.5
    %v5576 = vmul.f32 %v5560, 2.5
    %v5577 = vmul.f32 %v5561, 2.5
    %v5578 = vmul.f32 %v5562, 2.5
    %v5579 = vmul.f32 %v5563, 2.5
    %v5580 = vmul.f32 %v5564, 2.5
    %v5581 = vmul.f32 %v5565, 2.5
    %v5582 = vmul.f32 %v5566, 2.5
    %v5583 = vmul.f32 %v5567, %v4703
    %v5584 = vmul.f32 %v5568, %v4704
    %v5585 = vmul.f32 %v5569, %v4705
    %v5586 = vmul.f32 %v5570, %v4706
    %v5587 = vmul.f32 %v5571, %v4707
    %v5588 = vmul.f32 %v5572, %v4708
    %v5589 = vmul.f32 %v5573, %v4709
    %v5590 = vmul.f32 %v5574, %v4710
    %v5591 = vmul.f32 %v5575, %v4711
    %v5592 = vmul.f32 %v5576, %v4712
    %v5593 = vmul.f32 %v5577, %v4713
    %v5594 = vmul.f32 %v5578, %v4714
    %v5595 = vmul.f32 %v5579, %v4715
    %v5596 = vmul.f32 %v5580, %v4716
    %v5597 = vmul.f32 %v5581, %v4717
    %v5598 = vmul.f32 %v5582, %v4718
    %v5599 = vadd.f32 %v5535, %v5583
    %v5600 = vadd.f32 %v5536, %v5584
    %v5601 = vadd.f32 %v5537, %v5585
    %v5602 = vadd.f32 %v5538, %v5586
    %v5603 = vadd.f32 %v5539, %v5587
    %v5604 = vadd.f32 %v5540, %v5588
    %v5605 = vadd.f32 %v5541, %v5589
    %v5606 = vadd.f32 %v5542, %v5590
    %v5607 = vadd.f32 %v5543, %v5591
    %v5608 = vadd.f32 %v5544, %v5592
    %v5609 = vadd.f32 %v5545, %v5593
    %v5610 = vadd.f32 %v5546, %v5594
    %v5611 = vadd.f32 %v5547, %v5595
    %v5612 = vadd.f32 %v5548, %v5596
    %v5613 = vadd.f32 %v5549, %v5597
    %v5614 = vadd.f32 %v5550, %v5598
    %v5615 = vsub.f32 %v4321, -1.0
    %v5616 = vsub.f32 %v4326, -1.0
    %v5617 = vsub.f32 %v4331, -1.0
    %v5618 = vsub.f32 %v4336, -1.0
    %v5619 = vsub.f32 %v4341, -1.0
    %v5620 = vsub.f32 %v4346, -1.0
    %v5621 = vsub.f32 %v4351, -1.0
    %v5622 = vsub.f32 %v4356, -1.0
    %v5623 = vsub.f32 %v4361, -1.0
    %v5624 = vsub.f32 %v4366, -1.0
    %v5625 = vsub.f32 %v4371, -1.0
    %v5626 = vsub.f32 %v4376, -1.0
    %v5627 = vsub.f32 %v4381, -1.0
    %v5628 = vsub.f32 %v4386, -1.0
    %v5629 = vsub.f32 %v4391, -1.0
    %v5630 = vsub.f32 %v4396, -1.0
    %v5631 = vmul.f32 %v5615, 2.5
    %v5632 = vmul.f32 %v5616, 2.5
    %v5633 = vmul.f32 %v5617, 2.5
    %v5634 = vmul.f32 %v5618, 2.5
    %v5635 = vmul.f32 %v5619, 2.5
    %v5636 = vmul.f32 %v5620, 2.5
    %v5637 = vmul.f32 %v5621, 2.5
    %v5638 = vmul.f32 %v5622, 2.5
    %v5639 = vmul.f32 %v5623, 2.5
    %v5640 = vmul.f32 %v5624, 2.5
    %v5641 = vmul.f32 %v5625, 2.5
    %v5642 = vmul.f32 %v5626, 2.5
    %v5643 = vmul.f32 %v5627, 2.5
    %v5644 = vmul.f32 %v5628, 2.5
    %v5645 = vmul.f32 %v5629, 2.5
    %v5646 = vmul.f32 %v5630, 2.5
    %v5647 = vmul.f32 %v5631, %v4703
    %v5648 = vmul.f32 %v5632, %v4704
    %v5649 = vmul.f32 %v5633, %v4705
    %v5650 = vmul.f32 %v5634, %v4706
    %v5651 = vmul.f32 %v5635, %v4707
    %v5652 = vmul.f32 %v5636, %v4708
    %v5653 = vmul.f32 %v5637, %v4709
    %v5654 = vmul.f32 %v5638, %v4710
    %v5655 = vmul.f32 %v5639, %v4711
    %v5656 = vmul.f32 %v5640, %v4712
    %v5657 = vmul.f32 %v5641, %v4713
    %v5658 = vmul.f32 %v5642, %v4714
    %v5659 = vmul.f32 %v5643, %v4715
    %v5660 = vmul.f32 %v5644, %v4716
    %v5661 = vmul.f32 %v5645, %v4717
    %v5662 = vmul.f32 %v5646, %v4718
    %v5663 = vsub.f32 -0.19999999, %v4321
    %v5664 = vsub.f32 -0.19999999, %v4326
    %v5665 = vsub.f32 -0.19999999, %v4331
    %v5666 = vsub.f32 -0.19999999, %v4336
    %v5667 = vsub.f32 -0.19999999, %v4341
    %v5668 = vsub.f32 -0.19999999, %v4346
    %v5669 = vsub.f32 -0.19999999, %v4351
    %v5670 = vsub.f32 -0.19999999, %v4356
    %v5671 = vsub.f32 -0.19999999, %v4361
    %v5672 = vsub.f32 -0.19999999, %v4366
    %v5673 = vsub.f32 -0.19999999, %v4371
    %v5674 = vsub.f32 -0.19999999, %v4376
    %v5675 = vsub.f32 -0.19999999, %v4381
    %v5676 = vsub.f32 -0.19999999, %v4386
    %v5677 = vsub.f32 -0.19999999, %v4391
    %v5678 = vsub.f32 -0.19999999, %v4396
    %v5679 = vmul.f32 %v5663, 2.5
    %v5680 = vmul.f32 %v5664, 2.5
    %v5681 = vmul.f32 %v5665, 2.5
    %v5682 = vmul.f32 %v5666, 2.5
    %v5683 = vmul.f32 %v5667, 2.5
    %v5684 = vmul.f32 %v5668, 2.5
    %v5685 = vmul.f32 %v5669, 2.5
    %v5686 = vmul.f32 %v5670, 2.5
    %v5687 = vmul.f32 %v5671, 2.5
    %v5688 = vmul.f32 %v5672, 2.5
    %v5689 = vmul.f32 %v5673, 2.5
    %v5690 = vmul.f32 %v5674, 2.5
    %v5691 = vmul.f32 %v5675, 2.5
    %v5692 = vmul.f32 %v5676, 2.5
    %v5693 = vmul.f32 %v5677, 2.5
    %v5694 = vmul.f32 %v5678, 2.5
    %v5695 = vmul.f32 %v5679, %v4783
    %v5696 = vmul.f32 %v5680, %v4784
    %v5697 = vmul.f32 %v5681, %v4785
    %v5698 = vmul.f32 %v5682, %v4786
    %v5699 = vmul.f32 %v5683, %v4787
    %v5700 = vmul.f32 %v5684, %v4788
    %v5701 = vmul.f32 %v5685, %v4789
    %v5702 = vmul.f32 %v5686, %v4790
    %v5703 = vmul.f32 %v5687, %v4791
    %v5704 = vmul.f32 %v5688, %v4792
    %v5705 = vmul.f32 %v5689, %v4793
    %v5706 = vmul.f32 %v5690, %v4794
    %v5707 = vmul.f32 %v5691, %v4795
    %v5708 = vmul.f32 %v5692, %v4796
    %v5709 = vmul.f32 %v5693, %v4797
    %v5710 = vmul.f32 %v5694, %v4798
    %v5711 = vadd.f32 %v5647, %v5695
    %v5712 = vadd.f32 %v5648, %v5696
    %v5713 = vadd.f32 %v5649, %v5697
    %v5714 = vadd.f32 %v5650, %v5698
    %v5715 = vadd.f32 %v5651, %v5699
    %v5716 = vadd.f32 %v5652, %v5700
    %v5717 = vadd.f32 %v5653, %v5701
    %v5718 = vadd.f32 %v5654, %v5702
    %v5719 = vadd.f32 %v5655, %v5703
    %v5720 = vadd.f32 %v5656, %v5704
    %v5721 = vadd.f32 %v5657, %v5705
    %v5722 = vadd.f32 %v5658, %v5706
    %v5723 = vadd.f32 %v5659, %v5707
    %v5724 = vadd.f32 %v5660, %v5708
    %v5725 = vadd.f32 %v5661, %v5709
    %v5726 = vadd.f32 %v5662, %v5710
    %v5727 = vsub.f32 %v4321, -0.6
    %v5728 = vsub.f32 %v4326, -0.6
    %v5729 = vsub.f32 %v4331, -0.6
    %v5730 = vsub.f32 %v4336, -0.6
    %v5731 = vsub.f32 %v4341, -0.6
    %v5732 = vsub.f32 %v4346, -0.6
    %v5733 = vsub.f32 %v4351, -0.6
    %v5734 = vsub.f32 %v4356, -0.6
    %v5735 = vsub.f32 %v4361, -0.6
    %v5736 = vsub.f32 %v4366, -0.6
    %v5737 = vsub.f32 %v4371, -0.6
    %v5738 = vsub.f32 %v4376, -0.6
    %v5739 = vsub.f32 %v4381, -0.6
    %v5740 = vsub.f32 %v4386, -0.6
    %v5741 = vsub.f32 %v4391, -0.6
    %v5742 = vsub.f32 %v4396, -0.6
    %v5743 = vmul.f32 %v5727, 2.5
    %v5744 = vmul.f32 %v5728, 2.5
    %v5745 = vmul.f32 %v5729, 2.5
    %v5746 = vmul.f32 %v5730, 2.5
    %v5747 = vmul.f32 %v5731, 2.5
    %v5748 = vmul.f32 %v5732, 2.5
    %v5749 = vmul.f32 %v5733, 2.5
    %v5750 = vmul.f32 %v5734, 2.5
    %v5751 = vmul.f32 %v5735, 2.5
    %v5752 = vmul.f32 %v5736, 2.5
    %v5753 = vmul.f32 %v5737, 2.5
    %v5754 = vmul.f32 %v5738, 2.5
    %v5755 = vmul.f32 %v5739, 2.5
    %v5756 = vmul.f32 %v5740, 2.5
    %v5757 = vmul.f32 %v5741, 2.5
    %v5758 = vmul.f32 %v5742, 2.5
    %v5759 = vmul.f32 %v5743, %v4783
    %v5760 = vmul.f32 %v5744, %v4784
    %v5761 = vmul.f32 %v5745, %v4785
    %v5762 = vmul.f32 %v5746, %v4786
    %v5763 = vmul.f32 %v5747, %v4787
    %v5764 = vmul.f32 %v5748, %v4788
    %v5765 = vmul.f32 %v5749, %v4789
    %v5766 = vmul.f32 %v5750, %v4790
    %v5767 = vmul.f32 %v5751, %v4791
    %v5768 = vmul.f32 %v5752, %v4792
    %v5769 = vmul.f32 %v5753, %v4793
    %v5770 = vmul.f32 %v5754, %v4794
    %v5771 = vmul.f32 %v5755, %v4795
    %v5772 = vmul.f32 %v5756, %v4796
    %v5773 = vmul.f32 %v5757, %v4797
    %v5774 = vmul.f32 %v5758, %v4798
    %v5775 = vsub.f32 0.20000005, %v4321
    %v5776 = vsub.f32 0.20000005, %v4326
    %v5777 = vsub.f32 0.20000005, %v4331
    %v5778 = vsub.f32 0.20000005, %v4336
    %v5779 = vsub.f32 0.20000005, %v4341
    %v5780 = vsub.f32 0.20000005, %v4346
    %v5781 = vsub.f32 0.20000005, %v4351
    %v5782 = vsub.f32 0.20000005, %v4356
    %v5783 = vsub.f32 0.20000005, %v4361
    %v5784 = vsub.f32 0.20000005, %v4366
    %v5785 = vsub.f32 0.20000005, %v4371
    %v5786 = vsub.f32 0.20000005, %v4376
    %v5787 = vsub.f32 0.20000005, %v4381
    %v5788 = vsub.f32 0.20000005, %v4386
    %v5789 = vsub.f32 0.20000005, %v4391
    %v5790 = vsub.f32 0.20000005, %v4396
    %v5791 = vmul.f32 %v5775, 2.5
    %v5792 = vmul.f32 %v5776, 2.5
    %v5793 = vmul.f32 %v5777, 2.5
    %v5794 = vmul.f32 %v5778, 2.5
    %v5795 = vmul.f32 %v5779, 2.5
    %v5796 = vmul.f32 %v5780, 2.5
    %v5797 = vmul.f32 %v5781, 2.5
    %v5798 = vmul.f32 %v5782, 2.5
    %v5799 = vmul.f32 %v5783, 2.5
    %v5800 = vmul.f32 %v5784, 2.5
    %v5801 = vmul.f32 %v5785, 2.5
    %v5802 = vmul.f32 %v5786, 2.5
    %v5803 = vmul.f32 %v5787, 2.5
    %v5804 = vmul.f32 %v5788, 2.5
    %v5805 = vmul.f32 %v5789, 2.5
    %v5806 = vmul.f32 %v5790, 2.5
    %v5807 = vmul.f32 %v5791, %v4863
    %v5808 = vmul.f32 %v5792, %v4864
    %v5809 = vmul.f32 %v5793, %v4865
    %v5810 = vmul.f32 %v5794, %v4866
    %v5811 = vmul.f32 %v5795, %v4867
    %v5812 = vmul.f32 %v5796, %v4868
    %v5813 = vmul.f32 %v5797, %v4869
    %v5814 = vmul.f32 %v5798, %v4870
    %v5815 = vmul.f32 %v5799, %v4871
    %v5816 = vmul.f32 %v5800, %v4872
    %v5817 = vmul.f32 %v5801, %v4873
    %v5818 = vmul.f32 %v5802, %v4874
    %v5819 = vmul.f32 %v5803, %v4875
    %v5820 = vmul.f32 %v5804, %v4876
    %v5821 = vmul.f32 %v5805, %v4877
    %v5822 = vmul.f32 %v5806, %v4878
    %v5823 = vadd.f32 %v5759, %v5807
    %v5824 = vadd.f32 %v5760, %v5808
    %v5825 = vadd.f32 %v5761, %v5809
    %v5826 = vadd.f32 %v5762, %v5810
    %v5827 = vadd.f32 %v5763, %v5811
    %v5828 = vadd.f32 %v5764, %v5812
    %v5829 = vadd.f32 %v5765, %v5813
    %v5830 = vadd.f32 %v5766, %v5814
    %v5831 = vadd.f32 %v5767, %v5815
    %v5832 = vadd.f32 %v5768, %v5816
    %v5833 = vadd.f32 %v5769, %v5817
    %v5834 = vadd.f32 %v5770, %v5818
    %v5835 = vadd.f32 %v5771, %v5819
    %v5836 = vadd.f32 %v5772, %v5820
    %v5837 = vadd.f32 %v5773, %v5821
    %v5838 = vadd.f32 %v5774, %v5822
    %v5839 = vsub.f32 %v4321, -0.19999999
    %v5840 = vsub.f32 %v4326, -0.19999999
    %v5841 = vsub.f32 %v4331, -0.19999999
    %v5842 = vsub.f32 %v4336, -0.19999999
    %v5843 = vsub.f32 %v4341, -0.19999999
    %v5844 = vsub.f32 %v4346, -0.19999999
    %v5845 = vsub.f32 %v4351, -0.19999999
    %v5846 = vsub.f32 %v4356, -0.19999999
    %v5847 = vsub.f32 %v4361, -0.19999999
    %v5848 = vsub.f32 %v4366, -0.19999999
    %v5849 = vsub.f32 %v4371, -0.19999999
    %v5850 = vsub.f32 %v4376, -0.19999999
    %v5851 = vsub.f32 %v4381, -0.19999999
    %v5852 = vsub.f32 %v4386, -0.19999999
    %v5853 = vsub.f32 %v4391, -0.19999999
    %v5854 = vsub.f32 %v4396, -0.19999999
    %v5855 = vmul.f32 %v5839, 2.5
    %v5856 = vmul.f32 %v5840, 2.5
    %v5857 = vmul.f32 %v5841, 2.5
    %v5858 = vmul.f32 %v5842, 2.5
    %v5859 = vmul.f32 %v5843, 2.5
    %v5860 = vmul.f32 %v5844, 2.5
    %v5861 = vmul.f32 %v5845, 2.5
    %v5862 = vmul.f32 %v5846, 2.5
    %v5863 = vmul.f32 %v5847, 2.5
    %v5864 = vmul.f32 %v5848, 2.5
    %v5865 = vmul.f32 %v5849, 2.5
    %v5866 = vmul.f32 %v5850, 2.5
    %v5867 = vmul.f32 %v5851, 2.5
    %v5868 = vmul.f32 %v5852, 2.5
    %v5869 = vmul.f32 %v5853, 2.5
    %v5870 = vmul.f32 %v5854, 2.5
    %v5871 = vmul.f32 %v5855, %v4863
    %v5872 = vmul.f32 %v5856, %v4864
    %v5873 = vmul.f32 %v5857, %v4865
    %v5874 = vmul.f32 %v5858, %v4866
    %v5875 = vmul.f32 %v5859, %v4867
    %v5876 = vmul.f32 %v5860, %v4868
    %v5877 = vmul.f32 %v5861, %v4869
    %v5878 = vmul.f32 %v5862, %v4870
    %v5879 = vmul.f32 %v5863, %v4871
    %v5880 = vmul.f32 %v5864, %v4872
    %v5881 = vmul.f32 %v5865, %v4873
    %v5882 = vmul.f32 %v5866, %v4874
    %v5883 = vmul.f32 %v5867, %v4875
    %v5884 = vmul.f32 %v5868, %v4876
    %v5885 = vmul.f32 %v5869, %v4877
    %v5886 = vmul.f32 %v5870, %v4878
    %v5887 = vsub.f32 0.6, %v4321
    %v5888 = vsub.f32 0.6, %v4326
    %v5889 = vsub.f32 0.6, %v4331
    %v5890 = vsub.f32 0.6, %v4336
    %v5891 = vsub.f32 0.6, %v4341
    %v5892 = vsub.f32 0.6, %v4346
    %v5893 = vsub.f32 0.6, %v4351
    %v5894 = vsub.f32 0.6, %v4356
    %v5895 = vsub.f32 0.6, %v4361
    %v5896 = vsub.f32 0.6, %v4366
    %v5897 = vsub.f32 0.6, %v4371
    %v5898 = vsub.f32 0.6, %v4376
    %v5899 = vsub.f32 0.6, %v4381
    %v5900 = vsub.f32 0.6, %v4386
    %v5901 = vsub.f32 0.6, %v4391
    %v5902 = vsub.f32 0.6, %v4396
    %v5903 = vmul.f32 %v5887, 2.5
    %v5904 = vmul.f32 %v5888, 2.5
    %v5905 = vmul.f32 %v5889, 2.5
    %v5906 = vmul.f32 %v5890, 2.5
    %v5907 = vmul.f32 %v5891, 2.5
    %v5908 = vmul.f32 %v5892, 2.5
    %v5909 = vmul.f32 %v5893, 2.5
    %v5910 = vmul.f32 %v5894, 2.5
    %v5911 = vmul.f32 %v5895, 2.5
    %v5912 = vmul.f32 %v5896, 2.5
    %v5913 = vmul.f32 %v5897, 2.5
    %v5914 = vmul.f32 %v5898, 2.5
    %v5915 = vmul.f32 %v5899, 2.5
    %v5916 = vmul.f32 %v5900, 2.5
    %v5917 = vmul.f32 %v5901, 2.5
    %v5918 = vmul.f32 %v5902, 2.5
    %v5919 = vmul.f32 %v5903, %v4943
    %v5920 = vmul.f32 %v5904, %v4944
    %v5921 = vmul.f32 %v5905, %v4945
    %v5922 = vmul.f32 %v5906, %v4946
    %v5923 = vmul.f32 %v5907, %v4947
    %v5924 = vmul.f32 %v5908, %v4948
    %v5925 = vmul.f32 %v5909, %v4949
    %v5926 = vmul.f32 %v5910, %v4950
    %v5927 = vmul.f32 %v5911, %v4951
    %v5928 = vmul.f32 %v5912, %v4952
    %v5929 = vmul.f32 %v5913, %v4953
    %v5930 = vmul.f32 %v5914, %v4954
    %v5931 = vmul.f32 %v5915, %v4955
    %v5932 = vmul.f32 %v5916, %v4956
    %v5933 = vmul.f32 %v5917, %v4957
    %v5934 = vmul.f32 %v5918, %v4958
    %v5935 = vadd.f32 %v5871, %v5919
    %v5936 = vadd.f32 %v5872, %v5920
    %v5937 = vadd.f32 %v5873, %v5921
    %v5938 = vadd.f32 %v5874, %v5922
    %v5939 = vadd.f32 %v5875, %v5923
    %v5940 = vadd.f32 %v5876, %v5924
    %v5941 = vadd.f32 %v5877, %v5925
    %v5942 = vadd.f32 %v5878, %v5926
    %v5943 = vadd.f32 %v5879, %v5927
    %v5944 = vadd.f32 %v5880, %v5928
    %v5945 = vadd.f32 %v5881, %v5929
    %v5946 = vadd.f32 %v5882, %v5930
    %v5947 = vadd.f32 %v5883, %v5931
    %v5948 = vadd.f32 %v5884, %v5932
    %v5949 = vadd.f32 %v5885, %v5933
    %v5950 = vadd.f32 %v5886, %v5934
    %v5951 = vsub.f32 %v4321, 0.20000005
    %v5952 = vsub.f32 %v4326, 0.20000005
    %v5953 = vsub.f32 %v4331, 0.20000005
    %v5954 = vsub.f32 %v4336, 0.20000005
    %v5955 = vsub.f32 %v4341, 0.20000005
    %v5956 = vsub.f32 %v4346, 0.20000005
    %v5957 = vsub.f32 %v4351, 0.20000005
    %v5958 = vsub.f32 %v4356, 0.20000005
    %v5959 = vsub.f32 %v4361, 0.20000005
    %v5960 = vsub.f32 %v4366, 0.20000005
    %v5961 = vsub.f32 %v4371, 0.20000005
    %v5962 = vsub.f32 %v4376, 0.20000005
    %v5963 = vsub.f32 %v4381, 0.20000005
    %v5964 = vsub.f32 %v4386, 0.20000005
    %v5965 = vsub.f32 %v4391, 0.20000005
    %v5966 = vsub.f32 %v4396, 0.20000005
    %v5967 = vmul.f32 %v5951, 2.5
    %v5968 = vmul.f32 %v5952, 2.5
    %v5969 = vmul.f32 %v5953, 2.5
    %v5970 = vmul.f32 %v5954, 2.5
    %v5971 = vmul.f32 %v5955, 2.5
    %v5972 = vmul.f32 %v5956, 2.5
    %v5973 = vmul.f32 %v5957, 2.5
    %v5974 = vmul.f32 %v5958, 2.5
    %v5975 = vmul.f32 %v5959, 2.5
    %v5976 = vmul.f32 %v5960, 2.5
    %v5977 = vmul.f32 %v5961, 2.5
    %v5978 = vmul.f32 %v5962, 2.5
    %v5979 = vmul.f32 %v5963, 2.5
    %v5980 = vmul.f32 %v5964, 2.5
    %v5981 = vmul.f32 %v5965, 2.5
    %v5982 = vmul.f32 %v5966, 2.5
    %v5983 = vmul.f32 %v5967, %v4943
    %v5984 = vmul.f32 %v5968, %v4944
    %v5985 = vmul.f32 %v5969, %v4945
    %v5986 = vmul.f32 %v5970, %v4946
    %v5987 = vmul.f32 %v5971, %v4947
    %v5988 = vmul.f32 %v5972, %v4948
    %v5989 = vmul.f32 %v5973, %v4949
    %v5990 = vmul.f32 %v5974, %v4950
    %v5991 = vmul.f32 %v5975, %v4951
    %v5992 = vmul.f32 %v5976, %v4952
    %v5993 = vmul.f32 %v5977, %v4953
    %v5994 = vmul.f32 %v5978, %v4954
    %v5995 = vmul.f32 %v5979, %v4955
    %v5996 = vmul.f32 %v5980, %v4956
    %v5997 = vmul.f32 %v5981, %v4957
    %v5998 = vmul.f32 %v5982, %v4958
    %v5999 = vsub.f32 1.0, %v4321
    %v6000 = vsub.f32 1.0, %v4326
    %v6001 = vsub.f32 1.0, %v4331
    %v6002 = vsub.f32 1.0, %v4336
    %v6003 = vsub.f32 1.0, %v4341
    %v6004 = vsub.f32 1.0, %v4346
    %v6005 = vsub.f32 1.0, %v4351
    %v6006 = vsub.f32 1.0, %v4356
    %v6007 = vsub.f32 1.0, %v4361
    %v6008 = vsub.f32 1.0, %v4366
    %v6009 = vsub.f32 1.0, %v4371
    %v6010 = vsub.f32 1.0, %v4376
    %v6011 = vsub.f32 1.0, %v4381
    %v6012 = vsub.f32 1.0, %v4386
    %v6013 = vsub.f32 1.0, %v4391
    %v6014 = vsub.f32 1.0, %v4396
    %v6015 = vmul.f32 %v5999, 2.5
    %v6016 = vmul.f32 %v6000, 2.5
    %v6017 = vmul.f32 %v6001, 2.5
    %v6018 = vmul.f32 %v6002, 2.5
    %v6019 = vmul.f32 %v6003, 2.5
    %v6020 = vmul.f32 %v6004, 2.5
    %v6021 = vmul.f32 %v6005, 2.5
    %v6022 = vmul.f32 %v6006, 2.5
    %v6023 = vmul.f32 %v6007, 2.5
    %v6024 = vmul.f32 %v6008, 2.5
    %v6025 = vmul.f32 %v6009, 2.5
    %v6026 = vmul.f32 %v6010, 2.5
    %v6027 = vmul.f32 %v6011, 2.5
    %v6028 = vmul.f32 %v6012, 2.5
    %v6029 = vmul.f32 %v6013, 2.5
    %v6030 = vmul.f32 %v6014, 2.5
    %v6031 = vmul.f32 %v6015, %v5023
    %v6032 = vmul.f32 %v6016, %v5024
    %v6033 = vmul.f32 %v6017, %v5025
    %v6034 = vmul.f32 %v6018, %v5026
    %v6035 = vmul.f32 %v6019, %v5027
    %v6036 = vmul.f32 %v6020, %v5028
    %v6037 = vmul.f32 %v6021, %v5029
    %v6038 = vmul.f32 %v6022, %v5030
    %v6039 = vmul.f32 %v6023, %v5031
    %v6040 = vmul.f32 %v6024, %v5032
    %v6041 = vmul.f32 %v6025, %v5033
    %v6042 = vmul.f32 %v6026, %v5034
    %v6043 = vmul.f32 %v6027, %v5035
    %v6044 = vmul.f32 %v6028, %v5036
    %v6045 = vmul.f32 %v6029, %v5037
    %v6046 = vmul.f32 %v6030, %v5038
    %v6047 = vadd.f32 %v5983, %v6031
    %v6048 = vadd.f32 %v5984, %v6032
    %v6049 = vadd.f32 %v5985, %v6033
    %v6050 = vadd.f32 %v5986, %v6034
    %v6051 = vadd.f32 %v5987, %v6035
    %v6052 = vadd.f32 %v5988, %v6036
    %v6053 = vadd.f32 %v5989, %v6037
    %v6054 = vadd.f32 %v5990, %v6038
    %v6055 = vadd.f32 %v5991, %v6039
    %v6056 = vadd.f32 %v5992, %v6040
    %v6057 = vadd.f32 %v5993, %v6041
    %v6058 = vadd.f32 %v5994, %v6042
    %v6059 = vadd.f32 %v5995, %v6043
    %v6060 = vadd.f32 %v5996, %v6044
    %v6061 = vadd.f32 %v5997, %v6045
    %v6062 = vadd.f32 %v5998, %v6046
    %v6063 = vsub.f32 %v4321, 0.6
    %v6064 = vsub.f32 %v4326, 0.6
    %v6065 = vsub.f32 %v4331, 0.6
    %v6066 = vsub.f32 %v4336, 0.6
    %v6067 = vsub.f32 %v4341, 0.6
    %v6068 = vsub.f32 %v4346, 0.6
    %v6069 = vsub.f32 %v4351, 0.6
    %v6070 = vsub.f32 %v4356, 0.6
    %v6071 = vsub.f32 %v4361, 0.6
    %v6072 = vsub.f32 %v4366, 0.6
    %v6073 = vsub.f32 %v4371, 0.6
    %v6074 = vsub.f32 %v4376, 0.6
    %v6075 = vsub.f32 %v4381, 0.6
    %v6076 = vsub.f32 %v4386, 0.6
    %v6077 = vsub.f32 %v4391, 0.6
    %v6078 = vsub.f32 %v4396, 0.6
    %v6079 = vmul.f32 %v6063, 2.5
    %v6080 = vmul.f32 %v6064, 2.5
    %v6081 = vmul.f32 %v6065, 2.5
    %v6082 = vmul.f32 %v6066, 2.5
    %v6083 = vmul.f32 %v6067, 2.5
    %v6084 = vmul.f32 %v6068, 2.5
    %v6085 = vmul.f32 %v6069, 2.5
    %v6086 = vmul.f32 %v6070, 2.5
    %v6087 = vmul.f32 %v6071, 2.5
    %v6088 = vmul.f32 %v6072, 2.5
    %v6089 = vmul.f32 %v6073, 2.5
    %v6090 = vmul.f32 %v6074, 2.5
    %v6091 = vmul.f32 %v6075, 2.5
    %v6092 = vmul.f32 %v6076, 2.5
    %v6093 = vmul.f32 %v6077, 2.5
    %v6094 = vmul.f32 %v6078, 2.5
    %v6095 = vmul.f32 %v6079, %v5023
    %v6096 = vmul.f32 %v6080, %v5024
    %v6097 = vmul.f32 %v6081, %v5025
    %v6098 = vmul.f32 %v6082, %v5026
    %v6099 = vmul.f32 %v6083, %v5027
    %v6100 = vmul.f32 %v6084, %v5028
    %v6101 = vmul.f32 %v6085, %v5029
    %v6102 = vmul.f32 %v6086, %v5030
    %v6103 = vmul.f32 %v6087, %v5031
    %v6104 = vmul.f32 %v6088, %v5032
    %v6105 = vmul.f32 %v6089, %v5033
    %v6106 = vmul.f32 %v6090, %v5034
    %v6107 = vmul.f32 %v6091, %v5035
    %v6108 = vmul.f32 %v6092, %v5036
    %v6109 = vmul.f32 %v6093, %v5037
    %v6110 = vmul.f32 %v6094, %v5038
    %v6111 = vsub.f32 1.4000001, %v4321
    %v6112 = vsub.f32 1.4000001, %v4326
    %v6113 = vsub.f32 1.4000001, %v4331
    %v6114 = vsub.f32 1.4000001, %v4336
    %v6115 = vsub.f32 1.4000001, %v4341
    %v6116 = vsub.f32 1.4000001, %v4346
    %v6117 = vsub.f32 1.4000001, %v4351
    %v6118 = vsub.f32 1.4000001, %v4356
    %v6119 = vsub.f32 1.4000001, %v4361
    %v6120 = vsub.f32 1.4000001, %v4366
    %v6121 = vsub.f32 1.4000001, %v4371
    %v6122 = vsub.f32 1.4000001, %v4376
    %v6123 = vsub.f32 1.4000001, %v4381
    %v6124 = vsub.f32 1.4000001, %v4386
    %v6125 = vsub.f32 1.4000001, %v4391
    %v6126 = vsub.f32 1.4000001, %v4396
    %v6127 = vmul.f32 %v6111, 2.5
    %v6128 = vmul.f32 %v6112, 2.5
    %v6129 = vmul.f32 %v6113, 2.5
    %v6130 = vmul.f32 %v6114, 2.5
    %v6131 = vmul.f32 %v6115, 2.5
    %v6132 = vmul.f32 %v6116, 2.5
    %v6133 = vmul.f32 %v6117, 2.5
    %v6134 = vmul.f32 %v6118, 2.5
    %v6135 = vmul.f32 %v6119, 2.5
    %v6136 = vmul.f32 %v6120, 2.5
    %v6137 = vmul.f32 %v6121, 2.5
    %v6138 = vmul.f32 %v6122, 2.5
    %v6139 = vmul.f32 %v6123, 2.5
    %v6140 = vmul.f32 %v6124, 2.5
    %v6141 = vmul.f32 %v6125, 2.5
    %v6142 = vmul.f32 %v6126, 2.5
    %v6143 = vmul.f32 %v6127, %v5103
    %v6144 = vmul.f32 %v6128, %v5104
    %v6145 = vmul.f32 %v6129, %v5105
    %v6146 = vmul.f32 %v6130, %v5106
    %v6147 = vmul.f32 %v6131, %v5107
    %v6148 = vmul.f32 %v6132, %v5108
    %v6149 = vmul.f32 %v6133, %v5109
    %v6150 = vmul.f32 %v6134, %v5110
    %v6151 = vmul.f32 %v6135, %v5111
    %v6152 = vmul.f32 %v6136, %v5112
    %v6153 = vmul.f32 %v6137, %v5113
    %v6154 = vmul.f32 %v6138, %v5114
    %v6155 = vmul.f32 %v6139, %v5115
    %v6156 = vmul.f32 %v6140, %v5116
    %v6157 = vmul.f32 %v6141, %v5117
    %v6158 = vmul.f32 %v6142, %v5118
    %v6159 = vadd.f32 %v6095, %v6143
    %v6160 = vadd.f32 %v6096, %v6144
    %v6161 = vadd.f32 %v6097, %v6145
    %v6162 = vadd.f32 %v6098, %v6146
    %v6163 = vadd.f32 %v6099, %v6147
    %v6164 = vadd.f32 %v6100, %v6148
    %v6165 = vadd.f32 %v6101, %v6149
    %v6166 = vadd.f32 %v6102, %v6150
    %v6167 = vadd.f32 %v6103, %v6151
    %v6168 = vadd.f32 %v6104, %v6152
    %v6169 = vadd.f32 %v6105, %v6153
    %v6170 = vadd.f32 %v6106, %v6154
    %v6171 = vadd.f32 %v6107, %v6155
    %v6172 = vadd.f32 %v6108, %v6156
    %v6173 = vadd.f32 %v6109, %v6157
    %v6174 = vadd.f32 %v6110, %v6158
    %v6175 = vsub.f32 %v4321, 1.0
    %v6176 = vsub.f32 %v4326, 1.0
    %v6177 = vsub.f32 %v4331, 1.0
    %v6178 = vsub.f32 %v4336, 1.0
    %v6179 = vsub.f32 %v4341, 1.0
    %v6180 = vsub.f32 %v4346, 1.0
    %v6181 = vsub.f32 %v4351, 1.0
    %v6182 = vsub.f32 %v4356, 1.0
    %v6183 = vsub.f32 %v4361, 1.0
    %v6184 = vsub.f32 %v4366, 1.0
    %v6185 = vsub.f32 %v4371, 1.0
    %v6186 = vsub.f32 %v4376, 1.0
    %v6187 = vsub.f32 %v4381, 1.0
    %v6188 = vsub.f32 %v4386, 1.0
    %v6189 = vsub.f32 %v4391, 1.0
    %v6190 = vsub.f32 %v4396, 1.0
    %v6191 = vmul.f32 %v6175, 2.5
    %v6192 = vmul.f32 %v6176, 2.5
    %v6193 = vmul.f32 %v6177, 2.5
    %v6194 = vmul.f32 %v6178, 2.5
    %v6195 = vmul.f32 %v6179, 2.5
    %v6196 = vmul.f32 %v6180, 2.5
    %v6197 = vmul.f32 %v6181, 2.5
    %v6198 = vmul.f32 %v6182, 2.5
    %v6199 = vmul.f32 %v6183, 2.5
    %v6200 = vmul.f32 %v6184, 2.5
    %v6201 = vmul.f32 %v6185, 2.5
    %v6202 = vmul.f32 %v6186, 2.5
    %v6203 = vmul.f32 %v6187, 2.5
    %v6204 = vmul.f32 %v6188, 2.5
    %v6205 = vmul.f32 %v6189, 2.5
    %v6206 = vmul.f32 %v6190, 2.5
    %v6207 = vmul.f32 %v6191, %v5103
    %v6208 = vmul.f32 %v6192, %v5104
    %v6209 = vmul.f32 %v6193, %v5105
    %v6210 = vmul.f32 %v6194, %v5106
    %v6211 = vmul.f32 %v6195, %v5107
    %v6212 = vmul.f32 %v6196, %v5108
    %v6213 = vmul.f32 %v6197, %v5109
    %v6214 = vmul.f32 %v6198, %v5110
    %v6215 = vmul.f32 %v6199, %v5111
    %v6216 = vmul.f32 %v6200, %v5112
    %v6217 = vmul.f32 %v6201, %v5113
    %v6218 = vmul.f32 %v6202, %v5114
    %v6219 = vmul.f32 %v6203, %v5115
    %v6220 = vmul.f32 %v6204, %v5116
    %v6221 = vmul.f32 %v6205, %v5117
    %v6222 = vmul.f32 %v6206, %v5118
    %v6223 = vsub.f32 1.8, %v4321
    %v6224 = vsub.f32 1.8, %v4326
    %v6225 = vsub.f32 1.8, %v4331
    %v6226 = vsub.f32 1.8, %v4336
    %v6227 = vsub.f32 1.8, %v4341
    %v6228 = vsub.f32 1.8, %v4346
    %v6229 = vsub.f32 1.8, %v4351
    %v6230 = vsub.f32 1.8, %v4356
    %v6231 = vsub.f32 1.8, %v4361
    %v6232 = vsub.f32 1.8, %v4366
    %v6233 = vsub.f32 1.8, %v4371
    %v6234 = vsub.f32 1.8, %v4376
    %v6235 = vsub.f32 1.8, %v4381
    %v6236 = vsub.f32 1.8, %v4386
    %v6237 = vsub.f32 1.8, %v4391
    %v6238 = vsub.f32 1.8, %v4396
    %v6239 = vmul.f32 %v6223, 2.5
    %v6240 = vmul.f32 %v6224, 2.5
    %v6241 = vmul.f32 %v6225, 2.5
    %v6242 = vmul.f32 %v6226, 2.5
    %v6243 = vmul.f32 %v6227, 2.5
    %v6244 = vmul.f32 %v6228, 2.5
    %v6245 = vmul.f32 %v6229, 2.5
    %v6246 = vmul.f32 %v6230, 2.5
    %v6247 = vmul.f32 %v6231, 2.5
    %v6248 = vmul.f32 %v6232, 2.5
    %v6249 = vmul.f32 %v6233, 2.5
    %v6250 = vmul.f32 %v6234, 2.5
    %v6251 = vmul.f32 %v6235, 2.5
    %v6252 = vmul.f32 %v6236, 2.5
    %v6253 = vmul.f32 %v6237, 2.5
    %v6254 = vmul.f32 %v6238, 2.5
    %v6255 = vmul.f32 %v6239, %v5183
    %v6256 = vmul.f32 %v6240, %v5184
    %v6257 = vmul.f32 %v6241, %v5185
    %v6258 = vmul.f32 %v6242, %v5186
    %v6259 = vmul.f32 %v6243, %v5187
    %v6260 = vmul.f32 %v6244, %v5188
    %v6261 = vmul.f32 %v6245, %v5189
    %v6262 = vmul.f32 %v6246, %v5190
    %v6263 = vmul.f32 %v6247, %v5191
    %v6264 = vmul.f32 %v6248, %v5192
    %v6265 = vmul.f32 %v6249, %v5193
    %v6266 = vmul.f32 %v6250, %v5194
    %v6267 = vmul.f32 %v6251, %v5195
    %v6268 = vmul.f32 %v6252, %v5196
    %v6269 = vmul.f32 %v6253, %v5197
    %v6270 = vmul.f32 %v6254, %v5198
    %v6271 = vadd.f32 %v6207, %v6255
    %v6272 = vadd.f32 %v6208, %v6256
    %v6273 = vadd.f32 %v6209, %v6257
    %v6274 = vadd.f32 %v6210, %v6258
    %v6275 = vadd.f32 %v6211, %v6259
    %v6276 = vadd.f32 %v6212, %v6260
    %v6277 = vadd.f32 %v6213, %v6261
    %v6278 = vadd.f32 %v6214, %v6262
    %v6279 = vadd.f32 %v6215, %v6263
    %v6280 = vadd.f32 %v6216, %v6264
    %v6281 = vadd.f32 %v6217, %v6265
    %v6282 = vadd.f32 %v6218, %v6266
    %v6283 = vadd.f32 %v6219, %v6267
    %v6284 = vadd.f32 %v6220, %v6268
    %v6285 = vadd.f32 %v6221, %v6269
    %v6286 = vadd.f32 %v6222, %v6270
    %v6287 = vsub.f32 %v4321, 1.4000001
    %v6288 = vsub.f32 %v4326, 1.4000001
    %v6289 = vsub.f32 %v4331, 1.4000001
    %v6290 = vsub.f32 %v4336, 1.4000001
    %v6291 = vsub.f32 %v4341, 1.4000001
    %v6292 = vsub.f32 %v4346, 1.4000001
    %v6293 = vsub.f32 %v4351, 1.4000001
    %v6294 = vsub.f32 %v4356, 1.4000001
    %v6295 = vsub.f32 %v4361, 1.4000001
    %v6296 = vsub.f32 %v4366, 1.4000001
    %v6297 = vsub.f32 %v4371, 1.4000001
    %v6298 = vsub.f32 %v4376, 1.4000001
    %v6299 = vsub.f32 %v4381, 1.4000001
    %v6300 = vsub.f32 %v4386, 1.4000001
    %v6301 = vsub.f32 %v4391, 1.4000001
    %v6302 = vsub.f32 %v4396, 1.4000001
    %v6303 = vmul.f32 %v6287, 2.5
    %v6304 = vmul.f32 %v6288, 2.5
    %v6305 = vmul.f32 %v6289, 2.5
    %v6306 = vmul.f32 %v6290, 2.5
    %v6307 = vmul.f32 %v6291, 2.5
    %v6308 = vmul.f32 %v6292, 2.5
    %v6309 = vmul.f32 %v6293, 2.5
    %v6310 = vmul.f32 %v6294, 2.5
    %v6311 = vmul.f32 %v6295, 2.5
    %v6312 = vmul.f32 %v6296, 2.5
    %v6313 = vmul.f32 %v6297, 2.5
    %v6314 = vmul.f32 %v6298, 2.5
    %v6315 = vmul.f32 %v6299, 2.5
    %v6316 = vmul.f32 %v6300, 2.5
    %v6317 = vmul.f32 %v6301, 2.5
    %v6318 = vmul.f32 %v6302, 2.5
    %v6319 = vmul.f32 %v6303, %v5183
    %v6320 = vmul.f32 %v6304, %v5184
    %v6321 = vmul.f32 %v6305, %v5185
    %v6322 = vmul.f32 %v6306, %v5186
    %v6323 = vmul.f32 %v6307, %v5187
    %v6324 = vmul.f32 %v6308, %v5188
    %v6325 = vmul.f32 %v6309, %v5189
    %v6326 = vmul.f32 %v6310, %v5190
    %v6327 = vmul.f32 %v6311, %v5191
    %v6328 = vmul.f32 %v6312, %v5192
    %v6329 = vmul.f32 %v6313, %v5193
    %v6330 = vmul.f32 %v6314, %v5194
    %v6331 = vmul.f32 %v6315, %v5195
    %v6332 = vmul.f32 %v6316, %v5196
    %v6333 = vmul.f32 %v6317, %v5197
    %v6334 = vmul.f32 %v6318, %v5198
    %v6335 = vsub.f32 2.2, %v4321
    %v6336 = vsub.f32 2.2, %v4326
    %v6337 = vsub.f32 2.2, %v4331
    %v6338 = vsub.f32 2.2, %v4336
    %v6339 = vsub.f32 2.2, %v4341
    %v6340 = vsub.f32 2.2, %v4346
    %v6341 = vsub.f32 2.2, %v4351
    %v6342 = vsub.f32 2.2, %v4356
    %v6343 = vsub.f32 2.2, %v4361
    %v6344 = vsub.f32 2.2, %v4366
    %v6345 = vsub.f32 2.2, %v4371
    %v6346 = vsub.f32 2.2, %v4376
    %v6347 = vsub.f32 2.2, %v4381
    %v6348 = vsub.f32 2.2, %v4386
    %v6349 = vsub.f32 2.2, %v4391
    %v6350 = vsub.f32 2.2, %v4396
    %v6351 = vmul.f32 %v6335, 2.5
    %v6352 = vmul.f32 %v6336, 2.5
    %v6353 = vmul.f32 %v6337, 2.5
    %v6354 = vmul.f32 %v6338, 2.5
    %v6355 = vmul.f32 %v6339, 2.5
    %v6356 = vmul.f32 %v6340, 2.5
    %v6357 = vmul.f32 %v6341, 2.5
    %v6358 = vmul.f32 %v6342, 2.5
    %v6359 = vmul.f32 %v6343, 2.5
    %v6360 = vmul.f32 %v6344, 2.5
    %v6361 = vmul.f32 %v6345, 2.5
    %v6362 = vmul.f32 %v6346, 2.5
    %v6363 = vmul.f32 %v6347, 2.5
    %v6364 = vmul.f32 %v6348, 2.5
    %v6365 = vmul.f32 %v6349, 2.5
    %v6366 = vmul.f32 %v6350, 2.5
    %v6367 = vmul.f32 %v6351, %v5263
    %v6368 = vmul.f32 %v6352, %v5264
    %v6369 = vmul.f32 %v6353, %v5265
    %v6370 = vmul.f32 %v6354, %v5266
    %v6371 = vmul.f32 %v6355, %v5267
    %v6372 = vmul.f32 %v6356, %v5268
    %v6373 = vmul.f32 %v6357, %v5269
    %v6374 = vmul.f32 %v6358, %v5270
    %v6375 = vmul.f32 %v6359, %v5271
    %v6376 = vmul.f32 %v6360, %v5272
    %v6377 = vmul.f32 %v6361, %v5273
    %v6378 = vmul.f32 %v6362, %v5274
    %v6379 = vmul.f32 %v6363, %v5275
    %v6380 = vmul.f32 %v6364, %v5276
    %v6381 = vmul.f32 %v6365, %v5277
    %v6382 = vmul.f32 %v6366, %v5278
    %v6383 = vadd.f32 %v6319, %v6367
    %v6384 = vadd.f32 %v6320, %v6368
    %v6385 = vadd.f32 %v6321, %v6369
    %v6386 = vadd.f32 %v6322, %v6370
    %v6387 = vadd.f32 %v6323, %v6371
    %v6388 = vadd.f32 %v6324, %v6372
    %v6389 = vadd.f32 %v6325, %v6373
    %v6390 = vadd.f32 %v6326, %v6374
    %v6391 = vadd.f32 %v6327, %v6375
    %v6392 = vadd.f32 %v6328, %v6376
    %v6393 = vadd.f32 %v6329, %v6377
    %v6394 = vadd.f32 %v6330, %v6378
    %v6395 = vadd.f32 %v6331, %v6379
    %v6396 = vadd.f32 %v6332, %v6380
    %v6397 = vadd.f32 %v6333, %v6381
    %v6398 = vadd.f32 %v6334, %v6382
    %v6399 = vmul.f32 %v5279, 1.25
    %v6400 = vmul.f32 %v5280, 1.25
    %v6401 = vmul.f32 %v5281, 1.25
    %v6402 = vmul.f32 %v5282, 1.25
    %v6403 = vmul.f32 %v5283, 1.25
    %v6404 = vmul.f32 %v5284, 1.25
    %v6405 = vmul.f32 %v5285, 1.25
    %v6406 = vmul.f32 %v5286, 1.25
    %v6407 = vmul.f32 %v5287, 1.25
    %v6408 = vmul.f32 %v5288, 1.25
    %v6409 = vmul.f32 %v5289, 1.25
    %v6410 = vmul.f32 %v5290, 1.25
    %v6411 = vmul.f32 %v5291, 1.25
    %v6412 = vmul.f32 %v5292, 1.25
    %v6413 = vmul.f32 %v5293, 1.25
    %v6414 = vmul.f32 %v5294, 1.25
    %v6415 = vmul.f32 %v6399, %v5375
    %v6416 = vmul.f32 %v6400, %v5376
    %v6417 = vmul.f32 %v6401, %v5377
    %v6418 = vmul.f32 %v6402, %v5378
    %v6419 = vmul.f32 %v6403, %v5379
    %v6420 = vmul.f32 %v6404, %v5380
    %v6421 = vmul.f32 %v6405, %v5381
    %v6422 = vmul.f32 %v6406, %v5382
    %v6423 = vmul.f32 %v6407, %v5383
    %v6424 = vmul.f32 %v6408, %v5384
    %v6425 = vmul.f32 %v6409, %v5385
    %v6426 = vmul.f32 %v6410, %v5386
    %v6427 = vmul.f32 %v6411, %v5387
    %v6428 = vmul.f32 %v6412, %v5388
    %v6429 = vmul.f32 %v6413, %v5389
    %v6430 = vmul.f32 %v6414, %v5390
    %v6431 = vmul.f32 %v5439, 1.25
    %v6432 = vmul.f32 %v5440, 1.25
    %v6433 = vmul.f32 %v5441, 1.25
    %v6434 = vmul.f32 %v5442, 1.25
    %v6435 = vmul.f32 %v5443, 1.25
    %v6436 = vmul.f32 %v5444, 1.25
    %v6437 = vmul.f32 %v5445, 1.25
    %v6438 = vmul.f32 %v5446, 1.25
    %v6439 = vmul.f32 %v5447, 1.25
    %v6440 = vmul.f32 %v5448, 1.25
    %v6441 = vmul.f32 %v5449, 1.25
    %v6442 = vmul.f32 %v5450, 1.25
    %v6443 = vmul.f32 %v5451, 1.25
    %v6444 = vmul.f32 %v5452, 1.25
    %v6445 = vmul.f32 %v5453, 1.25
    %v6446 = vmul.f32 %v5454, 1.25
    %v6447 = vmul.f32 %v6431, %v5487
    %v6448 = vmul.f32 %v6432, %v5488
    %v6449 = vmul.f32 %v6433, %v5489
    %v6450 = vmul.f32 %v6434, %v5490
    %v6451 = vmul.f32 %v6435, %v5491
    %v6452 = vmul.f32 %v6436, %v5492
    %v6453 = vmul.f32 %v6437, %v5493
    %v6454 = vmul.f32 %v6438, %v5494
    %v6455 = vmul.f32 %v6439, %v5495
    %v6456 = vmul.f32 %v6440, %v5496
    %v6457 = vmul.f32 %v6441, %v5497
    %v6458 = vmul.f32 %v6442, %v5498
    %v6459 = vmul.f32 %v6443, %v5499
    %v6460 = vmul.f32 %v6444, %v5500
    %v6461 = vmul.f32 %v6445, %v5501
    %v6462 = vmul.f32 %v6446, %v5502
    %v6463 = vadd.f32 %v6415, %v6447
    %v6464 = vadd.f32 %v6416, %v6448
    %v6465 = vadd.f32 %v6417, %v6449
    %v6466 = vadd.f32 %v6418, %v6450
    %v6467 = vadd.f32 %v6419, %v6451
    %v6468 = vadd.f32 %v6420, %v6452
    %v6469 = vadd.f32 %v6421, %v6453
    %v6470 = vadd.f32 %v6422, %v6454
    %v6471 = vadd.f32 %v6423, %v6455
    %v6472 = vadd.f32 %v6424, %v6456
    %v6473 = vadd.f32 %v6425, %v6457
    %v6474 = vadd.f32 %v6426, %v6458
    %v6475 = vadd.f32 %v6427, %v6459
    %v6476 = vadd.f32 %v6428, %v6460
    %v6477 = vadd.f32 %v6429, %v6461
    %v6478 = vadd.f32 %v6430, %v6462
    %v6479 = vmul.f32 %v5391, 1.25
    %v6480 = vmul.f32 %v5392, 1.25
    %v6481 = vmul.f32 %v5393, 1.25
    %v6482 = vmul.f32 %v5394, 1.25
    %v6483 = vmul.f32 %v5395, 1.25
    %v6484 = vmul.f32 %v5396, 1.25
    %v6485 = vmul.f32 %v5397, 1.25
    %v6486 = vmul.f32 %v5398, 1.25
    %v6487 = vmul.f32 %v5399, 1.25
    %v6488 = vmul.f32 %v5400, 1.25
    %v6489 = vmul.f32 %v5401, 1.25
    %v6490 = vmul.f32 %v5402, 1.25
    %v6491 = vmul.f32 %v5403, 1.25
    %v6492 = vmul.f32 %v5404, 1.25
    %v6493 = vmul.f32 %v5405, 1.25
    %v6494 = vmul.f32 %v5406, 1.25
    %v6495 = vmul.f32 %v6479, %v5487
    %v6496 = vmul.f32 %v6480, %v5488
    %v6497 = vmul.f32 %v6481, %v5489
    %v6498 = vmul.f32 %v6482, %v5490
    %v6499 = vmul.f32 %v6483, %v5491
    %v6500 = vmul.f32 %v6484, %v5492
    %v6501 = vmul.f32 %v6485, %v5493
    %v6502 = vmul.f32 %v6486, %v5494
    %v6503 = vmul.f32 %v6487, %v5495
    %v6504 = vmul.f32 %v6488, %v5496
    %v6505 = vmul.f32 %v6489, %v5497
    %v6506 = vmul.f32 %v6490, %v5498
    %v6507 = vmul.f32 %v6491, %v5499
    %v6508 = vmul.f32 %v6492, %v5500
    %v6509 = vmul.f32 %v6493, %v5501
    %v6510 = vmul.f32 %v6494, %v5502
    %v6511 = vmul.f32 %v5551, 1.25
    %v6512 = vmul.f32 %v5552, 1.25
    %v6513 = vmul.f32 %v5553, 1.25
    %v6514 = vmul.f32 %v5554, 1.25
    %v6515 = vmul.f32 %v5555, 1.25
    %v6516 = vmul.f32 %v5556, 1.25
    %v6517 = vmul.f32 %v5557, 1.25
    %v6518 = vmul.f32 %v5558, 1.25
    %v6519 = vmul.f32 %v5559, 1.25
    %v6520 = vmul.f32 %v5560, 1.25
    %v6521 = vmul.f32 %v5561, 1.25
    %v6522 = vmul.f32 %v5562, 1.25
    %v6523 = vmul.f32 %v5563, 1.25
    %v6524 = vmul.f32 %v5564, 1.25
    %v6525 = vmul.f32 %v5565, 1.25
    %v6526 = vmul.f32 %v5566, 1.25
    %v6527 = vmul.f32 %v6511, %v5599
    %v6528 = vmul.f32 %v6512, %v5600
    %v6529 = vmul.f32 %v6513, %v5601
    %v6530 = vmul.f32 %v6514, %v5602
    %v6531 = vmul.f32 %v6515, %v5603
    %v6532 = vmul.f32 %v6516, %v5604
    %v6533 = vmul.f32 %v6517, %v5605
    %v6534 = vmul.f32 %v6518, %v5606
    %v6535 = vmul.f32 %v6519, %v5607
    %v6536 = vmul.f32 %v6520, %v5608
    %v6537 = vmul.f32 %v6521, %v5609
    %v6538 = vmul.f32 %v6522, %v5610
    %v6539 = vmul.f32 %v6523, %v5611
    %v6540 = vmul.f32 %v6524, %v5612
    %v6541 = vmul.f32 %v6525, %v5613
    %v6542 = vmul.f32 %v6526, %v5614
    %v6543 = vadd.f32 %v6495, %v6527
    %v6544 = vadd.f32 %v6496, %v6528
    %v6545 = vadd.f32 %v6497, %v6529
    %v6546 = vadd.f32 %v6498, %v6530
    %v6547 = vadd.f32 %v6499, %v6531
    %v6548 = vadd.f32 %v6500, %v6532
    %v6549 = vadd.f32 %v6501, %v6533
    %v6550 = vadd.f32 %v6502, %v6534
    %v6551 = vadd.f32 %v6503, %v6535
    %v6552 = vadd.f32 %v6504, %v6536
    %v6553 = vadd.f32 %v6505, %v6537
    %v6554 = vadd.f32 %v6506, %v6538
    %v6555 = vadd.f32 %v6507, %v6539
    %v6556 = vadd.f32 %v6508, %v6540
    %v6557 = vadd.f32 %v6509, %v6541
    %v6558 = vadd.f32 %v6510, %v6542
    %v6559 = vmul.f32 %v5503, 1.25
    %v6560 = vmul.f32 %v5504, 1.25
    %v6561 = vmul.f32 %v5505, 1.25
    %v6562 = vmul.f32 %v5506, 1.25
    %v6563 = vmul.f32 %v5507, 1.25
    %v6564 = vmul.f32 %v5508, 1.25
    %v6565 = vmul.f32 %v5509, 1.25
    %v6566 = vmul.f32 %v5510, 1.25
    %v6567 = vmul.f32 %v5511, 1.25
    %v6568 = vmul.f32 %v5512, 1.25
    %v6569 = vmul.f32 %v5513, 1.25
    %v6570 = vmul.f32 %v5514, 1.25
    %v6571 = vmul.f32 %v5515, 1.25
    %v6572 = vmul.f32 %v5516, 1.25
    %v6573 = vmul.f32 %v5517, 1.25
    %v6574 = vmul.f32 %v5518, 1.25
    %v6575 = vmul.f32 %v6559, %v5599
    %v6576 = vmul.f32 %v6560, %v5600
    %v6577 = vmul.f32 %v6561, %v5601
    %v6578 = vmul.f32 %v6562, %v5602
    %v6579 = vmul.f32 %v6563, %v5603
    %v6580 = vmul.f32 %v6564, %v5604
    %v6581 = vmul.f32 %v6565, %v5605
    %v6582 = vmul.f32 %v6566, %v5606
    %v6583 = vmul.f32 %v6567, %v5607
    %v6584 = vmul.f32 %v6568, %v5608
    %v6585 = vmul.f32 %v6569, %v5609
    %v6586 = vmul.f32 %v6570, %v5610
    %v6587 = vmul.f32 %v6571, %v5611
    %v6588 = vmul.f32 %v6572, %v5612
    %v6589 = vmul.f32 %v6573, %v5613
    %v6590 = vmul.f32 %v6574, %v5614
    %v6591 = vmul.f32 %v5663, 1.25
    %v6592 = vmul.f32 %v5664, 1.25
    %v6593 = vmul.f32 %v5665, 1.25
    %v6594 = vmul.f32 %v5666, 1.25
    %v6595 = vmul.f32 %v5667, 1.25
    %v6596 = vmul.f32 %v5668, 1.25
    %v6597 = vmul.f32 %v5669, 1.25
    %v6598 = vmul.f32 %v5670, 1.25
    %v6599 = vmul.f32 %v5671, 1.25
    %v6600 = vmul.f32 %v5672, 1.25
    %v6601 = vmul.f32 %v5673, 1.25
    %v6602 = vmul.f32 %v5674, 1.25
    %v6603 = vmul.f32 %v5675, 1.25
    %v6604 = vmul.f32 %v5676, 1.25
    %v6605 = vmul.f32 %v5677, 1.25
    %v6606 = vmul.f32 %v5678, 1.25
    %v6607 = vmul.f32 %v6591, %v5711
    %v6608 = vmul.f32 %v6592, %v5712
    %v6609 = vmul.f32 %v6593, %v5713
    %v6610 = vmul.f32 %v6594, %v5714
    %v6611 = vmul.f32 %v6595, %v5715
    %v6612 = vmul.f32 %v6596, %v5716
    %v6613 = vmul.f32 %v6597, %v5717
    %v6614 = vmul.f32 %v6598, %v5718
    %v6615 = vmul.f32 %v6599, %v5719
    %v6616 = vmul.f32 %v6600, %v5720
    %v6617 = vmul.f32 %v6601, %v5721
    %v6618 = vmul.f32 %v6602, %v5722
    %v6619 = vmul.f32 %v6603, %v5723
    %v6620 = vmul.f32 %v6604, %v5724
    %v6621 = vmul.f32 %v6605, %v5725
    %v6622 = vmul.f32 %v6606, %v5726
    %v6623 = vadd.f32 %v6575, %v6607
    %v6624 = vadd.f32 %v6576, %v6608
    %v6625 = vadd.f32 %v6577, %v6609
    %v6626 = vadd.f32 %v6578, %v6610
    %v6627 = vadd.f32 %v6579, %v6611
    %v6628 = vadd.f32 %v6580, %v6612
    %v6629 = vadd.f32 %v6581, %v6613
    %v6630 = vadd.f32 %v6582, %v6614
    %v6631 = vadd.f32 %v6583, %v6615
    %v6632 = vadd.f32 %v6584, %v6616
    %v6633 = vadd.f32 %v6585, %v6617
    %v6634 = vadd.f32 %v6586, %v6618
    %v6635 = vadd.f32 %v6587, %v6619
    %v6636 = vadd.f32 %v6588, %v6620
    %v6637 = vadd.f32 %v6589, %v6621
    %v6638 = vadd.f32 %v6590, %v6622
    %v6639 = vmul.f32 %v5615, 1.25
    %v6640 = vmul.f32 %v5616, 1.25
    %v6641 = vmul.f32 %v5617, 1.25
    %v6642 = vmul.f32 %v5618, 1.25
    %v6643 = vmul.f32 %v5619, 1.25
    %v6644 = vmul.f32 %v5620, 1.25
    %v6645 = vmul.f32 %v5621, 1.25
    %v6646 = vmul.f32 %v5622, 1.25
    %v6647 = vmul.f32 %v5623, 1.25
    %v6648 = vmul.f32 %v5624, 1.25
    %v6649 = vmul.f32 %v5625, 1.25
    %v6650 = vmul.f32 %v5626, 1.25
    %v6651 = vmul.f32 %v5627, 1.25
    %v6652 = vmul.f32 %v5628, 1.25
    %v6653 = vmul.f32 %v5629, 1.25
    %v6654 = vmul.f32 %v5630, 1.25
    %v6655 = vmul.f32 %v6639, %v5711
    %v6656 = vmul.f32 %v6640, %v5712
    %v6657 = vmul.f32 %v6641, %v5713
    %v6658 = vmul.f32 %v6642, %v5714
    %v6659 = vmul.f32 %v6643, %v5715
    %v6660 = vmul.f32 %v6644, %v5716
    %v6661 = vmul.f32 %v6645, %v5717
    %v6662 = vmul.f32 %v6646, %v5718
    %v6663 = vmul.f32 %v6647, %v5719
    %v6664 = vmul.f32 %v6648, %v5720
    %v6665 = vmul.f32 %v6649, %v5721
    %v6666 = vmul.f32 %v6650, %v5722
    %v6667 = vmul.f32 %v6651, %v5723
    %v6668 = vmul.f32 %v6652, %v5724
    %v6669 = vmul.f32 %v6653, %v5725
    %v6670 = vmul.f32 %v6654, %v5726
    %v6671 = vmul.f32 %v5775, 1.25
    %v6672 = vmul.f32 %v5776, 1.25
    %v6673 = vmul.f32 %v5777, 1.25
    %v6674 = vmul.f32 %v5778, 1.25
    %v6675 = vmul.f32 %v5779, 1.25
    %v6676 = vmul.f32 %v5780, 1.25
    %v6677 = vmul.f32 %v5781, 1.25
    %v6678 = vmul.f32 %v5782, 1.25
    %v6679 = vmul.f32 %v5783, 1.25
    %v6680 = vmul.f32 %v5784, 1.25
    %v6681 = vmul.f32 %v5785, 1.25
    %v6682 = vmul.f32 %v5786, 1.25
    %v6683 = vmul.f32 %v5787, 1.25
    %v6684 = vmul.f32 %v5788, 1.25
    %v6685 = vmul.f32 %v5789, 1.25
    %v6686 = vmul.f32 %v5790, 1.25
    %v6687 = vmul.f32 %v6671, %v5823
    %v6688 = vmul.f32 %v6672, %v5824
    %v6689 = vmul.f32 %v6673, %v5825
    %v6690 = vmul.f32 %v6674, %v5826
    %v6691 = vmul.f32 %v6675, %v5827
    %v6692 = vmul.f32 %v6676, %v5828
    %v6693 = vmul.f32 %v6677, %v5829
    %v6694 = vmul.f32 %v6678, %v5830
    %v6695 = vmul.f32 %v6679, %v5831
    %v6696 = vmul.f32 %v6680, %v5832
    %v6697 = vmul.f32 %v6681, %v5833
    %v6698 = vmul.f32 %v6682, %v5834
    %v6699 = vmul.f32 %v6683, %v5835
    %v6700 = vmul.f32 %v6684, %v5836
    %v6701 = vmul.f32 %v6685, %v5837
    %v6702 = vmul.f32 %v6686, %v5838
    %v6703 = vadd.f32 %v6655, %v6687
    %v6704 = vadd.f32 %v6656, %v6688
    %v6705 = vadd.f32 %v6657, %v6689
    %v6706 = vadd.f32 %v6658, %v6690
    %v6707 = vadd.f32 %v6659, %v6691
    %v6708 = vadd.f32 %v6660, %v6692
    %v6709 = vadd.f32 %v6661, %v6693
    %v6710 = vadd.f32 %v6662, %v6694
    %v6711 = vadd.f32 %v6663, %v6695
    %v6712 = vadd.f32 %v6664, %v6696
    %v6713 = vadd.f32 %v6665, %v6697
    %v6714 = vadd.f32 %v6666, %v6698
    %v6715 = vadd.f32 %v6667, %v6699
    %v6716 = vadd.f32 %v6668, %v6700
    %v6717 = vadd.f32 %v6669, %v6701
    %v6718 = vadd.f32 %v6670, %v6702
    %v6719 = vmul.f32 %v5727, 1.25
    %v6720 = vmul.f32 %v5728, 1.25
    %v6721 = vmul.f32 %v5729, 1.25
    %v6722 = vmul.f32 %v5730, 1.25
    %v6723 = vmul.f32 %v5731, 1.25
    %v6724 = vmul.f32 %v5732, 1.25
    %v6725 = vmul.f32 %v5733, 1.25
    %v6726 = vmul.f32 %v5734, 1.25
    %v6727 = vmul.f32 %v5735, 1.25
    %v6728 = vmul.f32 %v5736, 1.25
    %v6729 = vmul.f32 %v5737, 1.25
    %v6730 = vmul.f32 %v5738, 1.25
    %v6731 = vmul.f32 %v5739, 1.25
    %v6732 = vmul.f32 %v5740, 1.25
    %v6733 = vmul.f32 %v5741, 1.25
    %v6734 = vmul.f32 %v5742, 1.25
    %v6735 = vmul.f32 %v6719, %v5823
    %v6736 = vmul.f32 %v6720, %v5824
    %v6737 = vmul.f32 %v6721, %v5825
    %v6738 = vmul.f32 %v6722, %v5826
    %v6739 = vmul.f32 %v6723, %v5827
    %v6740 = vmul.f32 %v6724, %v5828
    %v6741 = vmul.f32 %v6725, %v5829
    %v6742 = vmul.f32 %v6726, %v5830
    %v6743 = vmul.f32 %v6727, %v5831
    %v6744 = vmul.f32 %v6728, %v5832
    %v6745 = vmul.f32 %v6729, %v5833
    %v6746 = vmul.f32 %v6730, %v5834
    %v6747 = vmul.f32 %v6731, %v5835
    %v6748 = vmul.f32 %v6732, %v5836
    %v6749 = vmul.f32 %v6733, %v5837
    %v6750 = vmul.f32 %v6734, %v5838
    %v6751 = vmul.f32 %v5887, 1.25
    %v6752 = vmul.f32 %v5888, 1.25
    %v6753 = vmul.f32 %v5889, 1.25
    %v6754 = vmul.f32 %v5890, 1.25
    %v6755 = vmul.f32 %v5891, 1.25
    %v6756 = vmul.f32 %v5892, 1.25
    %v6757 = vmul.f32 %v5893, 1.25
    %v6758 = vmul.f32 %v5894, 1.25
    %v6759 = vmul.f32 %v5895, 1.25
    %v6760 = vmul.f32 %v5896, 1.25
    %v6761 = vmul.f32 %v5897, 1.25
    %v6762 = vmul.f32 %v5898, 1.25
    %v6763 = vmul.f32 %v5899, 1.25
    %v6764 = vmul.f32 %v5900, 1.25
    %v6765 = vmul.f32 %v5901, 1.25
    %v6766 = vmul.f32 %v5902, 1.25
    %v6767 = vmul.f32 %v6751, %v5935
    %v6768 = vmul.f32 %v6752, %v5936
    %v6769 = vmul.f32 %v6753, %v5937
    %v6770 = vmul.f32 %v6754, %v5938
    %v6771 = vmul.f32 %v6755, %v5939
    %v6772 = vmul.f32 %v6756, %v5940
    %v6773 = vmul.f32 %v6757, %v5941
    %v6774 = vmul.f32 %v6758, %v5942
    %v6775 = vmul.f32 %v6759, %v5943
    %v6776 = vmul.f32 %v6760, %v5944
    %v6777 = vmul.f32 %v6761, %v5945
    %v6778 = vmul.f32 %v6762, %v5946
    %v6779 = vmul.f32 %v6763, %v5947
    %v6780 = vmul.f32 %v6764, %v5948
    %v6781 = vmul.f32 %v6765, %v5949
    %v6782 = vmul.f32 %v6766, %v5950
    %v6783 = vadd.f32 %v6735, %v6767
    %v6784 = vadd.f32 %v6736, %v6768
    %v6785 = vadd.f32 %v6737, %v6769
    %v6786 = vadd.f32 %v6738, %v6770
    %v6787 = vadd.f32 %v6739, %v6771
    %v6788 = vadd.f32 %v6740, %v6772
    %v6789 = vadd.f32 %v6741, %v6773
    %v6790 = vadd.f32 %v6742, %v6774
    %v6791 = vadd.f32 %v6743, %v6775
    %v6792 = vadd.f32 %v6744, %v6776
    %v6793 = vadd.f32 %v6745, %v6777
    %v6794 = vadd.f32 %v6746, %v6778
    %v6795 = vadd.f32 %v6747, %v6779
    %v6796 = vadd.f32 %v6748, %v6780
    %v6797 = vadd.f32 %v6749, %v6781
    %v6798 = vadd.f32 %v6750, %v6782
    %v6799 = vmul.f32 %v5839, 1.25
    %v6800 = vmul.f32 %v5840, 1.25
    %v6801 = vmul.f32 %v5841, 1.25
    %v6802 = vmul.f32 %v5842, 1.25
    %v6803 = vmul.f32 %v5843, 1.25
    %v6804 = vmul.f32 %v5844, 1.25
    %v6805 = vmul.f32 %v5845, 1.25
    %v6806 = vmul.f32 %v5846, 1.25
    %v6807 = vmul.f32 %v5847, 1.25
    %v6808 = vmul.f32 %v5848, 1.25
    %v6809 = vmul.f32 %v5849, 1.25
    %v6810 = vmul.f32 %v5850, 1.25
    %v6811 = vmul.f32 %v5851, 1.25
    %v6812 = vmul.f32 %v5852, 1.25
    %v6813 = vmul.f32 %v5853, 1.25
    %v6814 = vmul.f32 %v5854, 1.25
    %v6815 = vmul.f32 %v6799, %v5935
    %v6816 = vmul.f32 %v6800, %v5936
    %v6817 = vmul.f32 %v6801, %v5937
    %v6818 = vmul.f32 %v6802, %v5938
    %v6819 = vmul.f32 %v6803, %v5939
    %v6820 = vmul.f32 %v6804, %v5940
    %v6821 = vmul.f32 %v6805, %v5941
    %v6822 = vmul.f32 %v6806, %v5942
    %v6823 = vmul.f32 %v6807, %v5943
    %v6824 = vmul.f32 %v6808, %v5944
    %v6825 = vmul.f32 %v6809, %v5945
    %v6826 = vmul.f32 %v6810, %v5946
    %v6827 = vmul.f32 %v6811, %v5947
    %v6828 = vmul.f32 %v6812, %v5948
    %v6829 = vmul.f32 %v6813, %v5949
    %v6830 = vmul.f32 %v6814, %v5950
    %v6831 = vmul.f32 %v5999, 1.25
    %v6832 = vmul.f32 %v6000, 1.25
    %v6833 = vmul.f32 %v6001, 1.25
    %v6834 = vmul.f32 %v6002, 1.25
    %v6835 = vmul.f32 %v6003, 1.25
    %v6836 = vmul.f32 %v6004, 1.25
    %v6837 = vmul.f32 %v6005, 1.25
    %v6838 = vmul.f32 %v6006, 1.25
    %v6839 = vmul.f32 %v6007, 1.25
    %v6840 = vmul.f32 %v6008, 1.25
    %v6841 = vmul.f32 %v6009, 1.25
    %v6842 = vmul.f32 %v6010, 1.25
    %v6843 = vmul.f32 %v6011, 1.25
    %v6844 = vmul.f32 %v6012, 1.25
    %v6845 = vmul.f32 %v6013, 1.25
    %v6846 = vmul.f32 %v6014, 1.25
    %v6847 = vmul.f32 %v6831, %v6047
    %v6848 = vmul.f32 %v6832, %v6048
    %v6849 = vmul.f32 %v6833, %v6049
    %v6850 = vmul.f32 %v6834, %v6050
    %v6851 = vmul.f32 %v6835, %v6051
    %v6852 = vmul.f32 %v6836, %v6052
    %v6853 = vmul.f32 %v6837, %v6053
    %v6854 = vmul.f32 %v6838, %v6054
    %v6855 = vmul.f32 %v6839, %v6055
    %v6856 = vmul.f32 %v6840, %v6056
    %v6857 = vmul.f32 %v6841, %v6057
    %v6858 = vmul.f32 %v6842, %v6058
    %v6859 = vmul.f32 %v6843, %v6059
    %v6860 = vmul.f32 %v6844, %v6060
    %v6861 = vmul.f32 %v6845, %v6061
    %v6862 = vmul.f32 %v6846, %v6062
    %v6863 = vadd.f32 %v6815, %v6847
    %v6864 = vadd.f32 %v6816, %v6848
    %v6865 = vadd.f32 %v6817, %v6849
    %v6866 = vadd.f32 %v6818, %v6850
    %v6867 = vadd.f32 %v6819, %v6851
    %v6868 = vadd.f32 %v6820, %v6852
    %v6869 = vadd.f32 %v6821, %v6853
    %v6870 = vadd.f32 %v6822, %v6854
    %v6871 = vadd.f32 %v6823, %v6855
    %v6872 = vadd.f32 %v6824, %v6856
    %v6873 = vadd.f32 %v6825, %v6857
    %v6874 = vadd.f32 %v6826, %v6858
    %v6875 = vadd.f32 %v6827, %v6859
    %v6876 = vadd.f32 %v6828, %v6860
    %v6877 = vadd.f32 %v6829, %v6861
    %v6878 = vadd.f32 %v6830, %v6862
    %v6879 = vmul.f32 %v5951, 1.25
    %v6880 = vmul.f32 %v5952, 1.25
    %v6881 = vmul.f32 %v5953, 1.25
    %v6882 = vmul.f32 %v5954, 1.25
    %v6883 = vmul.f32 %v5955, 1.25
    %v6884 = vmul.f32 %v5956, 1.25
    %v6885 = vmul.f32 %v5957, 1.25
    %v6886 = vmul.f32 %v5958, 1.25
    %v6887 = vmul.f32 %v5959, 1.25
    %v6888 = vmul.f32 %v5960, 1.25
    %v6889 = vmul.f32 %v5961, 1.25
    %v6890 = vmul.f32 %v5962, 1.25
    %v6891 = vmul.f32 %v5963, 1.25
    %v6892 = vmul.f32 %v5964, 1.25
    %v6893 = vmul.f32 %v5965, 1.25
    %v6894 = vmul.f32 %v5966, 1.25
    %v6895 = vmul.f32 %v6879, %v6047
    %v6896 = vmul.f32 %v6880, %v6048
    %v6897 = vmul.f32 %v6881, %v6049
    %v6898 = vmul.f32 %v6882, %v6050
    %v6899 = vmul.f32 %v6883, %v6051
    %v6900 = vmul.f32 %v6884, %v6052
    %v6901 = vmul.f32 %v6885, %v6053
    %v6902 = vmul.f32 %v6886, %v6054
    %v6903 = vmul.f32 %v6887, %v6055
    %v6904 = vmul.f32 %v6888, %v6056
    %v6905 = vmul.f32 %v6889, %v6057
    %v6906 = vmul.f32 %v6890, %v6058
    %v6907 = vmul.f32 %v6891, %v6059
    %v6908 = vmul.f32 %v6892, %v6060
    %v6909 = vmul.f32 %v6893, %v6061
    %v6910 = vmul.f32 %v6894, %v6062
    %v6911 = vmul.f32 %v6111, 1.25
    %v6912 = vmul.f32 %v6112, 1.25
    %v6913 = vmul.f32 %v6113, 1.25
    %v6914 = vmul.f32 %v6114, 1.25
    %v6915 = vmul.f32 %v6115, 1.25
    %v6916 = vmul.f32 %v6116, 1.25
    %v6917 = vmul.f32 %v6117, 1.25
    %v6918 = vmul.f32 %v6118, 1.25
    %v6919 = vmul.f32 %v6119, 1.25
    %v6920 = vmul.f32 %v6120, 1.25
    %v6921 = vmul.f32 %v6121, 1.25
    %v6922 = vmul.f32 %v6122, 1.25
    %v6923 = vmul.f32 %v6123, 1.25
    %v6924 = vmul.f32 %v6124, 1.25
    %v6925 = vmul.f32 %v6125, 1.25
    %v6926 = vmul.f32 %v6126, 1.25
    %v6927 = vmul.f32 %v6911, %v6159
    %v6928 = vmul.f32 %v6912, %v6160
    %v6929 = vmul.f32 %v6913, %v6161
    %v6930 = vmul.f32 %v6914, %v6162
    %v6931 = vmul.f32 %v6915, %v6163
    %v6932 = vmul.f32 %v6916, %v6164
    %v6933 = vmul.f32 %v6917, %v6165
    %v6934 = vmul.f32 %v6918, %v6166
    %v6935 = vmul.f32 %v6919, %v6167
    %v6936 = vmul.f32 %v6920, %v6168
    %v6937 = vmul.f32 %v6921, %v6169
    %v6938 = vmul.f32 %v6922, %v6170
    %v6939 = vmul.f32 %v6923, %v6171
    %v6940 = vmul.f32 %v6924, %v6172
    %v6941 = vmul.f32 %v6925, %v6173
    %v6942 = vmul.f32 %v6926, %v6174
    %v6943 = vadd.f32 %v6895, %v6927
    %v6944 = vadd.f32 %v6896, %v6928
    %v6945 = vadd.f32 %v6897, %v6929
    %v6946 = vadd.f32 %v6898, %v6930
    %v6947 = vadd.f32 %v6899, %v6931
    %v6948 = vadd.f32 %v6900, %v6932
    %v6949 = vadd.f32 %v6901, %v6933
    %v6950 = vadd.f32 %v6902, %v6934
    %v6951 = vadd.f32 %v6903, %v6935
    %v6952 = vadd.f32 %v6904, %v6936
    %v6953 = vadd.f32 %v6905, %v6937
    %v6954 = vadd.f32 %v6906, %v6938
    %v6955 = vadd.f32 %v6907, %v6939
    %v6956 = vadd.f32 %v6908, %v6940
    %v6957 = vadd.f32 %v6909, %v6941
    %v6958 = vadd.f32 %v6910, %v6942
    %v6959 = vmul.f32 %v6063, 1.25
    %v6960 = vmul.f32 %v6064, 1.25
    %v6961 = vmul.f32 %v6065, 1.25
    %v6962 = vmul.f32 %v6066, 1.25
    %v6963 = vmul.f32 %v6067, 1.25
    %v6964 = vmul.f32 %v6068, 1.25
    %v6965 = vmul.f32 %v6069, 1.25
    %v6966 = vmul.f32 %v6070, 1.25
    %v6967 = vmul.f32 %v6071, 1.25
    %v6968 = vmul.f32 %v6072, 1.25
    %v6969 = vmul.f32 %v6073, 1.25
    %v6970 = vmul.f32 %v6074, 1.25
    %v6971 = vmul.f32 %v6075, 1.25
    %v6972 = vmul.f32 %v6076, 1.25
    %v6973 = vmul.f32 %v6077, 1.25
    %v6974 = vmul.f32 %v6078, 1.25
    %v6975 = vmul.f32 %v6959, %v6159
    %v6976 = vmul.f32 %v6960, %v6160
    %v6977 = vmul.f32 %v6961, %v6161
    %v6978 = vmul.f32 %v6962, %v6162
    %v6979 = vmul.f32 %v6963, %v6163
    %v6980 = vmul.f32 %v6964, %v6164
    %v6981 = vmul.f32 %v6965, %v6165
    %v6982 = vmul.f32 %v6966, %v6166
    %v6983 = vmul.f32 %v6967, %v6167
    %v6984 = vmul.f32 %v6968, %v6168
    %v6985 = vmul.f32 %v6969, %v6169
    %v6986 = vmul.f32 %v6970, %v6170
    %v6987 = vmul.f32 %v6971, %v6171
    %v6988 = vmul.f32 %v6972, %v6172
    %v6989 = vmul.f32 %v6973, %v6173
    %v6990 = vmul.f32 %v6974, %v6174
    %v6991 = vmul.f32 %v6223, 1.25
    %v6992 = vmul.f32 %v6224, 1.25
    %v6993 = vmul.f32 %v6225, 1.25
    %v6994 = vmul.f32 %v6226, 1.25
    %v6995 = vmul.f32 %v6227, 1.25
    %v6996 = vmul.f32 %v6228, 1.25
    %v6997 = vmul.f32 %v6229, 1.25
    %v6998 = vmul.f32 %v6230, 1.25
    %v6999 = vmul.f32 %v6231, 1.25
    %v7000 = vmul.f32 %v6232, 1.25
    %v7001 = vmul.f32 %v6233, 1.25
    %v7002 = vmul.f32 %v6234, 1.25
    %v7003 = vmul.f32 %v6235, 1.25
    %v7004 = vmul.f32 %v6236, 1.25
    %v7005 = vmul.f32 %v6237, 1.25
    %v7006 = vmul.f32 %v6238, 1.25
    %v7007 = vmul.f32 %v6991, %v6271
    %v7008 = vmul.f32 %v6992, %v6272
    %v7009 = vmul.f32 %v6993, %v6273
    %v7010 = vmul.f32 %v6994, %v6274
    %v7011 = vmul.f32 %v6995, %v6275
    %v7012 = vmul.f32 %v6996, %v6276
    %v7013 = vmul.f32 %v6997, %v6277
    %v7014 = vmul.f32 %v6998, %v6278
    %v7015 = vmul.f32 %v6999, %v6279
    %v7016 = vmul.f32 %v7000, %v6280
    %v7017 = vmul.f32 %v7001, %v6281
    %v7018 = vmul.f32 %v7002, %v6282
    %v7019 = vmul.f32 %v7003, %v6283
    %v7020 = vmul.f32 %v7004, %v6284
    %v7021 = vmul.f32 %v7005, %v6285
    %v7022 = vmul.f32 %v7006, %v6286
    %v7023 = vadd.f32 %v6975, %v7007
    %v7024 = vadd.f32 %v6976, %v7008
    %v7025 = vadd.f32 %v6977, %v7009
    %v7026 = vadd.f32 %v6978, %v7010
    %v7027 = vadd.f32 %v6979, %v7011
    %v7028 = vadd.f32 %v6980, %v7012
    %v7029 = vadd.f32 %v6981, %v7013
    %v7030 = vadd.f32 %v6982, %v7014
    %v7031 = vadd.f32 %v6983, %v7015
    %v7032 = vadd.f32 %v6984, %v7016
    %v7033 = vadd.f32 %v6985, %v7017
    %v7034 = vadd.f32 %v6986, %v7018
    %v7035 = vadd.f32 %v6987, %v7019
    %v7036 = vadd.f32 %v6988, %v7020
    %v7037 = vadd.f32 %v6989, %v7021
    %v7038 = vadd.f32 %v6990, %v7022
    %v7039 = vmul.f32 %v6175, 1.25
    %v7040 = vmul.f32 %v6176, 1.25
    %v7041 = vmul.f32 %v6177, 1.25
    %v7042 = vmul.f32 %v6178, 1.25
    %v7043 = vmul.f32 %v6179, 1.25
    %v7044 = vmul.f32 %v6180, 1.25
    %v7045 = vmul.f32 %v6181, 1.25
    %v7046 = vmul.f32 %v6182, 1.25
    %v7047 = vmul.f32 %v6183, 1.25
    %v7048 = vmul.f32 %v6184, 1.25
    %v7049 = vmul.f32 %v6185, 1.25
    %v7050 = vmul.f32 %v6186, 1.25
    %v7051 = vmul.f32 %v6187, 1.25
    %v7052 = vmul.f32 %v6188, 1.25
    %v7053 = vmul.f32 %v6189, 1.25
    %v7054 = vmul.f32 %v6190, 1.25
    %v7055 = vmul.f32 %v7039, %v6271
    %v7056 = vmul.f32 %v7040, %v6272
    %v7057 = vmul.f32 %v7041, %v6273
    %v7058 = vmul.f32 %v7042, %v6274
    %v7059 = vmul.f32 %v7043, %v6275
    %v7060 = vmul.f32 %v7044, %v6276
    %v7061 = vmul.f32 %v7045, %v6277
    %v7062 = vmul.f32 %v7046, %v6278
    %v7063 = vmul.f32 %v7047, %v6279
    %v7064 = vmul.f32 %v7048, %v6280
    %v7065 = vmul.f32 %v7049, %v6281
    %v7066 = vmul.f32 %v7050, %v6282
    %v7067 = vmul.f32 %v7051, %v6283
    %v7068 = vmul.f32 %v7052, %v6284
    %v7069 = vmul.f32 %v7053, %v6285
    %v7070 = vmul.f32 %v7054, %v6286
    %v7071 = vmul.f32 %v6335, 1.25
    %v7072 = vmul.f32 %v6336, 1.25
    %v7073 = vmul.f32 %v6337, 1.25
    %v7074 = vmul.f32 %v6338, 1.25
    %v7075 = vmul.f32 %v6339, 1.25
    %v7076 = vmul.f32 %v6340, 1.25
    %v7077 = vmul.f32 %v6341, 1.25
    %v7078 = vmul.f32 %v6342, 1.25
    %v7079 = vmul.f32 %v6343, 1.25
    %v7080 = vmul.f32 %v6344, 1.25
    %v7081 = vmul.f32 %v6345, 1.25
    %v7082 = vmul.f32 %v6346, 1.25
    %v7083 = vmul.f32 %v6347, 1.25
    %v7084 = vmul.f32 %v6348, 1.25
    %v7085 = vmul.f32 %v6349, 1.25
    %v7086 = vmul.f32 %v6350, 1.25
    %v7087 = vmul.f32 %v7071, %v6383
    %v7088 = vmul.f32 %v7072, %v6384
    %v7089 = vmul.f32 %v7073, %v6385
    %v7090 = vmul.f32 %v7074, %v6386
    %v7091 = vmul.f32 %v7075, %v6387
    %v7092 = vmul.f32 %v7076, %v6388
    %v7093 = vmul.f32 %v7077, %v6389
    %v7094 = vmul.f32 %v7078, %v6390
    %v7095 = vmul.f32 %v7079, %v6391
    %v7096 = vmul.f32 %v7080, %v6392
    %v7097 = vmul.f32 %v7081, %v6393
    %v7098 = vmul.f32 %v7082, %v6394
    %v7099 = vmul.f32 %v7083, %v6395
    %v7100 = vmul.f32 %v7084, %v6396
    %v7101 = vmul.f32 %v7085, %v6397
    %v7102 = vmul.f32 %v7086, %v6398
    %v7103 = vadd.f32 %v7055, %v7087
    %v7104 = vadd.f32 %v7056, %v7088
    %v7105 = vadd.f32 %v7057, %v7089
    %v7106 = vadd.f32 %v7058, %v7090
    %v7107 = vadd.f32 %v7059, %v7091
    %v7108 = vadd.f32 %v7060, %v7092
    %v7109 = vadd.f32 %v7061, %v7093
    %v7110 = vadd.f32 %v7062, %v7094
    %v7111 = vadd.f32 %v7063, %v7095
    %v7112 = vadd.f32 %v7064, %v7096
    %v7113 = vadd.f32 %v7065, %v7097
    %v7114 = vadd.f32 %v7066, %v7098
    %v7115 = vadd.f32 %v7067, %v7099
    %v7116 = vadd.f32 %v7068, %v7100
    %v7117 = vadd.f32 %v7069, %v7101
    %v7118 = vadd.f32 %v7070, %v7102
    %v7119 = vmul.f32 %v5279, 0.8333333
    %v7120 = vmul.f32 %v5280, 0.8333333
    %v7121 = vmul.f32 %v5281, 0.8333333
    %v7122 = vmul.f32 %v5282, 0.8333333
    %v7123 = vmul.f32 %v5283, 0.8333333
    %v7124 = vmul.f32 %v5284, 0.8333333
    %v7125 = vmul.f32 %v5285, 0.8333333
    %v7126 = vmul.f32 %v5286, 0.8333333
    %v7127 = vmul.f32 %v5287, 0.8333333
    %v7128 = vmul.f32 %v5288, 0.8333333
    %v7129 = vmul.f32 %v5289, 0.8333333
    %v7130 = vmul.f32 %v5290, 0.8333333
    %v7131 = vmul.f32 %v5291, 0.8333333
    %v7132 = vmul.f32 %v5292, 0.8333333
    %v7133 = vmul.f32 %v5293, 0.8333333
    %v7134 = vmul.f32 %v5294, 0.8333333
    %v7135 = vmul.f32 %v7119, %v6463
    %v7136 = vmul.f32 %v7120, %v6464
    %v7137 = vmul.f32 %v7121, %v6465
    %v7138 = vmul.f32 %v7122, %v6466
    %v7139 = vmul.f32 %v7123, %v6467
    %v7140 = vmul.f32 %v7124, %v6468
    %v7141 = vmul.f32 %v7125, %v6469
    %v7142 = vmul.f32 %v7126, %v6470
    %v7143 = vmul.f32 %v7127, %v6471
    %v7144 = vmul.f32 %v7128, %v6472
    %v7145 = vmul.f32 %v7129, %v6473
    %v7146 = vmul.f32 %v7130, %v6474
    %v7147 = vmul.f32 %v7131, %v6475
    %v7148 = vmul.f32 %v7132, %v6476
    %v7149 = vmul.f32 %v7133, %v6477
    %v7150 = vmul.f32 %v7134, %v6478
    %v7151 = vmul.f32 %v5551, 0.8333333
    %v7152 = vmul.f32 %v5552, 0.8333333
    %v7153 = vmul.f32 %v5553, 0.8333333
    %v7154 = vmul.f32 %v5554, 0.8333333
    %v7155 = vmul.f32 %v5555, 0.8333333
    %v7156 = vmul.f32 %v5556, 0.8333333
    %v7157 = vmul.f32 %v5557, 0.8333333
    %v7158 = vmul.f32 %v5558, 0.8333333
    %v7159 = vmul.f32 %v5559, 0.8333333
    %v7160 = vmul.f32 %v5560, 0.8333333
    %v7161 = vmul.f32 %v5561, 0.8333333
    %v7162 = vmul.f32 %v5562, 0.8333333
    %v7163 = vmul.f32 %v5563, 0.8333333
    %v7164 = vmul.f32 %v5564, 0.8333333
    %v7165 = vmul.f32 %v5565, 0.8333333
    %v7166 = vmul.f32 %v5566, 0.8333333
    %v7167 = vmul.f32 %v7151, %v6543
    %v7168 = vmul.f32 %v7152, %v6544
    %v7169 = vmul.f32 %v7153, %v6545
    %v7170 = vmul.f32 %v7154, %v6546
    %v7171 = vmul.f32 %v7155, %v6547
    %v7172 = vmul.f32 %v7156, %v6548
    %v7173 = vmul.f32 %v7157, %v6549
    %v7174 = vmul.f32 %v7158, %v6550
    %v7175 = vmul.f32 %v7159, %v6551
    %v7176 = vmul.f32 %v7160, %v6552
    %v7177 = vmul.f32 %v7161, %v6553
    %v7178 = vmul.f32 %v7162, %v6554
    %v7179 = vmul.f32 %v7163, %v6555
    %v7180 = vmul.f32 %v7164, %v6556
    %v7181 = vmul.f32 %v7165, %v6557
    %v7182 = vmul.f32 %v7166, %v6558
    %v7183 = vadd.f32 %v7135, %v7167
    %v7184 = vadd.f32 %v7136, %v7168
    %v7185 = vadd.f32 %v7137, %v7169
    %v7186 = vadd.f32 %v7138, %v7170
    %v7187 = vadd.f32 %v7139, %v7171
    %v7188 = vadd.f32 %v7140, %v7172
    %v7189 = vadd.f32 %v7141, %v7173
    %v7190 = vadd.f32 %v7142, %v7174
    %v7191 = vadd.f32 %v7143, %v7175
    %v7192 = vadd.f32 %v7144, %v7176
    %v7193 = vadd.f32 %v7145, %v7177
    %v7194 = vadd.f32 %v7146, %v7178
    %v7195 = vadd.f32 %v7147, %v7179
    %v7196 = vadd.f32 %v7148, %v7180
    %v7197 = vadd.f32 %v7149, %v7181
    %v7198 = vadd.f32 %v7150, %v7182
    %v7199 = vmul.f32 %v5391, 0.8333333
    %v7200 = vmul.f32 %v5392, 0.8333333
    %v7201 = vmul.f32 %v5393, 0.8333333
    %v7202 = vmul.f32 %v5394, 0.8333333
    %v7203 = vmul.f32 %v5395, 0.8333333
    %v7204 = vmul.f32 %v5396, 0.8333333
    %v7205 = vmul.f32 %v5397, 0.8333333
    %v7206 = vmul.f32 %v5398, 0.8333333
    %v7207 = vmul.f32 %v5399, 0.8333333
    %v7208 = vmul.f32 %v5400, 0.8333333
    %v7209 = vmul.f32 %v5401, 0.8333333
    %v7210 = vmul.f32 %v5402, 0.8333333
    %v7211 = vmul.f32 %v5403, 0.8333333
    %v7212 = vmul.f32 %v5404, 0.8333333
    %v7213 = vmul.f32 %v5405, 0.8333333
    %v7214 = vmul.f32 %v5406, 0.8333333
    %v7215 = vmul.f32 %v7199, %v6543
    %v7216 = vmul.f32 %v7200, %v6544
    %v7217 = vmul.f32 %v7201, %v6545
    %v7218 = vmul.f32 %v7202, %v6546
    %v7219 = vmul.f32 %v7203, %v6547
    %v7220 = vmul.f32 %v7204, %v6548
    %v7221 = vmul.f32 %v7205, %v6549
    %v7222 = vmul.f32 %v7206, %v6550
    %v7223 = vmul.f32 %v7207, %v6551
    %v7224 = vmul.f32 %v7208, %v6552
    %v7225 = vmul.f32 %v7209, %v6553
    %v7226 = vmul.f32 %v7210, %v6554
    %v7227 = vmul.f32 %v7211, %v6555
    %v7228 = vmul.f32 %v7212, %v6556
    %v7229 = vmul.f32 %v7213, %v6557
    %v7230 = vmul.f32 %v7214, %v6558
    %v7231 = vmul.f32 %v5663, 0.8333333
    %v7232 = vmul.f32 %v5664, 0.8333333
    %v7233 = vmul.f32 %v5665, 0.8333333
    %v7234 = vmul.f32 %v5666, 0.8333333
    %v7235 = vmul.f32 %v5667, 0.8333333
    %v7236 = vmul.f32 %v5668, 0.8333333
    %v7237 = vmul.f32 %v5669, 0.8333333
    %v7238 = vmul.f32 %v5670, 0.8333333
    %v7239 = vmul.f32 %v5671, 0.8333333
    %v7240 = vmul.f32 %v5672, 0.8333333
    %v7241 = vmul.f32 %v5673, 0.8333333
    %v7242 = vmul.f32 %v5674, 0.8333333
    %v7243 = vmul.f32 %v5675, 0.8333333
    %v7244 = vmul.f32 %v5676, 0.8333333
    %v7245 = vmul.f32 %v5677, 0.8333333
    %v7246 = vmul.f32 %v5678, 0.8333333
    %v7247 = vmul.f32 %v7231, %v6623
    %v7248 = vmul.f32 %v7232, %v6624
    %v7249 = vmul.f32 %v7233, %v6625
    %v7250 = vmul.f32 %v7234, %v6626
    %v7251 = vmul.f32 %v7235, %v6627
    %v7252 = vmul.f32 %v7236, %v6628
    %v7253 = vmul.f32 %v7237, %v6629
    %v7254 = vmul.f32 %v7238, %v6630
    %v7255 = vmul.f32 %v7239, %v6631
    %v7256 = vmul.f32 %v7240, %v6632
    %v7257 = vmul.f32 %v7241, %v6633
    %v7258 = vmul.f32 %v7242, %v6634
    %v7259 = vmul.f32 %v7243, %v6635
    %v7260 = vmul.f32 %v7244, %v6636
    %v7261 = vmul.f32 %v7245, %v6637
    %v7262 = vmul.f32 %v7246, %v6638
    %v7263 = vadd.f32 %v7215, %v7247
    %v7264 = vadd.f32 %v7216, %v7248
    %v7265 = vadd.f32 %v7217, %v7249
    %v7266 = vadd.f32 %v7218, %v7250
    %v7267 = vadd.f32 %v7219, %v7251
    %v7268 = vadd.f32 %v7220, %v7252
    %v7269 = vadd.f32 %v7221, %v7253
    %v7270 = vadd.f32 %v7222, %v7254
    %v7271 = vadd.f32 %v7223, %v7255
    %v7272 = vadd.f32 %v7224, %v7256
    %v7273 = vadd.f32 %v7225, %v7257
    %v7274 = vadd.f32 %v7226, %v7258
    %v7275 = vadd.f32 %v7227, %v7259
    %v7276 = vadd.f32 %v7228, %v7260
    %v7277 = vadd.f32 %v7229, %v7261
    %v7278 = vadd.f32 %v7230, %v7262
    %v7279 = vmul.f32 %v5503, 0.8333333
    %v7280 = vmul.f32 %v5504, 0.8333333
    %v7281 = vmul.f32 %v5505, 0.8333333
    %v7282 = vmul.f32 %v5506, 0.8333333
    %v7283 = vmul.f32 %v5507, 0.8333333
    %v7284 = vmul.f32 %v5508, 0.8333333
    %v7285 = vmul.f32 %v5509, 0.8333333
    %v7286 = vmul.f32 %v5510, 0.8333333
    %v7287 = vmul.f32 %v5511, 0.8333333
    %v7288 = vmul.f32 %v5512, 0.8333333
    %v7289 = vmul.f32 %v5513, 0.8333333
    %v7290 = vmul.f32 %v5514, 0.8333333
    %v7291 = vmul.f32 %v5515, 0.8333333
    %v7292 = vmul.f32 %v5516, 0.8333333
    %v7293 = vmul.f32 %v5517, 0.8333333
    %v7294 = vmul.f32 %v5518, 0.8333333
    %v7295 = vmul.f32 %v7279, %v6623
    %v7296 = vmul.f32 %v7280, %v6624
    %v7297 = vmul.f32 %v7281, %v6625
    %v7298 = vmul.f32 %v7282, %v6626
    %v7299 = vmul.f32 %v7283, %v6627
    %v7300 = vmul.f32 %v7284, %v6628
    %v7301 = vmul.f32 %v7285, %v6629
    %v7302 = vmul.f32 %v7286, %v6630
    %v7303 = vmul.f32 %v7287, %v6631
    %v7304 = vmul.f32 %v7288, %v6632
    %v7305 = vmul.f32 %v7289, %v6633
    %v7306 = vmul.f32 %v7290, %v6634
    %v7307 = vmul.f32 %v7291, %v6635
    %v7308 = vmul.f32 %v7292, %v6636
    %v7309 = vmul.f32 %v7293, %v6637
    %v7310 = vmul.f32 %v7294, %v6638
    %v7311 = vmul.f32 %v5775, 0.8333333
    %v7312 = vmul.f32 %v5776, 0.8333333
    %v7313 = vmul.f32 %v5777, 0.8333333
    %v7314 = vmul.f32 %v5778, 0.8333333
    %v7315 = vmul.f32 %v5779, 0.8333333
    %v7316 = vmul.f32 %v5780, 0.8333333
    %v7317 = vmul.f32 %v5781, 0.8333333
    %v7318 = vmul.f32 %v5782, 0.8333333
    %v7319 = vmul.f32 %v5783, 0.8333333
    %v7320 = vmul.f32 %v5784, 0.8333333
    %v7321 = vmul.f32 %v5785, 0.8333333
    %v7322 = vmul.f32 %v5786, 0.8333333
    %v7323 = vmul.f32 %v5787, 0.8333333
    %v7324 = vmul.f32 %v5788, 0.8333333
    %v7325 = vmul.f32 %v5789, 0.8333333
    %v7326 = vmul.f32 %v5790, 0.8333333
    %v7327 = vmul.f32 %v7311, %v6703
    %v7328 = vmul.f32 %v7312, %v6704
    %v7329 = vmul.f32 %v7313, %v6705
    %v7330 = vmul.f32 %v7314, %v6706
    %v7331 = vmul.f32 %v7315, %v6707
    %v7332 = vmul.f32 %v7316, %v6708
    %v7333 = vmul.f32 %v7317, %v6709
    %v7334 = vmul.f32 %v7318, %v6710
    %v7335 = vmul.f32 %v7319, %v6711
    %v7336 = vmul.f32 %v7320, %v6712
    %v7337 = vmul.f32 %v7321, %v6713
    %v7338 = vmul.f32 %v7322, %v6714
    %v7339 = vmul.f32 %v7323, %v6715
    %v7340 = vmul.f32 %v7324, %v6716
    %v7341 = vmul.f32 %v7325, %v6717
    %v7342 = vmul.f32 %v7326, %v6718
    %v7343 = vadd.f32 %v7295, %v7327
    %v7344 = vadd.f32 %v7296, %v7328
    %v7345 = vadd.f32 %v7297, %v7329
    %v7346 = vadd.f32 %v7298, %v7330
    %v7347 = vadd.f32 %v7299, %v7331
    %v7348 = vadd.f32 %v7300, %v7332
    %v7349 = vadd.f32 %v7301, %v7333
    %v7350 = vadd.f32 %v7302, %v7334
    %v7351 = vadd.f32 %v7303, %v7335
    %v7352 = vadd.f32 %v7304, %v7336
    %v7353 = vadd.f32 %v7305, %v7337
    %v7354 = vadd.f32 %v7306, %v7338
    %v7355 = vadd.f32 %v7307, %v7339
    %v7356 = vadd.f32 %v7308, %v7340
    %v7357 = vadd.f32 %v7309, %v7341
    %v7358 = vadd.f32 %v7310, %v7342
    %v7359 = vmul.f32 %v5615, 0.8333333
    %v7360 = vmul.f32 %v5616, 0.8333333
    %v7361 = vmul.f32 %v5617, 0.8333333
    %v7362 = vmul.f32 %v5618, 0.8333333
    %v7363 = vmul.f32 %v5619, 0.8333333
    %v7364 = vmul.f32 %v5620, 0.8333333
    %v7365 = vmul.f32 %v5621, 0.8333333
    %v7366 = vmul.f32 %v5622, 0.8333333
    %v7367 = vmul.f32 %v5623, 0.8333333
    %v7368 = vmul.f32 %v5624, 0.8333333
    %v7369 = vmul.f32 %v5625, 0.8333333
    %v7370 = vmul.f32 %v5626, 0.8333333
    %v7371 = vmul.f32 %v5627, 0.8333333
    %v7372 = vmul.f32 %v5628, 0.8333333
    %v7373 = vmul.f32 %v5629, 0.8333333
    %v7374 = vmul.f32 %v5630, 0.8333333
    %v7375 = vmul.f32 %v7359, %v6703
    %v7376 = vmul.f32 %v7360, %v6704
    %v7377 = vmul.f32 %v7361, %v6705
    %v7378 = vmul.f32 %v7362, %v6706
    %v7379 = vmul.f32 %v7363, %v6707
    %v7380 = vmul.f32 %v7364, %v6708
    %v7381 = vmul.f32 %v7365, %v6709
    %v7382 = vmul.f32 %v7366, %v6710
    %v7383 = vmul.f32 %v7367, %v6711
    %v7384 = vmul.f32 %v7368, %v6712
    %v7385 = vmul.f32 %v7369, %v6713
    %v7386 = vmul.f32 %v7370, %v6714
    %v7387 = vmul.f32 %v7371, %v6715
    %v7388 = vmul.f32 %v7372, %v6716
    %v7389 = vmul.f32 %v7373, %v6717
    %v7390 = vmul.f32 %v7374, %v6718
    %v7391 = vmul.f32 %v5887, 0.8333333
    %v7392 = vmul.f32 %v5888, 0.8333333
    %v7393 = vmul.f32 %v5889, 0.8333333
    %v7394 = vmul.f32 %v5890, 0.8333333
    %v7395 = vmul.f32 %v5891, 0.8333333
    %v7396 = vmul.f32 %v5892, 0.8333333
    %v7397 = vmul.f32 %v5893, 0.8333333
    %v7398 = vmul.f32 %v5894, 0.8333333
    %v7399 = vmul.f32 %v5895, 0.8333333
    %v7400 = vmul.f32 %v5896, 0.8333333
    %v7401 = vmul.f32 %v5897, 0.8333333
    %v7402 = vmul.f32 %v5898, 0.8333333
    %v7403 = vmul.f32 %v5899, 0.8333333
    %v7404 = vmul.f32 %v5900, 0.8333333
    %v7405 = vmul.f32 %v5901, 0.8333333
    %v7406 = vmul.f32 %v5902, 0.8333333
    %v7407 = vmul.f32 %v7391, %v6783
    %v7408 = vmul.f32 %v7392, %v6784
    %v7409 = vmul.f32 %v7393, %v6785
    %v7410 = vmul.f32 %v7394, %v6786
    %v7411 = vmul.f32 %v7395, %v6787
    %v7412 = vmul.f32 %v7396, %v6788
    %v7413 = vmul.f32 %v7397, %v6789
    %v7414 = vmul.f32 %v7398, %v6790
    %v7415 = vmul.f32 %v7399, %v6791
    %v7416 = vmul.f32 %v7400, %v6792
    %v7417 = vmul.f32 %v7401, %v6793
    %v7418 = vmul.f32 %v7402, %v6794
    %v7419 = vmul.f32 %v7403, %v6795
    %v7420 = vmul.f32 %v7404, %v6796
    %v7421 = vmul.f32 %v7405, %v6797
    %v7422 = vmul.f32 %v7406, %v6798
    %v7423 = vadd.f32 %v7375, %v7407
    %v7424 = vadd.f32 %v7376, %v7408
    %v7425 = vadd.f32 %v7377, %v7409
    %v7426 = vadd.f32 %v7378, %v7410
    %v7427 = vadd.f32 %v7379, %v7411
    %v7428 = vadd.f32 %v7380, %v7412
    %v7429 = vadd.f32 %v7381, %v7413
    %v7430 = vadd.f32 %v7382, %v7414
    %v7431 = vadd.f32 %v7383, %v7415
    %v7432 = vadd.f32 %v7384, %v7416
    %v7433 = vadd.f32 %v7385, %v7417
    %v7434 = vadd.f32 %v7386, %v7418
    %v7435 = vadd.f32 %v7387, %v7419
    %v7436 = vadd.f32 %v7388, %v7420
    %v7437 = vadd.f32 %v7389, %v7421
    %v7438 = vadd.f32 %v7390, %v7422
    %v7439 = vmul.f32 %v5727, 0.8333333
    %v7440 = vmul.f32 %v5728, 0.8333333
    %v7441 = vmul.f32 %v5729, 0.8333333
    %v7442 = vmul.f32 %v5730, 0.8333333
    %v7443 = vmul.f32 %v5731, 0.8333333
    %v7444 = vmul.f32 %v5732, 0.8333333
    %v7445 = vmul.f32 %v5733, 0.8333333
    %v7446 = vmul.f32 %v5734, 0.8333333
    %v7447 = vmul.f32 %v5735, 0.8333333
    %v7448 = vmul.f32 %v5736, 0.8333333
    %v7449 = vmul.f32 %v5737, 0.8333333
    %v7450 = vmul.f32 %v5738, 0.8333333
    %v7451 = vmul.f32 %v5739, 0.8333333
    %v7452 = vmul.f32 %v5740, 0.8333333
    %v7453 = vmul.f32 %v5741, 0.8333333
    %v7454 = vmul.f32 %v5742, 0.8333333
    %v7455 = vmul.f32 %v7439, %v6783
    %v7456 = vmul.f32 %v7440, %v6784
    %v7457 = vmul.f32 %v7441, %v6785
    %v7458 = vmul.f32 %v7442, %v6786
    %v7459 = vmul.f32 %v7443, %v6787
    %v7460 = vmul.f32 %v7444, %v6788
    %v7461 = vmul.f32 %v7445, %v6789
    %v7462 = vmul.f32 %v7446, %v6790
    %v7463 = vmul.f32 %v7447, %v6791
    %v7464 = vmul.f32 %v7448, %v6792
    %v7465 = vmul.f32 %v7449, %v6793
    %v7466 = vmul.f32 %v7450, %v6794
    %v7467 = vmul.f32 %v7451, %v6795
    %v7468 = vmul.f32 %v7452, %v6796
    %v7469 = vmul.f32 %v7453, %v6797
    %v7470 = vmul.f32 %v7454, %v6798
    %v7471 = vmul.f32 %v5999, 0.8333333
    %v7472 = vmul.f32 %v6000, 0.8333333
    %v7473 = vmul.f32 %v6001, 0.8333333
    %v7474 = vmul.f32 %v6002, 0.8333333
    %v7475 = vmul.f32 %v6003, 0.8333333
    %v7476 = vmul.f32 %v6004, 0.8333333
    %v7477 = vmul.f32 %v6005, 0.8333333
    %v7478 = vmul.f32 %v6006, 0.8333333
    %v7479 = vmul.f32 %v6007, 0.8333333
    %v7480 = vmul.f32 %v6008, 0.8333333
    %v7481 = vmul.f32 %v6009, 0.8333333
    %v7482 = vmul.f32 %v6010, 0.8333333
    %v7483 = vmul.f32 %v6011, 0.8333333
    %v7484 = vmul.f32 %v6012, 0.8333333
    %v7485 = vmul.f32 %v6013, 0.8333333
    %v7486 = vmul.f32 %v6014, 0.8333333
    %v7487 = vmul.f32 %v7471, %v6863
    %v7488 = vmul.f32 %v7472, %v6864
    %v7489 = vmul.f32 %v7473, %v6865
    %v7490 = vmul.f32 %v7474, %v6866
    %v7491 = vmul.f32 %v7475, %v6867
    %v7492 = vmul.f32 %v7476, %v6868
    %v7493 = vmul.f32 %v7477, %v6869
    %v7494 = vmul.f32 %v7478, %v6870
    %v7495 = vmul.f32 %v7479, %v6871
    %v7496 = vmul.f32 %v7480, %v6872
    %v7497 = vmul.f32 %v7481, %v6873
    %v7498 = vmul.f32 %v7482, %v6874
    %v7499 = vmul.f32 %v7483, %v6875
    %v7500 = vmul.f32 %v7484, %v6876
    %v7501 = vmul.f32 %v7485, %v6877
    %v7502 = vmul.f32 %v7486, %v6878
    %v7503 = vadd.f32 %v7455, %v7487
    %v7504 = vadd.f32 %v7456, %v7488
    %v7505 = vadd.f32 %v7457, %v7489
    %v7506 = vadd.f32 %v7458, %v7490
    %v7507 = vadd.f32 %v7459, %v7491
    %v7508 = vadd.f32 %v7460, %v7492
    %v7509 = vadd.f32 %v7461, %v7493
    %v7510 = vadd.f32 %v7462, %v7494
    %v7511 = vadd.f32 %v7463, %v7495
    %v7512 = vadd.f32 %v7464, %v7496
    %v7513 = vadd.f32 %v7465, %v7497
    %v7514 = vadd.f32 %v7466, %v7498
    %v7515 = vadd.f32 %v7467, %v7499
    %v7516 = vadd.f32 %v7468, %v7500
    %v7517 = vadd.f32 %v7469, %v7501
    %v7518 = vadd.f32 %v7470, %v7502
    %v7519 = vmul.f32 %v5839, 0.8333333
    %v7520 = vmul.f32 %v5840, 0.8333333
    %v7521 = vmul.f32 %v5841, 0.8333333
    %v7522 = vmul.f32 %v5842, 0.8333333
    %v7523 = vmul.f32 %v5843, 0.8333333
    %v7524 = vmul.f32 %v5844, 0.8333333
    %v7525 = vmul.f32 %v5845, 0.8333333
    %v7526 = vmul.f32 %v5846, 0.8333333
    %v7527 = vmul.f32 %v5847, 0.8333333
    %v7528 = vmul.f32 %v5848, 0.8333333
    %v7529 = vmul.f32 %v5849, 0.8333333
    %v7530 = vmul.f32 %v5850, 0.8333333
    %v7531 = vmul.f32 %v5851, 0.8333333
    %v7532 = vmul.f32 %v5852, 0.8333333
    %v7533 = vmul.f32 %v5853, 0.8333333
    %v7534 = vmul.f32 %v5854, 0.8333333
    %v7535 = vmul.f32 %v7519, %v6863
    %v7536 = vmul.f32 %v7520, %v6864
    %v7537 = vmul.f32 %v7521, %v6865
    %v7538 = vmul.f32 %v7522, %v6866
    %v7539 = vmul.f32 %v7523, %v6867
    %v7540 = vmul.f32 %v7524, %v6868
    %v7541 = vmul.f32 %v7525, %v6869
    %v7542 = vmul.f32 %v7526, %v6870
    %v7543 = vmul.f32 %v7527, %v6871
    %v7544 = vmul.f32 %v7528, %v6872
    %v7545 = vmul.f32 %v7529, %v6873
    %v7546 = vmul.f32 %v7530, %v6874
    %v7547 = vmul.f32 %v7531, %v6875
    %v7548 = vmul.f32 %v7532, %v6876
    %v7549 = vmul.f32 %v7533, %v6877
    %v7550 = vmul.f32 %v7534, %v6878
    %v7551 = vmul.f32 %v6111, 0.8333333
    %v7552 = vmul.f32 %v6112, 0.8333333
    %v7553 = vmul.f32 %v6113, 0.8333333
    %v7554 = vmul.f32 %v6114, 0.8333333
    %v7555 = vmul.f32 %v6115, 0.8333333
    %v7556 = vmul.f32 %v6116, 0.8333333
    %v7557 = vmul.f32 %v6117, 0.8333333
    %v7558 = vmul.f32 %v6118, 0.8333333
    %v7559 = vmul.f32 %v6119, 0.8333333
    %v7560 = vmul.f32 %v6120, 0.8333333
    %v7561 = vmul.f32 %v6121, 0.8333333
    %v7562 = vmul.f32 %v6122, 0.8333333
    %v7563 = vmul.f32 %v6123, 0.8333333
    %v7564 = vmul.f32 %v6124, 0.8333333
    %v7565 = vmul.f32 %v6125, 0.8333333
    %v7566 = vmul.f32 %v6126, 0.8333333
    %v7567 = vmul.f32 %v7551, %v6943
    %v7568 = vmul.f32 %v7552, %v6944
    %v7569 = vmul.f32 %v7553, %v6945
    %v7570 = vmul.f32 %v7554, %v6946
    %v7571 = vmul.f32 %v7555, %v6947
    %v7572 = vmul.f32 %v7556, %v6948
    %v7573 = vmul.f32 %v7557, %v6949
    %v7574 = vmul.f32 %v7558, %v6950
    %v7575 = vmul.f32 %v7559, %v6951
    %v7576 = vmul.f32 %v7560, %v6952
    %v7577 = vmul.f32 %v7561, %v6953
    %v7578 = vmul.f32 %v7562, %v6954
    %v7579 = vmul.f32 %v7563, %v6955
    %v7580 = vmul.f32 %v7564, %v6956
    %v7581 = vmul.f32 %v7565, %v6957
    %v7582 = vmul.f32 %v7566, %v6958
    %v7583 = vadd.f32 %v7535, %v7567
    %v7584 = vadd.f32 %v7536, %v7568
    %v7585 = vadd.f32 %v7537, %v7569
    %v7586 = vadd.f32 %v7538, %v7570
    %v7587 = vadd.f32 %v7539, %v7571
    %v7588 = vadd.f32 %v7540, %v7572
    %v7589 = vadd.f32 %v7541, %v7573
    %v7590 = vadd.f32 %v7542, %v7574
    %v7591 = vadd.f32 %v7543, %v7575
    %v7592 = vadd.f32 %v7544, %v7576
    %v7593 = vadd.f32 %v7545, %v7577
    %v7594 = vadd.f32 %v7546, %v7578
    %v7595 = vadd.f32 %v7547, %v7579
    %v7596 = vadd.f32 %v7548, %v7580
    %v7597 = vadd.f32 %v7549, %v7581
    %v7598 = vadd.f32 %v7550, %v7582
    %v7599 = vmul.f32 %v5951, 0.8333333
    %v7600 = vmul.f32 %v5952, 0.8333333
    %v7601 = vmul.f32 %v5953, 0.8333333
    %v7602 = vmul.f32 %v5954, 0.8333333
    %v7603 = vmul.f32 %v5955, 0.8333333
    %v7604 = vmul.f32 %v5956, 0.8333333
    %v7605 = vmul.f32 %v5957, 0.8333333
    %v7606 = vmul.f32 %v5958, 0.8333333
    %v7607 = vmul.f32 %v5959, 0.8333333
    %v7608 = vmul.f32 %v5960, 0.8333333
    %v7609 = vmul.f32 %v5961, 0.8333333
    %v7610 = vmul.f32 %v5962, 0.8333333
    %v7611 = vmul.f32 %v5963, 0.8333333
    %v7612 = vmul.f32 %v5964, 0.8333333
    %v7613 = vmul.f32 %v5965, 0.8333333
    %v7614 = vmul.f32 %v5966, 0.8333333
    %v7615 = vmul.f32 %v7599, %v6943
    %v7616 = vmul.f32 %v7600, %v6944
    %v7617 = vmul.f32 %v7601, %v6945
    %v7618 = vmul.f32 %v7602, %v6946
    %v7619 = vmul.f32 %v7603, %v6947
    %v7620 = vmul.f32 %v7604, %v6948
    %v7621 = vmul.f32 %v7605, %v6949
    %v7622 = vmul.f32 %v7606, %v6950
    %v7623 = vmul.f32 %v7607, %v6951
    %v7624 = vmul.f32 %v7608, %v6952
    %v7625 = vmul.f32 %v7609, %v6953
    %v7626 = vmul.f32 %v7610, %v6954
    %v7627 = vmul.f32 %v7611, %v6955
    %v7628 = vmul.f32 %v7612, %v6956
    %v7629 = vmul.f32 %v7613, %v6957
    %v7630 = vmul.f32 %v7614, %v6958
    %v7631 = vmul.f32 %v6223, 0.8333333
    %v7632 = vmul.f32 %v6224, 0.8333333
    %v7633 = vmul.f32 %v6225, 0.8333333
    %v7634 = vmul.f32 %v6226, 0.8333333
    %v7635 = vmul.f32 %v6227, 0.8333333
    %v7636 = vmul.f32 %v6228, 0.8333333
    %v7637 = vmul.f32 %v6229, 0.8333333
    %v7638 = vmul.f32 %v6230, 0.8333333
    %v7639 = vmul.f32 %v6231, 0.8333333
    %v7640 = vmul.f32 %v6232, 0.8333333
    %v7641 = vmul.f32 %v6233, 0.8333333
    %v7642 = vmul.f32 %v6234, 0.8333333
    %v7643 = vmul.f32 %v6235, 0.8333333
    %v7644 = vmul.f32 %v6236, 0.8333333
    %v7645 = vmul.f32 %v6237, 0.8333333
    %v7646 = vmul.f32 %v6238, 0.8333333
    %v7647 = vmul.f32 %v7631, %v7023
    %v7648 = vmul.f32 %v7632, %v7024
    %v7649 = vmul.f32 %v7633, %v7025
    %v7650 = vmul.f32 %v7634, %v7026
    %v7651 = vmul.f32 %v7635, %v7027
    %v7652 = vmul.f32 %v7636, %v7028
    %v7653 = vmul.f32 %v7637, %v7029
    %v7654 = vmul.f32 %v7638, %v7030
    %v7655 = vmul.f32 %v7639, %v7031
    %v7656 = vmul.f32 %v7640, %v7032
    %v7657 = vmul.f32 %v7641, %v7033
    %v7658 = vmul.f32 %v7642, %v7034
    %v7659 = vmul.f32 %v7643, %v7035
    %v7660 = vmul.f32 %v7644, %v7036
    %v7661 = vmul.f32 %v7645, %v7037
    %v7662 = vmul.f32 %v7646, %v7038
    %v7663 = vadd.f32 %v7615, %v7647
    %v7664 = vadd.f32 %v7616, %v7648
    %v7665 = vadd.f32 %v7617, %v7649
    %v7666 = vadd.f32 %v7618, %v7650
    %v7667 = vadd.f32 %v7619, %v7651
    %v7668 = vadd.f32 %v7620, %v7652
    %v7669 = vadd.f32 %v7621, %v7653
    %v7670 = vadd.f32 %v7622, %v7654
    %v7671 = vadd.f32 %v7623, %v7655
    %v7672 = vadd.f32 %v7624, %v7656
    %v7673 = vadd.f32 %v7625, %v7657
    %v7674 = vadd.f32 %v7626, %v7658
    %v7675 = vadd.f32 %v7627, %v7659
    %v7676 = vadd.f32 %v7628, %v7660
    %v7677 = vadd.f32 %v7629, %v7661
    %v7678 = vadd.f32 %v7630, %v7662
    %v7679 = vmul.f32 %v6063, 0.8333333
    %v7680 = vmul.f32 %v6064, 0.8333333
    %v7681 = vmul.f32 %v6065, 0.8333333
    %v7682 = vmul.f32 %v6066, 0.8333333
    %v7683 = vmul.f32 %v6067, 0.8333333
    %v7684 = vmul.f32 %v6068, 0.8333333
    %v7685 = vmul.f32 %v6069, 0.8333333
    %v7686 = vmul.f32 %v6070, 0.8333333
    %v7687 = vmul.f32 %v6071, 0.8333333
    %v7688 = vmul.f32 %v6072, 0.8333333
    %v7689 = vmul.f32 %v6073, 0.8333333
    %v7690 = vmul.f32 %v6074, 0.8333333
    %v7691 = vmul.f32 %v6075, 0.8333333
    %v7692 = vmul.f32 %v6076, 0.8333333
    %v7693 = vmul.f32 %v6077, 0.8333333
    %v7694 = vmul.f32 %v6078, 0.8333333
    %v7695 = vmul.f32 %v7679, %v7023
    %v7696 = vmul.f32 %v7680, %v7024
    %v7697 = vmul.f32 %v7681, %v7025
    %v7698 = vmul.f32 %v7682, %v7026
    %v7699 = vmul.f32 %v7683, %v7027
    %v7700 = vmul.f32 %v7684, %v7028
    %v7701 = vmul.f32 %v7685, %v7029
    %v7702 = vmul.f32 %v7686, %v7030
    %v7703 = vmul.f32 %v7687, %v7031
    %v7704 = vmul.f32 %v7688, %v7032
    %v7705 = vmul.f32 %v7689, %v7033
    %v7706 = vmul.f32 %v7690, %v7034
    %v7707 = vmul.f32 %v7691, %v7035
    %v7708 = vmul.f32 %v7692, %v7036
    %v7709 = vmul.f32 %v7693, %v7037
    %v7710 = vmul.f32 %v7694, %v7038
    %v7711 = vmul.f32 %v6335, 0.8333333
    %v7712 = vmul.f32 %v6336, 0.8333333
    %v7713 = vmul.f32 %v6337, 0.8333333
    %v7714 = vmul.f32 %v6338, 0.8333333
    %v7715 = vmul.f32 %v6339, 0.8333333
    %v7716 = vmul.f32 %v6340, 0.8333333
    %v7717 = vmul.f32 %v6341, 0.8333333
    %v7718 = vmul.f32 %v6342, 0.8333333
    %v7719 = vmul.f32 %v6343, 0.8333333
    %v7720 = vmul.f32 %v6344, 0.8333333
    %v7721 = vmul.f32 %v6345, 0.8333333
    %v7722 = vmul.f32 %v6346, 0.8333333
    %v7723 = vmul.f32 %v6347, 0.8333333
    %v7724 = vmul.f32 %v6348, 0.8333333
    %v7725 = vmul.f32 %v6349, 0.8333333
    %v7726 = vmul.f32 %v6350, 0.8333333
    %v7727 = vmul.f32 %v7711, %v7103
    %v7728 = vmul.f32 %v7712, %v7104
    %v7729 = vmul.f32 %v7713, %v7105
    %v7730 = vmul.f32 %v7714, %v7106
    %v7731 = vmul.f32 %v7715, %v7107
    %v7732 = vmul.f32 %v7716, %v7108
    %v7733 = vmul.f32 %v7717, %v7109
    %v7734 = vmul.f32 %v7718, %v7110
    %v7735 = vmul.f32 %v7719, %v7111
    %v7736 = vmul.f32 %v7720, %v7112
    %v7737 = vmul.f32 %v7721, %v7113
    %v7738 = vmul.f32 %v7722, %v7114
    %v7739 = vmul.f32 %v7723, %v7115
    %v7740 = vmul.f32 %v7724, %v7116
    %v7741 = vmul.f32 %v7725, %v7117
    %v7742 = vmul.f32 %v7726, %v7118
    %v7743 = vadd.f32 %v7695, %v7727
    %v7744 = vadd.f32 %v7696, %v7728
    %v7745 = vadd.f32 %v7697, %v7729
    %v7746 = vadd.f32 %v7698, %v7730
    %v7747 = vadd.f32 %v7699, %v7731
    %v7748 = vadd.f32 %v7700, %v7732
    %v7749 = vadd.f32 %v7701, %v7733
    %v7750 = vadd.f32 %v7702, %v7734
    %v7751 = vadd.f32 %v7703, %v7735
    %v7752 = vadd.f32 %v7704, %v7736
    %v7753 = vadd.f32 %v7705, %v7737
    %v7754 = vadd.f32 %v7706, %v7738
    %v7755 = vadd.f32 %v7707, %v7739
    %v7756 = vadd.f32 %v7708, %v7740
    %v7757 = vadd.f32 %v7709, %v7741
    %v7758 = vadd.f32 %v7710, %v7742
    %v7759 = vxor.u32 %v4321, 2147483648
    %v7760 = vxor.u32 %v4326, 2147483648
    %v7761 = vxor.u32 %v4331, 2147483648
    %v7762 = vxor.u32 %v4336, 2147483648
    %v7763 = vxor.u32 %v4341, 2147483648
    %v7764 = vxor.u32 %v4346, 2147483648
    %v7765 = vxor.u32 %v4351, 2147483648
    %v7766 = vxor.u32 %v4356, 2147483648
    %v7767 = vxor.u32 %v4361, 2147483648
    %v7768 = vxor.u32 %v4366, 2147483648
    %v7769 = vxor.u32 %v4371, 2147483648
    %v7770 = vxor.u32 %v4376, 2147483648
    %v7771 = vxor.u32 %v4381, 2147483648
    %v7772 = vxor.u32 %v4386, 2147483648
    %v7773 = vxor.u32 %v4391, 2147483648
    %v7774 = vxor.u32 %v4396, 2147483648
    %v7775 = vmul.f32 %v7759, 1.442695
    %v7776 = vpow.pop %v7775
    %v7777 = vmul.f32 %v7760, 1.442695
    %v7778 = vpow.pop %v7777
    %v7779 = vmul.f32 %v7761, 1.442695
    %v7780 = vpow.pop %v7779
    %v7781 = vmul.f32 %v7762, 1.442695
    %v7782 = vpow.pop %v7781
    %v7783 = vmul.f32 %v7763, 1.442695
    %v7784 = vpow.pop %v7783
    %v7785 = vmul.f32 %v7764, 1.442695
    %v7786 = vpow.pop %v7785
    %v7787 = vmul.f32 %v7765, 1.442695
    %v7788 = vpow.pop %v7787
    %v7789 = vmul.f32 %v7766, 1.442695
    %v7790 = vpow.pop %v7789
    %v7791 = vmul.f32 %v7767, 1.442695
    %v7792 = vpow.pop %v7791
    %v7793 = vmul.f32 %v7768, 1.442695
    %v7794 = vpow.pop %v7793
    %v7795 = vmul.f32 %v7769, 1.442695
    %v7796 = vpow.pop %v7795
    %v7797 = vmul.f32 %v7770, 1.442695
    %v7798 = vpow.pop %v7797
    %v7799 = vmul.f32 %v7771, 1.442695
    %v7800 = vpow.pop %v7799
    %v7801 = vmul.f32 %v7772, 1.442695
    %v7802 = vpow.pop %v7801
    %v7803 = vmul.f32 %v7773, 1.442695
    %v7804 = vpow.pop %v7803
    %v7805 = vmul.f32 %v7774, 1.442695
    %v7806 = vpow.pop %v7805
    %v7807 = vadd.f32 %v7776, 1.0
    %v7808 = vadd.f32 %v7778, 1.0
    %v7809 = vadd.f32 %v7780, 1.0
    %v7810 = vadd.f32 %v7782, 1.0
    %v7811 = vadd.f32 %v7784, 1.0
    %v7812 = vadd.f32 %v7786, 1.0
    %v7813 = vadd.f32 %v7788, 1.0
    %v7814 = vadd.f32 %v7790, 1.0
    %v7815 = vadd.f32 %v7792, 1.0
    %v7816 = vadd.f32 %v7794, 1.0
    %v7817 = vadd.f32 %v7796, 1.0
    %v7818 = vadd.f32 %v7798, 1.0
    %v7819 = vadd.f32 %v7800, 1.0
    %v7820 = vadd.f32 %v7802, 1.0
    %v7821 = vadd.f32 %v7804, 1.0
    %v7822 = vadd.f32 %v7806, 1.0
    %v7823 = vrcp.pop %v7807
    %v7824 = vmul.f32 1.0, %v7823
    %v7825 = vrcp.pop %v7808
    %v7826 = vmul.f32 1.0, %v7825
    %v7827 = vrcp.pop %v7809
    %v7828 = vmul.f32 1.0, %v7827
    %v7829 = vrcp.pop %v7810
    %v7830 = vmul.f32 1.0, %v7829
    %v7831 = vrcp.pop %v7811
    %v7832 = vmul.f32 1.0, %v7831
    %v7833 = vrcp.pop %v7812
    %v7834 = vmul.f32 1.0, %v7833
    %v7835 = vrcp.pop %v7813
    %v7836 = vmul.f32 1.0, %v7835
    %v7837 = vrcp.pop %v7814
    %v7838 = vmul.f32 1.0, %v7837
    %v7839 = vrcp.pop %v7815
    %v7840 = vmul.f32 1.0, %v7839
    %v7841 = vrcp.pop %v7816
    %v7842 = vmul.f32 1.0, %v7841
    %v7843 = vrcp.pop %v7817
    %v7844 = vmul.f32 1.0, %v7843
    %v7845 = vrcp.pop %v7818
    %v7846 = vmul.f32 1.0, %v7845
    %v7847 = vrcp.pop %v7819
    %v7848 = vmul.f32 1.0, %v7847
    %v7849 = vrcp.pop %v7820
    %v7850 = vmul.f32 1.0, %v7849
    %v7851 = vrcp.pop %v7821
    %v7852 = vmul.f32 1.0, %v7851
    %v7853 = vrcp.pop %v7822
    %v7854 = vmul.f32 1.0, %v7853
    %v7855 = vmul.f32 %v4321, %v7824
    %v7856 = vmul.f32 %v4326, %v7826
    %v7857 = vmul.f32 %v4331, %v7828
    %v7858 = vmul.f32 %v4336, %v7830
    %v7859 = vmul.f32 %v4341, %v7832
    %v7860 = vmul.f32 %v4346, %v7834
    %v7861 = vmul.f32 %v4351, %v7836
    %v7862 = vmul.f32 %v4356, %v7838
    %v7863 = vmul.f32 %v4361, %v7840
    %v7864 = vmul.f32 %v4366, %v7842
    %v7865 = vmul.f32 %v4371, %v7844
    %v7866 = vmul.f32 %v4376, %v7846
    %v7867 = vmul.f32 %v4381, %v7848
    %v7868 = vmul.f32 %v4386, %v7850
    %v7869 = vmul.f32 %v4391, %v7852
    %v7870 = vmul.f32 %v4396, %v7854
    %v7871 = vld [vmem:[#allocation4] sm:$0xff]
    %v7872 = vld [vmem:[#allocation4 + $0x8] sm:$0xff]
    %v7873 = vld [vmem:[#allocation4 + $0x10] sm:$0xff]
    %v7874 = vld [vmem:[#allocation4 + $0x18] sm:$0xff]
    %v7875 = vld [vmem:[#allocation4 + $0x20] sm:$0xff]
    %v7876 = vld [vmem:[#allocation4 + $0x28] sm:$0xff]
    %v7877 = vld [vmem:[#allocation4 + $0x30] sm:$0xff]
    %v7878 = vld [vmem:[#allocation4 + $0x38] sm:$0xff]
    %v7879 = vld [vmem:[#allocation4 + $0x40] sm:$0xff]
    %v7880 = vld [vmem:[#allocation4 + $0x48] sm:$0xff]
    %v7881 = vld [vmem:[#allocation4 + $0x50] sm:$0xff]
    %v7882 = vld [vmem:[#allocation4 + $0x58] sm:$0xff]
    %v7883 = vld [vmem:[#allocation4 + $0x60] sm:$0xff]
    %v7884 = vld [vmem:[#allocation4 + $0x68] sm:$0xff]
    %v7885 = vld [vmem:[#allocation4 + $0x70] sm:$0xff]
    %v7886 = vld [vmem:[#allocation4 + $0x78] sm:$0xff]
    %v7887 = vld [vmem:[#allocation4 + $0x80] sm:$0xff]
    %v7888 = vld [vmem:[#allocation4 + $0x88] sm:$0xff]
    %v7889 = vld [vmem:[#allocation4 + $0x90] sm:$0xff]
    %v7890 = vld [vmem:[#allocation4 + $0x98] sm:$0xff]
    %v7891 = vld [vmem:[#allocation4 + $0xa0] sm:$0xff]
    %v7892 = vld [vmem:[#allocation4 + $0xa8] sm:$0xff]
    %v7893 = vld [vmem:[#allocation4 + $0xb0] sm:$0xff]
    %v7894 = vld [vmem:[#allocation4 + $0xb8] sm:$0xff]
    %v7895 = vld [vmem:[#allocation4 + $0xc0] sm:$0xff]
    %v7896 = vld [vmem:[#allocation4 + $0xc8] sm:$0xff]
    %v7897 = vld [vmem:[#allocation4 + $0xd0] sm:$0xff]
    %v7898 = vld [vmem:[#allocation4 + $0xd8] sm:$0xff]
    %v7899 = vld [vmem:[#allocation4 + $0xe0] sm:$0xff]
    %v7900 = vld [vmem:[#allocation4 + $0xe8] sm:$0xff]
    %v7901 = vld [vmem:[#allocation4 + $0xf0] sm:$0xff]
    %v7902 = vld [vmem:[#allocation4 + $0xf8] sm:$0xff]
    %v7903 = vld [vmem:[#allocation4 + $0x100] sm:$0xff]
    %v7904 = vld [vmem:[#allocation4 + $0x108] sm:$0xff]
    %v7905 = vld [vmem:[#allocation4 + $0x110] sm:$0xff]
    %v7906 = vld [vmem:[#allocation4 + $0x118] sm:$0xff]
    %v7907 = vld [vmem:[#allocation4 + $0x120] sm:$0xff]
    %v7908 = vld [vmem:[#allocation4 + $0x128] sm:$0xff]
    %v7909 = vld [vmem:[#allocation4 + $0x130] sm:$0xff]
    %v7910 = vld [vmem:[#allocation4 + $0x138] sm:$0xff]
    %v7911 = vld [vmem:[#allocation4 + $0x140] sm:$0xff]
    %v7912 = vld [vmem:[#allocation4 + $0x148] sm:$0xff]
    %v7913 = vld [vmem:[#allocation4 + $0x150] sm:$0xff]
    %v7914 = vld [vmem:[#allocation4 + $0x158] sm:$0xff]
    %v7915 = vld [vmem:[#allocation4 + $0x160] sm:$0xff]
    %v7916 = vld [vmem:[#allocation4 + $0x168] sm:$0xff]
    %v7917 = vld [vmem:[#allocation4 + $0x170] sm:$0xff]
    %v7918 = vld [vmem:[#allocation4 + $0x178] sm:$0xff]
    %v7919 = vld [vmem:[#allocation4 + $0x180] sm:$0xff]
    %v7920 = vld [vmem:[#allocation4 + $0x188] sm:$0xff]
    %v7921 = vld [vmem:[#allocation4 + $0x190] sm:$0xff]
    %v7922 = vld [vmem:[#allocation4 + $0x198] sm:$0xff]
    %v7923 = vld [vmem:[#allocation4 + $0x1a0] sm:$0xff]
    %v7924 = vld [vmem:[#allocation4 + $0x1a8] sm:$0xff]
    %v7925 = vld [vmem:[#allocation4 + $0x1b0] sm:$0xff]
    %v7926 = vld [vmem:[#allocation4 + $0x1b8] sm:$0xff]
    %v7927 = vld [vmem:[#allocation4 + $0x1c0] sm:$0xff]
    %v7928 = vld [vmem:[#allocation4 + $0x1c8] sm:$0xff]
    %v7929 = vld [vmem:[#allocation4 + $0x1d0] sm:$0xff]
    %v7930 = vld [vmem:[#allocation4 + $0x1d8] sm:$0xff]
    %v7931 = vld [vmem:[#allocation4 + $0x1e0] sm:$0xff]
    %v7932 = vld [vmem:[#allocation4 + $0x1e8] sm:$0xff]
    %v7933 = vld [vmem:[#allocation4 + $0x1f0] sm:$0xff]
    %v7934 = vld [vmem:[#allocation4 + $0x1f8] sm:$0xff]
    %v7935 = vld [vmem:[#allocation4 + $0x200] sm:$0xff]
    %v7936 = vld [vmem:[#allocation4 + $0x208] sm:$0xff]
    %v7937 = vld [vmem:[#allocation4 + $0x210] sm:$0xff]
    %v7938 = vld [vmem:[#allocation4 + $0x218] sm:$0xff]
    %v7939 = vld [vmem:[#allocation4 + $0x220] sm:$0xff]
    %v7940 = vld [vmem:[#allocation4 + $0x228] sm:$0xff]
    %v7941 = vld [vmem:[#allocation4 + $0x230] sm:$0xff]
    %v7942 = vld [vmem:[#allocation4 + $0x238] sm:$0xff]
    %v7943 = vld [vmem:[#allocation4 + $0x240] sm:$0xff]
    %v7944 = vld [vmem:[#allocation4 + $0x248] sm:$0xff]
    %v7945 = vld [vmem:[#allocation4 + $0x250] sm:$0xff]
    %v7946 = vld [vmem:[#allocation4 + $0x258] sm:$0xff]
    %v7947 = vld [vmem:[#allocation4 + $0x260] sm:$0xff]
    %v7948 = vld [vmem:[#allocation4 + $0x268] sm:$0xff]
    %v7949 = vld [vmem:[#allocation4 + $0x270] sm:$0xff]
    %v7950 = vld [vmem:[#allocation4 + $0x278] sm:$0xff]
    %v7951 = vld [vmem:[#allocation4 + $0x280] sm:$0xff]
    %v7952 = vld [vmem:[#allocation4 + $0x288] sm:$0xff]
    %v7953 = vld [vmem:[#allocation4 + $0x290] sm:$0xff]
    %v7954 = vld [vmem:[#allocation4 + $0x298] sm:$0xff]
    %v7955 = vld [vmem:[#allocation4 + $0x2a0] sm:$0xff]
    %v7956 = vld [vmem:[#allocation4 + $0x2a8] sm:$0xff]
    %v7957 = vld [vmem:[#allocation4 + $0x2b0] sm:$0xff]
    %v7958 = vld [vmem:[#allocation4 + $0x2b8] sm:$0xff]
    %v7959 = vld [vmem:[#allocation4 + $0x2c0] sm:$0xff]
    %v7960 = vld [vmem:[#allocation4 + $0x2c8] sm:$0xff]
    %v7961 = vld [vmem:[#allocation4 + $0x2d0] sm:$0xff]
    %v7962 = vld [vmem:[#allocation4 + $0x2d8] sm:$0xff]
    %v7963 = vld [vmem:[#allocation4 + $0x2e0] sm:$0xff]
    %v7964 = vld [vmem:[#allocation4 + $0x2e8] sm:$0xff]
    %v7965 = vld [vmem:[#allocation4 + $0x2f0] sm:$0xff]
    %v7966 = vld [vmem:[#allocation4 + $0x2f8] sm:$0xff]
    %v7967 = vld [vmem:[#allocation4 + $0x300] sm:$0xff]
    %v7968 = vld [vmem:[#allocation4 + $0x308] sm:$0xff]
    %v7969 = vld [vmem:[#allocation4 + $0x310] sm:$0xff]
    %v7970 = vld [vmem:[#allocation4 + $0x318] sm:$0xff]
    %v7971 = vld [vmem:[#allocation4 + $0x320] sm:$0xff]
    %v7972 = vld [vmem:[#allocation4 + $0x328] sm:$0xff]
    %v7973 = vld [vmem:[#allocation4 + $0x330] sm:$0xff]
    %v7974 = vld [vmem:[#allocation4 + $0x338] sm:$0xff]
    %v7975 = vld [vmem:[#allocation4 + $0x340] sm:$0xff]
    %v7976 = vld [vmem:[#allocation4 + $0x348] sm:$0xff]
    %v7977 = vld [vmem:[#allocation4 + $0x350] sm:$0xff]
    %v7978 = vld [vmem:[#allocation4 + $0x358] sm:$0xff]
    %v7979 = vld [vmem:[#allocation4 + $0x360] sm:$0xff]
    %v7980 = vld [vmem:[#allocation4 + $0x368] sm:$0xff]
    %v7981 = vld [vmem:[#allocation4 + $0x370] sm:$0xff]
    %v7982 = vld [vmem:[#allocation4 + $0x378] sm:$0xff]
    %v7983 = vld [vmem:[#allocation4 + $0x380] sm:$0xff]
    %v7984 = vld [vmem:[#allocation4 + $0x388] sm:$0xff]
    %v7985 = vld [vmem:[#allocation4 + $0x390] sm:$0xff]
    %v7986 = vld [vmem:[#allocation4 + $0x398] sm:$0xff]
    %v7987 = vld [vmem:[#allocation4 + $0x3a0] sm:$0xff]
    %v7988 = vld [vmem:[#allocation4 + $0x3a8] sm:$0xff]
    %v7989 = vld [vmem:[#allocation4 + $0x3b0] sm:$0xff]
    %v7990 = vld [vmem:[#allocation4 + $0x3b8] sm:$0xff]
    %v7991 = vld [vmem:[#allocation4 + $0x3c0] sm:$0xff]
    %v7992 = vld [vmem:[#allocation4 + $0x3c8] sm:$0xff]
    %v7993 = vld [vmem:[#allocation4 + $0x3d0] sm:$0xff]
    %v7994 = vld [vmem:[#allocation4 + $0x3d8] sm:$0xff]
    %v7995 = vld [vmem:[#allocation4 + $0x3e0] sm:$0xff]
    %v7996 = vld [vmem:[#allocation4 + $0x3e8] sm:$0xff]
    %v7997 = vld [vmem:[#allocation4 + $0x3f0] sm:$0xff]
    %v7998 = vld [vmem:[#allocation4 + $0x3f8] sm:$0xff]
    %v7999 = vld [vmem:[#allocation4 + $0x400] sm:$0xff]
    %v8000 = vld [vmem:[#allocation4 + $0x408] sm:$0xff]
    %v8001 = vld [vmem:[#allocation4 + $0x410] sm:$0xff]
    %v8002 = vld [vmem:[#allocation4 + $0x418] sm:$0xff]
    %v8003 = vld [vmem:[#allocation4 + $0x420] sm:$0xff]
    %v8004 = vld [vmem:[#allocation4 + $0x428] sm:$0xff]
    %v8005 = vld [vmem:[#allocation4 + $0x430] sm:$0xff]
    %v8006 = vld [vmem:[#allocation4 + $0x438] sm:$0xff]
    %v8007 = vld [vmem:[#allocation4 + $0x440] sm:$0xff]
    %v8008 = vld [vmem:[#allocation4 + $0x448] sm:$0xff]
    %v8009 = vld [vmem:[#allocation4 + $0x450] sm:$0xff]
    %v8010 = vld [vmem:[#allocation4 + $0x458] sm:$0xff]
    %v8011 = vld [vmem:[#allocation4 + $0x460] sm:$0xff]
    %v8012 = vld [vmem:[#allocation4 + $0x468] sm:$0xff]
    %v8013 = vld [vmem:[#allocation4 + $0x470] sm:$0xff]
    %v8014 = vld [vmem:[#allocation4 + $0x478] sm:$0xff]
    %8015 = vmatprep.subr.mxu0 0.0
    %8016 = vmatpush1.msra.mxu0 %v7886
    %8017 = vmatprep.subr.mxu0 0.0
    %8018 = vmatpush1.msra.mxu0 %v7885
    %8019 = vmatprep.subr.mxu0 0.0
    %8020 = vmatpush1.msra.mxu0 %v7884
    %8021 = vmatprep.subr.mxu0 0.0
    %8022 = vmatpush1.msra.mxu0 %v7883
    %8023 = vmatprep.subr.mxu0 0.0
    %8024 = vmatpush1.msra.mxu0 %v7882
    %8025 = vmatprep.subr.mxu0 0.0
    %8026 = vmatpush1.msra.mxu0 %v7881
    %8027 = vmatprep.subr.mxu0 0.0
    %8028 = vmatpush1.msra.mxu0 %v7880
    %8029 = vmatprep.subr.mxu0 0.0
    %8030 = vmatpush1.msra.mxu0 %v7879
    %8031 = vmatprep.subr.mxu0 0.0
    %8032 = vmatpush1.msra.mxu0 %v7878
    %8033 = vmatprep.subr.mxu0 0.0
    %8034 = vmatpush1.msra.mxu0 %v7877
    %8035 = vmatprep.subr.mxu0 0.0
    %8036 = vmatpush1.msra.mxu0 %v7876
    %8037 = vmatprep.subr.mxu0 0.0
    %8038 = vmatpush1.msra.mxu0 %v7875
    %8039 = vmatprep.subr.mxu0 0.0
    %8040 = vmatpush1.msra.mxu0 %v7874
    %8041 = vmatprep.subr.mxu0 0.0
    %8042 = vmatpush1.msra.mxu0 %v7873
    %8043 = vmatprep.subr.mxu0 0.0
    %8044 = vmatpush1.msra.mxu0 %v7872
    %8045 = vmatprep.subr.mxu0 0.0
    %8046 = vmatpush1.msra.mxu0 %v7871
    %8047 = vmatprep.subr.mxu0 0.0
    %8048 = vmatpush2.msra.mxu0 %v7902
    %8049 = vmatprep.subr.mxu0 0.0
    %8050 = vmatpush2.msra.mxu0 %v7901
    %8051 = vmatprep.subr.mxu0 0.0
    %8052 = vmatpush2.msra.mxu0 %v7900
    %8053 = vmatprep.subr.mxu0 0.0
    %8054 = vmatpush2.msra.mxu0 %v7899
    %8055 = vmatprep.subr.mxu0 0.0
    %8056 = vmatpush2.msra.mxu0 %v7898
    %8057 = vmatprep.subr.mxu0 0.0
    %8058 = vmatpush2.msra.mxu0 %v7897
    %8059 = vmatprep.subr.mxu0 0.0
    %8060 = vmatpush2.msra.mxu0 %v7896
    %8061 = vmatprep.subr.mxu0 0.0
    %8062 = vmatpush2.msra.mxu0 %v7895
    %8063 = vmatprep.subr.mxu0 0.0
    %8064 = vmatpush2.msra.mxu0 %v7894
    %8065 = vmatprep.subr.mxu0 0.0
    %8066 = vmatpush2.msra.mxu0 %v7893
    %8067 = vmatprep.subr.mxu0 0.0
    %8068 = vmatpush2.msra.mxu0 %v7892
    %8069 = vmatprep.subr.mxu0 0.0
    %8070 = vmatpush2.msra.mxu0 %v7891
    %8071 = vmatprep.subr.mxu0 0.0
    %8072 = vmatpush2.msra.mxu0 %v7890
    %8073 = vmatprep.subr.mxu0 0.0
    %8074 = vmatpush2.msra.mxu0 %v7889
    %8075 = vmatprep.subr.mxu0 0.0
    %8076 = vmatpush2.msra.mxu0 %v7888
    %8077 = vmatprep.subr.mxu0 0.0
    %8078 = vmatpush2.msra.mxu0 %v7887
    %8079 = vmatprep.mubr.f32.mxu0 %v7183
    %8080 = vmatmul.mubr.f32.gmra.mxu0 %v7855
    %v8081 = vpop.f32.mrf.mxu0
    %v8082 = vadd.f32 0.0, %v8081
    %v8083 = vpop.f32.mrf.mxu0
    %8084 = vmatprep.mubr.f32.mxu0 %v7184
    %8085 = vmatmul.mubr.f32.gmra.mxu0 %v7856
    %v8086 = vpop.f32.mrf.mxu0
    %v8087 = vadd.f32 0.0, %v8086
    %v8088 = vpop.f32.mrf.mxu0
    %8089 = vmatprep.mubr.f32.mxu0 %v7185
    %8090 = vmatmul.mubr.f32.gmra.mxu0 %v7857
    %v8091 = vpop.f32.mrf.mxu0
    %v8092 = vadd.f32 0.0, %v8091
    %v8093 = vpop.f32.mrf.mxu0
    %8094 = vmatprep.mubr.f32.mxu0 %v7186
    %8095 = vmatmul.mubr.f32.gmra.mxu0 %v7858
    %v8096 = vpop.f32.mrf.mxu0
    %v8097 = vadd.f32 0.0, %v8096
    %v8098 = vpop.f32.mrf.mxu0
    %8099 = vmatprep.mubr.f32.mxu0 %v7187
    %8100 = vmatmul.mubr.f32.gmra.mxu0 %v7859
    %v8101 = vpop.f32.mrf.mxu0
    %v8102 = vadd.f32 0.0, %v8101
    %v8103 = vpop.f32.mrf.mxu0
    %8104 = vmatprep.mubr.f32.mxu0 %v7188
    %8105 = vmatmul.mubr.f32.gmra.mxu0 %v7860
    %v8106 = vpop.f32.mrf.mxu0
    %v8107 = vadd.f32 0.0, %v8106
    %v8108 = vpop.f32.mrf.mxu0
    %8109 = vmatprep.mubr.f32.mxu0 %v7189
    %8110 = vmatmul.mubr.f32.gmra.mxu0 %v7861
    %v8111 = vpop.f32.mrf.mxu0
    %v8112 = vadd.f32 0.0, %v8111
    %v8113 = vpop.f32.mrf.mxu0
    %8114 = vmatprep.mubr.f32.mxu0 %v7190
    %8115 = vmatmul.mubr.f32.gmra.mxu0 %v7862
    %v8116 = vpop.f32.mrf.mxu0
    %v8117 = vadd.f32 0.0, %v8116
    %v8118 = vpop.f32.mrf.mxu0
    %8119 = vmatprep.mubr.f32.mxu0 %v7191
    %8120 = vmatmul.mubr.f32.gmra.mxu0 %v7863
    %v8121 = vpop.f32.mrf.mxu0
    %v8122 = vadd.f32 0.0, %v8121
    %v8123 = vpop.f32.mrf.mxu0
    %8124 = vmatprep.mubr.f32.mxu0 %v7192
    %8125 = vmatmul.mubr.f32.gmra.mxu0 %v7864
    %v8126 = vpop.f32.mrf.mxu0
    %v8127 = vadd.f32 0.0, %v8126
    %v8128 = vpop.f32.mrf.mxu0
    %8129 = vmatprep.mubr.f32.mxu0 %v7193
    %8130 = vmatmul.mubr.f32.gmra.mxu0 %v7865
    %v8131 = vpop.f32.mrf.mxu0
    %v8132 = vadd.f32 0.0, %v8131
    %v8133 = vpop.f32.mrf.mxu0
    %8134 = vmatprep.mubr.f32.mxu0 %v7194
    %8135 = vmatmul.mubr.f32.gmra.mxu0 %v7866
    %v8136 = vpop.f32.mrf.mxu0
    %v8137 = vadd.f32 0.0, %v8136
    %v8138 = vpop.f32.mrf.mxu0
    %8139 = vmatprep.mubr.f32.mxu0 %v7195
    %8140 = vmatmul.mubr.f32.gmra.mxu0 %v7867
    %v8141 = vpop.f32.mrf.mxu0
    %v8142 = vadd.f32 0.0, %v8141
    %v8143 = vpop.f32.mrf.mxu0
    %8144 = vmatprep.mubr.f32.mxu0 %v7196
    %8145 = vmatmul.mubr.f32.gmra.mxu0 %v7868
    %v8146 = vpop.f32.mrf.mxu0
    %v8147 = vadd.f32 0.0, %v8146
    %v8148 = vpop.f32.mrf.mxu0
    %8149 = vmatprep.mubr.f32.mxu0 %v7197
    %8150 = vmatmul.mubr.f32.gmra.mxu0 %v7869
    %v8151 = vpop.f32.mrf.mxu0
    %v8152 = vadd.f32 0.0, %v8151
    %v8153 = vpop.f32.mrf.mxu0
    %8154 = vmatprep.mubr.f32.mxu0 %v7198
    %8155 = vmatmul.mubr.f32.gmra.mxu0 %v7870
    %v8156 = vpop.f32.mrf.mxu0
    %v8157 = vadd.f32 0.0, %v8156
    %v8158 = vpop.f32.mrf.mxu0
    %8159 = vdwg.mxu0
    %8160 = vmatprep.subr.mxu0 0.0
    %8161 = vmatpush1.msra.mxu0 %v7918
    %8162 = vmatprep.subr.mxu0 0.0
    %8163 = vmatpush1.msra.mxu0 %v7917
    %8164 = vmatprep.subr.mxu0 0.0
    %8165 = vmatpush1.msra.mxu0 %v7916
    %8166 = vmatprep.subr.mxu0 0.0
    %8167 = vmatpush1.msra.mxu0 %v7915
    %8168 = vmatprep.subr.mxu0 0.0
    %8169 = vmatpush1.msra.mxu0 %v7914
    %8170 = vmatprep.subr.mxu0 0.0
    %8171 = vmatpush1.msra.mxu0 %v7913
    %8172 = vmatprep.subr.mxu0 0.0
    %8173 = vmatpush1.msra.mxu0 %v7912
    %8174 = vmatprep.subr.mxu0 0.0
    %8175 = vmatpush1.msra.mxu0 %v7911
    %8176 = vmatprep.subr.mxu0 0.0
    %8177 = vmatpush1.msra.mxu0 %v7910
    %8178 = vmatprep.subr.mxu0 0.0
    %8179 = vmatpush1.msra.mxu0 %v7909
    %8180 = vmatprep.subr.mxu0 0.0
    %8181 = vmatpush1.msra.mxu0 %v7908
    %8182 = vmatprep.subr.mxu0 0.0
    %8183 = vmatpush1.msra.mxu0 %v7907
    %8184 = vmatprep.subr.mxu0 0.0
    %8185 = vmatpush1.msra.mxu0 %v7906
    %8186 = vmatprep.subr.mxu0 0.0
    %8187 = vmatpush1.msra.mxu0 %v7905
    %8188 = vmatprep.subr.mxu0 0.0
    %8189 = vmatpush1.msra.mxu0 %v7904
    %8190 = vmatprep.subr.mxu0 0.0
    %8191 = vmatpush1.msra.mxu0 %v7903
    %8192 = vmatprep.subr.mxu0 0.0
    %8193 = vmatpush2.msra.mxu0 %v7934
    %8194 = vmatprep.subr.mxu0 0.0
    %8195 = vmatpush2.msra.mxu0 %v7933
    %8196 = vmatprep.subr.mxu0 0.0
    %8197 = vmatpush2.msra.mxu0 %v7932
    %8198 = vmatprep.subr.mxu0 0.0
    %8199 = vmatpush2.msra.mxu0 %v7931
    %8200 = vmatprep.subr.mxu0 0.0
    %8201 = vmatpush2.msra.mxu0 %v7930
    %8202 = vmatprep.subr.mxu0 0.0
    %8203 = vmatpush2.msra.mxu0 %v7929
    %8204 = vmatprep.subr.mxu0 0.0
    %8205 = vmatpush2.msra.mxu0 %v7928
    %8206 = vmatprep.subr.mxu0 0.0
    %8207 = vmatpush2.msra.mxu0 %v7927
    %8208 = vmatprep.subr.mxu0 0.0
    %8209 = vmatpush2.msra.mxu0 %v7926
    %8210 = vmatprep.subr.mxu0 0.0
    %8211 = vmatpush2.msra.mxu0 %v7925
    %8212 = vmatprep.subr.mxu0 0.0
    %8213 = vmatpush2.msra.mxu0 %v7924
    %8214 = vmatprep.subr.mxu0 0.0
    %8215 = vmatpush2.msra.mxu0 %v7923
    %8216 = vmatprep.subr.mxu0 0.0
    %8217 = vmatpush2.msra.mxu0 %v7922
    %8218 = vmatprep.subr.mxu0 0.0
    %8219 = vmatpush2.msra.mxu0 %v7921
    %8220 = vmatprep.subr.mxu0 0.0
    %8221 = vmatpush2.msra.mxu0 %v7920
    %8222 = vmatprep.subr.mxu0 0.0
    %8223 = vmatpush2.msra.mxu0 %v7919
    %8224 = vmatprep.mubr.f32.mxu0 %v7343
    %8225 = vmatmul.mubr.f32.gmra.mxu0 %v7263
    %v8226 = vpop.f32.mrf.mxu0
    %v8227 = vadd.f32 %v8082, %v8226
    %v8228 = vpop.f32.mrf.mxu0
    %8229 = vmatprep.mubr.f32.mxu0 %v7344
    %8230 = vmatmul.mubr.f32.gmra.mxu0 %v7264
    %v8231 = vpop.f32.mrf.mxu0
    %v8232 = vadd.f32 %v8087, %v8231
    %v8233 = vpop.f32.mrf.mxu0
    %8234 = vmatprep.mubr.f32.mxu0 %v7345
    %8235 = vmatmul.mubr.f32.gmra.mxu0 %v7265
    %v8236 = vpop.f32.mrf.mxu0
    %v8237 = vadd.f32 %v8092, %v8236
    %v8238 = vpop.f32.mrf.mxu0
    %8239 = vmatprep.mubr.f32.mxu0 %v7346
    %8240 = vmatmul.mubr.f32.gmra.mxu0 %v7266
    %v8241 = vpop.f32.mrf.mxu0
    %v8242 = vadd.f32 %v8097, %v8241
    %v8243 = vpop.f32.mrf.mxu0
    %8244 = vmatprep.mubr.f32.mxu0 %v7347
    %8245 = vmatmul.mubr.f32.gmra.mxu0 %v7267
    %v8246 = vpop.f32.mrf.mxu0
    %v8247 = vadd.f32 %v8102, %v8246
    %v8248 = vpop.f32.mrf.mxu0
    %8249 = vmatprep.mubr.f32.mxu0 %v7348
    %8250 = vmatmul.mubr.f32.gmra.mxu0 %v7268
    %v8251 = vpop.f32.mrf.mxu0
    %v8252 = vadd.f32 %v8107, %v8251
    %v8253 = vpop.f32.mrf.mxu0
    %8254 = vmatprep.mubr.f32.mxu0 %v7349
    %8255 = vmatmul.mubr.f32.gmra.mxu0 %v7269
    %v8256 = vpop.f32.mrf.mxu0
    %v8257 = vadd.f32 %v8112, %v8256
    %v8258 = vpop.f32.mrf.mxu0
    %8259 = vmatprep.mubr.f32.mxu0 %v7350
    %8260 = vmatmul.mubr.f32.gmra.mxu0 %v7270
    %v8261 = vpop.f32.mrf.mxu0
    %v8262 = vadd.f32 %v8117, %v8261
    %v8263 = vpop.f32.mrf.mxu0
    %8264 = vmatprep.mubr.f32.mxu0 %v7351
    %8265 = vmatmul.mubr.f32.gmra.mxu0 %v7271
    %v8266 = vpop.f32.mrf.mxu0
    %v8267 = vadd.f32 %v8122, %v8266
    %v8268 = vpop.f32.mrf.mxu0
    %8269 = vmatprep.mubr.f32.mxu0 %v7352
    %8270 = vmatmul.mubr.f32.gmra.mxu0 %v7272
    %v8271 = vpop.f32.mrf.mxu0
    %v8272 = vadd.f32 %v8127, %v8271
    %v8273 = vpop.f32.mrf.mxu0
    %8274 = vmatprep.mubr.f32.mxu0 %v7353
    %8275 = vmatmul.mubr.f32.gmra.mxu0 %v7273
    %v8276 = vpop.f32.mrf.mxu0
    %v8277 = vadd.f32 %v8132, %v8276
    %v8278 = vpop.f32.mrf.mxu0
    %8279 = vmatprep.mubr.f32.mxu0 %v7354
    %8280 = vmatmul.mubr.f32.gmra.mxu0 %v7274
    %v8281 = vpop.f32.mrf.mxu0
    %v8282 = vadd.f32 %v8137, %v8281
    %v8283 = vpop.f32.mrf.mxu0
    %8284 = vmatprep.mubr.f32.mxu0 %v7355
    %8285 = vmatmul.mubr.f32.gmra.mxu0 %v7275
    %v8286 = vpop.f32.mrf.mxu0
    %v8287 = vadd.f32 %v8142, %v8286
    %v8288 = vpop.f32.mrf.mxu0
    %8289 = vmatprep.mubr.f32.mxu0 %v7356
    %8290 = vmatmul.mubr.f32.gmra.mxu0 %v7276
    %v8291 = vpop.f32.mrf.mxu0
    %v8292 = vadd.f32 %v8147, %v8291
    %v8293 = vpop.f32.mrf.mxu0
    %8294 = vmatprep.mubr.f32.mxu0 %v7357
    %8295 = vmatmul.mubr.f32.gmra.mxu0 %v7277
    %v8296 = vpop.f32.mrf.mxu0
    %v8297 = vadd.f32 %v8152, %v8296
    %v8298 = vpop.f32.mrf.mxu0
    %8299 = vmatprep.mubr.f32.mxu0 %v7358
    %8300 = vmatmul.mubr.f32.gmra.mxu0 %v7278
    %v8301 = vpop.f32.mrf.mxu0
    %v8302 = vadd.f32 %v8157, %v8301
    %v8303 = vpop.f32.mrf.mxu0
    %8304 = vdwg.mxu0
    %8305 = vmatprep.subr.mxu0 0.0
    %8306 = vmatpush1.msra.mxu0 %v7950
    %8307 = vmatprep.subr.mxu0 0.0
    %8308 = vmatpush1.msra.mxu0 %v7949
    %8309 = vmatprep.subr.mxu0 0.0
    %8310 = vmatpush1.msra.mxu0 %v7948
    %8311 = vmatprep.subr.mxu0 0.0
    %8312 = vmatpush1.msra.mxu0 %v7947
    %8313 = vmatprep.subr.mxu0 0.0
    %8314 = vmatpush1.msra.mxu0 %v7946
    %8315 = vmatprep.subr.mxu0 0.0
    %8316 = vmatpush1.msra.mxu0 %v7945
    %8317 = vmatprep.subr.mxu0 0.0
    %8318 = vmatpush1.msra.mxu0 %v7944
    %8319 = vmatprep.subr.mxu0 0.0
    %8320 = vmatpush1.msra.mxu0 %v7943
    %8321 = vmatprep.subr.mxu0 0.0
    %8322 = vmatpush1.msra.mxu0 %v7942
    %8323 = vmatprep.subr.mxu0 0.0
    %8324 = vmatpush1.msra.mxu0 %v7941
    %8325 = vmatprep.subr.mxu0 0.0
    %8326 = vmatpush1.msra.mxu0 %v7940
    %8327 = vmatprep.subr.mxu0 0.0
    %8328 = vmatpush1.msra.mxu0 %v7939
    %8329 = vmatprep.subr.mxu0 0.0
    %8330 = vmatpush1.msra.mxu0 %v7938
    %8331 = vmatprep.subr.mxu0 0.0
    %8332 = vmatpush1.msra.mxu0 %v7937
    %8333 = vmatprep.subr.mxu0 0.0
    %8334 = vmatpush1.msra.mxu0 %v7936
    %8335 = vmatprep.subr.mxu0 0.0
    %8336 = vmatpush1.msra.mxu0 %v7935
    %8337 = vmatprep.subr.mxu0 0.0
    %8338 = vmatpush2.msra.mxu0 %v7966
    %8339 = vmatprep.subr.mxu0 0.0
    %8340 = vmatpush2.msra.mxu0 %v7965
    %8341 = vmatprep.subr.mxu0 0.0
    %8342 = vmatpush2.msra.mxu0 %v7964
    %8343 = vmatprep.subr.mxu0 0.0
    %8344 = vmatpush2.msra.mxu0 %v7963
    %8345 = vmatprep.subr.mxu0 0.0
    %8346 = vmatpush2.msra.mxu0 %v7962
    %8347 = vmatprep.subr.mxu0 0.0
    %8348 = vmatpush2.msra.mxu0 %v7961
    %8349 = vmatprep.subr.mxu0 0.0
    %8350 = vmatpush2.msra.mxu0 %v7960
    %8351 = vmatprep.subr.mxu0 0.0
    %8352 = vmatpush2.msra.mxu0 %v7959
    %8353 = vmatprep.subr.mxu0 0.0
    %8354 = vmatpush2.msra.mxu0 %v7958
    %8355 = vmatprep.subr.mxu0 0.0
    %8356 = vmatpush2.msra.mxu0 %v7957
    %8357 = vmatprep.subr.mxu0 0.0
    %8358 = vmatpush2.msra.mxu0 %v7956
    %8359 = vmatprep.subr.mxu0 0.0
    %8360 = vmatpush2.msra.mxu0 %v7955
    %8361 = vmatprep.subr.mxu0 0.0
    %8362 = vmatpush2.msra.mxu0 %v7954
    %8363 = vmatprep.subr.mxu0 0.0
    %8364 = vmatpush2.msra.mxu0 %v7953
    %8365 = vmatprep.subr.mxu0 0.0
    %8366 = vmatpush2.msra.mxu0 %v7952
    %8367 = vmatprep.subr.mxu0 0.0
    %8368 = vmatpush2.msra.mxu0 %v7951
    %8369 = vmatprep.mubr.f32.mxu0 %v7503
    %8370 = vmatmul.mubr.f32.gmra.mxu0 %v7423
    %v8371 = vpop.f32.mrf.mxu0
    %v8372 = vadd.f32 %v8227, %v8371
    %v8373 = vpop.f32.mrf.mxu0
    %8374 = vmatprep.mubr.f32.mxu0 %v7504
    %8375 = vmatmul.mubr.f32.gmra.mxu0 %v7424
    %v8376 = vpop.f32.mrf.mxu0
    %v8377 = vadd.f32 %v8232, %v8376
    %v8378 = vpop.f32.mrf.mxu0
    %8379 = vmatprep.mubr.f32.mxu0 %v7505
    %8380 = vmatmul.mubr.f32.gmra.mxu0 %v7425
    %v8381 = vpop.f32.mrf.mxu0
    %v8382 = vadd.f32 %v8237, %v8381
    %v8383 = vpop.f32.mrf.mxu0
    %8384 = vmatprep.mubr.f32.mxu0 %v7506
    %8385 = vmatmul.mubr.f32.gmra.mxu0 %v7426
    %v8386 = vpop.f32.mrf.mxu0
    %v8387 = vadd.f32 %v8242, %v8386
    %v8388 = vpop.f32.mrf.mxu0
    %8389 = vmatprep.mubr.f32.mxu0 %v7507
    %8390 = vmatmul.mubr.f32.gmra.mxu0 %v7427
    %v8391 = vpop.f32.mrf.mxu0
    %v8392 = vadd.f32 %v8247, %v8391
    %v8393 = vpop.f32.mrf.mxu0
    %8394 = vmatprep.mubr.f32.mxu0 %v7508
    %8395 = vmatmul.mubr.f32.gmra.mxu0 %v7428
    %v8396 = vpop.f32.mrf.mxu0
    %v8397 = vadd.f32 %v8252, %v8396
    %v8398 = vpop.f32.mrf.mxu0
    %8399 = vmatprep.mubr.f32.mxu0 %v7509
    %8400 = vmatmul.mubr.f32.gmra.mxu0 %v7429
    %v8401 = vpop.f32.mrf.mxu0
    %v8402 = vadd.f32 %v8257, %v8401
    %v8403 = vpop.f32.mrf.mxu0
    %8404 = vmatprep.mubr.f32.mxu0 %v7510
    %8405 = vmatmul.mubr.f32.gmra.mxu0 %v7430
    %v8406 = vpop.f32.mrf.mxu0
    %v8407 = vadd.f32 %v8262, %v8406
    %v8408 = vpop.f32.mrf.mxu0
    %8409 = vmatprep.mubr.f32.mxu0 %v7511
    %8410 = vmatmul.mubr.f32.gmra.mxu0 %v7431
    %v8411 = vpop.f32.mrf.mxu0
    %v8412 = vadd.f32 %v8267, %v8411
    %v8413 = vpop.f32.mrf.mxu0
    %8414 = vmatprep.mubr.f32.mxu0 %v7512
    %8415 = vmatmul.mubr.f32.gmra.mxu0 %v7432
    %v8416 = vpop.f32.mrf.mxu0
    %v8417 = vadd.f32 %v8272, %v8416
    %v8418 = vpop.f32.mrf.mxu0
    %8419 = vmatprep.mubr.f32.mxu0 %v7513
    %8420 = vmatmul.mubr.f32.gmra.mxu0 %v7433
    %v8421 = vpop.f32.mrf.mxu0
    %v8422 = vadd.f32 %v8277, %v8421
    %v8423 = vpop.f32.mrf.mxu0
    %8424 = vmatprep.mubr.f32.mxu0 %v7514
    %8425 = vmatmul.mubr.f32.gmra.mxu0 %v7434
    %v8426 = vpop.f32.mrf.mxu0
    %v8427 = vadd.f32 %v8282, %v8426
    %v8428 = vpop.f32.mrf.mxu0
    %8429 = vmatprep.mubr.f32.mxu0 %v7515
    %8430 = vmatmul.mubr.f32.gmra.mxu0 %v7435
    %v8431 = vpop.f32.mrf.mxu0
    %v8432 = vadd.f32 %v8287, %v8431
    %v8433 = vpop.f32.mrf.mxu0
    %8434 = vmatprep.mubr.f32.mxu0 %v7516
    %8435 = vmatmul.mubr.f32.gmra.mxu0 %v7436
    %v8436 = vpop.f32.mrf.mxu0
    %v8437 = vadd.f32 %v8292, %v8436
    %v8438 = vpop.f32.mrf.mxu0
    %8439 = vmatprep.mubr.f32.mxu0 %v7517
    %8440 = vmatmul.mubr.f32.gmra.mxu0 %v7437
    %v8441 = vpop.f32.mrf.mxu0
    %v8442 = vadd.f32 %v8297, %v8441
    %v8443 = vpop.f32.mrf.mxu0
    %8444 = vmatprep.mubr.f32.mxu0 %v7518
    %8445 = vmatmul.mubr.f32.gmra.mxu0 %v7438
    %v8446 = vpop.f32.mrf.mxu0
    %v8447 = vadd.f32 %v8302, %v8446
    %v8448 = vpop.f32.mrf.mxu0
    %8449 = vdwg.mxu0
    %8450 = vmatprep.subr.mxu0 0.0
    %8451 = vmatpush1.msra.mxu0 %v7982
    %8452 = vmatprep.subr.mxu0 0.0
    %8453 = vmatpush1.msra.mxu0 %v7981
    %8454 = vmatprep.subr.mxu0 0.0
    %8455 = vmatpush1.msra.mxu0 %v7980
    %8456 = vmatprep.subr.mxu0 0.0
    %8457 = vmatpush1.msra.mxu0 %v7979
    %8458 = vmatprep.subr.mxu0 0.0
    %8459 = vmatpush1.msra.mxu0 %v7978
    %8460 = vmatprep.subr.mxu0 0.0
    %8461 = vmatpush1.msra.mxu0 %v7977
    %8462 = vmatprep.subr.mxu0 0.0
    %8463 = vmatpush1.msra.mxu0 %v7976
    %8464 = vmatprep.subr.mxu0 0.0
    %8465 = vmatpush1.msra.mxu0 %v7975
    %8466 = vmatprep.subr.mxu0 0.0
    %8467 = vmatpush1.msra.mxu0 %v7974
    %8468 = vmatprep.subr.mxu0 0.0
    %8469 = vmatpush1.msra.mxu0 %v7973
    %8470 = vmatprep.subr.mxu0 0.0
    %8471 = vmatpush1.msra.mxu0 %v7972
    %8472 = vmatprep.subr.mxu0 0.0
    %8473 = vmatpush1.msra.mxu0 %v7971
    %8474 = vmatprep.subr.mxu0 0.0
    %8475 = vmatpush1.msra.mxu0 %v7970
    %8476 = vmatprep.subr.mxu0 0.0
    %8477 = vmatpush1.msra.mxu0 %v7969
    %8478 = vmatprep.subr.mxu0 0.0
    %8479 = vmatpush1.msra.mxu0 %v7968
    %8480 = vmatprep.subr.mxu0 0.0
    %8481 = vmatpush1.msra.mxu0 %v7967
    %8482 = vmatprep.subr.mxu0 0.0
    %8483 = vmatpush2.msra.mxu0 %v7998
    %8484 = vmatprep.subr.mxu0 0.0
    %8485 = vmatpush2.msra.mxu0 %v7997
    %8486 = vmatprep.subr.mxu0 0.0
    %8487 = vmatpush2.msra.mxu0 %v7996
    %8488 = vmatprep.subr.mxu0 0.0
    %8489 = vmatpush2.msra.mxu0 %v7995
    %8490 = vmatprep.subr.mxu0 0.0
    %8491 = vmatpush2.msra.mxu0 %v7994
    %8492 = vmatprep.subr.mxu0 0.0
    %8493 = vmatpush2.msra.mxu0 %v7993
    %8494 = vmatprep.subr.mxu0 0.0
    %8495 = vmatpush2.msra.mxu0 %v7992
    %8496 = vmatprep.subr.mxu0 0.0
    %8497 = vmatpush2.msra.mxu0 %v7991
    %8498 = vmatprep.subr.mxu0 0.0
    %8499 = vmatpush2.msra.mxu0 %v7990
    %8500 = vmatprep.subr.mxu0 0.0
    %8501 = vmatpush2.msra.mxu0 %v7989
    %8502 = vmatprep.subr.mxu0 0.0
    %8503 = vmatpush2.msra.mxu0 %v7988
    %8504 = vmatprep.subr.mxu0 0.0
    %8505 = vmatpush2.msra.mxu0 %v7987
    %8506 = vmatprep.subr.mxu0 0.0
    %8507 = vmatpush2.msra.mxu0 %v7986
    %8508 = vmatprep.subr.mxu0 0.0
    %8509 = vmatpush2.msra.mxu0 %v7985
    %8510 = vmatprep.subr.mxu0 0.0
    %8511 = vmatpush2.msra.mxu0 %v7984
    %8512 = vmatprep.subr.mxu0 0.0
    %8513 = vmatpush2.msra.mxu0 %v7983
    %8514 = vmatprep.mubr.f32.mxu0 %v7663
    %8515 = vmatmul.mubr.f32.gmra.mxu0 %v7583
    %v8516 = vpop.f32.mrf.mxu0
    %v8517 = vadd.f32 %v8372, %v8516
    %v8518 = vpop.f32.mrf.mxu0
    %8519 = vmatprep.mubr.f32.mxu0 %v7664
    %8520 = vmatmul.mubr.f32.gmra.mxu0 %v7584
    %v8521 = vpop.f32.mrf.mxu0
    %v8522 = vadd.f32 %v8377, %v8521
    %v8523 = vpop.f32.mrf.mxu0
    %8524 = vmatprep.mubr.f32.mxu0 %v7665
    %8525 = vmatmul.mubr.f32.gmra.mxu0 %v7585
    %v8526 = vpop.f32.mrf.mxu0
    %v8527 = vadd.f32 %v8382, %v8526
    %v8528 = vpop.f32.mrf.mxu0
    %8529 = vmatprep.mubr.f32.mxu0 %v7666
    %8530 = vmatmul.mubr.f32.gmra.mxu0 %v7586
    %v8531 = vpop.f32.mrf.mxu0
    %v8532 = vadd.f32 %v8387, %v8531
    %v8533 = vpop.f32.mrf.mxu0
    %8534 = vmatprep.mubr.f32.mxu0 %v7667
    %8535 = vmatmul.mubr.f32.gmra.mxu0 %v7587
    %v8536 = vpop.f32.mrf.mxu0
    %v8537 = vadd.f32 %v8392, %v8536
    %v8538 = vpop.f32.mrf.mxu0
    %8539 = vmatprep.mubr.f32.mxu0 %v7668
    %8540 = vmatmul.mubr.f32.gmra.mxu0 %v7588
    %v8541 = vpop.f32.mrf.mxu0
    %v8542 = vadd.f32 %v8397, %v8541
    %v8543 = vpop.f32.mrf.mxu0
    %8544 = vmatprep.mubr.f32.mxu0 %v7669
    %8545 = vmatmul.mubr.f32.gmra.mxu0 %v7589
    %v8546 = vpop.f32.mrf.mxu0
    %v8547 = vadd.f32 %v8402, %v8546
    %v8548 = vpop.f32.mrf.mxu0
    %8549 = vmatprep.mubr.f32.mxu0 %v7670
    %8550 = vmatmul.mubr.f32.gmra.mxu0 %v7590
    %v8551 = vpop.f32.mrf.mxu0
    %v8552 = vadd.f32 %v8407, %v8551
    %v8553 = vpop.f32.mrf.mxu0
    %8554 = vmatprep.mubr.f32.mxu0 %v7671
    %8555 = vmatmul.mubr.f32.gmra.mxu0 %v7591
    %v8556 = vpop.f32.mrf.mxu0
    %v8557 = vadd.f32 %v8412, %v8556
    %v8558 = vpop.f32.mrf.mxu0
    %8559 = vmatprep.mubr.f32.mxu0 %v7672
    %8560 = vmatmul.mubr.f32.gmra.mxu0 %v7592
    %v8561 = vpop.f32.mrf.mxu0
    %v8562 = vadd.f32 %v8417, %v8561
    %v8563 = vpop.f32.mrf.mxu0
    %8564 = vmatprep.mubr.f32.mxu0 %v7673
    %8565 = vmatmul.mubr.f32.gmra.mxu0 %v7593
    %v8566 = vpop.f32.mrf.mxu0
    %v8567 = vadd.f32 %v8422, %v8566
    %v8568 = vpop.f32.mrf.mxu0
    %8569 = vmatprep.mubr.f32.mxu0 %v7674
    %8570 = vmatmul.mubr.f32.gmra.mxu0 %v7594
    %v8571 = vpop.f32.mrf.mxu0
    %v8572 = vadd.f32 %v8427, %v8571
    %v8573 = vpop.f32.mrf.mxu0
    %8574 = vmatprep.mubr.f32.mxu0 %v7675
    %8575 = vmatmul.mubr.f32.gmra.mxu0 %v7595
    %v8576 = vpop.f32.mrf.mxu0
    %v8577 = vadd.f32 %v8432, %v8576
    %v8578 = vpop.f32.mrf.mxu0
    %8579 = vmatprep.mubr.f32.mxu0 %v7676
    %8580 = vmatmul.mubr.f32.gmra.mxu0 %v7596
    %v8581 = vpop.f32.mrf.mxu0
    %v8582 = vadd.f32 %v8437, %v8581
    %v8583 = vpop.f32.mrf.mxu0
    %8584 = vmatprep.mubr.f32.mxu0 %v7677
    %8585 = vmatmul.mubr.f32.gmra.mxu0 %v7597
    %v8586 = vpop.f32.mrf.mxu0
    %v8587 = vadd.f32 %v8442, %v8586
    %v8588 = vpop.f32.mrf.mxu0
    %8589 = vmatprep.mubr.f32.mxu0 %v7678
    %8590 = vmatmul.mubr.f32.gmra.mxu0 %v7598
    %v8591 = vpop.f32.mrf.mxu0
    %v8592 = vadd.f32 %v8447, %v8591
    %v8593 = vpop.f32.mrf.mxu0
    %8594 = vdwg.mxu0
    %8595 = vmatprep.subr.mxu0 0.0
    %8596 = vmatpush1.msra.mxu0 %v8014
    %8597 = vmatprep.subr.mxu0 0.0
    %8598 = vmatpush1.msra.mxu0 %v8013
    %8599 = vmatprep.subr.mxu0 0.0
    %8600 = vmatpush1.msra.mxu0 %v8012
    %8601 = vmatprep.subr.mxu0 0.0
    %8602 = vmatpush1.msra.mxu0 %v8011
    %8603 = vmatprep.subr.mxu0 0.0
    %8604 = vmatpush1.msra.mxu0 %v8010
    %8605 = vmatprep.subr.mxu0 0.0
    %8606 = vmatpush1.msra.mxu0 %v8009
    %8607 = vmatprep.subr.mxu0 0.0
    %8608 = vmatpush1.msra.mxu0 %v8008
    %8609 = vmatprep.subr.mxu0 0.0
    %8610 = vmatpush1.msra.mxu0 %v8007
    %8611 = vmatprep.subr.mxu0 0.0
    %8612 = vmatpush1.msra.mxu0 %v8006
    %8613 = vmatprep.subr.mxu0 0.0
    %8614 = vmatpush1.msra.mxu0 %v8005
    %8615 = vmatprep.subr.mxu0 0.0
    %8616 = vmatpush1.msra.mxu0 %v8004
    %8617 = vmatprep.subr.mxu0 0.0
    %8618 = vmatpush1.msra.mxu0 %v8003
    %8619 = vmatprep.subr.mxu0 0.0
    %8620 = vmatpush1.msra.mxu0 %v8002
    %8621 = vmatprep.subr.mxu0 0.0
    %8622 = vmatpush1.msra.mxu0 %v8001
    %8623 = vmatprep.subr.mxu0 0.0
    %8624 = vmatpush1.msra.mxu0 %v8000
    %8625 = vmatprep.subr.mxu0 0.0
    %8626 = vmatpush1.msra.mxu0 %v7999
    %8627 = vmatprep.subr.mxu0 0.0
    %8628 = vmatpush2.msra.mxu0 0.0
    %8629 = vmatprep.subr.mxu0 0.0
    %8630 = vmatpush2.msra.mxu0 0.0
    %8631 = vmatprep.subr.mxu0 0.0
    %8632 = vmatpush2.msra.mxu0 0.0
    %8633 = vmatprep.subr.mxu0 0.0
    %8634 = vmatpush2.msra.mxu0 0.0
    %8635 = vmatprep.subr.mxu0 0.0
    %8636 = vmatpush2.msra.mxu0 0.0
    %8637 = vmatprep.subr.mxu0 0.0
    %8638 = vmatpush2.msra.mxu0 0.0
    %8639 = vmatprep.subr.mxu0 0.0
    %8640 = vmatpush2.msra.mxu0 0.0
    %8641 = vmatprep.subr.mxu0 0.0
    %8642 = vmatpush2.msra.mxu0 0.0
    %8643 = vmatprep.subr.mxu0 0.0
    %8644 = vmatpush2.msra.mxu0 0.0
    %8645 = vmatprep.subr.mxu0 0.0
    %8646 = vmatpush2.msra.mxu0 0.0
    %8647 = vmatprep.subr.mxu0 0.0
    %8648 = vmatpush2.msra.mxu0 0.0
    %8649 = vmatprep.subr.mxu0 0.0
    %8650 = vmatpush2.msra.mxu0 0.0
    %8651 = vmatprep.subr.mxu0 0.0
    %8652 = vmatpush2.msra.mxu0 0.0
    %8653 = vmatprep.subr.mxu0 0.0
    %8654 = vmatpush2.msra.mxu0 0.0
    %8655 = vmatprep.subr.mxu0 0.0
    %8656 = vmatpush2.msra.mxu0 0.0
    %8657 = vmatprep.subr.mxu0 0.0
    %8658 = vmatpush2.msra.mxu0 0.0
    %8659 = vmatprep.mubr.f32.mxu0 0.0
    %8660 = vmatmul.mubr.f32.gmra.mxu0 %v7743
    %v8661 = vpop.f32.mrf.mxu0
    %v8662 = vadd.f32 %v8517, %v8661
    %v8663 = vpop.f32.mrf.mxu0
    %8664 = vmatprep.mubr.f32.mxu0 0.0
    %8665 = vmatmul.mubr.f32.gmra.mxu0 %v7744
    %v8666 = vpop.f32.mrf.mxu0
    %v8667 = vadd.f32 %v8522, %v8666
    %v8668 = vpop.f32.mrf.mxu0
    %8669 = vmatprep.mubr.f32.mxu0 0.0
    %8670 = vmatmul.mubr.f32.gmra.mxu0 %v7745
    %v8671 = vpop.f32.mrf.mxu0
    %v8672 = vadd.f32 %v8527, %v8671
    %v8673 = vpop.f32.mrf.mxu0
    %8674 = vmatprep.mubr.f32.mxu0 0.0
    %8675 = vmatmul.mubr.f32.gmra.mxu0 %v7746
    %v8676 = vpop.f32.mrf.mxu0
    %v8677 = vadd.f32 %v8532, %v8676
    %v8678 = vpop.f32.mrf.mxu0
    %8679 = vmatprep.mubr.f32.mxu0 0.0
    %8680 = vmatmul.mubr.f32.gmra.mxu0 %v7747
    %v8681 = vpop.f32.mrf.mxu0
    %v8682 = vadd.f32 %v8537, %v8681
    %v8683 = vpop.f32.mrf.mxu0
    %8684 = vmatprep.mubr.f32.mxu0 0.0
    %8685 = vmatmul.mubr.f32.gmra.mxu0 %v7748
    %v8686 = vpop.f32.mrf.mxu0
    %v8687 = vadd.f32 %v8542, %v8686
    %v8688 = vpop.f32.mrf.mxu0
    %8689 = vmatprep.mubr.f32.mxu0 0.0
    %8690 = vmatmul.mubr.f32.gmra.mxu0 %v7749
    %v8691 = vpop.f32.mrf.mxu0
    %v8692 = vadd.f32 %v8547, %v8691
    %v8693 = vpop.f32.mrf.mxu0
    %8694 = vmatprep.mubr.f32.mxu0 0.0
    %8695 = vmatmul.mubr.f32.gmra.mxu0 %v7750
    %v8696 = vpop.f32.mrf.mxu0
    %v8697 = vadd.f32 %v8552, %v8696
    %v8698 = vpop.f32.mrf.mxu0
    %8699 = vmatprep.mubr.f32.mxu0 0.0
    %8700 = vmatmul.mubr.f32.gmra.mxu0 %v7751
    %v8701 = vpop.f32.mrf.mxu0
    %v8702 = vadd.f32 %v8557, %v8701
    %v8703 = vpop.f32.mrf.mxu0
    %8704 = vmatprep.mubr.f32.mxu0 0.0
    %8705 = vmatmul.mubr.f32.gmra.mxu0 %v7752
    %v8706 = vpop.f32.mrf.mxu0
    %v8707 = vadd.f32 %v8562, %v8706
    %v8708 = vpop.f32.mrf.mxu0
    %8709 = vmatprep.mubr.f32.mxu0 0.0
    %8710 = vmatmul.mubr.f32.gmra.mxu0 %v7753
    %v8711 = vpop.f32.mrf.mxu0
    %v8712 = vadd.f32 %v8567, %v8711
    %v8713 = vpop.f32.mrf.mxu0
    %8714 = vmatprep.mubr.f32.mxu0 0.0
    %8715 = vmatmul.mubr.f32.gmra.mxu0 %v7754
    %v8716 = vpop.f32.mrf.mxu0
    %v8717 = vadd.f32 %v8572, %v8716
    %v8718 = vpop.f32.mrf.mxu0
    %8719 = vmatprep.mubr.f32.mxu0 0.0
    %8720 = vmatmul.mubr.f32.gmra.mxu0 %v7755
    %v8721 = vpop.f32.mrf.mxu0
    %v8722 = vadd.f32 %v8577, %v8721
    %v8723 = vpop.f32.mrf.mxu0
    %8724 = vmatprep.mubr.f32.mxu0 0.0
    %8725 = vmatmul.mubr.f32.gmra.mxu0 %v7756
    %v8726 = vpop.f32.mrf.mxu0
    %v8727 = vadd.f32 %v8582, %v8726
    %v8728 = vpop.f32.mrf.mxu0
    %8729 = vmatprep.mubr.f32.mxu0 0.0
    %8730 = vmatmul.mubr.f32.gmra.mxu0 %v7757
    %v8731 = vpop.f32.mrf.mxu0
    %v8732 = vadd.f32 %v8587, %v8731
    %v8733 = vpop.f32.mrf.mxu0
    %8734 = vmatprep.mubr.f32.mxu0 0.0
    %8735 = vmatmul.mubr.f32.gmra.mxu0 %v7758
    %v8736 = vpop.f32.mrf.mxu0
    %v8737 = vadd.f32 %v8592, %v8736
    %v8738 = vpop.f32.mrf.mxu0
    %8739 = vdwg.mxu0
    %8740 = vst [vmem:[%s3] sm:$0xff] %v8662
    %8741 = vst [vmem:[%s3 + $0x8] sm:$0xff] %v8667
    %8742 = vst [vmem:[%s3 + $0x10] sm:$0xff] %v8672
    %8743 = vst [vmem:[%s3 + $0x18] sm:$0xff] %v8677
    %8744 = vst [vmem:[%s3 + $0x20] sm:$0xff] %v8682
    %8745 = vst [vmem:[%s3 + $0x28] sm:$0xff] %v8687
    %8746 = vst [vmem:[%s3 + $0x30] sm:$0xff] %v8692
    %8747 = vst [vmem:[%s3 + $0x38] sm:$0xff] %v8697
    %8748 = vst [vmem:[%s3 + $0x40] sm:$0xff] %v8702
    %8749 = vst [vmem:[%s3 + $0x48] sm:$0xff] %v8707
    %8750 = vst [vmem:[%s3 + $0x50] sm:$0xff] %v8712
    %8751 = vst [vmem:[%s3 + $0x58] sm:$0xff] %v8717
    %8752 = vst [vmem:[%s3 + $0x60] sm:$0xff] %v8722
    %8753 = vst [vmem:[%s3 + $0x68] sm:$0xff] %v8727
    %8754 = vst [vmem:[%s3 + $0x70] sm:$0xff] %v8732
    %8755 = vst [vmem:[%s3 + $0x78] sm:$0xff] %v8737
    // Predicated region
    $region22: #{kan_forward.1} parent=1 // pred_check
      _
    $region23: #{kan_forward.1} parent=1 // pred_check_branch
      %8757 = sbr.rel (0) target = $region25
    $region24: #{kan_forward.1} parent=1 // pred_region
      _
    $region25: #{kan_forward.1} parent=1 // pred_fallthru
      _
    // Predicated region
    $region26: #{kan_forward.1} parent=1 // pred_check
      _
    $region27: #{kan_forward.1} parent=1 // pred_check_branch
      %8759 = sbr.rel (0) target = $region29
    $region28: #{kan_forward.1} parent=1 // pred_region
      _
    $region29: #{kan_forward.1} parent=1 // pred_fallthru
      _
    %8760 = vsyncpa [#allocation3], 1
    %8761 = vsyncpa [#allocation5], 1

</llo_original>
